<compile_context>
chip_gen: v7x
topology: tpu7x:2x2x1
jax: 0.10.0
libtpu: 0.0.40
codegen_flags: <defaults>
</compile_context>

<pallas_src>
import math
from functools import partial

import numpy as np
import jax
import jax.numpy as jnp
from jax import lax
from jax.experimental import pallas as pl
from jax.experimental.pallas import tpu as pltpu


def _gelu(v):
    c = math.sqrt(2.0 / math.pi)
    return 0.5 * v * (1.0 + jnp.tanh(c * (v + 0.044715 * v * v * v)))


# --------------------------------------------------------------------------- kernel

def _up_block_kernel(x_ref, skip_ref, wt_ref, bt_ref, s_ref,
                     w1u_ref, w1s_ref, b1_ref, w2_ref, b2_ref, mask_ref,
                     o_ref, u_scr, y1_scr, *, wf, l1, lext, ho2, wo2, cm):
    # ---- ConvTranspose2d(2,2,stride=2): 4 phase matmuls, scattered (interleave +
    #      zero-pad-1) into the conv1 input frame via constant scatter matrices.
    x = x_ref[0]                                            # (Cin, H*W)
    u = None
    for p in range(4):
        ph = jnp.dot(wt_ref[p], x, preferred_element_type=jnp.float32) + bt_ref[...]
        sc = jnp.dot(ph, s_ref[p], preferred_element_type=jnp.float32)   # (Cout, Lext)
        u = sc if u is None else u + sc
    u_scr[...] = u                                          # frame: zeros on border/margin

    # ---- Conv2d(2*Cout, Cout, 3, padding=1): 9 shifted taps, split-K over [u | skip].
    acc1 = None
    for t in range(9):
        dh, dw = divmod(t, 3)
        s0 = dh * wf + dw
        a = jnp.dot(w1u_ref[t], u_scr[:, s0:s0 + l1], preferred_element_type=jnp.float32)
        a = a + jnp.dot(w1s_ref[t], skip_ref[0, :, s0:s0 + l1],
                        preferred_element_type=jnp.float32)
        acc1 = a if acc1 is None else acc1 + a
    acc1 = _gelu(acc1 + b1_ref[...])                        # (Cout, L1), valid rows<2H cols<2W

    y1_scr[:, l1:] = jnp.zeros((cm, lext - l1), jnp.float32)
    y1_scr[:, :l1] = acc1

    # ---- Conv2d(Cout, Cout, 3, padding=0): 9 shifted taps.
    acc2 = None
    for t in range(9):
        dh, dw = divmod(t, 3)
        s0 = dh * wf + dw
        a = jnp.dot(w2_ref[t], y1_scr[:, s0:s0 + l1], preferred_element_type=jnp.float32)
        acc2 = a if acc2 is None else acc2 + a
    acc2 = _gelu(acc2 + b2_ref[...])                        # valid rows<2H-2 cols<2W-2

    # ---- nn.LayerNorm([c, h, w]) built fresh in forward: weight=1, bias=0, eps=1e-5.
    valid = mask_ref[...] > 0.5                             # (1, L1)
    cnt = float(cm * ho2 * wo2)
    xs = jnp.where(valid, acc2, 0.0)
    mean = jnp.sum(xs) * (1.0 / cnt)
    d = jnp.where(valid, acc2 - mean, 0.0)
    var = jnp.sum(d * d) * (1.0 / cnt)
    o_ref[0] = (acc2 - mean) * lax.rsqrt(var + 1e-5)


# --------------------------------------------------------------------------- glue

def _center_crop_nchw(x, th, tw):
    """torchvision.transforms.functional.center_crop semantics on NCHW."""
    _, _, H, W = x.shape
    if tw > W or th > H:
        pad_l = (tw - W) // 2 if tw > W else 0
        pad_t = (th - H) // 2 if th > H else 0
        pad_r = (tw - W + 1) // 2 if tw > W else 0
        pad_b = (th - H + 1) // 2 if th > H else 0
        x = jnp.pad(x, ((0, 0), (0, 0), (pad_t, pad_b), (pad_l, pad_r)))
        _, _, H, W = x.shape
        if th == H and tw == W:
            return x
    top = int(round((H - th) / 2.0))      # matches torchvision (Python round)
    left = int(round((W - tw) / 2.0))
    return x[:, :, top:top + th, left:left + tw]


def up_forward(params, x, skip):
    """Up forward: x (B,Cin,H,W), skip (B,Cout,Hs,Ws) -> (B,Cout,2H-2,2W-2), NCHW."""
    x = x.astype(jnp.float32)
    skip = skip.astype(jnp.float32)
    B, Cin, H, W = x.shape
    wt, bt = params['up_w'], params['up_b']          # (Cin,Cout,2,2), (Cout,)
    w1, b1 = params['w1'], params['b1']              # (Cout,2*Cout,3,3), (Cout,)
    w2, b2 = params['w2'], params['b2']              # (Cout,Cout,3,3), (Cout,)
    Cout = wt.shape[1]
    Cm = w1.shape[0]
    assert Cm == Cout and w1.shape[1] == 2 * Cout

    HU, WU = 2 * H, 2 * W                            # ConvTranspose output size
    Hf, Wf = HU + 2, WU + 2                          # conv1 zero-pad-1 frame
    L1 = Hf * Wf
    Lext = ((L1 + 2 * Wf + 2 + 127) // 128) * 128    # tail margin for shifted tap slices
    Ho2, Wo2 = HU - 2, WU - 2                        # conv2 (padding=0) output size
    HW = H * W

    # ---- cheap static XLA glue: crop skip and place it in the padded flat frame.
    skip_c = _center_crop_nchw(skip, HU, WU)                                 # (B,Cout,HU,WU)
    skip_f = jnp.pad(skip_c, ((0, 0), (0, 0), (1, 1), (1, 1))).reshape(B, Cout, L1)
    skip_f = jnp.pad(skip_f, ((0, 0), (0, 0), (0, Lext - L1)))
    x_flat = x.reshape(B, Cin, HW)

    # ---- constants: scatter matrices (phase grid -> padded frame) and LN valid mask.
    s_np = np.zeros((4, HW, Lext), np.float32)
    ii, jj = np.meshgrid(np.arange(H), np.arange(W), indexing='ij')
    src = (ii * W + jj).ravel()
    for a in range(2):
        for b in range(2):
            dst = ((1 + 2 * ii + a) * Wf + (1 + 2 * jj + b)).ravel()
            s_np[2 * a + b, src, dst] = 1.0
    s_mat = jnp.asarray(s_np)

    rows = np.arange(L1) // Wf
    cols = np.arange(L1) % Wf
    mask = jnp.asarray(((rows < Ho2) & (cols < Wo2)).astype(np.float32)[None, :])

    # ---- tiny one-time weight repacks (tap-major, matmul-ready).
    wt4 = jnp.transpose(wt, (2, 3, 1, 0)).reshape(4, Cout, Cin)        # [2a+b, co, ci]
    w1_t = jnp.transpose(w1, (2, 3, 0, 1)).reshape(9, Cm, 2 * Cout)    # [3dh+dw, m, c]
    w1u, w1s = w1_t[:, :, :Cout], w1_t[:, :, Cout:]                    # cat order: (x, skip)
    w2_t = jnp.transpose(w2, (2, 3, 0, 1)).reshape(9, Cm, Cm)
    bt2, b12, b22 = bt.reshape(Cout, 1), b1.reshape(Cm, 1), b2.reshape(Cm, 1)

    kernel = partial(_up_block_kernel, wf=Wf, l1=L1, lext=Lext, ho2=Ho2, wo2=Wo2, cm=Cm)
    out_flat = pl.pallas_call(
        kernel,
        out_shape=jax.ShapeDtypeStruct((B, Cm, L1), jnp.float32),
        grid=(B,),
        in_specs=[
            pl.BlockSpec((1, Cin, HW), lambda i: (i, 0, 0)),      # x (flat spatial)
            pl.BlockSpec((1, Cout, Lext), lambda i: (i, 0, 0)),   # skip frame
            pl.BlockSpec((4, Cout, Cin), lambda i: (0, 0, 0)),    # upconv phase weights
            pl.BlockSpec((Cout, 1), lambda i: (0, 0)),            # upconv bias
            pl.BlockSpec((4, HW, Lext), lambda i: (0, 0, 0)),     # scatter matrices
            pl.BlockSpec((9, Cm, Cout), lambda i: (0, 0, 0)),     # conv1 taps (u half)
            pl.BlockSpec((9, Cm, Cout), lambda i: (0, 0, 0)),     # conv1 taps (skip half)
            pl.BlockSpec((Cm, 1), lambda i: (0, 0)),              # conv1 bias
            pl.BlockSpec((9, Cm, Cm), lambda i: (0, 0, 0)),       # conv2 taps
            pl.BlockSpec((Cm, 1), lambda i: (0, 0)),              # conv2 bias
            pl.BlockSpec((1, L1), lambda i: (0, 0)),              # LayerNorm valid mask
        ],
        out_specs=pl.BlockSpec((1, Cm, L1), lambda i: (i, 0, 0)),
        scratch_shapes=[pltpu.VMEM((Cout, Lext), jnp.float32),    # up-conv frame
                        pltpu.VMEM((Cm, Lext), jnp.float32)],     # conv1 output frame
        compiler_params=pltpu.CompilerParams(dimension_semantics=("parallel",)),
    )(x_flat, skip_f, wt4, bt2, s_mat, w1u, w1s, b12, w2_t, b22, mask)

    # Valid-region extraction: free reshape (adjacent-dim split) + cheap static slice.
    return out_flat.reshape(B, Cm, Hf, Wf)[:, :, :Ho2, :Wo2]


# --------------------------------------------------------------------------- reference

def _ref_up_forward(params, x, skip):
    """Pure-JAX reference mirroring the PyTorch module (same tanh-GELU)."""
    wt, bt = params['up_w'], params['up_b']
    w1, b1 = params['w1'], params['b1']
    w2, b2 = params['w2'], params['b2']
    B, Cin, H, W = x.shape
    Cout = wt.shape[1]

    # ConvTranspose2d(Cin, Cout, 2, 2): out[n,co,2i+a,2j+b] = sum_ci x[n,ci,i,j]*wt[ci,co,a,b]+bt
    u = jnp.einsum('ncij,coab->noiajb', x, wt, precision=lax.Precision.HIGHEST)
    u = u.reshape(B, Cout, 2 * H, 2 * W) + bt[None, :, None, None]

    sk = _center_crop_nchw(skip, 2 * H, 2 * W)
    cat = jnp.concatenate([u, sk], axis=1)

    def conv(z, w, b, pad):
        y = lax.conv_general_dilated(z, w, (1, 1), ((pad, pad), (pad, pad)),
                                     dimension_numbers=('NCHW', 'OIHW', 'NCHW'),
                                     precision=lax.Precision.HIGHEST)
        return y + b[None, :, None, None]

    y = _gelu(conv(cat, w1, b1, 1))
    y = _gelu(conv(y, w2, b2, 0))
    mean = jnp.mean(y, axis=(1, 2, 3), keepdims=True)
    var = jnp.mean(jnp.square(y - mean), axis=(1, 2, 3), keepdims=True)
    return (y - mean) * lax.rsqrt(var + 1e-5)


# --------------------------------------------------------------------------- main

if __name__ == "__main__":
    key = jax.random.PRNGKey(0)
    k = jax.random.split(key, 8)

    B, Cin, Cout = 2, 16, 8          # Up(in_channels=16, out_channels=8)
    H = W = 8                        # x spatial; skip is larger and gets center-cropped

    params = {
        'up_w': 0.1 * jax.random.normal(k[0], (Cin, Cout, 2, 2), jnp.float32),
        'up_b': 0.1 * jax.random.normal(k[1], (Cout,), jnp.float32),
        'w1':   0.1 * jax.random.normal(k[2], (Cout, 2 * Cout, 3, 3), jnp.float32),
        'b1':   0.1 * jax.random.normal(k[3], (Cout,), jnp.float32),
        'w2':   0.1 * jax.random.normal(k[4], (Cout, Cout, 3, 3), jnp.float32),
        'b2':   0.1 * jax.random.normal(k[5], (Cout,), jnp.float32),
    }
    x = jax.random.normal(k[6], (B, Cin, H, W), jnp.float32)
    skip = jax.random.normal(k[7], (B, Cout, 2 * H + 2, 2 * W + 2), jnp.float32)

    out = jax.jit(up_forward)(params, x, skip)
    out = jax.block_until_ready(out)

    assert out.shape == (B, Cout, 2 * H - 2, 2 * W - 2), out.shape
    assert bool(jnp.all(jnp.isfinite(out)))

    ref = _ref_up_forward(params, x, skip)
    err = float(jnp.max(jnp.abs(out - ref)))
    assert err < 5e-2, f"max abs err vs reference: {err}"

    print("KERNEL_OK")
</pallas_src>

<mosaic_0001>
module attributes {stable_mosaic.version = 11 : i64} {
  func.func @_up_block_kernel(%arg0: i32, %arg1: memref<1x16x64xf32, #tpu.memory_space<vmem>>, %arg2: memref<1x8x384xf32, #tpu.memory_space<vmem>>, %arg3: memref<4x8x16xf32, #tpu.memory_space<vmem>>, %arg4: memref<8x1xf32, #tpu.memory_space<vmem>>, %arg5: memref<4x64x384xf32, #tpu.memory_space<vmem>>, %arg6: memref<9x8x8xf32, #tpu.memory_space<vmem>>, %arg7: memref<9x8x8xf32, #tpu.memory_space<vmem>>, %arg8: memref<8x1xf32, #tpu.memory_space<vmem>>, %arg9: memref<9x8x8xf32, #tpu.memory_space<vmem>>, %arg10: memref<8x1xf32, #tpu.memory_space<vmem>>, %arg11: memref<1x324xf32, #tpu.memory_space<vmem>>, %arg12: memref<1x8x324xf32, #tpu.memory_space<vmem>>, %arg13: memref<8x384xf32, #tpu.memory_space<vmem>>, %arg14: memref<8x384xf32, #tpu.memory_space<vmem>>) attributes {dimension_semantics = [#tpu.dimension_semantics<parallel>], iteration_bounds = array<i64: 2>, scalar_prefetch = 0 : i64, scratch_operands = 2 : i64, tpu.core_type = #tpu.core_type<tc>, window_params = [{transform_indices = @transform_0, window_bounds = array<i64: 1, 16, 64>}, {transform_indices = @transform_1, window_bounds = array<i64: 1, 8, 384>}, {pipeline_mode = #tpu.pipeline_mode<synchronous>, transform_indices = @transform_2, window_bounds = array<i64: 4, 8, 16>}, {pipeline_mode = #tpu.pipeline_mode<synchronous>, transform_indices = @transform_3, window_bounds = array<i64: 8, 1>}, {pipeline_mode = #tpu.pipeline_mode<synchronous>, transform_indices = @transform_4, window_bounds = array<i64: 4, 64, 384>}, {pipeline_mode = #tpu.pipeline_mode<synchronous>, transform_indices = @transform_5, window_bounds = array<i64: 9, 8, 8>}, {pipeline_mode = #tpu.pipeline_mode<synchronous>, transform_indices = @transform_6, window_bounds = array<i64: 9, 8, 8>}, {pipeline_mode = #tpu.pipeline_mode<synchronous>, transform_indices = @transform_7, window_bounds = array<i64: 8, 1>}, {pipeline_mode = #tpu.pipeline_mode<synchronous>, transform_indices = @transform_8, window_bounds = array<i64: 9, 8, 8>}, {pipeline_mode = #tpu.pipeline_mode<synchronous>, transform_indices = @transform_9, window_bounds = array<i64: 8, 1>}, {pipeline_mode = #tpu.pipeline_mode<synchronous>, transform_indices = @transform_10, window_bounds = array<i64: 1, 324>}, {transform_indices = @transform_11, window_bounds = array<i64: 1, 8, 324>}]} {
    %c0 = arith.constant 0 : index
    %c0_0 = arith.constant 0 : index
    %c0_1 = arith.constant 0 : index
    %0 = vector.load %arg1[%c0, %c0_0, %c0_1] : memref<1x16x64xf32, #tpu.memory_space<vmem>>, vector<1x16x64xf32>
    %1 = vector.shape_cast %0 : vector<1x16x64xf32> to vector<16x64xf32>
    %c0_2 = arith.constant 0 : index
    %c0_3 = arith.constant 0 : index
    %c0_4 = arith.constant 0 : index
    %2 = vector.load %arg3[%c0_2, %c0_3, %c0_4] : memref<4x8x16xf32, #tpu.memory_space<vmem>>, vector<1x8x16xf32>
    %3 = vector.shape_cast %2 : vector<1x8x16xf32> to vector<8x16xf32>
    %cst = arith.constant dense<0.000000e+00> : vector<8x64xf32>
    %4 = tpu.matmul %3, %1, %cst {dimension_numbers = #tpu.dot_dimension_numbers<[1], [0], [0], [1], [0, 0, 1, 1], [], []>} : vector<8x16xf32>, vector<16x64xf32>, vector<8x64xf32> -> vector<8x64xf32>
    %c0_5 = arith.constant 0 : index
    %c0_6 = arith.constant 0 : index
    %5 = vector.load %arg4[%c0_5, %c0_6] : memref<8x1xf32, #tpu.memory_space<vmem>>, vector<8x1xf32>
    %6 = vector.broadcast %5 : vector<8x1xf32> to vector<8x64xf32>
    %7 = arith.addf %4, %6 : vector<8x64xf32>
    %c0_7 = arith.constant 0 : index
    %c0_8 = arith.constant 0 : index
    %c0_9 = arith.constant 0 : index
    %8 = vector.load %arg5[%c0_7, %c0_8, %c0_9] : memref<4x64x384xf32, #tpu.memory_space<vmem>>, vector<1x64x384xf32>
    %9 = vector.shape_cast %8 : vector<1x64x384xf32> to vector<64x384xf32>
    %cst_10 = arith.constant dense<0.000000e+00> : vector<8x384xf32>
    %10 = tpu.matmul %7, %9, %cst_10 {dimension_numbers = #tpu.dot_dimension_numbers<[1], [0], [0], [1], [0, 0, 1, 1], [], []>} : vector<8x64xf32>, vector<64x384xf32>, vector<8x384xf32> -> vector<8x384xf32>
    %c1 = arith.constant 1 : index
    %c0_11 = arith.constant 0 : index
    %c0_12 = arith.constant 0 : index
    %11 = vector.load %arg3[%c1, %c0_11, %c0_12] : memref<4x8x16xf32, #tpu.memory_space<vmem>>, vector<1x8x16xf32>
    %12 = vector.shape_cast %11 : vector<1x8x16xf32> to vector<8x16xf32>
    %cst_13 = arith.constant dense<0.000000e+00> : vector<8x64xf32>
    %13 = tpu.matmul %12, %1, %cst_13 {dimension_numbers = #tpu.dot_dimension_numbers<[1], [0], [0], [1], [0, 0, 1, 1], [], []>} : vector<8x16xf32>, vector<16x64xf32>, vector<8x64xf32> -> vector<8x64xf32>
    %c0_14 = arith.constant 0 : index
    %c0_15 = arith.constant 0 : index
    %14 = vector.load %arg4[%c0_14, %c0_15] : memref<8x1xf32, #tpu.memory_space<vmem>>, vector<8x1xf32>
    %15 = vector.broadcast %14 : vector<8x1xf32> to vector<8x64xf32>
    %16 = arith.addf %13, %15 : vector<8x64xf32>
    %c1_16 = arith.constant 1 : index
    %c0_17 = arith.constant 0 : index
    %c0_18 = arith.constant 0 : index
    %17 = vector.load %arg5[%c1_16, %c0_17, %c0_18] : memref<4x64x384xf32, #tpu.memory_space<vmem>>, vector<1x64x384xf32>
    %18 = vector.shape_cast %17 : vector<1x64x384xf32> to vector<64x384xf32>
    %cst_19 = arith.constant dense<0.000000e+00> : vector<8x384xf32>
    %19 = tpu.matmul %16, %18, %cst_19 {dimension_numbers = #tpu.dot_dimension_numbers<[1], [0], [0], [1], [0, 0, 1, 1], [], []>} : vector<8x64xf32>, vector<64x384xf32>, vector<8x384xf32> -> vector<8x384xf32>
    %20 = arith.addf %10, %19 : vector<8x384xf32>
    %c2 = arith.constant 2 : index
    %c0_20 = arith.constant 0 : index
    %c0_21 = arith.constant 0 : index
    %21 = vector.load %arg3[%c2, %c0_20, %c0_21] : memref<4x8x16xf32, #tpu.memory_space<vmem>>, vector<1x8x16xf32>
    %22 = vector.shape_cast %21 : vector<1x8x16xf32> to vector<8x16xf32>
    %cst_22 = arith.constant dense<0.000000e+00> : vector<8x64xf32>
    %23 = tpu.matmul %22, %1, %cst_22 {dimension_numbers = #tpu.dot_dimension_numbers<[1], [0], [0], [1], [0, 0, 1, 1], [], []>} : vector<8x16xf32>, vector<16x64xf32>, vector<8x64xf32> -> vector<8x64xf32>
    %c0_23 = arith.constant 0 : index
    %c0_24 = arith.constant 0 : index
    %24 = vector.load %arg4[%c0_23, %c0_24] : memref<8x1xf32, #tpu.memory_space<vmem>>, vector<8x1xf32>
    %25 = vector.broadcast %24 : vector<8x1xf32> to vector<8x64xf32>
    %26 = arith.addf %23, %25 : vector<8x64xf32>
    %c2_25 = arith.constant 2 : index
    %c0_26 = arith.constant 0 : index
    %c0_27 = arith.constant 0 : index
    %27 = vector.load %arg5[%c2_25, %c0_26, %c0_27] : memref<4x64x384xf32, #tpu.memory_space<vmem>>, vector<1x64x384xf32>
    %28 = vector.shape_cast %27 : vector<1x64x384xf32> to vector<64x384xf32>
    %cst_28 = arith.constant dense<0.000000e+00> : vector<8x384xf32>
    %29 = tpu.matmul %26, %28, %cst_28 {dimension_numbers = #tpu.dot_dimension_numbers<[1], [0], [0], [1], [0, 0, 1, 1], [], []>} : vector<8x64xf32>, vector<64x384xf32>, vector<8x384xf32> -> vector<8x384xf32>
    %30 = arith.addf %20, %29 : vector<8x384xf32>
    %c3 = arith.constant 3 : index
    %c0_29 = arith.constant 0 : index
    %c0_30 = arith.constant 0 : index
    %31 = vector.load %arg3[%c3, %c0_29, %c0_30] : memref<4x8x16xf32, #tpu.memory_space<vmem>>, vector<1x8x16xf32>
    %32 = vector.shape_cast %31 : vector<1x8x16xf32> to vector<8x16xf32>
    %cst_31 = arith.constant dense<0.000000e+00> : vector<8x64xf32>
    %33 = tpu.matmul %32, %1, %cst_31 {dimension_numbers = #tpu.dot_dimension_numbers<[1], [0], [0], [1], [0, 0, 1, 1], [], []>} : vector<8x16xf32>, vector<16x64xf32>, vector<8x64xf32> -> vector<8x64xf32>
    %c0_32 = arith.constant 0 : index
    %c0_33 = arith.constant 0 : index
    %34 = vector.load %arg4[%c0_32, %c0_33] : memref<8x1xf32, #tpu.memory_space<vmem>>, vector<8x1xf32>
    %35 = vector.broadcast %34 : vector<8x1xf32> to vector<8x64xf32>
    %36 = arith.addf %33, %35 : vector<8x64xf32>
    %c3_34 = arith.constant 3 : index
    %c0_35 = arith.constant 0 : index
    %c0_36 = arith.constant 0 : index
    %37 = vector.load %arg5[%c3_34, %c0_35, %c0_36] : memref<4x64x384xf32, #tpu.memory_space<vmem>>, vector<1x64x384xf32>
    %38 = vector.shape_cast %37 : vector<1x64x384xf32> to vector<64x384xf32>
    %cst_37 = arith.constant dense<0.000000e+00> : vector<8x384xf32>
    %39 = tpu.matmul %36, %38, %cst_37 {dimension_numbers = #tpu.dot_dimension_numbers<[1], [0], [0], [1], [0, 0, 1, 1], [], []>} : vector<8x64xf32>, vector<64x384xf32>, vector<8x384xf32> -> vector<8x384xf32>
    %40 = arith.addf %30, %39 : vector<8x384xf32>
    %c0_38 = arith.constant 0 : index
    %c0_39 = arith.constant 0 : index
    %41 = vector.load %arg13[%c0_38, %c0_39] : memref<8x384xf32, #tpu.memory_space<vmem>>, vector<8x384xf32>
    tpu.vector_store %arg13[%c0_38, %c0_39], %40 {strides = array<i32>} : memref<8x384xf32, #tpu.memory_space<vmem>>, vector<8x384xf32>,
    %c0_40 = arith.constant 0 : index
    %c0_41 = arith.constant 0 : index
    %c0_42 = arith.constant 0 : index
    %42 = vector.load %arg6[%c0_40, %c0_41, %c0_42] : memref<9x8x8xf32, #tpu.memory_space<vmem>>, vector<1x8x8xf32>
    %43 = vector.shape_cast %42 : vector<1x8x8xf32> to vector<8x8xf32>
    %c0_43 = arith.constant 0 : index
    %c0_44 = arith.constant 0 : index
    %44 = vector.load %arg13[%c0_43, %c0_44] : memref<8x384xf32, #tpu.memory_space<vmem>>, vector<8x324xf32>
    %cst_45 = arith.constant dense<0.000000e+00> : vector<8x324xf32>
    %45 = tpu.matmul %43, %44, %cst_45 {dimension_numbers = #tpu.dot_dimension_numbers<[1], [0], [0], [1], [0, 0, 1, 1], [], []>} : vector<8x8xf32>, vector<8x324xf32>, vector<8x324xf32> -> vector<8x324xf32>
    %c0_46 = arith.constant 0 : index
    %c0_47 = arith.constant 0 : index
    %c0_48 = arith.constant 0 : index
    %46 = vector.load %arg7[%c0_46, %c0_47, %c0_48] : memref<9x8x8xf32, #tpu.memory_space<vmem>>, vector<1x8x8xf32>
    %47 = vector.shape_cast %46 : vector<1x8x8xf32> to vector<8x8xf32>
    %c0_49 = arith.constant 0 : index
    %c0_50 = arith.constant 0 : index
    %c0_51 = arith.constant 0 : index
    %48 = vector.load %arg2[%c0_49, %c0_50, %c0_51] : memref<1x8x384xf32, #tpu.memory_space<vmem>>, vector<1x8x324xf32>
    %49 = vector.shape_cast %48 : vector<1x8x324xf32> to vector<8x324xf32>
    %cst_52 = arith.constant dense<0.000000e+00> : vector<8x324xf32>
    %50 = tpu.matmul %47, %49, %cst_52 {dimension_numbers = #tpu.dot_dimension_numbers<[1], [0], [0], [1], [0, 0, 1, 1], [], []>} : vector<8x8xf32>, vector<8x324xf32>, vector<8x324xf32> -> vector<8x324xf32>
    %51 = arith.addf %45, %50 : vector<8x324xf32>
    %c1_53 = arith.constant 1 : index
    %c0_54 = arith.constant 0 : index
    %c0_55 = arith.constant 0 : index
    %52 = vector.load %arg6[%c1_53, %c0_54, %c0_55] : memref<9x8x8xf32, #tpu.memory_space<vmem>>, vector<1x8x8xf32>
    %53 = vector.shape_cast %52 : vector<1x8x8xf32> to vector<8x8xf32>
    %c0_56 = arith.constant 0 : index
    %c1_57 = arith.constant 1 : index
    %54 = vector.load %arg13[%c0_56, %c1_57] : memref<8x384xf32, #tpu.memory_space<vmem>>, vector<8x324xf32>
    %cst_58 = arith.constant dense<0.000000e+00> : vector<8x324xf32>
    %55 = tpu.matmul %53, %54, %cst_58 {dimension_numbers = #tpu.dot_dimension_numbers<[1], [0], [0], [1], [0, 0, 1, 1], [], []>} : vector<8x8xf32>, vector<8x324xf32>, vector<8x324xf32> -> vector<8x324xf32>
    %c1_59 = arith.constant 1 : index
    %c0_60 = arith.constant 0 : index
    %c0_61 = arith.constant 0 : index
    %56 = vector.load %arg7[%c1_59, %c0_60, %c0_61] : memref<9x8x8xf32, #tpu.memory_space<vmem>>, vector<1x8x8xf32>
    %57 = vector.shape_cast %56 : vector<1x8x8xf32> to vector<8x8xf32>
    %c0_62 = arith.constant 0 : index
    %c0_63 = arith.constant 0 : index
    %c1_64 = arith.constant 1 : index
    %58 = vector.load %arg2[%c0_62, %c0_63, %c1_64] : memref<1x8x384xf32, #tpu.memory_space<vmem>>, vector<1x8x324xf32>
    %59 = vector.shape_cast %58 : vector<1x8x324xf32> to vector<8x324xf32>
    %cst_65 = arith.constant dense<0.000000e+00> : vector<8x324xf32>
    %60 = tpu.matmul %57, %59, %cst_65 {dimension_numbers = #tpu.dot_dimension_numbers<[1], [0], [0], [1], [0, 0, 1, 1], [], []>} : vector<8x8xf32>, vector<8x324xf32>, vector<8x324xf32> -> vector<8x324xf32>
    %61 = arith.addf %55, %60 : vector<8x324xf32>
    %62 = arith.addf %51, %61 : vector<8x324xf32>
    %c2_66 = arith.constant 2 : index
    %c0_67 = arith.constant 0 : index
    %c0_68 = arith.constant 0 : index
    %63 = vector.load %arg6[%c2_66, %c0_67, %c0_68] : memref<9x8x8xf32, #tpu.memory_space<vmem>>, vector<1x8x8xf32>
    %64 = vector.shape_cast %63 : vector<1x8x8xf32> to vector<8x8xf32>
    %c0_69 = arith.constant 0 : index
    %c2_70 = arith.constant 2 : index
    %65 = vector.load %arg13[%c0_69, %c2_70] : memref<8x384xf32, #tpu.memory_space<vmem>>, vector<8x324xf32>
    %cst_71 = arith.constant dense<0.000000e+00> : vector<8x324xf32>
    %66 = tpu.matmul %64, %65, %cst_71 {dimension_numbers = #tpu.dot_dimension_numbers<[1], [0], [0], [1], [0, 0, 1, 1], [], []>} : vector<8x8xf32>, vector<8x324xf32>, vector<8x324xf32> -> vector<8x324xf32>
    %c2_72 = arith.constant 2 : index
    %c0_73 = arith.constant 0 : index
    %c0_74 = arith.constant 0 : index
    %67 = vector.load %arg7[%c2_72, %c0_73, %c0_74] : memref<9x8x8xf32, #tpu.memory_space<vmem>>, vector<1x8x8xf32>
    %68 = vector.shape_cast %67 : vector<1x8x8xf32> to vector<8x8xf32>
    %c0_75 = arith.constant 0 : index
    %c0_76 = arith.constant 0 : index
    %c2_77 = arith.constant 2 : index
    %69 = vector.load %arg2[%c0_75, %c0_76, %c2_77] : memref<1x8x384xf32, #tpu.memory_space<vmem>>, vector<1x8x324xf32>
    %70 = vector.shape_cast %69 : vector<1x8x324xf32> to vector<8x324xf32>
    %cst_78 = arith.constant dense<0.000000e+00> : vector<8x324xf32>
    %71 = tpu.matmul %68, %70, %cst_78 {dimension_numbers = #tpu.dot_dimension_numbers<[1], [0], [0], [1], [0, 0, 1, 1], [], []>} : vector<8x8xf32>, vector<8x324xf32>, vector<8x324xf32> -> vector<8x324xf32>
    %72 = arith.addf %66, %71 : vector<8x324xf32>
    %73 = arith.addf %62, %72 : vector<8x324xf32>
    %c3_79 = arith.constant 3 : index
    %c0_80 = arith.constant 0 : index
    %c0_81 = arith.constant 0 : index
    %74 = vector.load %arg6[%c3_79, %c0_80, %c0_81] : memref<9x8x8xf32, #tpu.memory_space<vmem>>, vector<1x8x8xf32>
    %75 = vector.shape_cast %74 : vector<1x8x8xf32> to vector<8x8xf32>
    %c0_82 = arith.constant 0 : index
    %c18 = arith.constant 18 : index
    %76 = vector.load %arg13[%c0_82, %c18] : memref<8x384xf32, #tpu.memory_space<vmem>>, vector<8x324xf32>
    %cst_83 = arith.constant dense<0.000000e+00> : vector<8x324xf32>
    %77 = tpu.matmul %75, %76, %cst_83 {dimension_numbers = #tpu.dot_dimension_numbers<[1], [0], [0], [1], [0, 0, 1, 1], [], []>} : vector<8x8xf32>, vector<8x324xf32>, vector<8x324xf32> -> vector<8x324xf32>
    %c3_84 = arith.constant 3 : index
    %c0_85 = arith.constant 0 : index
    %c0_86 = arith.constant 0 : index
    %78 = vector.load %arg7[%c3_84, %c0_85, %c0_86] : memref<9x8x8xf32, #tpu.memory_space<vmem>>, vector<1x8x8xf32>
    %79 = vector.shape_cast %78 : vector<1x8x8xf32> to vector<8x8xf32>
    %c0_87 = arith.constant 0 : index
    %c0_88 = arith.constant 0 : index
    %c18_89 = arith.constant 18 : index
    %80 = vector.load %arg2[%c0_87, %c0_88, %c18_89] : memref<1x8x384xf32, #tpu.memory_space<vmem>>, vector<1x8x324xf32>
    %81 = vector.shape_cast %80 : vector<1x8x324xf32> to vector<8x324xf32>
    %cst_90 = arith.constant dense<0.000000e+00> : vector<8x324xf32>
    %82 = tpu.matmul %79, %81, %cst_90 {dimension_numbers = #tpu.dot_dimension_numbers<[1], [0], [0], [1], [0, 0, 1, 1], [], []>} : vector<8x8xf32>, vector<8x324xf32>, vector<8x324xf32> -> vector<8x324xf32>
    %83 = arith.addf %77, %82 : vector<8x324xf32>
    %84 = arith.addf %73, %83 : vector<8x324xf32>
    %c4 = arith.constant 4 : index
    %c0_91 = arith.constant 0 : index
    %c0_92 = arith.constant 0 : index
    %85 = vector.load %arg6[%c4, %c0_91, %c0_92] : memref<9x8x8xf32, #tpu.memory_space<vmem>>, vector<1x8x8xf32>
    %86 = vector.shape_cast %85 : vector<1x8x8xf32> to vector<8x8xf32>
    %c0_93 = arith.constant 0 : index
    %c19 = arith.constant 19 : index
    %87 = vector.load %arg13[%c0_93, %c19] : memref<8x384xf32, #tpu.memory_space<vmem>>, vector<8x324xf32>
    %cst_94 = arith.constant dense<0.000000e+00> : vector<8x324xf32>
    %88 = tpu.matmul %86, %87, %cst_94 {dimension_numbers = #tpu.dot_dimension_numbers<[1], [0], [0], [1], [0, 0, 1, 1], [], []>} : vector<8x8xf32>, vector<8x324xf32>, vector<8x324xf32> -> vector<8x324xf32>
    %c4_95 = arith.constant 4 : index
    %c0_96 = arith.constant 0 : index
    %c0_97 = arith.constant 0 : index
    %89 = vector.load %arg7[%c4_95, %c0_96, %c0_97] : memref<9x8x8xf32, #tpu.memory_space<vmem>>, vector<1x8x8xf32>
    %90 = vector.shape_cast %89 : vector<1x8x8xf32> to vector<8x8xf32>
    %c0_98 = arith.constant 0 : index
    %c0_99 = arith.constant 0 : index
    %c19_100 = arith.constant 19 : index
    %91 = vector.load %arg2[%c0_98, %c0_99, %c19_100] : memref<1x8x384xf32, #tpu.memory_space<vmem>>, vector<1x8x324xf32>
    %92 = vector.shape_cast %91 : vector<1x8x324xf32> to vector<8x324xf32>
    %cst_101 = arith.constant dense<0.000000e+00> : vector<8x324xf32>
    %93 = tpu.matmul %90, %92, %cst_101 {dimension_numbers = #tpu.dot_dimension_numbers<[1], [0], [0], [1], [0, 0, 1, 1], [], []>} : vector<8x8xf32>, vector<8x324xf32>, vector<8x324xf32> -> vector<8x324xf32>
    %94 = arith.addf %88, %93 : vector<8x324xf32>
    %95 = arith.addf %84, %94 : vector<8x324xf32>
    %c5 = arith.constant 5 : index
    %c0_102 = arith.constant 0 : index
    %c0_103 = arith.constant 0 : index
    %96 = vector.load %arg6[%c5, %c0_102, %c0_103] : memref<9x8x8xf32, #tpu.memory_space<vmem>>, vector<1x8x8xf32>
    %97 = vector.shape_cast %96 : vector<1x8x8xf32> to vector<8x8xf32>
    %c0_104 = arith.constant 0 : index
    %c20 = arith.constant 20 : index
    %98 = vector.load %arg13[%c0_104, %c20] : memref<8x384xf32, #tpu.memory_space<vmem>>, vector<8x324xf32>
    %cst_105 = arith.constant dense<0.000000e+00> : vector<8x324xf32>
    %99 = tpu.matmul %97, %98, %cst_105 {dimension_numbers = #tpu.dot_dimension_numbers<[1], [0], [0], [1], [0, 0, 1, 1], [], []>} : vector<8x8xf32>, vector<8x324xf32>, vector<8x324xf32> -> vector<8x324xf32>
    %c5_106 = arith.constant 5 : index
    %c0_107 = arith.constant 0 : index
    %c0_108 = arith.constant 0 : index
    %100 = vector.load %arg7[%c5_106, %c0_107, %c0_108] : memref<9x8x8xf32, #tpu.memory_space<vmem>>, vector<1x8x8xf32>
    %101 = vector.shape_cast %100 : vector<1x8x8xf32> to vector<8x8xf32>
    %c0_109 = arith.constant 0 : index
    %c0_110 = arith.constant 0 : index
    %c20_111 = arith.constant 20 : index
    %102 = vector.load %arg2[%c0_109, %c0_110, %c20_111] : memref<1x8x384xf32, #tpu.memory_space<vmem>>, vector<1x8x324xf32>
    %103 = vector.shape_cast %102 : vector<1x8x324xf32> to vector<8x324xf32>
    %cst_112 = arith.constant dense<0.000000e+00> : vector<8x324xf32>
    %104 = tpu.matmul %101, %103, %cst_112 {dimension_numbers = #tpu.dot_dimension_numbers<[1], [0], [0], [1], [0, 0, 1, 1], [], []>} : vector<8x8xf32>, vector<8x324xf32>, vector<8x324xf32> -> vector<8x324xf32>
    %105 = arith.addf %99, %104 : vector<8x324xf32>
    %106 = arith.addf %95, %105 : vector<8x324xf32>
    %c6 = arith.constant 6 : index
    %c0_113 = arith.constant 0 : index
    %c0_114 = arith.constant 0 : index
    %107 = vector.load %arg6[%c6, %c0_113, %c0_114] : memref<9x8x8xf32, #tpu.memory_space<vmem>>, vector<1x8x8xf32>
    %108 = vector.shape_cast %107 : vector<1x8x8xf32> to vector<8x8xf32>
    %c0_115 = arith.constant 0 : index
    %c36 = arith.constant 36 : index
    %109 = vector.load %arg13[%c0_115, %c36] : memref<8x384xf32, #tpu.memory_space<vmem>>, vector<8x324xf32>
    %cst_116 = arith.constant dense<0.000000e+00> : vector<8x324xf32>
    %110 = tpu.matmul %108, %109, %cst_116 {dimension_numbers = #tpu.dot_dimension_numbers<[1], [0], [0], [1], [0, 0, 1, 1], [], []>} : vector<8x8xf32>, vector<8x324xf32>, vector<8x324xf32> -> vector<8x324xf32>
    %c6_117 = arith.constant 6 : index
    %c0_118 = arith.constant 0 : index
    %c0_119 = arith.constant 0 : index
    %111 = vector.load %arg7[%c6_117, %c0_118, %c0_119] : memref<9x8x8xf32, #tpu.memory_space<vmem>>, vector<1x8x8xf32>
    %112 = vector.shape_cast %111 : vector<1x8x8xf32> to vector<8x8xf32>
    %c0_120 = arith.constant 0 : index
    %c0_121 = arith.constant 0 : index
    %c36_122 = arith.constant 36 : index
    %113 = vector.load %arg2[%c0_120, %c0_121, %c36_122] : memref<1x8x384xf32, #tpu.memory_space<vmem>>, vector<1x8x324xf32>
    %114 = vector.shape_cast %113 : vector<1x8x324xf32> to vector<8x324xf32>
    %cst_123 = arith.constant dense<0.000000e+00> : vector<8x324xf32>
    %115 = tpu.matmul %112, %114, %cst_123 {dimension_numbers = #tpu.dot_dimension_numbers<[1], [0], [0], [1], [0, 0, 1, 1], [], []>} : vector<8x8xf32>, vector<8x324xf32>, vector<8x324xf32> -> vector<8x324xf32>
    %116 = arith.addf %110, %115 : vector<8x324xf32>
    %117 = arith.addf %106, %116 : vector<8x324xf32>
    %c7 = arith.constant 7 : index
    %c0_124 = arith.constant 0 : index
    %c0_125 = arith.constant 0 : index
    %118 = vector.load %arg6[%c7, %c0_124, %c0_125] : memref<9x8x8xf32, #tpu.memory_space<vmem>>, vector<1x8x8xf32>
    %119 = vector.shape_cast %118 : vector<1x8x8xf32> to vector<8x8xf32>
    %c0_126 = arith.constant 0 : index
    %c37 = arith.constant 37 : index
    %120 = vector.load %arg13[%c0_126, %c37] : memref<8x384xf32, #tpu.memory_space<vmem>>, vector<8x324xf32>
    %cst_127 = arith.constant dense<0.000000e+00> : vector<8x324xf32>
    %121 = tpu.matmul %119, %120, %cst_127 {dimension_numbers = #tpu.dot_dimension_numbers<[1], [0], [0], [1], [0, 0, 1, 1], [], []>} : vector<8x8xf32>, vector<8x324xf32>, vector<8x324xf32> -> vector<8x324xf32>
    %c7_128 = arith.constant 7 : index
    %c0_129 = arith.constant 0 : index
    %c0_130 = arith.constant 0 : index
    %122 = vector.load %arg7[%c7_128, %c0_129, %c0_130] : memref<9x8x8xf32, #tpu.memory_space<vmem>>, vector<1x8x8xf32>
    %123 = vector.shape_cast %122 : vector<1x8x8xf32> to vector<8x8xf32>
    %c0_131 = arith.constant 0 : index
    %c0_132 = arith.constant 0 : index
    %c37_133 = arith.constant 37 : index
    %124 = vector.load %arg2[%c0_131, %c0_132, %c37_133] : memref<1x8x384xf32, #tpu.memory_space<vmem>>, vector<1x8x324xf32>
    %125 = vector.shape_cast %124 : vector<1x8x324xf32> to vector<8x324xf32>
    %cst_134 = arith.constant dense<0.000000e+00> : vector<8x324xf32>
    %126 = tpu.matmul %123, %125, %cst_134 {dimension_numbers = #tpu.dot_dimension_numbers<[1], [0], [0], [1], [0, 0, 1, 1], [], []>} : vector<8x8xf32>, vector<8x324xf32>, vector<8x324xf32> -> vector<8x324xf32>
    %127 = arith.addf %121, %126 : vector<8x324xf32>
    %128 = arith.addf %117, %127 : vector<8x324xf32>
    %c8 = arith.constant 8 : index
    %c0_135 = arith.constant 0 : index
    %c0_136 = arith.constant 0 : index
    %129 = vector.load %arg6[%c8, %c0_135, %c0_136] : memref<9x8x8xf32, #tpu.memory_space<vmem>>, vector<1x8x8xf32>
    %130 = vector.shape_cast %129 : vector<1x8x8xf32> to vector<8x8xf32>
    %c0_137 = arith.constant 0 : index
    %c38 = arith.constant 38 : index
    %131 = vector.load %arg13[%c0_137, %c38] : memref<8x384xf32, #tpu.memory_space<vmem>>, vector<8x324xf32>
    %cst_138 = arith.constant dense<0.000000e+00> : vector<8x324xf32>
    %132 = tpu.matmul %130, %131, %cst_138 {dimension_numbers = #tpu.dot_dimension_numbers<[1], [0], [0], [1], [0, 0, 1, 1], [], []>} : vector<8x8xf32>, vector<8x324xf32>, vector<8x324xf32> -> vector<8x324xf32>
    %c8_139 = arith.constant 8 : index
    %c0_140 = arith.constant 0 : index
    %c0_141 = arith.constant 0 : index
    %133 = vector.load %arg7[%c8_139, %c0_140, %c0_141] : memref<9x8x8xf32, #tpu.memory_space<vmem>>, vector<1x8x8xf32>
    %134 = vector.shape_cast %133 : vector<1x8x8xf32> to vector<8x8xf32>
    %c0_142 = arith.constant 0 : index
    %c0_143 = arith.constant 0 : index
    %c38_144 = arith.constant 38 : index
    %135 = vector.load %arg2[%c0_142, %c0_143, %c38_144] : memref<1x8x384xf32, #tpu.memory_space<vmem>>, vector<1x8x324xf32>
    %136 = vector.shape_cast %135 : vector<1x8x324xf32> to vector<8x324xf32>
    %cst_145 = arith.constant dense<0.000000e+00> : vector<8x324xf32>
    %137 = tpu.matmul %134, %136, %cst_145 {dimension_numbers = #tpu.dot_dimension_numbers<[1], [0], [0], [1], [0, 0, 1, 1], [], []>} : vector<8x8xf32>, vector<8x324xf32>, vector<8x324xf32> -> vector<8x324xf32>
    %138 = arith.addf %132, %137 : vector<8x324xf32>
    %139 = arith.addf %128, %138 : vector<8x324xf32>
    %c0_146 = arith.constant 0 : index
    %c0_147 = arith.constant 0 : index
    %140 = vector.load %arg8[%c0_146, %c0_147] : memref<8x1xf32, #tpu.memory_space<vmem>>, vector<8x1xf32>
    %141 = vector.broadcast %140 : vector<8x1xf32> to vector<8x324xf32>
    %142 = arith.addf %139, %141 : vector<8x324xf32>
    %cst_148 = arith.constant 5.000000e-01 : f32
    %143 = vector.broadcast %cst_148 : f32 to vector<8x324xf32>
    %144 = arith.mulf %143, %142 : vector<8x324xf32>
    %cst_149 = arith.constant 4.471500e-02 : f32
    %145 = vector.broadcast %cst_149 : f32 to vector<8x324xf32>
    %146 = arith.mulf %145, %142 : vector<8x324xf32>
    %147 = arith.mulf %146, %142 : vector<8x324xf32>
    %148 = arith.mulf %147, %142 : vector<8x324xf32>
    %149 = arith.addf %142, %148 : vector<8x324xf32>
    %cst_150 = arith.constant 0.797884583 : f32
    %150 = vector.broadcast %cst_150 : f32 to vector<8x324xf32>
    %151 = arith.mulf %150, %149 : vector<8x324xf32>
    %152 = math.tanh %151 : vector<8x324xf32>
    %cst_151 = arith.constant 1.000000e+00 : f32
    %153 = vector.broadcast %cst_151 : f32 to vector<8x324xf32>
    %154 = arith.addf %153, %152 : vector<8x324xf32>
    %155 = arith.mulf %144, %154 : vector<8x324xf32>
    %cst_152 = arith.constant 0.000000e+00 : f32
    %156 = vector.broadcast %cst_152 : f32 to vector<8x60xf32>
    %c0_153 = arith.constant 0 : index
    %c324 = arith.constant 324 : index
    %157 = vector.load %arg14[%c0_153, %c324] : memref<8x384xf32, #tpu.memory_space<vmem>>, vector<8x60xf32>
    tpu.vector_store %arg14[%c0_153, %c324], %156 {strides = array<i32>} : memref<8x384xf32, #tpu.memory_space<vmem>>, vector<8x60xf32>,
    %c0_154 = arith.constant 0 : index
    %c0_155 = arith.constant 0 : index
    %158 = vector.load %arg14[%c0_154, %c0_155] : memref<8x384xf32, #tpu.memory_space<vmem>>, vector<8x324xf32>
    tpu.vector_store %arg14[%c0_154, %c0_155], %155 {strides = array<i32>} : memref<8x384xf32, #tpu.memory_space<vmem>>, vector<8x324xf32>,
    %c0_156 = arith.constant 0 : index
    %c0_157 = arith.constant 0 : index
    %c0_158 = arith.constant 0 : index
    %159 = vector.load %arg9[%c0_156, %c0_157, %c0_158] : memref<9x8x8xf32, #tpu.memory_space<vmem>>, vector<1x8x8xf32>
    %160 = vector.shape_cast %159 : vector<1x8x8xf32> to vector<8x8xf32>
    %c0_159 = arith.constant 0 : index
    %c0_160 = arith.constant 0 : index
    %161 = vector.load %arg14[%c0_159, %c0_160] : memref<8x384xf32, #tpu.memory_space<vmem>>, vector<8x324xf32>
    %cst_161 = arith.constant dense<0.000000e+00> : vector<8x324xf32>
    %162 = tpu.matmul %160, %161, %cst_161 {dimension_numbers = #tpu.dot_dimension_numbers<[1], [0], [0], [1], [0, 0, 1, 1], [], []>} : vector<8x8xf32>, vector<8x324xf32>, vector<8x324xf32> -> vector<8x324xf32>
    %c1_162 = arith.constant 1 : index
    %c0_163 = arith.constant 0 : index
    %c0_164 = arith.constant 0 : index
    %163 = vector.load %arg9[%c1_162, %c0_163, %c0_164] : memref<9x8x8xf32, #tpu.memory_space<vmem>>, vector<1x8x8xf32>
    %164 = vector.shape_cast %163 : vector<1x8x8xf32> to vector<8x8xf32>
    %c0_165 = arith.constant 0 : index
    %c1_166 = arith.constant 1 : index
    %165 = vector.load %arg14[%c0_165, %c1_166] : memref<8x384xf32, #tpu.memory_space<vmem>>, vector<8x324xf32>
    %cst_167 = arith.constant dense<0.000000e+00> : vector<8x324xf32>
    %166 = tpu.matmul %164, %165, %cst_167 {dimension_numbers = #tpu.dot_dimension_numbers<[1], [0], [0], [1], [0, 0, 1, 1], [], []>} : vector<8x8xf32>, vector<8x324xf32>, vector<8x324xf32> -> vector<8x324xf32>
    %167 = arith.addf %162, %166 : vector<8x324xf32>
    %c2_168 = arith.constant 2 : index
    %c0_169 = arith.constant 0 : index
    %c0_170 = arith.constant 0 : index
    %168 = vector.load %arg9[%c2_168, %c0_169, %c0_170] : memref<9x8x8xf32, #tpu.memory_space<vmem>>, vector<1x8x8xf32>
    %169 = vector.shape_cast %168 : vector<1x8x8xf32> to vector<8x8xf32>
    %c0_171 = arith.constant 0 : index
    %c2_172 = arith.constant 2 : index
    %170 = vector.load %arg14[%c0_171, %c2_172] : memref<8x384xf32, #tpu.memory_space<vmem>>, vector<8x324xf32>
    %cst_173 = arith.constant dense<0.000000e+00> : vector<8x324xf32>
    %171 = tpu.matmul %169, %170, %cst_173 {dimension_numbers = #tpu.dot_dimension_numbers<[1], [0], [0], [1], [0, 0, 1, 1], [], []>} : vector<8x8xf32>, vector<8x324xf32>, vector<8x324xf32> -> vector<8x324xf32>
    %172 = arith.addf %167, %171 : vector<8x324xf32>
    %c3_174 = arith.constant 3 : index
    %c0_175 = arith.constant 0 : index
    %c0_176 = arith.constant 0 : index
    %173 = vector.load %arg9[%c3_174, %c0_175, %c0_176] : memref<9x8x8xf32, #tpu.memory_space<vmem>>, vector<1x8x8xf32>
    %174 = vector.shape_cast %173 : vector<1x8x8xf32> to vector<8x8xf32>
    %c0_177 = arith.constant 0 : index
    %c18_178 = arith.constant 18 : index
    %175 = vector.load %arg14[%c0_177, %c18_178] : memref<8x384xf32, #tpu.memory_space<vmem>>, vector<8x324xf32>
    %cst_179 = arith.constant dense<0.000000e+00> : vector<8x324xf32>
    %176 = tpu.matmul %174, %175, %cst_179 {dimension_numbers = #tpu.dot_dimension_numbers<[1], [0], [0], [1], [0, 0, 1, 1], [], []>} : vector<8x8xf32>, vector<8x324xf32>, vector<8x324xf32> -> vector<8x324xf32>
    %177 = arith.addf %172, %176 : vector<8x324xf32>
    %c4_180 = arith.constant 4 : index
    %c0_181 = arith.constant 0 : index
    %c0_182 = arith.constant 0 : index
    %178 = vector.load %arg9[%c4_180, %c0_181, %c0_182] : memref<9x8x8xf32, #tpu.memory_space<vmem>>, vector<1x8x8xf32>
    %179 = vector.shape_cast %178 : vector<1x8x8xf32> to vector<8x8xf32>
    %c0_183 = arith.constant 0 : index
    %c19_184 = arith.constant 19 : index
    %180 = vector.load %arg14[%c0_183, %c19_184] : memref<8x384xf32, #tpu.memory_space<vmem>>, vector<8x324xf32>
    %cst_185 = arith.constant dense<0.000000e+00> : vector<8x324xf32>
    %181 = tpu.matmul %179, %180, %cst_185 {dimension_numbers = #tpu.dot_dimension_numbers<[1], [0], [0], [1], [0, 0, 1, 1], [], []>} : vector<8x8xf32>, vector<8x324xf32>, vector<8x324xf32> -> vector<8x324xf32>
    %182 = arith.addf %177, %181 : vector<8x324xf32>
    %c5_186 = arith.constant 5 : index
    %c0_187 = arith.constant 0 : index
    %c0_188 = arith.constant 0 : index
    %183 = vector.load %arg9[%c5_186, %c0_187, %c0_188] : memref<9x8x8xf32, #tpu.memory_space<vmem>>, vector<1x8x8xf32>
    %184 = vector.shape_cast %183 : vector<1x8x8xf32> to vector<8x8xf32>
    %c0_189 = arith.constant 0 : index
    %c20_190 = arith.constant 20 : index
    %185 = vector.load %arg14[%c0_189, %c20_190] : memref<8x384xf32, #tpu.memory_space<vmem>>, vector<8x324xf32>
    %cst_191 = arith.constant dense<0.000000e+00> : vector<8x324xf32>
    %186 = tpu.matmul %184, %185, %cst_191 {dimension_numbers = #tpu.dot_dimension_numbers<[1], [0], [0], [1], [0, 0, 1, 1], [], []>} : vector<8x8xf32>, vector<8x324xf32>, vector<8x324xf32> -> vector<8x324xf32>
    %187 = arith.addf %182, %186 : vector<8x324xf32>
    %c6_192 = arith.constant 6 : index
    %c0_193 = arith.constant 0 : index
    %c0_194 = arith.constant 0 : index
    %188 = vector.load %arg9[%c6_192, %c0_193, %c0_194] : memref<9x8x8xf32, #tpu.memory_space<vmem>>, vector<1x8x8xf32>
    %189 = vector.shape_cast %188 : vector<1x8x8xf32> to vector<8x8xf32>
    %c0_195 = arith.constant 0 : index
    %c36_196 = arith.constant 36 : index
    %190 = vector.load %arg14[%c0_195, %c36_196] : memref<8x384xf32, #tpu.memory_space<vmem>>, vector<8x324xf32>
    %cst_197 = arith.constant dense<0.000000e+00> : vector<8x324xf32>
    %191 = tpu.matmul %189, %190, %cst_197 {dimension_numbers = #tpu.dot_dimension_numbers<[1], [0], [0], [1], [0, 0, 1, 1], [], []>} : vector<8x8xf32>, vector<8x324xf32>, vector<8x324xf32> -> vector<8x324xf32>
    %192 = arith.addf %187, %191 : vector<8x324xf32>
    %c7_198 = arith.constant 7 : index
    %c0_199 = arith.constant 0 : index
    %c0_200 = arith.constant 0 : index
    %193 = vector.load %arg9[%c7_198, %c0_199, %c0_200] : memref<9x8x8xf32, #tpu.memory_space<vmem>>, vector<1x8x8xf32>
    %194 = vector.shape_cast %193 : vector<1x8x8xf32> to vector<8x8xf32>
    %c0_201 = arith.constant 0 : index
    %c37_202 = arith.constant 37 : index
    %195 = vector.load %arg14[%c0_201, %c37_202] : memref<8x384xf32, #tpu.memory_space<vmem>>, vector<8x324xf32>
    %cst_203 = arith.constant dense<0.000000e+00> : vector<8x324xf32>
    %196 = tpu.matmul %194, %195, %cst_203 {dimension_numbers = #tpu.dot_dimension_numbers<[1], [0], [0], [1], [0, 0, 1, 1], [], []>} : vector<8x8xf32>, vector<8x324xf32>, vector<8x324xf32> -> vector<8x324xf32>
    %197 = arith.addf %192, %196 : vector<8x324xf32>
    %c8_204 = arith.constant 8 : index
    %c0_205 = arith.constant 0 : index
    %c0_206 = arith.constant 0 : index
    %198 = vector.load %arg9[%c8_204, %c0_205, %c0_206] : memref<9x8x8xf32, #tpu.memory_space<vmem>>, vector<1x8x8xf32>
    %199 = vector.shape_cast %198 : vector<1x8x8xf32> to vector<8x8xf32>
    %c0_207 = arith.constant 0 : index
    %c38_208 = arith.constant 38 : index
    %200 = vector.load %arg14[%c0_207, %c38_208] : memref<8x384xf32, #tpu.memory_space<vmem>>, vector<8x324xf32>
    %cst_209 = arith.constant dense<0.000000e+00> : vector<8x324xf32>
    %201 = tpu.matmul %199, %200, %cst_209 {dimension_numbers = #tpu.dot_dimension_numbers<[1], [0], [0], [1], [0, 0, 1, 1], [], []>} : vector<8x8xf32>, vector<8x324xf32>, vector<8x324xf32> -> vector<8x324xf32>
    %202 = arith.addf %197, %201 : vector<8x324xf32>
    %c0_210 = arith.constant 0 : index
    %c0_211 = arith.constant 0 : index
    %203 = vector.load %arg10[%c0_210, %c0_211] : memref<8x1xf32, #tpu.memory_space<vmem>>, vector<8x1xf32>
    %204 = vector.broadcast %203 : vector<8x1xf32> to vector<8x324xf32>
    %205 = arith.addf %202, %204 : vector<8x324xf32>
    %cst_212 = arith.constant 5.000000e-01 : f32
    %206 = vector.broadcast %cst_212 : f32 to vector<8x324xf32>
    %207 = arith.mulf %206, %205 : vector<8x324xf32>
    %cst_213 = arith.constant 4.471500e-02 : f32
    %208 = vector.broadcast %cst_213 : f32 to vector<8x324xf32>
    %209 = arith.mulf %208, %205 : vector<8x324xf32>
    %210 = arith.mulf %209, %205 : vector<8x324xf32>
    %211 = arith.mulf %210, %205 : vector<8x324xf32>
    %212 = arith.addf %205, %211 : vector<8x324xf32>
    %cst_214 = arith.constant 0.797884583 : f32
    %213 = vector.broadcast %cst_214 : f32 to vector<8x324xf32>
    %214 = arith.mulf %213, %212 : vector<8x324xf32>
    %215 = math.tanh %214 : vector<8x324xf32>
    %cst_215 = arith.constant 1.000000e+00 : f32
    %216 = vector.broadcast %cst_215 : f32 to vector<8x324xf32>
    %217 = arith.addf %216, %215 : vector<8x324xf32>
    %218 = arith.mulf %207, %217 : vector<8x324xf32>
    %c0_216 = arith.constant 0 : index
    %c0_217 = arith.constant 0 : index
    %219 = vector.load %arg11[%c0_216, %c0_217] : memref<1x324xf32, #tpu.memory_space<vmem>>, vector<1x324xf32>
    %cst_218 = arith.constant 5.000000e-01 : f32
    %220 = vector.broadcast %cst_218 : f32 to vector<1x324xf32>
    %221 = arith.cmpf ogt, %219, %220 : vector<1x324xf32>
    %cst_219 = arith.constant 0.000000e+00 : f32
    %222 = vector.shape_cast %221 : vector<1x324xi1> to vector<1x324xi1>
    %223 = vector.broadcast %222 : vector<1x324xi1> to vector<8x324xi1>
    %224 = vector.broadcast %cst_219 : f32 to vector<8x324xf32>
    %225 = arith.select %223, %218, %224 : vector<8x324xi1>, vector<8x324xf32>
    %226 = vector.shape_cast %225 : vector<8x324xf32> to vector<1x8x324xf32>
    %cst_220 = arith.constant dense<0.000000e+00> : vector<1xf32>
    %227 = vector.multi_reduction <add>, %226, %cst_220 [1, 2] : vector<1x8x324xf32> to vector<1xf32>
    %228 = vector.shape_cast %227 : vector<1xf32> to vector<1x1x1xf32>
    %229 = vector.extract %228[0, 0, 0] : f32 from vector<1x1x1xf32>
    %cst_221 = arith.constant 6.37755089E-4 : f32
    %230 = arith.mulf %229, %cst_221 : f32
    %231 = vector.broadcast %230 : f32 to vector<8x324xf32>
    %232 = arith.subf %218, %231 : vector<8x324xf32>
    %cst_222 = arith.constant 0.000000e+00 : f32
    %233 = vector.shape_cast %221 : vector<1x324xi1> to vector<1x324xi1>
    %234 = vector.broadcast %233 : vector<1x324xi1> to vector<8x324xi1>
    %235 = vector.broadcast %cst_222 : f32 to vector<8x324xf32>
    %236 = arith.select %234, %232, %235 : vector<8x324xi1>, vector<8x324xf32>
    %237 = arith.mulf %236, %236 : vector<8x324xf32>
    %238 = vector.shape_cast %237 : vector<8x324xf32> to vector<1x8x324xf32>
    %cst_223 = arith.constant dense<0.000000e+00> : vector<1xf32>
    %239 = vector.multi_reduction <add>, %238, %cst_223 [1, 2] : vector<1x8x324xf32> to vector<1xf32>
    %240 = vector.shape_cast %239 : vector<1xf32> to vector<1x1x1xf32>
    %241 = vector.extract %240[0, 0, 0] : f32 from vector<1x1x1xf32>
    %cst_224 = arith.constant 6.37755089E-4 : f32
    %242 = arith.mulf %241, %cst_224 : f32
    %243 = vector.broadcast %230 : f32 to vector<8x324xf32>
    %244 = arith.subf %218, %243 : vector<8x324xf32>
    %cst_225 = arith.constant 9.99999974E-6 : f32
    %245 = arith.addf %242, %cst_225 : f32
    %246 = math.rsqrt %245 : f32
    %247 = vector.broadcast %246 : f32 to vector<8x324xf32>
    %248 = arith.mulf %244, %247 : vector<8x324xf32>
    %c0_226 = arith.constant 0 : index
    %c0_227 = arith.constant 0 : index
    %c0_228 = arith.constant 0 : index
    %249 = vector.load %arg12[%c0_226, %c0_227, %c0_228] : memref<1x8x324xf32, #tpu.memory_space<vmem>>, vector<1x8x324xf32>
    %250 = vector.shape_cast %249 : vector<1x8x324xf32> to vector<8x324xf32>
    %251 = vector.shape_cast %248 : vector<8x324xf32> to vector<1x8x324xf32>
    tpu.vector_store %arg12[%c0_226, %c0_227, %c0_228], %251 {strides = array<i32>} : memref<1x8x324xf32, #tpu.memory_space<vmem>>, vector<1x8x324xf32>,
    return
  }
  func.func @transform_0(%arg0: i32) -> (i32, i32, i32) {
    %c0_i32 = arith.constant 0 : i32
    %c0_i32_0 = arith.constant 0 : i32
    %c0_i32_1 = arith.constant 0 : i32
    return %arg0, %c0_i32, %c0_i32_0 : i32, i32, i32
  }
  func.func @transform_1(%arg0: i32) -> (i32, i32, i32) {
    %c0_i32 = arith.constant 0 : i32
    %c0_i32_0 = arith.constant 0 : i32
    %c0_i32_1 = arith.constant 0 : i32
    return %arg0, %c0_i32, %c0_i32_0 : i32, i32, i32
  }
  func.func @transform_2(%arg0: i32) -> (i32, i32, i32) {
    %c0_i32 = arith.constant 0 : i32
    %c0_i32_0 = arith.constant 0 : i32
    %c0_i32_1 = arith.constant 0 : i32
    %c0_i32_2 = arith.constant 0 : i32
    return %c0_i32, %c0_i32_0, %c0_i32_1 : i32, i32, i32
  }
  func.func @transform_3(%arg0: i32) -> (i32, i32) {
    %c0_i32 = arith.constant 0 : i32
    %c0_i32_0 = arith.constant 0 : i32
    %c0_i32_1 = arith.constant 0 : i32
    return %c0_i32, %c0_i32_0 : i32, i32
  }
  func.func @transform_4(%arg0: i32) -> (i32, i32, i32) {
    %c0_i32 = arith.constant 0 : i32
    %c0_i32_0 = arith.constant 0 : i32
    %c0_i32_1 = arith.constant 0 : i32
    %c0_i32_2 = arith.constant 0 : i32
    return %c0_i32, %c0_i32_0, %c0_i32_1 : i32, i32, i32
  }
  func.func @transform_5(%arg0: i32) -> (i32, i32, i32) {
    %c0_i32 = arith.constant 0 : i32
    %c0_i32_0 = arith.constant 0 : i32
    %c0_i32_1 = arith.constant 0 : i32
    %c0_i32_2 = arith.constant 0 : i32
    return %c0_i32, %c0_i32_0, %c0_i32_1 : i32, i32, i32
  }
  func.func @transform_6(%arg0: i32) -> (i32, i32, i32) {
    %c0_i32 = arith.constant 0 : i32
    %c0_i32_0 = arith.constant 0 : i32
    %c0_i32_1 = arith.constant 0 : i32
    %c0_i32_2 = arith.constant 0 : i32
    return %c0_i32, %c0_i32_0, %c0_i32_1 : i32, i32, i32
  }
  func.func @transform_7(%arg0: i32) -> (i32, i32) {
    %c0_i32 = arith.constant 0 : i32
    %c0_i32_0 = arith.constant 0 : i32
    %c0_i32_1 = arith.constant 0 : i32
    return %c0_i32, %c0_i32_0 : i32, i32
  }
  func.func @transform_8(%arg0: i32) -> (i32, i32, i32) {
    %c0_i32 = arith.constant 0 : i32
    %c0_i32_0 = arith.constant 0 : i32
    %c0_i32_1 = arith.constant 0 : i32
    %c0_i32_2 = arith.constant 0 : i32
    return %c0_i32, %c0_i32_0, %c0_i32_1 : i32, i32, i32
  }
  func.func @transform_9(%arg0: i32) -> (i32, i32) {
    %c0_i32 = arith.constant 0 : i32
    %c0_i32_0 = arith.constant 0 : i32
    %c0_i32_1 = arith.constant 0 : i32
    return %c0_i32, %c0_i32_0 : i32, i32
  }
  func.func @transform_10(%arg0: i32) -> (i32, i32) {
    %c0_i32 = arith.constant 0 : i32
    %c0_i32_0 = arith.constant 0 : i32
    %c0_i32_1 = arith.constant 0 : i32
    return %c0_i32, %c0_i32_0 : i32, i32
  }
  func.func @transform_11(%arg0: i32) -> (i32, i32, i32) {
    %c0_i32 = arith.constant 0 : i32
    %c0_i32_0 = arith.constant 0 : i32
    %c0_i32_1 = arith.constant 0 : i32
    return %arg0, %c0_i32, %c0_i32_0 : i32, i32, i32
  }
}

</mosaic_0001>

<llo_original>
// kernel: up_forward.1
$region0: #{up_forward.1}
  #allocation0 [shape = 'u32[]', space=smem, size = 0x4, offset = 0x4, fixed_abs, tag = 'smem constant byte address 0x4 - core index']
  #allocation1 [shape = 'u32[144,128]{1,0:T(1,128)}', space=vmem, size = 0x12000, scoped, tag = 'internal scratch']
  #allocation2 [shape = 'f32[8,384]{1,0:T(8,128)}', space=vmem, size = 0x3000, scoped, tag = 'scratch operand']
  #allocation3 [shape = 'f32[8,384]{1,0:T(8,128)}', space=vmem, size = 0x3000, scoped, tag = 'scratch operand']
  %s0 = inlined_call_operand.vmem [shape: f32[2,16,64], index: 0, kind: input, shape index: {}]
  %s1 = inlined_call_operand.vmem [shape: f32[2,8,384], index: 1, kind: input, shape index: {}]
  %s2 = inlined_call_operand.vmem [shape: f32[4,8,16], index: 2, kind: input, shape index: {}]
  %s3 = inlined_call_operand.vmem [shape: f32[8,1], index: 3, kind: input, shape index: {}]
  %s4 = inlined_call_operand.vmem [shape: f32[4,64,384], index: 4, kind: input, shape index: {}]
  %s5 = inlined_call_operand.vmem [shape: f32[9,8,8], index: 5, kind: input, shape index: {}]
  %s6 = inlined_call_operand.vmem [shape: f32[9,8,8], index: 6, kind: input, shape index: {}]
  %s7 = inlined_call_operand.vmem [shape: f32[8,1], index: 7, kind: input, shape index: {}]
  %s8 = inlined_call_operand.vmem [shape: f32[9,8,8], index: 8, kind: input, shape index: {}]
  %s9 = inlined_call_operand.vmem [shape: f32[8,1], index: 9, kind: input, shape index: {}]
  %s10 = inlined_call_operand.vmem [shape: f32[1,324], index: 10, kind: input, shape index: {}]
  %s11 = inlined_call_operand.vmem [shape: f32[2,8,324], index: 11, kind: output, shape index: {}]
  %s12 = sld [smem:[#allocation0]]
  $region77: #{up_forward.1} parent=0
    _
  %s14 = ssub.s32 1, %s12
  %s15 = scalar_select 0, %s14, %s12
  loop: start=0, step=1, limit=4
  $region2: #{up_forward.1} parent=0 // loop_pre_header
    _
  $region3: #{up_forward.1} parent=0 // loop_header
    %s17 = sphi 0, %s21
    %p18 = scmp.ge.s32.totalorder %s17, 4
    %s27 = sphi 0, %s29
    %s30 = sphi 0, %s27
    %s31 = sphi 0, %s30
    %s47 = sphi 0, %s31
    %s53 = sphi 0, %s55
    %s56 = sphi 0, %s53
    %s57 = sphi 0, %s56
    %s73 = sphi 0, %s57
    %s77 = sphi 0, %s77
    %s79 = sphi 0, %s77
    %s80 = sphi 0, %s79
    %s94 = sphi 0, %s80
    %s98 = sphi 0, %s98
    %s100 = sphi 0, %s98
    %s101 = sphi 0, %s100
    %s115 = sphi 0, %s101
    %s119 = sphi 0, %s119
    %s121 = sphi 0, %s119
    %s122 = sphi 0, %s121
    %s136 = sphi 0, %s122
    %s140 = sphi 0, %s140
    %s142 = sphi 0, %s140
    %s143 = sphi 0, %s142
    %s157 = sphi 0, %s143
    %s161 = sphi 0, %s161
    %s163 = sphi 0, %s161
    %s164 = sphi 0, %s163
    %s178 = sphi 0, %s164
    %s182 = sphi 0, %s182
    %s184 = sphi 0, %s182
    %s185 = sphi 0, %s184
    %s199 = sphi 0, %s185
    %s203 = sphi 0, %s203
    %s205 = sphi 0, %s203
    %s206 = sphi 0, %s205
    %s220 = sphi 0, %s206
    %s224 = sphi 0, %s224
    %s226 = sphi 0, %s224
    %s227 = sphi 0, %s226
    %s241 = sphi 0, %s227
    %s245 = sphi 0, %s245
    %s247 = sphi 0, %s245
    %s248 = sphi 0, %s247
    %s262 = sphi 0, %s248
    %s268 = sphi 0, %s270
    %s271 = sphi 0, %s268
    %s272 = sphi 0, %s271
    %s288 = sphi 0, %s272
  $region4: #{up_forward.1} parent=0 // loop_header_branch
    %20 = sbr.rel (%p18) target = $region8
  $region5: #{up_forward.1} parent=0 // loop_body
    %s22 = ssub.s32 %s17, 1
    %s23 = ssub.s32 %s17, 2
    %s24 = sadd.s32 %s17, 1
    %s25 = ssub.s32 %s17, %s24
    %p26 = scmp.eq.s32.totalorder %s25, 0
    %s28 = sadd.s32 %s27, 1
    %s29 = scalar_select %p26, %s27, %s28
    %p32 = pneg %p26
    %p33 = scmp.eq.s32.totalorder %s17, 1
    %p34 = por %p32, %p33
    %p35 = scmp.ne.s32.totalorder %s27, %s30
    %p36 = scmp.eq.s32.totalorder %s17, 0
    %p37 = por %p35, %p36
    %p38 = scmp.ne.s32.totalorder %s27, %s30
    %p39 = scmp.eq.s32.totalorder %s22, 1
    %p40 = por %p38, %p39
    %p41 = scmp.ne.s32.totalorder %s30, %s31
    %p42 = scmp.eq.s32.totalorder %s22, 0
    %p43 = por %p41, %p42
    %p44 = scmp.ne.s32.totalorder %s30, %s31
    %p45 = scmp.eq.s32.totalorder %s23, 1
    %p46 = por %p44, %p45
    %p48 = scmp.ne.s32.totalorder %s31, %s47
    %p49 = scmp.eq.s32.totalorder %s23, 0
    %p50 = por %p48, %p49
    %s51 = ssub.s32 %s17, %s24
    %p52 = scmp.eq.s32.totalorder %s51, 0
    %s54 = sadd.s32 %s53, 1
    %s55 = scalar_select %p52, %s53, %s54
    %p58 = pneg %p52
    %p59 = scmp.eq.s32.totalorder %s17, 1
    %p60 = por %p58, %p59
    %p61 = scmp.ne.s32.totalorder %s53, %s56
    %p62 = scmp.eq.s32.totalorder %s17, 0
    %p63 = por %p61, %p62
    %p64 = scmp.ne.s32.totalorder %s53, %s56
    %p65 = scmp.eq.s32.totalorder %s22, 1
    %p66 = por %p64, %p65
    %p67 = scmp.ne.s32.totalorder %s56, %s57
    %p68 = scmp.eq.s32.totalorder %s22, 0
    %p69 = por %p67, %p68
    %p70 = scmp.ne.s32.totalorder %s56, %s57
    %p71 = scmp.eq.s32.totalorder %s23, 1
    %p72 = por %p70, %p71
    %p74 = scmp.ne.s32.totalorder %s57, %s73
    %p75 = scmp.eq.s32.totalorder %s23, 0
    %p76 = por %p74, %p75
    %s78 = sadd.s32 %s77, 1
    %p81 = scmp.eq.s32.totalorder %s17, 1
    %p82 = scmp.ne.s32.totalorder %s77, %s79
    %p83 = scmp.eq.s32.totalorder %s17, 0
    %p84 = por %p82, %p83
    %p85 = scmp.ne.s32.totalorder %s77, %s79
    %p86 = scmp.eq.s32.totalorder %s22, 1
    %p87 = por %p85, %p86
    %p88 = scmp.ne.s32.totalorder %s79, %s80
    %p89 = scmp.eq.s32.totalorder %s22, 0
    %p90 = por %p88, %p89
    %p91 = scmp.ne.s32.totalorder %s79, %s80
    %p92 = scmp.eq.s32.totalorder %s23, 1
    %p93 = por %p91, %p92
    %p95 = scmp.ne.s32.totalorder %s80, %s94
    %p96 = scmp.eq.s32.totalorder %s23, 0
    %p97 = por %p95, %p96
    %s99 = sadd.s32 %s98, 1
    %p102 = scmp.eq.s32.totalorder %s17, 1
    %p103 = scmp.ne.s32.totalorder %s98, %s100
    %p104 = scmp.eq.s32.totalorder %s17, 0
    %p105 = por %p103, %p104
    %p106 = scmp.ne.s32.totalorder %s98, %s100
    %p107 = scmp.eq.s32.totalorder %s22, 1
    %p108 = por %p106, %p107
    %p109 = scmp.ne.s32.totalorder %s100, %s101
    %p110 = scmp.eq.s32.totalorder %s22, 0
    %p111 = por %p109, %p110
    %p112 = scmp.ne.s32.totalorder %s100, %s101
    %p113 = scmp.eq.s32.totalorder %s23, 1
    %p114 = por %p112, %p113
    %p116 = scmp.ne.s32.totalorder %s101, %s115
    %p117 = scmp.eq.s32.totalorder %s23, 0
    %p118 = por %p116, %p117
    %s120 = sadd.s32 %s119, 1
    %p123 = scmp.eq.s32.totalorder %s17, 1
    %p124 = scmp.ne.s32.totalorder %s119, %s121
    %p125 = scmp.eq.s32.totalorder %s17, 0
    %p126 = por %p124, %p125
    %p127 = scmp.ne.s32.totalorder %s119, %s121
    %p128 = scmp.eq.s32.totalorder %s22, 1
    %p129 = por %p127, %p128
    %p130 = scmp.ne.s32.totalorder %s121, %s122
    %p131 = scmp.eq.s32.totalorder %s22, 0
    %p132 = por %p130, %p131
    %p133 = scmp.ne.s32.totalorder %s121, %s122
    %p134 = scmp.eq.s32.totalorder %s23, 1
    %p135 = por %p133, %p134
    %p137 = scmp.ne.s32.totalorder %s122, %s136
    %p138 = scmp.eq.s32.totalorder %s23, 0
    %p139 = por %p137, %p138
    %s141 = sadd.s32 %s140, 1
    %p144 = scmp.eq.s32.totalorder %s17, 1
    %p145 = scmp.ne.s32.totalorder %s140, %s142
    %p146 = scmp.eq.s32.totalorder %s17, 0
    %p147 = por %p145, %p146
    %p148 = scmp.ne.s32.totalorder %s140, %s142
    %p149 = scmp.eq.s32.totalorder %s22, 1
    %p150 = por %p148, %p149
    %p151 = scmp.ne.s32.totalorder %s142, %s143
    %p152 = scmp.eq.s32.totalorder %s22, 0
    %p153 = por %p151, %p152
    %p154 = scmp.ne.s32.totalorder %s142, %s143
    %p155 = scmp.eq.s32.totalorder %s23, 1
    %p156 = por %p154, %p155
    %p158 = scmp.ne.s32.totalorder %s143, %s157
    %p159 = scmp.eq.s32.totalorder %s23, 0
    %p160 = por %p158, %p159
    %s162 = sadd.s32 %s161, 1
    %p165 = scmp.eq.s32.totalorder %s17, 1
    %p166 = scmp.ne.s32.totalorder %s161, %s163
    %p167 = scmp.eq.s32.totalorder %s17, 0
    %p168 = por %p166, %p167
    %p169 = scmp.ne.s32.totalorder %s161, %s163
    %p170 = scmp.eq.s32.totalorder %s22, 1
    %p171 = por %p169, %p170
    %p172 = scmp.ne.s32.totalorder %s163, %s164
    %p173 = scmp.eq.s32.totalorder %s22, 0
    %p174 = por %p172, %p173
    %p175 = scmp.ne.s32.totalorder %s163, %s164
    %p176 = scmp.eq.s32.totalorder %s23, 1
    %p177 = por %p175, %p176
    %p179 = scmp.ne.s32.totalorder %s164, %s178
    %p180 = scmp.eq.s32.totalorder %s23, 0
    %p181 = por %p179, %p180
    %s183 = sadd.s32 %s182, 1
    %p186 = scmp.eq.s32.totalorder %s17, 1
    %p187 = scmp.ne.s32.totalorder %s182, %s184
    %p188 = scmp.eq.s32.totalorder %s17, 0
    %p189 = por %p187, %p188
    %p190 = scmp.ne.s32.totalorder %s182, %s184
    %p191 = scmp.eq.s32.totalorder %s22, 1
    %p192 = por %p190, %p191
    %p193 = scmp.ne.s32.totalorder %s184, %s185
    %p194 = scmp.eq.s32.totalorder %s22, 0
    %p195 = por %p193, %p194
    %p196 = scmp.ne.s32.totalorder %s184, %s185
    %p197 = scmp.eq.s32.totalorder %s23, 1
    %p198 = por %p196, %p197
    %p200 = scmp.ne.s32.totalorder %s185, %s199
    %p201 = scmp.eq.s32.totalorder %s23, 0
    %p202 = por %p200, %p201
    %s204 = sadd.s32 %s203, 1
    %p207 = scmp.eq.s32.totalorder %s17, 1
    %p208 = scmp.ne.s32.totalorder %s203, %s205
    %p209 = scmp.eq.s32.totalorder %s17, 0
    %p210 = por %p208, %p209
    %p211 = scmp.ne.s32.totalorder %s203, %s205
    %p212 = scmp.eq.s32.totalorder %s22, 1
    %p213 = por %p211, %p212
    %p214 = scmp.ne.s32.totalorder %s205, %s206
    %p215 = scmp.eq.s32.totalorder %s22, 0
    %p216 = por %p214, %p215
    %p217 = scmp.ne.s32.totalorder %s205, %s206
    %p218 = scmp.eq.s32.totalorder %s23, 1
    %p219 = por %p217, %p218
    %p221 = scmp.ne.s32.totalorder %s206, %s220
    %p222 = scmp.eq.s32.totalorder %s23, 0
    %p223 = por %p221, %p222
    %s225 = sadd.s32 %s224, 1
    %p228 = scmp.eq.s32.totalorder %s17, 1
    %p229 = scmp.ne.s32.totalorder %s224, %s226
    %p230 = scmp.eq.s32.totalorder %s17, 0
    %p231 = por %p229, %p230
    %p232 = scmp.ne.s32.totalorder %s224, %s226
    %p233 = scmp.eq.s32.totalorder %s22, 1
    %p234 = por %p232, %p233
    %p235 = scmp.ne.s32.totalorder %s226, %s227
    %p236 = scmp.eq.s32.totalorder %s22, 0
    %p237 = por %p235, %p236
    %p238 = scmp.ne.s32.totalorder %s226, %s227
    %p239 = scmp.eq.s32.totalorder %s23, 1
    %p240 = por %p238, %p239
    %p242 = scmp.ne.s32.totalorder %s227, %s241
    %p243 = scmp.eq.s32.totalorder %s23, 0
    %p244 = por %p242, %p243
    %s246 = sadd.s32 %s245, 1
    %p249 = scmp.eq.s32.totalorder %s17, 1
    %p250 = scmp.ne.s32.totalorder %s245, %s247
    %p251 = scmp.eq.s32.totalorder %s17, 0
    %p252 = por %p250, %p251
    %p253 = scmp.ne.s32.totalorder %s245, %s247
    %p254 = scmp.eq.s32.totalorder %s22, 1
    %p255 = por %p253, %p254
    %p256 = scmp.ne.s32.totalorder %s247, %s248
    %p257 = scmp.eq.s32.totalorder %s22, 0
    %p258 = por %p256, %p257
    %p259 = scmp.ne.s32.totalorder %s247, %s248
    %p260 = scmp.eq.s32.totalorder %s23, 1
    %p261 = por %p259, %p260
    %p263 = scmp.ne.s32.totalorder %s248, %s262
    %p264 = scmp.eq.s32.totalorder %s23, 0
    %p265 = por %p263, %p264
    %s266 = ssub.s32 %s17, %s24
    %p267 = scmp.eq.s32.totalorder %s266, 0
    %s269 = sadd.s32 %s268, 1
    %s270 = scalar_select %p267, %s268, %s269
    %p273 = pneg %p267
    %p274 = scmp.eq.s32.totalorder %s17, 1
    %p275 = por %p273, %p274
    %p276 = scmp.ne.s32.totalorder %s268, %s271
    %p277 = scmp.eq.s32.totalorder %s17, 0
    %p278 = por %p276, %p277
    %p279 = scmp.ne.s32.totalorder %s268, %s271
    %p280 = scmp.eq.s32.totalorder %s22, 1
    %p281 = por %p279, %p280
    %p282 = scmp.ne.s32.totalorder %s271, %s272
    %p283 = scmp.eq.s32.totalorder %s22, 0
    %p284 = por %p282, %p283
    %p285 = scmp.ne.s32.totalorder %s271, %s272
    %p286 = scmp.eq.s32.totalorder %s23, 1
    %p287 = por %p285, %p286
    %p289 = scmp.ne.s32.totalorder %s272, %s288
    %p290 = scmp.eq.s32.totalorder %s23, 0
    %p291 = por %p289, %p290
    %p292 = scmp.le.s32.totalorder 1, %s17
    %p293 = scmp.lt.s32.totalorder %s17, 3
    %p294 = pnand %p292, %p293
    %p295 = pneg %p294
    // Predicated region
    $region9: #{up_forward.1} parent=5 // pred_check
      _
    $region10: #{up_forward.1} parent=5 // pred_check_branch
      %297 = sbr.rel (%p294) target = $region12
    $region11: #{up_forward.1} parent=5 // pred_region
      %s298 = ssub.s32 %s17, 1
      // Predicated region
      $region13: #{up_forward.1} parent=11 // pred_check
        %p299 = pneg %p90
      $region14: #{up_forward.1} parent=11 // pred_check_branch
        %301 = sbr.rel (%p299) target = $region16
      $region15: #{up_forward.1} parent=11 // pred_region
        _
      $region16: #{up_forward.1} parent=11 // pred_fallthru
        _
      // Predicated region
      $region17: #{up_forward.1} parent=11 // pred_check
        %p302 = pneg %p111
      $region18: #{up_forward.1} parent=11 // pred_check_branch
        %304 = sbr.rel (%p302) target = $region20
      $region19: #{up_forward.1} parent=11 // pred_region
        _
      $region20: #{up_forward.1} parent=11 // pred_fallthru
        _
      // Predicated region
      $region21: #{up_forward.1} parent=11 // pred_check
        %p305 = pneg %p132
      $region22: #{up_forward.1} parent=11 // pred_check_branch
        %307 = sbr.rel (%p305) target = $region24
      $region23: #{up_forward.1} parent=11 // pred_region
        _
      $region24: #{up_forward.1} parent=11 // pred_fallthru
        _
      // Predicated region
      $region25: #{up_forward.1} parent=11 // pred_check
        %p308 = pneg %p153
      $region26: #{up_forward.1} parent=11 // pred_check_branch
        %310 = sbr.rel (%p308) target = $region28
      $region27: #{up_forward.1} parent=11 // pred_region
        _
      $region28: #{up_forward.1} parent=11 // pred_fallthru
        _
      // Predicated region
      $region29: #{up_forward.1} parent=11 // pred_check
        %p311 = pneg %p174
      $region30: #{up_forward.1} parent=11 // pred_check_branch
        %313 = sbr.rel (%p311) target = $region32
      $region31: #{up_forward.1} parent=11 // pred_region
        _
      $region32: #{up_forward.1} parent=11 // pred_fallthru
        _
      // Predicated region
      $region33: #{up_forward.1} parent=11 // pred_check
        %p314 = pneg %p195
      $region34: #{up_forward.1} parent=11 // pred_check_branch
        %316 = sbr.rel (%p314) target = $region36
      $region35: #{up_forward.1} parent=11 // pred_region
        _
      $region36: #{up_forward.1} parent=11 // pred_fallthru
        _
      // Predicated region
      $region37: #{up_forward.1} parent=11 // pred_check
        %p317 = pneg %p216
      $region38: #{up_forward.1} parent=11 // pred_check_branch
        %319 = sbr.rel (%p317) target = $region40
      $region39: #{up_forward.1} parent=11 // pred_region
        _
      $region40: #{up_forward.1} parent=11 // pred_fallthru
        _
      // Predicated region
      $region41: #{up_forward.1} parent=11 // pred_check
        %p320 = pneg %p237
      $region42: #{up_forward.1} parent=11 // pred_check_branch
        %322 = sbr.rel (%p320) target = $region44
      $region43: #{up_forward.1} parent=11 // pred_region
        _
      $region44: #{up_forward.1} parent=11 // pred_fallthru
        _
      // Predicated region
      $region45: #{up_forward.1} parent=11 // pred_check
        %p323 = pneg %p258
      $region46: #{up_forward.1} parent=11 // pred_check_branch
        %325 = sbr.rel (%p323) target = $region48
      $region47: #{up_forward.1} parent=11 // pred_region
        _
      $region48: #{up_forward.1} parent=11 // pred_fallthru
        _
    $region12: #{up_forward.1} parent=5 // pred_fallthru
      _
    %p326 = scmp.lt.s32.totalorder %s17, 2
    // Predicated region
    $region49: #{up_forward.1} parent=5 // pred_check
      %p327 = pneg %p326
    $region50: #{up_forward.1} parent=5 // pred_check_branch
      %329 = sbr.rel (%p327) target = $region52
    $region51: #{up_forward.1} parent=5 // pred_region
      // Predicated region
      $region53: #{up_forward.1} parent=51 // pred_check
        %p330 = pneg %p37
      $region54: #{up_forward.1} parent=51 // pred_check_branch
        %332 = sbr.rel (%p330) target = $region56
      $region55: #{up_forward.1} parent=51 // pred_region
        %p333 = scmp.lt.s32.totalorder %s17, 1
        %s334 = scalar_select %p333, %s17, 1
        %s335 = smul.addr %s334, 2
        %s336 = smul.addr %s335, 8
        %s337 = scalar_lea.vmem %s0, %s336
      $region56: #{up_forward.1} parent=51 // pred_fallthru
        _
      // Predicated region
      $region57: #{up_forward.1} parent=51 // pred_check
        %p338 = pneg %p63
      $region58: #{up_forward.1} parent=51 // pred_check_branch
        %340 = sbr.rel (%p338) target = $region60
      $region59: #{up_forward.1} parent=51 // pred_region
        %p341 = scmp.lt.s32.totalorder %s17, 1
        %s342 = scalar_select %p341, %s17, 1
        %s343 = smul.addr %s342, 3
        %s344 = smul.addr %s343, 8
        %s345 = scalar_lea.vmem %s1, %s344
      $region60: #{up_forward.1} parent=51 // pred_fallthru
        _
    $region52: #{up_forward.1} parent=5 // pred_fallthru
      _
    %p346 = scmp.le.s32.totalorder 1, %s17
    %p347 = scmp.lt.s32.totalorder %s17, 3
    %p348 = pnand %p346, %p347
    %p349 = pneg %p348
    // Predicated region
    $region61: #{up_forward.1} parent=5 // pred_check
      _
    $region62: #{up_forward.1} parent=5 // pred_check_branch
      %351 = sbr.rel (%p348) target = $region64
    $region63: #{up_forward.1} parent=5 // pred_region
      %s352 = ssub.s32 %s17, 1
      %p353 = scmp.lt.s32.totalorder %s22, 1
      %s354 = scalar_select %p353, %s22, 1
      %s355 = smul.addr %s354, 2
      %s356 = smul.addr %s355, 8
      %s357 = scalar_lea.vmem %s0, %s356
      %p358 = pneg %p43
      %p359 = pneg %p40
      %p360 = scmp.lt.s32.totalorder %s22, 1
      %s361 = scalar_select %p360, %s22, 1
      %s362 = smul.addr %s361, 3
      %s363 = smul.addr %s362, 8
      %s364 = scalar_lea.vmem %s1, %s363
      %p365 = pneg %p69
      %p366 = pneg %p66
      %p367 = pneg %p90
      %p368 = pneg %p87
      %p369 = pneg %p111
      %p370 = pneg %p108
      %p371 = pneg %p132
      %p372 = pneg %p129
      %p373 = pneg %p153
      %p374 = pneg %p150
      %p375 = pneg %p174
      %p376 = pneg %p171
      %p377 = pneg %p195
      %p378 = pneg %p192
      %p379 = pneg %p216
      %p380 = pneg %p213
      %p381 = pneg %p237
      %p382 = pneg %p234
      %p383 = pneg %p258
      %p384 = pneg %p255
      %p385 = pneg %p284
      %p386 = pneg %p281
      %p387 = scmp.lt.s32.totalorder %s22, 1
      %s388 = scalar_select %p387, %s22, 1
      %s389 = smul.addr %s388, 3
      %s390 = smul.addr %s389, 8
      %s391 = scalar_lea.vmem %s11, %s390
      %p392 = scmp.lt.s32.totalorder %s22, 1
      %s393 = scalar_select %p392, %s22, 1
      %s394 = smul.addr %s393, 2
      %s395 = smul.addr %s394, 8
      %s396 = scalar_lea.vmem %s0, %s395
      %p397 = scmp.lt.s32.totalorder %s22, 1
      %s398 = scalar_select %p397, %s22, 1
      %s399 = smul.addr %s398, 3
      %s400 = smul.addr %s399, 8
      %s401 = scalar_lea.vmem %s1, %s400
      %p402 = scmp.lt.s32.totalorder %s22, 1
      %s403 = scalar_select %p402, %s22, 1
      %s404 = smul.addr %s403, 3
      %s405 = smul.addr %s404, 8
      %s406 = scalar_lea.vmem %s11, %s405
      %v407 = vld [vmem:[%s396] sm:$0xff]
      %v408 = vld [vmem:[%s396 + $0x8] sm:$0xff]
      %v409 = vld [vmem:[%s2] sm:$0xff]
      %v410 = vld [vmem:[%s3] sm:$0xff]
      %412 = vset.pattern.permute.xlu0 0
      %413 = vperm.xlu0 %412, %v410
      %v414 = vpop.permute.xlu0 %413
      %vm416 = vcmask 130048
      %v418 = vsel %vm416, %v409, 0
      %420 = vmatprep.subr.mxu0 0.0
      %421 = vmatpush1.msra.mxu0 %v407
      %422 = vmatprep.subr.mxu0 0.0
      %423 = vmatpush1.msra.mxu0 %v408
      %424 = vmatprep.subr.mxu0 0.0
      %425 = vmatpush1.msra.mxu0 0.0
      %426 = vmatprep.subr.mxu0 0.0
      %427 = vmatpush1.msra.mxu0 0.0
      %428 = vmatprep.subr.mxu0 0.0
      %429 = vmatpush1.msra.mxu0 0.0
      %430 = vmatprep.subr.mxu0 0.0
      %431 = vmatpush1.msra.mxu0 0.0
      %432 = vmatprep.subr.mxu0 0.0
      %433 = vmatpush1.msra.mxu0 0.0
      %434 = vmatprep.subr.mxu0 0.0
      %435 = vmatpush1.msra.mxu0 0.0
      %436 = vmatprep.subr.mxu0 0.0
      %437 = vmatpush1.msra.mxu0 0.0
      %438 = vmatprep.subr.mxu0 0.0
      %439 = vmatpush1.msra.mxu0 0.0
      %440 = vmatprep.subr.mxu0 0.0
      %441 = vmatpush1.msra.mxu0 0.0
      %442 = vmatprep.subr.mxu0 0.0
      %443 = vmatpush1.msra.mxu0 0.0
      %444 = vmatprep.subr.mxu0 0.0
      %445 = vmatpush1.msra.mxu0 0.0
      %446 = vmatprep.subr.mxu0 0.0
      %447 = vmatpush1.msra.mxu0 0.0
      %448 = vmatprep.subr.mxu0 0.0
      %449 = vmatpush1.msra.mxu0 0.0
      %450 = vmatprep.subr.mxu0 0.0
      %451 = vmatpush1.msra.mxu0 0.0
      %452 = vmatprep.subr.mxu0 0.0
      %453 = vmatpush1.msra.mxu0 0.0
      %454 = vmatprep.subr.mxu0 0.0
      %455 = vmatpush1.msra.mxu0 0.0
      %456 = vmatprep.subr.mxu0 0.0
      %457 = vmatpush1.msra.mxu0 0.0
      %458 = vmatprep.subr.mxu0 0.0
      %459 = vmatpush1.msra.mxu0 0.0
      %460 = vmatprep.subr.mxu0 0.0
      %461 = vmatpush1.msra.mxu0 0.0
      %462 = vmatprep.subr.mxu0 0.0
      %463 = vmatpush1.msra.mxu0 0.0
      %464 = vmatprep.subr.mxu0 0.0
      %465 = vmatpush1.msra.mxu0 0.0
      %466 = vmatprep.subr.mxu0 0.0
      %467 = vmatpush1.msra.mxu0 0.0
      %468 = vmatprep.subr.mxu0 0.0
      %469 = vmatpush1.msra.mxu0 0.0
      %470 = vmatprep.subr.mxu0 0.0
      %471 = vmatpush1.msra.mxu0 0.0
      %472 = vmatprep.subr.mxu0 0.0
      %473 = vmatpush1.msra.mxu0 0.0
      %474 = vmatprep.subr.mxu0 0.0
      %475 = vmatpush1.msra.mxu0 0.0
      %476 = vmatprep.subr.mxu0 0.0
      %477 = vmatpush1.msra.mxu0 0.0
      %478 = vmatprep.subr.mxu0 0.0
      %479 = vmatpush1.msra.mxu0 0.0
      %480 = vmatprep.subr.mxu0 0.0
      %481 = vmatpush1.msra.mxu0 0.0
      %482 = vmatprep.subr.mxu0 0.0
      %483 = vmatpush1.msra.mxu0 0.0
      %484 = vmatprep.mubr.f32.mxu0 0.0
      %485 = vmatmul.mubr.f32.gmra.mrb[0].mxu0 %v418
      %v486 = vpop.f32.mrb[0].mxu0
      %v487 = vadd.f32 %v414, %v486
      %v488 = vpop.f32.mrb[0].mxu0
      %489 = vdwg.mxu0
      %v490 = vld [vmem:[%s4] sm:$0xff]
      %v491 = vld [vmem:[%s4 + $0x8] sm:$0xff]
      %v492 = vld [vmem:[%s4 + $0x10] sm:$0xff]
      %v493 = vld [vmem:[%s4 + $0x18] sm:$0xff]
      %v494 = vld [vmem:[%s4 + $0x20] sm:$0xff]
      %v495 = vld [vmem:[%s4 + $0x28] sm:$0xff]
      %v496 = vld [vmem:[%s4 + $0x30] sm:$0xff]
      %v497 = vld [vmem:[%s4 + $0x38] sm:$0xff]
      %v498 = vld [vmem:[%s4 + $0x40] sm:$0xff]
      %v499 = vld [vmem:[%s4 + $0x48] sm:$0xff]
      %v500 = vld [vmem:[%s4 + $0x50] sm:$0xff]
      %v501 = vld [vmem:[%s4 + $0x58] sm:$0xff]
      %v502 = vld [vmem:[%s4 + $0x60] sm:$0xff]
      %v503 = vld [vmem:[%s4 + $0x68] sm:$0xff]
      %v504 = vld [vmem:[%s4 + $0x70] sm:$0xff]
      %v505 = vld [vmem:[%s4 + $0x78] sm:$0xff]
      %v506 = vld [vmem:[%s4 + $0x80] sm:$0xff]
      %v507 = vld [vmem:[%s4 + $0x88] sm:$0xff]
      %v508 = vld [vmem:[%s4 + $0x90] sm:$0xff]
      %v509 = vld [vmem:[%s4 + $0x98] sm:$0xff]
      %v510 = vld [vmem:[%s4 + $0xa0] sm:$0xff]
      %v511 = vld [vmem:[%s4 + $0xa8] sm:$0xff]
      %v512 = vld [vmem:[%s4 + $0xb0] sm:$0xff]
      %v513 = vld [vmem:[%s4 + $0xb8] sm:$0xff]
      %s514 = scalar_lea.vmem %s2, 8
      %v515 = vld [vmem:[%s514] sm:$0xff]
      %v517 = vsel %vm416, %v515, 0
      %519 = vmatprep.subr.mxu0 0.0
      %520 = vmatpush1.msra.mxu0 %v407
      %521 = vmatprep.subr.mxu0 0.0
      %522 = vmatpush1.msra.mxu0 %v408
      %523 = vmatprep.subr.mxu0 0.0
      %524 = vmatpush1.msra.mxu0 0.0
      %525 = vmatprep.subr.mxu0 0.0
      %526 = vmatpush1.msra.mxu0 0.0
      %527 = vmatprep.subr.mxu0 0.0
      %528 = vmatpush1.msra.mxu0 0.0
      %529 = vmatprep.subr.mxu0 0.0
      %530 = vmatpush1.msra.mxu0 0.0
      %531 = vmatprep.subr.mxu0 0.0
      %532 = vmatpush1.msra.mxu0 0.0
      %533 = vmatprep.subr.mxu0 0.0
      %534 = vmatpush1.msra.mxu0 0.0
      %535 = vmatprep.subr.mxu0 0.0
      %536 = vmatpush1.msra.mxu0 0.0
      %537 = vmatprep.subr.mxu0 0.0
      %538 = vmatpush1.msra.mxu0 0.0
      %539 = vmatprep.subr.mxu0 0.0
      %540 = vmatpush1.msra.mxu0 0.0
      %541 = vmatprep.subr.mxu0 0.0
      %542 = vmatpush1.msra.mxu0 0.0
      %543 = vmatprep.subr.mxu0 0.0
      %544 = vmatpush1.msra.mxu0 0.0
      %545 = vmatprep.subr.mxu0 0.0
      %546 = vmatpush1.msra.mxu0 0.0
      %547 = vmatprep.subr.mxu0 0.0
      %548 = vmatpush1.msra.mxu0 0.0
      %549 = vmatprep.subr.mxu0 0.0
      %550 = vmatpush1.msra.mxu0 0.0
      %551 = vmatprep.subr.mxu0 0.0
      %552 = vmatpush1.msra.mxu0 0.0
      %553 = vmatprep.subr.mxu0 0.0
      %554 = vmatpush1.msra.mxu0 0.0
      %555 = vmatprep.subr.mxu0 0.0
      %556 = vmatpush1.msra.mxu0 0.0
      %557 = vmatprep.subr.mxu0 0.0
      %558 = vmatpush1.msra.mxu0 0.0
      %559 = vmatprep.subr.mxu0 0.0
      %560 = vmatpush1.msra.mxu0 0.0
      %561 = vmatprep.subr.mxu0 0.0
      %562 = vmatpush1.msra.mxu0 0.0
      %563 = vmatprep.subr.mxu0 0.0
      %564 = vmatpush1.msra.mxu0 0.0
      %565 = vmatprep.subr.mxu0 0.0
      %566 = vmatpush1.msra.mxu0 0.0
      %567 = vmatprep.subr.mxu0 0.0
      %568 = vmatpush1.msra.mxu0 0.0
      %569 = vmatprep.subr.mxu0 0.0
      %570 = vmatpush1.msra.mxu0 0.0
      %571 = vmatprep.subr.mxu0 0.0
      %572 = vmatpush1.msra.mxu0 0.0
      %573 = vmatprep.subr.mxu0 0.0
      %574 = vmatpush1.msra.mxu0 0.0
      %575 = vmatprep.subr.mxu0 0.0
      %576 = vmatpush1.msra.mxu0 0.0
      %577 = vmatprep.subr.mxu0 0.0
      %578 = vmatpush1.msra.mxu0 0.0
      %579 = vmatprep.subr.mxu0 0.0
      %580 = vmatpush1.msra.mxu0 0.0
      %581 = vmatprep.subr.mxu0 0.0
      %582 = vmatpush1.msra.mxu0 0.0
      %583 = vmatprep.mubr.f32.mxu0 0.0
      %584 = vmatmul.mubr.f32.gmra.mrb[0].mxu0 %v517
      %v585 = vpop.f32.mrb[0].mxu0
      %v586 = vadd.f32 %v414, %v585
      %v587 = vpop.f32.mrb[0].mxu0
      %588 = vdwg.mxu0
      %s589 = scalar_lea.vmem %s4, 192
      %v590 = vld [vmem:[%s589] sm:$0xff]
      %v591 = vld [vmem:[%s589 + $0x8] sm:$0xff]
      %v592 = vld [vmem:[%s589 + $0x10] sm:$0xff]
      %v593 = vld [vmem:[%s589 + $0x18] sm:$0xff]
      %v594 = vld [vmem:[%s589 + $0x20] sm:$0xff]
      %v595 = vld [vmem:[%s589 + $0x28] sm:$0xff]
      %v596 = vld [vmem:[%s589 + $0x30] sm:$0xff]
      %v597 = vld [vmem:[%s589 + $0x38] sm:$0xff]
      %v598 = vld [vmem:[%s589 + $0x40] sm:$0xff]
      %v599 = vld [vmem:[%s589 + $0x48] sm:$0xff]
      %v600 = vld [vmem:[%s589 + $0x50] sm:$0xff]
      %v601 = vld [vmem:[%s589 + $0x58] sm:$0xff]
      %v602 = vld [vmem:[%s589 + $0x60] sm:$0xff]
      %v603 = vld [vmem:[%s589 + $0x68] sm:$0xff]
      %v604 = vld [vmem:[%s589 + $0x70] sm:$0xff]
      %v605 = vld [vmem:[%s589 + $0x78] sm:$0xff]
      %v606 = vld [vmem:[%s589 + $0x80] sm:$0xff]
      %v607 = vld [vmem:[%s589 + $0x88] sm:$0xff]
      %v608 = vld [vmem:[%s589 + $0x90] sm:$0xff]
      %v609 = vld [vmem:[%s589 + $0x98] sm:$0xff]
      %v610 = vld [vmem:[%s589 + $0xa0] sm:$0xff]
      %v611 = vld [vmem:[%s589 + $0xa8] sm:$0xff]
      %v612 = vld [vmem:[%s589 + $0xb0] sm:$0xff]
      %v613 = vld [vmem:[%s589 + $0xb8] sm:$0xff]
      %vm614 = vcmask 523264
      %v616 = vsel %vm614, %v586, 0
      %618 = vmatprep.subr.mxu0 %v591
      %619 = vmatpush1.msra.mxu0 %v590
      %620 = vmatprep.subr.mxu0 %v594
      %621 = vmatpush1.msra.mxu0 %v593
      %622 = vmatprep.subr.mxu0 %v597
      %623 = vmatpush1.msra.mxu0 %v596
      %624 = vmatprep.subr.mxu0 %v600
      %625 = vmatpush1.msra.mxu0 %v599
      %626 = vmatprep.subr.mxu0 %v603
      %627 = vmatpush1.msra.mxu0 %v602
      %628 = vmatprep.subr.mxu0 %v606
      %629 = vmatpush1.msra.mxu0 %v605
      %630 = vmatprep.subr.mxu0 %v609
      %631 = vmatpush1.msra.mxu0 %v608
      %632 = vmatprep.subr.mxu0 %v612
      %633 = vmatpush1.msra.mxu0 %v611
      %634 = vmatprep.subr.mxu0 0.0
      %635 = vmatpush1.msra.mxu0 0.0
      %636 = vmatprep.subr.mxu0 0.0
      %637 = vmatpush1.msra.mxu0 0.0
      %638 = vmatprep.subr.mxu0 0.0
      %639 = vmatpush1.msra.mxu0 0.0
      %640 = vmatprep.subr.mxu0 0.0
      %641 = vmatpush1.msra.mxu0 0.0
      %642 = vmatprep.subr.mxu0 0.0
      %643 = vmatpush1.msra.mxu0 0.0
      %644 = vmatprep.subr.mxu0 0.0
      %645 = vmatpush1.msra.mxu0 0.0
      %646 = vmatprep.subr.mxu0 0.0
      %647 = vmatpush1.msra.mxu0 0.0
      %648 = vmatprep.subr.mxu0 0.0
      %649 = vmatpush1.msra.mxu0 0.0
      %650 = vmatprep.subr.mxu0 0.0
      %651 = vmatpush1.msra.mxu0 0.0
      %652 = vmatprep.subr.mxu0 0.0
      %653 = vmatpush1.msra.mxu0 0.0
      %654 = vmatprep.subr.mxu0 0.0
      %655 = vmatpush1.msra.mxu0 0.0
      %656 = vmatprep.subr.mxu0 0.0
      %657 = vmatpush1.msra.mxu0 0.0
      %658 = vmatprep.subr.mxu0 0.0
      %659 = vmatpush1.msra.mxu0 0.0
      %660 = vmatprep.subr.mxu0 0.0
      %661 = vmatpush1.msra.mxu0 0.0
      %662 = vmatprep.subr.mxu0 0.0
      %663 = vmatpush1.msra.mxu0 0.0
      %664 = vmatprep.subr.mxu0 0.0
      %665 = vmatpush1.msra.mxu0 0.0
      %666 = vmatprep.subr.mxu0 0.0
      %667 = vmatpush1.msra.mxu0 0.0
      %668 = vmatprep.subr.mxu0 0.0
      %669 = vmatpush1.msra.mxu0 0.0
      %670 = vmatprep.subr.mxu0 0.0
      %671 = vmatpush1.msra.mxu0 0.0
      %672 = vmatprep.subr.mxu0 0.0
      %673 = vmatpush1.msra.mxu0 0.0
      %674 = vmatprep.subr.mxu0 0.0
      %675 = vmatpush1.msra.mxu0 0.0
      %676 = vmatprep.subr.mxu0 0.0
      %677 = vmatpush1.msra.mxu0 0.0
      %678 = vmatprep.subr.mxu0 0.0
      %679 = vmatpush1.msra.mxu0 0.0
      %680 = vmatprep.subr.mxu0 0.0
      %681 = vmatpush1.msra.mxu0 0.0
      %682 = vmatprep.mubr.f32.mxu0 0.0
      %683 = vmatmul.mubr.f32.gmra.mrb[0].mxu0 %v616
      %v684 = vpop.f32.mrb[0].mxu0
      %v685 = vadd.f32 0.0, %v684
      %v686 = vpop.f32.mrb[0].mxu0
      %v687 = vadd.f32 0.0, %v686
      %688 = vdwg.mxu0
      %689 = vmatprep.subr.mxu0 0.0
      %690 = vmatpush1.msra.mxu0 %v592
      %691 = vmatprep.subr.mxu0 0.0
      %692 = vmatpush1.msra.mxu0 %v595
      %693 = vmatprep.subr.mxu0 0.0
      %694 = vmatpush1.msra.mxu0 %v598
      %695 = vmatprep.subr.mxu0 0.0
      %696 = vmatpush1.msra.mxu0 %v601
      %697 = vmatprep.subr.mxu0 0.0
      %698 = vmatpush1.msra.mxu0 %v604
      %699 = vmatprep.subr.mxu0 0.0
      %700 = vmatpush1.msra.mxu0 %v607
      %701 = vmatprep.subr.mxu0 0.0
      %702 = vmatpush1.msra.mxu0 %v610
      %703 = vmatprep.subr.mxu0 0.0
      %704 = vmatpush1.msra.mxu0 %v613
      %705 = vmatprep.subr.mxu0 0.0
      %706 = vmatpush1.msra.mxu0 0.0
      %707 = vmatprep.subr.mxu0 0.0
      %708 = vmatpush1.msra.mxu0 0.0
      %709 = vmatprep.subr.mxu0 0.0
      %710 = vmatpush1.msra.mxu0 0.0
      %711 = vmatprep.subr.mxu0 0.0
      %712 = vmatpush1.msra.mxu0 0.0
      %713 = vmatprep.subr.mxu0 0.0
      %714 = vmatpush1.msra.mxu0 0.0
      %715 = vmatprep.subr.mxu0 0.0
      %716 = vmatpush1.msra.mxu0 0.0
      %717 = vmatprep.subr.mxu0 0.0
      %718 = vmatpush1.msra.mxu0 0.0
      %719 = vmatprep.subr.mxu0 0.0
      %720 = vmatpush1.msra.mxu0 0.0
      %721 = vmatprep.subr.mxu0 0.0
      %722 = vmatpush1.msra.mxu0 0.0
      %723 = vmatprep.subr.mxu0 0.0
      %724 = vmatpush1.msra.mxu0 0.0
      %725 = vmatprep.subr.mxu0 0.0
      %726 = vmatpush1.msra.mxu0 0.0
      %727 = vmatprep.subr.mxu0 0.0
      %728 = vmatpush1.msra.mxu0 0.0
      %729 = vmatprep.subr.mxu0 0.0
      %730 = vmatpush1.msra.mxu0 0.0
      %731 = vmatprep.subr.mxu0 0.0
      %732 = vmatpush1.msra.mxu0 0.0
      %733 = vmatprep.subr.mxu0 0.0
      %734 = vmatpush1.msra.mxu0 0.0
      %735 = vmatprep.subr.mxu0 0.0
      %736 = vmatpush1.msra.mxu0 0.0
      %737 = vmatprep.subr.mxu0 0.0
      %738 = vmatpush1.msra.mxu0 0.0
      %739 = vmatprep.subr.mxu0 0.0
      %740 = vmatpush1.msra.mxu0 0.0
      %741 = vmatprep.subr.mxu0 0.0
      %742 = vmatpush1.msra.mxu0 0.0
      %743 = vmatprep.subr.mxu0 0.0
      %744 = vmatpush1.msra.mxu0 0.0
      %745 = vmatprep.subr.mxu0 0.0
      %746 = vmatpush1.msra.mxu0 0.0
      %747 = vmatprep.subr.mxu0 0.0
      %748 = vmatpush1.msra.mxu0 0.0
      %749 = vmatprep.subr.mxu0 0.0
      %750 = vmatpush1.msra.mxu0 0.0
      %751 = vmatprep.subr.mxu0 0.0
      %752 = vmatpush1.msra.mxu0 0.0
      %753 = vmatprep.mubr.f32.mxu0 0.0
      %754 = vmatmul.mubr.f32.gmra.mrb[0].mxu0 %v616
      %v755 = vpop.f32.mrb[0].mxu0
      %v756 = vadd.f32 0.0, %v755
      %v757 = vpop.f32.mrb[0].mxu0
      %758 = vdwg.mxu0
      %v760 = vsel %vm614, %v487, 0
      %762 = vmatprep.subr.mxu0 %v491
      %763 = vmatpush1.msra.mxu0 %v490
      %764 = vmatprep.subr.mxu0 %v494
      %765 = vmatpush1.msra.mxu0 %v493
      %766 = vmatprep.subr.mxu0 %v497
      %767 = vmatpush1.msra.mxu0 %v496
      %768 = vmatprep.subr.mxu0 %v500
      %769 = vmatpush1.msra.mxu0 %v499
      %770 = vmatprep.subr.mxu0 %v503
      %771 = vmatpush1.msra.mxu0 %v502
      %772 = vmatprep.subr.mxu0 %v506
      %773 = vmatpush1.msra.mxu0 %v505
      %774 = vmatprep.subr.mxu0 %v509
      %775 = vmatpush1.msra.mxu0 %v508
      %776 = vmatprep.subr.mxu0 %v512
      %777 = vmatpush1.msra.mxu0 %v511
      %778 = vmatprep.subr.mxu0 0.0
      %779 = vmatpush1.msra.mxu0 0.0
      %780 = vmatprep.subr.mxu0 0.0
      %781 = vmatpush1.msra.mxu0 0.0
      %782 = vmatprep.subr.mxu0 0.0
      %783 = vmatpush1.msra.mxu0 0.0
      %784 = vmatprep.subr.mxu0 0.0
      %785 = vmatpush1.msra.mxu0 0.0
      %786 = vmatprep.subr.mxu0 0.0
      %787 = vmatpush1.msra.mxu0 0.0
      %788 = vmatprep.subr.mxu0 0.0
      %789 = vmatpush1.msra.mxu0 0.0
      %790 = vmatprep.subr.mxu0 0.0
      %791 = vmatpush1.msra.mxu0 0.0
      %792 = vmatprep.subr.mxu0 0.0
      %793 = vmatpush1.msra.mxu0 0.0
      %794 = vmatprep.subr.mxu0 0.0
      %795 = vmatpush1.msra.mxu0 0.0
      %796 = vmatprep.subr.mxu0 0.0
      %797 = vmatpush1.msra.mxu0 0.0
      %798 = vmatprep.subr.mxu0 0.0
      %799 = vmatpush1.msra.mxu0 0.0
      %800 = vmatprep.subr.mxu0 0.0
      %801 = vmatpush1.msra.mxu0 0.0
      %802 = vmatprep.subr.mxu0 0.0
      %803 = vmatpush1.msra.mxu0 0.0
      %804 = vmatprep.subr.mxu0 0.0
      %805 = vmatpush1.msra.mxu0 0.0
      %806 = vmatprep.subr.mxu0 0.0
      %807 = vmatpush1.msra.mxu0 0.0
      %808 = vmatprep.subr.mxu0 0.0
      %809 = vmatpush1.msra.mxu0 0.0
      %810 = vmatprep.subr.mxu0 0.0
      %811 = vmatpush1.msra.mxu0 0.0
      %812 = vmatprep.subr.mxu0 0.0
      %813 = vmatpush1.msra.mxu0 0.0
      %814 = vmatprep.subr.mxu0 0.0
      %815 = vmatpush1.msra.mxu0 0.0
      %816 = vmatprep.subr.mxu0 0.0
      %817 = vmatpush1.msra.mxu0 0.0
      %818 = vmatprep.subr.mxu0 0.0
      %819 = vmatpush1.msra.mxu0 0.0
      %820 = vmatprep.subr.mxu0 0.0
      %821 = vmatpush1.msra.mxu0 0.0
      %822 = vmatprep.subr.mxu0 0.0
      %823 = vmatpush1.msra.mxu0 0.0
      %824 = vmatprep.subr.mxu0 0.0
      %825 = vmatpush1.msra.mxu0 0.0
      %826 = vmatprep.mubr.f32.mxu0 0.0
      %827 = vmatmul.mubr.f32.gmra.mrb[0].mxu0 %v760
      %v828 = vpop.f32.mrb[0].mxu0
      %v829 = vadd.f32 %v685, %v828
      %v830 = vpop.f32.mrb[0].mxu0
      %v831 = vadd.f32 %v687, %v830
      %832 = vdwg.mxu0
      %833 = vmatprep.subr.mxu0 0.0
      %834 = vmatpush1.msra.mxu0 %v492
      %835 = vmatprep.subr.mxu0 0.0
      %836 = vmatpush1.msra.mxu0 %v495
      %837 = vmatprep.subr.mxu0 0.0
      %838 = vmatpush1.msra.mxu0 %v498
      %839 = vmatprep.subr.mxu0 0.0
      %840 = vmatpush1.msra.mxu0 %v501
      %841 = vmatprep.subr.mxu0 0.0
      %842 = vmatpush1.msra.mxu0 %v504
      %843 = vmatprep.subr.mxu0 0.0
      %844 = vmatpush1.msra.mxu0 %v507
      %845 = vmatprep.subr.mxu0 0.0
      %846 = vmatpush1.msra.mxu0 %v510
      %847 = vmatprep.subr.mxu0 0.0
      %848 = vmatpush1.msra.mxu0 %v513
      %849 = vmatprep.subr.mxu0 0.0
      %850 = vmatpush1.msra.mxu0 0.0
      %851 = vmatprep.subr.mxu0 0.0
      %852 = vmatpush1.msra.mxu0 0.0
      %853 = vmatprep.subr.mxu0 0.0
      %854 = vmatpush1.msra.mxu0 0.0
      %855 = vmatprep.subr.mxu0 0.0
      %856 = vmatpush1.msra.mxu0 0.0
      %857 = vmatprep.subr.mxu0 0.0
      %858 = vmatpush1.msra.mxu0 0.0
      %859 = vmatprep.subr.mxu0 0.0
      %860 = vmatpush1.msra.mxu0 0.0
      %861 = vmatprep.subr.mxu0 0.0
      %862 = vmatpush1.msra.mxu0 0.0
      %863 = vmatprep.subr.mxu0 0.0
      %864 = vmatpush1.msra.mxu0 0.0
      %865 = vmatprep.subr.mxu0 0.0
      %866 = vmatpush1.msra.mxu0 0.0
      %867 = vmatprep.subr.mxu0 0.0
      %868 = vmatpush1.msra.mxu0 0.0
      %869 = vmatprep.subr.mxu0 0.0
      %870 = vmatpush1.msra.mxu0 0.0
      %871 = vmatprep.subr.mxu0 0.0
      %872 = vmatpush1.msra.mxu0 0.0
      %873 = vmatprep.subr.mxu0 0.0
      %874 = vmatpush1.msra.mxu0 0.0
      %875 = vmatprep.subr.mxu0 0.0
      %876 = vmatpush1.msra.mxu0 0.0
      %877 = vmatprep.subr.mxu0 0.0
      %878 = vmatpush1.msra.mxu0 0.0
      %879 = vmatprep.subr.mxu0 0.0
      %880 = vmatpush1.msra.mxu0 0.0
      %881 = vmatprep.subr.mxu0 0.0
      %882 = vmatpush1.msra.mxu0 0.0
      %883 = vmatprep.subr.mxu0 0.0
      %884 = vmatpush1.msra.mxu0 0.0
      %885 = vmatprep.subr.mxu0 0.0
      %886 = vmatpush1.msra.mxu0 0.0
      %887 = vmatprep.subr.mxu0 0.0
      %888 = vmatpush1.msra.mxu0 0.0
      %889 = vmatprep.subr.mxu0 0.0
      %890 = vmatpush1.msra.mxu0 0.0
      %891 = vmatprep.subr.mxu0 0.0
      %892 = vmatpush1.msra.mxu0 0.0
      %893 = vmatprep.subr.mxu0 0.0
      %894 = vmatpush1.msra.mxu0 0.0
      %895 = vmatprep.subr.mxu0 0.0
      %896 = vmatpush1.msra.mxu0 0.0
      %897 = vmatprep.mubr.f32.mxu0 0.0
      %898 = vmatmul.mubr.f32.gmra.mrb[0].mxu0 %v760
      %v899 = vpop.f32.mrb[0].mxu0
      %v900 = vadd.f32 %v756, %v899
      %v901 = vpop.f32.mrb[0].mxu0
      %902 = vdwg.mxu0
      %s903 = scalar_lea.vmem %s2, 16
      %v904 = vld [vmem:[%s903] sm:$0xff]
      %v906 = vsel %vm416, %v904, 0
      %908 = vmatprep.subr.mxu0 0.0
      %909 = vmatpush1.msra.mxu0 %v407
      %910 = vmatprep.subr.mxu0 0.0
      %911 = vmatpush1.msra.mxu0 %v408
      %912 = vmatprep.subr.mxu0 0.0
      %913 = vmatpush1.msra.mxu0 0.0
      %914 = vmatprep.subr.mxu0 0.0
      %915 = vmatpush1.msra.mxu0 0.0
      %916 = vmatprep.subr.mxu0 0.0
      %917 = vmatpush1.msra.mxu0 0.0
      %918 = vmatprep.subr.mxu0 0.0
      %919 = vmatpush1.msra.mxu0 0.0
      %920 = vmatprep.subr.mxu0 0.0
      %921 = vmatpush1.msra.mxu0 0.0
      %922 = vmatprep.subr.mxu0 0.0
      %923 = vmatpush1.msra.mxu0 0.0
      %924 = vmatprep.subr.mxu0 0.0
      %925 = vmatpush1.msra.mxu0 0.0
      %926 = vmatprep.subr.mxu0 0.0
      %927 = vmatpush1.msra.mxu0 0.0
      %928 = vmatprep.subr.mxu0 0.0
      %929 = vmatpush1.msra.mxu0 0.0
      %930 = vmatprep.subr.mxu0 0.0
      %931 = vmatpush1.msra.mxu0 0.0
      %932 = vmatprep.subr.mxu0 0.0
      %933 = vmatpush1.msra.mxu0 0.0
      %934 = vmatprep.subr.mxu0 0.0
      %935 = vmatpush1.msra.mxu0 0.0
      %936 = vmatprep.subr.mxu0 0.0
      %937 = vmatpush1.msra.mxu0 0.0
      %938 = vmatprep.subr.mxu0 0.0
      %939 = vmatpush1.msra.mxu0 0.0
      %940 = vmatprep.subr.mxu0 0.0
      %941 = vmatpush1.msra.mxu0 0.0
      %942 = vmatprep.subr.mxu0 0.0
      %943 = vmatpush1.msra.mxu0 0.0
      %944 = vmatprep.subr.mxu0 0.0
      %945 = vmatpush1.msra.mxu0 0.0
      %946 = vmatprep.subr.mxu0 0.0
      %947 = vmatpush1.msra.mxu0 0.0
      %948 = vmatprep.subr.mxu0 0.0
      %949 = vmatpush1.msra.mxu0 0.0
      %950 = vmatprep.subr.mxu0 0.0
      %951 = vmatpush1.msra.mxu0 0.0
      %952 = vmatprep.subr.mxu0 0.0
      %953 = vmatpush1.msra.mxu0 0.0
      %954 = vmatprep.subr.mxu0 0.0
      %955 = vmatpush1.msra.mxu0 0.0
      %956 = vmatprep.subr.mxu0 0.0
      %957 = vmatpush1.msra.mxu0 0.0
      %958 = vmatprep.subr.mxu0 0.0
      %959 = vmatpush1.msra.mxu0 0.0
      %960 = vmatprep.subr.mxu0 0.0
      %961 = vmatpush1.msra.mxu0 0.0
      %962 = vmatprep.subr.mxu0 0.0
      %963 = vmatpush1.msra.mxu0 0.0
      %964 = vmatprep.subr.mxu0 0.0
      %965 = vmatpush1.msra.mxu0 0.0
      %966 = vmatprep.subr.mxu0 0.0
      %967 = vmatpush1.msra.mxu0 0.0
      %968 = vmatprep.subr.mxu0 0.0
      %969 = vmatpush1.msra.mxu0 0.0
      %970 = vmatprep.subr.mxu0 0.0
      %971 = vmatpush1.msra.mxu0 0.0
      %972 = vmatprep.mubr.f32.mxu0 0.0
      %973 = vmatmul.mubr.f32.gmra.mrb[0].mxu0 %v906
      %v974 = vpop.f32.mrb[0].mxu0
      %v975 = vadd.f32 %v414, %v974
      %v976 = vpop.f32.mrb[0].mxu0
      %977 = vdwg.mxu0
      %s978 = scalar_lea.vmem %s4, 384
      %v979 = vld [vmem:[%s978] sm:$0xff]
      %v980 = vld [vmem:[%s978 + $0x8] sm:$0xff]
      %v981 = vld [vmem:[%s978 + $0x10] sm:$0xff]
      %v982 = vld [vmem:[%s978 + $0x18] sm:$0xff]
      %v983 = vld [vmem:[%s978 + $0x20] sm:$0xff]
      %v984 = vld [vmem:[%s978 + $0x28] sm:$0xff]
      %v985 = vld [vmem:[%s978 + $0x30] sm:$0xff]
      %v986 = vld [vmem:[%s978 + $0x38] sm:$0xff]
      %v987 = vld [vmem:[%s978 + $0x40] sm:$0xff]
      %v988 = vld [vmem:[%s978 + $0x48] sm:$0xff]
      %v989 = vld [vmem:[%s978 + $0x50] sm:$0xff]
      %v990 = vld [vmem:[%s978 + $0x58] sm:$0xff]
      %v991 = vld [vmem:[%s978 + $0x60] sm:$0xff]
      %v992 = vld [vmem:[%s978 + $0x68] sm:$0xff]
      %v993 = vld [vmem:[%s978 + $0x70] sm:$0xff]
      %v994 = vld [vmem:[%s978 + $0x78] sm:$0xff]
      %v995 = vld [vmem:[%s978 + $0x80] sm:$0xff]
      %v996 = vld [vmem:[%s978 + $0x88] sm:$0xff]
      %v997 = vld [vmem:[%s978 + $0x90] sm:$0xff]
      %v998 = vld [vmem:[%s978 + $0x98] sm:$0xff]
      %v999 = vld [vmem:[%s978 + $0xa0] sm:$0xff]
      %v1000 = vld [vmem:[%s978 + $0xa8] sm:$0xff]
      %v1001 = vld [vmem:[%s978 + $0xb0] sm:$0xff]
      %v1002 = vld [vmem:[%s978 + $0xb8] sm:$0xff]
      %v1004 = vsel %vm614, %v975, 0
      %1006 = vmatprep.subr.mxu0 %v980
      %1007 = vmatpush1.msra.mxu0 %v979
      %1008 = vmatprep.subr.mxu0 %v983
      %1009 = vmatpush1.msra.mxu0 %v982
      %1010 = vmatprep.subr.mxu0 %v986
      %1011 = vmatpush1.msra.mxu0 %v985
      %1012 = vmatprep.subr.mxu0 %v989
      %1013 = vmatpush1.msra.mxu0 %v988
      %1014 = vmatprep.subr.mxu0 %v992
      %1015 = vmatpush1.msra.mxu0 %v991
      %1016 = vmatprep.subr.mxu0 %v995
      %1017 = vmatpush1.msra.mxu0 %v994
      %1018 = vmatprep.subr.mxu0 %v998
      %1019 = vmatpush1.msra.mxu0 %v997
      %1020 = vmatprep.subr.mxu0 %v1001
      %1021 = vmatpush1.msra.mxu0 %v1000
      %1022 = vmatprep.subr.mxu0 0.0
      %1023 = vmatpush1.msra.mxu0 0.0
      %1024 = vmatprep.subr.mxu0 0.0
      %1025 = vmatpush1.msra.mxu0 0.0
      %1026 = vmatprep.subr.mxu0 0.0
      %1027 = vmatpush1.msra.mxu0 0.0
      %1028 = vmatprep.subr.mxu0 0.0
      %1029 = vmatpush1.msra.mxu0 0.0
      %1030 = vmatprep.subr.mxu0 0.0
      %1031 = vmatpush1.msra.mxu0 0.0
      %1032 = vmatprep.subr.mxu0 0.0
      %1033 = vmatpush1.msra.mxu0 0.0
      %1034 = vmatprep.subr.mxu0 0.0
      %1035 = vmatpush1.msra.mxu0 0.0
      %1036 = vmatprep.subr.mxu0 0.0
      %1037 = vmatpush1.msra.mxu0 0.0
      %1038 = vmatprep.subr.mxu0 0.0
      %1039 = vmatpush1.msra.mxu0 0.0
      %1040 = vmatprep.subr.mxu0 0.0
      %1041 = vmatpush1.msra.mxu0 0.0
      %1042 = vmatprep.subr.mxu0 0.0
      %1043 = vmatpush1.msra.mxu0 0.0
      %1044 = vmatprep.subr.mxu0 0.0
      %1045 = vmatpush1.msra.mxu0 0.0
      %1046 = vmatprep.subr.mxu0 0.0
      %1047 = vmatpush1.msra.mxu0 0.0
      %1048 = vmatprep.subr.mxu0 0.0
      %1049 = vmatpush1.msra.mxu0 0.0
      %1050 = vmatprep.subr.mxu0 0.0
      %1051 = vmatpush1.msra.mxu0 0.0
      %1052 = vmatprep.subr.mxu0 0.0
      %1053 = vmatpush1.msra.mxu0 0.0
      %1054 = vmatprep.subr.mxu0 0.0
      %1055 = vmatpush1.msra.mxu0 0.0
      %1056 = vmatprep.subr.mxu0 0.0
      %1057 = vmatpush1.msra.mxu0 0.0
      %1058 = vmatprep.subr.mxu0 0.0
      %1059 = vmatpush1.msra.mxu0 0.0
      %1060 = vmatprep.subr.mxu0 0.0
      %1061 = vmatpush1.msra.mxu0 0.0
      %1062 = vmatprep.subr.mxu0 0.0
      %1063 = vmatpush1.msra.mxu0 0.0
      %1064 = vmatprep.subr.mxu0 0.0
      %1065 = vmatpush1.msra.mxu0 0.0
      %1066 = vmatprep.subr.mxu0 0.0
      %1067 = vmatpush1.msra.mxu0 0.0
      %1068 = vmatprep.subr.mxu0 0.0
      %1069 = vmatpush1.msra.mxu0 0.0
      %1070 = vmatprep.mubr.f32.mxu0 0.0
      %1071 = vmatmul.mubr.f32.gmra.mrb[0].mxu0 %v1004
      %v1072 = vpop.f32.mrb[0].mxu0
      %v1073 = vadd.f32 0.0, %v1072
      %v1074 = vpop.f32.mrb[0].mxu0
      %v1075 = vadd.f32 0.0, %v1074
      %1076 = vdwg.mxu0
      %1077 = vmatprep.subr.mxu0 0.0
      %1078 = vmatpush1.msra.mxu0 %v981
      %1079 = vmatprep.subr.mxu0 0.0
      %1080 = vmatpush1.msra.mxu0 %v984
      %1081 = vmatprep.subr.mxu0 0.0
      %1082 = vmatpush1.msra.mxu0 %v987
      %1083 = vmatprep.subr.mxu0 0.0
      %1084 = vmatpush1.msra.mxu0 %v990
      %1085 = vmatprep.subr.mxu0 0.0
      %1086 = vmatpush1.msra.mxu0 %v993
      %1087 = vmatprep.subr.mxu0 0.0
      %1088 = vmatpush1.msra.mxu0 %v996
      %1089 = vmatprep.subr.mxu0 0.0
      %1090 = vmatpush1.msra.mxu0 %v999
      %1091 = vmatprep.subr.mxu0 0.0
      %1092 = vmatpush1.msra.mxu0 %v1002
      %1093 = vmatprep.subr.mxu0 0.0
      %1094 = vmatpush1.msra.mxu0 0.0
      %1095 = vmatprep.subr.mxu0 0.0
      %1096 = vmatpush1.msra.mxu0 0.0
      %1097 = vmatprep.subr.mxu0 0.0
      %1098 = vmatpush1.msra.mxu0 0.0
      %1099 = vmatprep.subr.mxu0 0.0
      %1100 = vmatpush1.msra.mxu0 0.0
      %1101 = vmatprep.subr.mxu0 0.0
      %1102 = vmatpush1.msra.mxu0 0.0
      %1103 = vmatprep.subr.mxu0 0.0
      %1104 = vmatpush1.msra.mxu0 0.0
      %1105 = vmatprep.subr.mxu0 0.0
      %1106 = vmatpush1.msra.mxu0 0.0
      %1107 = vmatprep.subr.mxu0 0.0
      %1108 = vmatpush1.msra.mxu0 0.0
      %1109 = vmatprep.subr.mxu0 0.0
      %1110 = vmatpush1.msra.mxu0 0.0
      %1111 = vmatprep.subr.mxu0 0.0
      %1112 = vmatpush1.msra.mxu0 0.0
      %1113 = vmatprep.subr.mxu0 0.0
      %1114 = vmatpush1.msra.mxu0 0.0
      %1115 = vmatprep.subr.mxu0 0.0
      %1116 = vmatpush1.msra.mxu0 0.0
      %1117 = vmatprep.subr.mxu0 0.0
      %1118 = vmatpush1.msra.mxu0 0.0
      %1119 = vmatprep.subr.mxu0 0.0
      %1120 = vmatpush1.msra.mxu0 0.0
      %1121 = vmatprep.subr.mxu0 0.0
      %1122 = vmatpush1.msra.mxu0 0.0
      %1123 = vmatprep.subr.mxu0 0.0
      %1124 = vmatpush1.msra.mxu0 0.0
      %1125 = vmatprep.subr.mxu0 0.0
      %1126 = vmatpush1.msra.mxu0 0.0
      %1127 = vmatprep.subr.mxu0 0.0
      %1128 = vmatpush1.msra.mxu0 0.0
      %1129 = vmatprep.subr.mxu0 0.0
      %1130 = vmatpush1.msra.mxu0 0.0
      %1131 = vmatprep.subr.mxu0 0.0
      %1132 = vmatpush1.msra.mxu0 0.0
      %1133 = vmatprep.subr.mxu0 0.0
      %1134 = vmatpush1.msra.mxu0 0.0
      %1135 = vmatprep.subr.mxu0 0.0
      %1136 = vmatpush1.msra.mxu0 0.0
      %1137 = vmatprep.subr.mxu0 0.0
      %1138 = vmatpush1.msra.mxu0 0.0
      %1139 = vmatprep.subr.mxu0 0.0
      %1140 = vmatpush1.msra.mxu0 0.0
      %1141 = vmatprep.mubr.f32.mxu0 0.0
      %1142 = vmatmul.mubr.f32.gmra.mrb[0].mxu0 %v1004
      %v1143 = vpop.f32.mrb[0].mxu0
      %v1144 = vadd.f32 0.0, %v1143
      %v1145 = vpop.f32.mrb[0].mxu0
      %1146 = vdwg.mxu0
      %v1147 = vadd.f32 %v829, %v1073
      %v1148 = vadd.f32 %v831, %v1075
      %v1149 = vadd.f32 %v900, %v1144
      %s1150 = scalar_lea.vmem %s2, 24
      %v1151 = vld [vmem:[%s1150] sm:$0xff]
      %v1153 = vsel %vm416, %v1151, 0
      %1155 = vmatprep.subr.mxu0 0.0
      %1156 = vmatpush1.msra.mxu0 %v407
      %1157 = vmatprep.subr.mxu0 0.0
      %1158 = vmatpush1.msra.mxu0 %v408
      %1159 = vmatprep.subr.mxu0 0.0
      %1160 = vmatpush1.msra.mxu0 0.0
      %1161 = vmatprep.subr.mxu0 0.0
      %1162 = vmatpush1.msra.mxu0 0.0
      %1163 = vmatprep.subr.mxu0 0.0
      %1164 = vmatpush1.msra.mxu0 0.0
      %1165 = vmatprep.subr.mxu0 0.0
      %1166 = vmatpush1.msra.mxu0 0.0
      %1167 = vmatprep.subr.mxu0 0.0
      %1168 = vmatpush1.msra.mxu0 0.0
      %1169 = vmatprep.subr.mxu0 0.0
      %1170 = vmatpush1.msra.mxu0 0.0
      %1171 = vmatprep.subr.mxu0 0.0
      %1172 = vmatpush1.msra.mxu0 0.0
      %1173 = vmatprep.subr.mxu0 0.0
      %1174 = vmatpush1.msra.mxu0 0.0
      %1175 = vmatprep.subr.mxu0 0.0
      %1176 = vmatpush1.msra.mxu0 0.0
      %1177 = vmatprep.subr.mxu0 0.0
      %1178 = vmatpush1.msra.mxu0 0.0
      %1179 = vmatprep.subr.mxu0 0.0
      %1180 = vmatpush1.msra.mxu0 0.0
      %1181 = vmatprep.subr.mxu0 0.0
      %1182 = vmatpush1.msra.mxu0 0.0
      %1183 = vmatprep.subr.mxu0 0.0
      %1184 = vmatpush1.msra.mxu0 0.0
      %1185 = vmatprep.subr.mxu0 0.0
      %1186 = vmatpush1.msra.mxu0 0.0
      %1187 = vmatprep.subr.mxu0 0.0
      %1188 = vmatpush1.msra.mxu0 0.0
      %1189 = vmatprep.subr.mxu0 0.0
      %1190 = vmatpush1.msra.mxu0 0.0
      %1191 = vmatprep.subr.mxu0 0.0
      %1192 = vmatpush1.msra.mxu0 0.0
      %1193 = vmatprep.subr.mxu0 0.0
      %1194 = vmatpush1.msra.mxu0 0.0
      %1195 = vmatprep.subr.mxu0 0.0
      %1196 = vmatpush1.msra.mxu0 0.0
      %1197 = vmatprep.subr.mxu0 0.0
      %1198 = vmatpush1.msra.mxu0 0.0
      %1199 = vmatprep.subr.mxu0 0.0
      %1200 = vmatpush1.msra.mxu0 0.0
      %1201 = vmatprep.subr.mxu0 0.0
      %1202 = vmatpush1.msra.mxu0 0.0
      %1203 = vmatprep.subr.mxu0 0.0
      %1204 = vmatpush1.msra.mxu0 0.0
      %1205 = vmatprep.subr.mxu0 0.0
      %1206 = vmatpush1.msra.mxu0 0.0
      %1207 = vmatprep.subr.mxu0 0.0
      %1208 = vmatpush1.msra.mxu0 0.0
      %1209 = vmatprep.subr.mxu0 0.0
      %1210 = vmatpush1.msra.mxu0 0.0
      %1211 = vmatprep.subr.mxu0 0.0
      %1212 = vmatpush1.msra.mxu0 0.0
      %1213 = vmatprep.subr.mxu0 0.0
      %1214 = vmatpush1.msra.mxu0 0.0
      %1215 = vmatprep.subr.mxu0 0.0
      %1216 = vmatpush1.msra.mxu0 0.0
      %1217 = vmatprep.subr.mxu0 0.0
      %1218 = vmatpush1.msra.mxu0 0.0
      %1219 = vmatprep.mubr.f32.mxu0 0.0
      %1220 = vmatmul.mubr.f32.gmra.mrb[0].mxu0 %v1153
      %v1221 = vpop.f32.mrb[0].mxu0
      %v1222 = vadd.f32 %v414, %v1221
      %v1223 = vpop.f32.mrb[0].mxu0
      %1224 = vdwg.mxu0
      %s1225 = scalar_lea.vmem %s4, 576
      %v1226 = vld [vmem:[%s1225] sm:$0xff]
      %v1227 = vld [vmem:[%s1225 + $0x8] sm:$0xff]
      %v1228 = vld [vmem:[%s1225 + $0x10] sm:$0xff]
      %v1229 = vld [vmem:[%s1225 + $0x18] sm:$0xff]
      %v1230 = vld [vmem:[%s1225 + $0x20] sm:$0xff]
      %v1231 = vld [vmem:[%s1225 + $0x28] sm:$0xff]
      %v1232 = vld [vmem:[%s1225 + $0x30] sm:$0xff]
      %v1233 = vld [vmem:[%s1225 + $0x38] sm:$0xff]
      %v1234 = vld [vmem:[%s1225 + $0x40] sm:$0xff]
      %v1235 = vld [vmem:[%s1225 + $0x48] sm:$0xff]
      %v1236 = vld [vmem:[%s1225 + $0x50] sm:$0xff]
      %v1237 = vld [vmem:[%s1225 + $0x58] sm:$0xff]
      %v1238 = vld [vmem:[%s1225 + $0x60] sm:$0xff]
      %v1239 = vld [vmem:[%s1225 + $0x68] sm:$0xff]
      %v1240 = vld [vmem:[%s1225 + $0x70] sm:$0xff]
      %v1241 = vld [vmem:[%s1225 + $0x78] sm:$0xff]
      %v1242 = vld [vmem:[%s1225 + $0x80] sm:$0xff]
      %v1243 = vld [vmem:[%s1225 + $0x88] sm:$0xff]
      %v1244 = vld [vmem:[%s1225 + $0x90] sm:$0xff]
      %v1245 = vld [vmem:[%s1225 + $0x98] sm:$0xff]
      %v1246 = vld [vmem:[%s1225 + $0xa0] sm:$0xff]
      %v1247 = vld [vmem:[%s1225 + $0xa8] sm:$0xff]
      %v1248 = vld [vmem:[%s1225 + $0xb0] sm:$0xff]
      %v1249 = vld [vmem:[%s1225 + $0xb8] sm:$0xff]
      %v1251 = vsel %vm614, %v1222, 0
      %1253 = vmatprep.subr.mxu0 %v1227
      %1254 = vmatpush1.msra.mxu0 %v1226
      %1255 = vmatprep.subr.mxu0 %v1230
      %1256 = vmatpush1.msra.mxu0 %v1229
      %1257 = vmatprep.subr.mxu0 %v1233
      %1258 = vmatpush1.msra.mxu0 %v1232
      %1259 = vmatprep.subr.mxu0 %v1236
      %1260 = vmatpush1.msra.mxu0 %v1235
      %1261 = vmatprep.subr.mxu0 %v1239
      %1262 = vmatpush1.msra.mxu0 %v1238
      %1263 = vmatprep.subr.mxu0 %v1242
      %1264 = vmatpush1.msra.mxu0 %v1241
      %1265 = vmatprep.subr.mxu0 %v1245
      %1266 = vmatpush1.msra.mxu0 %v1244
      %1267 = vmatprep.subr.mxu0 %v1248
      %1268 = vmatpush1.msra.mxu0 %v1247
      %1269 = vmatprep.subr.mxu0 0.0
      %1270 = vmatpush1.msra.mxu0 0.0
      %1271 = vmatprep.subr.mxu0 0.0
      %1272 = vmatpush1.msra.mxu0 0.0
      %1273 = vmatprep.subr.mxu0 0.0
      %1274 = vmatpush1.msra.mxu0 0.0
      %1275 = vmatprep.subr.mxu0 0.0
      %1276 = vmatpush1.msra.mxu0 0.0
      %1277 = vmatprep.subr.mxu0 0.0
      %1278 = vmatpush1.msra.mxu0 0.0
      %1279 = vmatprep.subr.mxu0 0.0
      %1280 = vmatpush1.msra.mxu0 0.0
      %1281 = vmatprep.subr.mxu0 0.0
      %1282 = vmatpush1.msra.mxu0 0.0
      %1283 = vmatprep.subr.mxu0 0.0
      %1284 = vmatpush1.msra.mxu0 0.0
      %1285 = vmatprep.subr.mxu0 0.0
      %1286 = vmatpush1.msra.mxu0 0.0
      %1287 = vmatprep.subr.mxu0 0.0
      %1288 = vmatpush1.msra.mxu0 0.0
      %1289 = vmatprep.subr.mxu0 0.0
      %1290 = vmatpush1.msra.mxu0 0.0
      %1291 = vmatprep.subr.mxu0 0.0
      %1292 = vmatpush1.msra.mxu0 0.0
      %1293 = vmatprep.subr.mxu0 0.0
      %1294 = vmatpush1.msra.mxu0 0.0
      %1295 = vmatprep.subr.mxu0 0.0
      %1296 = vmatpush1.msra.mxu0 0.0
      %1297 = vmatprep.subr.mxu0 0.0
      %1298 = vmatpush1.msra.mxu0 0.0
      %1299 = vmatprep.subr.mxu0 0.0
      %1300 = vmatpush1.msra.mxu0 0.0
      %1301 = vmatprep.subr.mxu0 0.0
      %1302 = vmatpush1.msra.mxu0 0.0
      %1303 = vmatprep.subr.mxu0 0.0
      %1304 = vmatpush1.msra.mxu0 0.0
      %1305 = vmatprep.subr.mxu0 0.0
      %1306 = vmatpush1.msra.mxu0 0.0
      %1307 = vmatprep.subr.mxu0 0.0
      %1308 = vmatpush1.msra.mxu0 0.0
      %1309 = vmatprep.subr.mxu0 0.0
      %1310 = vmatpush1.msra.mxu0 0.0
      %1311 = vmatprep.subr.mxu0 0.0
      %1312 = vmatpush1.msra.mxu0 0.0
      %1313 = vmatprep.subr.mxu0 0.0
      %1314 = vmatpush1.msra.mxu0 0.0
      %1315 = vmatprep.subr.mxu0 0.0
      %1316 = vmatpush1.msra.mxu0 0.0
      %1317 = vmatprep.mubr.f32.mxu0 0.0
      %1318 = vmatmul.mubr.f32.gmra.mrb[0].mxu0 %v1251
      %v1319 = vpop.f32.mrb[0].mxu0
      %v1320 = vadd.f32 0.0, %v1319
      %v1321 = vpop.f32.mrb[0].mxu0
      %v1322 = vadd.f32 0.0, %v1321
      %1323 = vdwg.mxu0
      %1324 = vmatprep.subr.mxu0 0.0
      %1325 = vmatpush1.msra.mxu0 %v1228
      %1326 = vmatprep.subr.mxu0 0.0
      %1327 = vmatpush1.msra.mxu0 %v1231
      %1328 = vmatprep.subr.mxu0 0.0
      %1329 = vmatpush1.msra.mxu0 %v1234
      %1330 = vmatprep.subr.mxu0 0.0
      %1331 = vmatpush1.msra.mxu0 %v1237
      %1332 = vmatprep.subr.mxu0 0.0
      %1333 = vmatpush1.msra.mxu0 %v1240
      %1334 = vmatprep.subr.mxu0 0.0
      %1335 = vmatpush1.msra.mxu0 %v1243
      %1336 = vmatprep.subr.mxu0 0.0
      %1337 = vmatpush1.msra.mxu0 %v1246
      %1338 = vmatprep.subr.mxu0 0.0
      %1339 = vmatpush1.msra.mxu0 %v1249
      %1340 = vmatprep.subr.mxu0 0.0
      %1341 = vmatpush1.msra.mxu0 0.0
      %1342 = vmatprep.subr.mxu0 0.0
      %1343 = vmatpush1.msra.mxu0 0.0
      %1344 = vmatprep.subr.mxu0 0.0
      %1345 = vmatpush1.msra.mxu0 0.0
      %1346 = vmatprep.subr.mxu0 0.0
      %1347 = vmatpush1.msra.mxu0 0.0
      %1348 = vmatprep.subr.mxu0 0.0
      %1349 = vmatpush1.msra.mxu0 0.0
      %1350 = vmatprep.subr.mxu0 0.0
      %1351 = vmatpush1.msra.mxu0 0.0
      %1352 = vmatprep.subr.mxu0 0.0
      %1353 = vmatpush1.msra.mxu0 0.0
      %1354 = vmatprep.subr.mxu0 0.0
      %1355 = vmatpush1.msra.mxu0 0.0
      %1356 = vmatprep.subr.mxu0 0.0
      %1357 = vmatpush1.msra.mxu0 0.0
      %1358 = vmatprep.subr.mxu0 0.0
      %1359 = vmatpush1.msra.mxu0 0.0
      %1360 = vmatprep.subr.mxu0 0.0
      %1361 = vmatpush1.msra.mxu0 0.0
      %1362 = vmatprep.subr.mxu0 0.0
      %1363 = vmatpush1.msra.mxu0 0.0
      %1364 = vmatprep.subr.mxu0 0.0
      %1365 = vmatpush1.msra.mxu0 0.0
      %1366 = vmatprep.subr.mxu0 0.0
      %1367 = vmatpush1.msra.mxu0 0.0
      %1368 = vmatprep.subr.mxu0 0.0
      %1369 = vmatpush1.msra.mxu0 0.0
      %1370 = vmatprep.subr.mxu0 0.0
      %1371 = vmatpush1.msra.mxu0 0.0
      %1372 = vmatprep.subr.mxu0 0.0
      %1373 = vmatpush1.msra.mxu0 0.0
      %1374 = vmatprep.subr.mxu0 0.0
      %1375 = vmatpush1.msra.mxu0 0.0
      %1376 = vmatprep.subr.mxu0 0.0
      %1377 = vmatpush1.msra.mxu0 0.0
      %1378 = vmatprep.subr.mxu0 0.0
      %1379 = vmatpush1.msra.mxu0 0.0
      %1380 = vmatprep.subr.mxu0 0.0
      %1381 = vmatpush1.msra.mxu0 0.0
      %1382 = vmatprep.subr.mxu0 0.0
      %1383 = vmatpush1.msra.mxu0 0.0
      %1384 = vmatprep.subr.mxu0 0.0
      %1385 = vmatpush1.msra.mxu0 0.0
      %1386 = vmatprep.subr.mxu0 0.0
      %1387 = vmatpush1.msra.mxu0 0.0
      %1388 = vmatprep.mubr.f32.mxu0 0.0
      %1389 = vmatmul.mubr.f32.gmra.mrb[0].mxu0 %v1251
      %v1390 = vpop.f32.mrb[0].mxu0
      %v1391 = vadd.f32 0.0, %v1390
      %v1392 = vpop.f32.mrb[0].mxu0
      %1393 = vdwg.mxu0
      %v1394 = vadd.f32 %v1147, %v1320
      %v1395 = vadd.f32 %v1148, %v1322
      %v1396 = vadd.f32 %v1149, %v1391
      %1397 = vst [vmem:[#allocation2] sm:$0xff] %v1394
      %1398 = vst [vmem:[#allocation2 + $0x8] sm:$0xff] %v1395
      %1399 = vst [vmem:[#allocation2 + $0x10] sm:$0xff] %v1396
      %v1400 = vld [vmem:[%s5] sm:$0xff]
      %v1401 = vld [vmem:[#allocation2] sm:$0xff]
      %v1402 = vld [vmem:[#allocation2 + $0x8] sm:$0xff]
      %v1403 = vld [vmem:[#allocation2 + $0x10] sm:$0xff]
      %v1404 = vld [vmem:[%s6] sm:$0xff]
      %v1405 = vld [vmem:[%s401] sm:$0xff]
      %v1406 = vld [vmem:[%s401 + $0x8] sm:$0xff]
      %v1407 = vld [vmem:[%s401 + $0x10] sm:$0xff]
      %vm1408 = vcmask 64512
      %v1410 = vsel %vm1408, %v1404, 0
      %1412 = vmatprep.subr.mxu0 %v1406
      %1413 = vmatpush1.msra.mxu0 %v1405
      %1414 = vmatprep.subr.mxu0 0.0
      %1415 = vmatpush1.msra.mxu0 0.0
      %1416 = vmatprep.subr.mxu0 0.0
      %1417 = vmatpush1.msra.mxu0 0.0
      %1418 = vmatprep.subr.mxu0 0.0
      %1419 = vmatpush1.msra.mxu0 0.0
      %1420 = vmatprep.subr.mxu0 0.0
      %1421 = vmatpush1.msra.mxu0 0.0
      %1422 = vmatprep.subr.mxu0 0.0
      %1423 = vmatpush1.msra.mxu0 0.0
      %1424 = vmatprep.subr.mxu0 0.0
      %1425 = vmatpush1.msra.mxu0 0.0
      %1426 = vmatprep.subr.mxu0 0.0
      %1427 = vmatpush1.msra.mxu0 0.0
      %1428 = vmatprep.subr.mxu0 0.0
      %1429 = vmatpush1.msra.mxu0 0.0
      %1430 = vmatprep.subr.mxu0 0.0
      %1431 = vmatpush1.msra.mxu0 0.0
      %1432 = vmatprep.subr.mxu0 0.0
      %1433 = vmatpush1.msra.mxu0 0.0
      %1434 = vmatprep.subr.mxu0 0.0
      %1435 = vmatpush1.msra.mxu0 0.0
      %1436 = vmatprep.subr.mxu0 0.0
      %1437 = vmatpush1.msra.mxu0 0.0
      %1438 = vmatprep.subr.mxu0 0.0
      %1439 = vmatpush1.msra.mxu0 0.0
      %1440 = vmatprep.subr.mxu0 0.0
      %1441 = vmatpush1.msra.mxu0 0.0
      %1442 = vmatprep.subr.mxu0 0.0
      %1443 = vmatpush1.msra.mxu0 0.0
      %1444 = vmatprep.subr.mxu0 0.0
      %1445 = vmatpush1.msra.mxu0 0.0
      %1446 = vmatprep.subr.mxu0 0.0
      %1447 = vmatpush1.msra.mxu0 0.0
      %1448 = vmatprep.subr.mxu0 0.0
      %1449 = vmatpush1.msra.mxu0 0.0
      %1450 = vmatprep.subr.mxu0 0.0
      %1451 = vmatpush1.msra.mxu0 0.0
      %1452 = vmatprep.subr.mxu0 0.0
      %1453 = vmatpush1.msra.mxu0 0.0
      %1454 = vmatprep.subr.mxu0 0.0
      %1455 = vmatpush1.msra.mxu0 0.0
      %1456 = vmatprep.subr.mxu0 0.0
      %1457 = vmatpush1.msra.mxu0 0.0
      %1458 = vmatprep.subr.mxu0 0.0
      %1459 = vmatpush1.msra.mxu0 0.0
      %1460 = vmatprep.subr.mxu0 0.0
      %1461 = vmatpush1.msra.mxu0 0.0
      %1462 = vmatprep.subr.mxu0 0.0
      %1463 = vmatpush1.msra.mxu0 0.0
      %1464 = vmatprep.subr.mxu0 0.0
      %1465 = vmatpush1.msra.mxu0 0.0
      %1466 = vmatprep.subr.mxu0 0.0
      %1467 = vmatpush1.msra.mxu0 0.0
      %1468 = vmatprep.subr.mxu0 0.0
      %1469 = vmatpush1.msra.mxu0 0.0
      %1470 = vmatprep.subr.mxu0 0.0
      %1471 = vmatpush1.msra.mxu0 0.0
      %1472 = vmatprep.subr.mxu0 0.0
      %1473 = vmatpush1.msra.mxu0 0.0
      %1474 = vmatprep.subr.mxu0 0.0
      %1475 = vmatpush1.msra.mxu0 0.0
      %1476 = vmatprep.mubr.f32.mxu0 0.0
      %1477 = vmatmul.mubr.f32.gmra.mrb[0].mxu0 %v1410
      %v1478 = vpop.f32.mrb[0].mxu0
      %v1479 = vadd.f32 0.0, %v1478
      %v1480 = vpop.f32.mrb[0].mxu0
      %v1481 = vadd.f32 0.0, %v1480
      %1482 = vdwg.mxu0
      %1483 = vmatprep.subr.mxu0 0.0
      %1484 = vmatpush1.msra.mxu0 %v1407
      %1485 = vmatprep.subr.mxu0 0.0
      %1486 = vmatpush1.msra.mxu0 0.0
      %1487 = vmatprep.subr.mxu0 0.0
      %1488 = vmatpush1.msra.mxu0 0.0
      %1489 = vmatprep.subr.mxu0 0.0
      %1490 = vmatpush1.msra.mxu0 0.0
      %1491 = vmatprep.subr.mxu0 0.0
      %1492 = vmatpush1.msra.mxu0 0.0
      %1493 = vmatprep.subr.mxu0 0.0
      %1494 = vmatpush1.msra.mxu0 0.0
      %1495 = vmatprep.subr.mxu0 0.0
      %1496 = vmatpush1.msra.mxu0 0.0
      %1497 = vmatprep.subr.mxu0 0.0
      %1498 = vmatpush1.msra.mxu0 0.0
      %1499 = vmatprep.subr.mxu0 0.0
      %1500 = vmatpush1.msra.mxu0 0.0
      %1501 = vmatprep.subr.mxu0 0.0
      %1502 = vmatpush1.msra.mxu0 0.0
      %1503 = vmatprep.subr.mxu0 0.0
      %1504 = vmatpush1.msra.mxu0 0.0
      %1505 = vmatprep.subr.mxu0 0.0
      %1506 = vmatpush1.msra.mxu0 0.0
      %1507 = vmatprep.subr.mxu0 0.0
      %1508 = vmatpush1.msra.mxu0 0.0
      %1509 = vmatprep.subr.mxu0 0.0
      %1510 = vmatpush1.msra.mxu0 0.0
      %1511 = vmatprep.subr.mxu0 0.0
      %1512 = vmatpush1.msra.mxu0 0.0
      %1513 = vmatprep.subr.mxu0 0.0
      %1514 = vmatpush1.msra.mxu0 0.0
      %1515 = vmatprep.subr.mxu0 0.0
      %1516 = vmatpush1.msra.mxu0 0.0
      %1517 = vmatprep.subr.mxu0 0.0
      %1518 = vmatpush1.msra.mxu0 0.0
      %1519 = vmatprep.subr.mxu0 0.0
      %1520 = vmatpush1.msra.mxu0 0.0
      %1521 = vmatprep.subr.mxu0 0.0
      %1522 = vmatpush1.msra.mxu0 0.0
      %1523 = vmatprep.subr.mxu0 0.0
      %1524 = vmatpush1.msra.mxu0 0.0
      %1525 = vmatprep.subr.mxu0 0.0
      %1526 = vmatpush1.msra.mxu0 0.0
      %1527 = vmatprep.subr.mxu0 0.0
      %1528 = vmatpush1.msra.mxu0 0.0
      %1529 = vmatprep.subr.mxu0 0.0
      %1530 = vmatpush1.msra.mxu0 0.0
      %1531 = vmatprep.subr.mxu0 0.0
      %1532 = vmatpush1.msra.mxu0 0.0
      %1533 = vmatprep.subr.mxu0 0.0
      %1534 = vmatpush1.msra.mxu0 0.0
      %1535 = vmatprep.subr.mxu0 0.0
      %1536 = vmatpush1.msra.mxu0 0.0
      %1537 = vmatprep.subr.mxu0 0.0
      %1538 = vmatpush1.msra.mxu0 0.0
      %1539 = vmatprep.subr.mxu0 0.0
      %1540 = vmatpush1.msra.mxu0 0.0
      %1541 = vmatprep.subr.mxu0 0.0
      %1542 = vmatpush1.msra.mxu0 0.0
      %1543 = vmatprep.subr.mxu0 0.0
      %1544 = vmatpush1.msra.mxu0 0.0
      %1545 = vmatprep.subr.mxu0 0.0
      %1546 = vmatpush1.msra.mxu0 0.0
      %1547 = vmatprep.mubr.f32.mxu0 0.0
      %1548 = vmatmul.mubr.f32.gmra.mrb[0].mxu0 %v1410
      %v1549 = vpop.f32.mrb[0].mxu0
      %v1550 = vadd.f32 0.0, %v1549
      %v1551 = vpop.f32.mrb[0].mxu0
      %1552 = vdwg.mxu0
      %v1554 = vsel %vm1408, %v1400, 0
      %1556 = vmatprep.subr.mxu0 %v1402
      %1557 = vmatpush1.msra.mxu0 %v1401
      %1558 = vmatprep.subr.mxu0 0.0
      %1559 = vmatpush1.msra.mxu0 0.0
      %1560 = vmatprep.subr.mxu0 0.0
      %1561 = vmatpush1.msra.mxu0 0.0
      %1562 = vmatprep.subr.mxu0 0.0
      %1563 = vmatpush1.msra.mxu0 0.0
      %1564 = vmatprep.subr.mxu0 0.0
      %1565 = vmatpush1.msra.mxu0 0.0
      %1566 = vmatprep.subr.mxu0 0.0
      %1567 = vmatpush1.msra.mxu0 0.0
      %1568 = vmatprep.subr.mxu0 0.0
      %1569 = vmatpush1.msra.mxu0 0.0
      %1570 = vmatprep.subr.mxu0 0.0
      %1571 = vmatpush1.msra.mxu0 0.0
      %1572 = vmatprep.subr.mxu0 0.0
      %1573 = vmatpush1.msra.mxu0 0.0
      %1574 = vmatprep.subr.mxu0 0.0
      %1575 = vmatpush1.msra.mxu0 0.0
      %1576 = vmatprep.subr.mxu0 0.0
      %1577 = vmatpush1.msra.mxu0 0.0
      %1578 = vmatprep.subr.mxu0 0.0
      %1579 = vmatpush1.msra.mxu0 0.0
      %1580 = vmatprep.subr.mxu0 0.0
      %1581 = vmatpush1.msra.mxu0 0.0
      %1582 = vmatprep.subr.mxu0 0.0
      %1583 = vmatpush1.msra.mxu0 0.0
      %1584 = vmatprep.subr.mxu0 0.0
      %1585 = vmatpush1.msra.mxu0 0.0
      %1586 = vmatprep.subr.mxu0 0.0
      %1587 = vmatpush1.msra.mxu0 0.0
      %1588 = vmatprep.subr.mxu0 0.0
      %1589 = vmatpush1.msra.mxu0 0.0
      %1590 = vmatprep.subr.mxu0 0.0
      %1591 = vmatpush1.msra.mxu0 0.0
      %1592 = vmatprep.subr.mxu0 0.0
      %1593 = vmatpush1.msra.mxu0 0.0
      %1594 = vmatprep.subr.mxu0 0.0
      %1595 = vmatpush1.msra.mxu0 0.0
      %1596 = vmatprep.subr.mxu0 0.0
      %1597 = vmatpush1.msra.mxu0 0.0
      %1598 = vmatprep.subr.mxu0 0.0
      %1599 = vmatpush1.msra.mxu0 0.0
      %1600 = vmatprep.subr.mxu0 0.0
      %1601 = vmatpush1.msra.mxu0 0.0
      %1602 = vmatprep.subr.mxu0 0.0
      %1603 = vmatpush1.msra.mxu0 0.0
      %1604 = vmatprep.subr.mxu0 0.0
      %1605 = vmatpush1.msra.mxu0 0.0
      %1606 = vmatprep.subr.mxu0 0.0
      %1607 = vmatpush1.msra.mxu0 0.0
      %1608 = vmatprep.subr.mxu0 0.0
      %1609 = vmatpush1.msra.mxu0 0.0
      %1610 = vmatprep.subr.mxu0 0.0
      %1611 = vmatpush1.msra.mxu0 0.0
      %1612 = vmatprep.subr.mxu0 0.0
      %1613 = vmatpush1.msra.mxu0 0.0
      %1614 = vmatprep.subr.mxu0 0.0
      %1615 = vmatpush1.msra.mxu0 0.0
      %1616 = vmatprep.subr.mxu0 0.0
      %1617 = vmatpush1.msra.mxu0 0.0
      %1618 = vmatprep.subr.mxu0 0.0
      %1619 = vmatpush1.msra.mxu0 0.0
      %1620 = vmatprep.mubr.f32.mxu0 0.0
      %1621 = vmatmul.mubr.f32.gmra.mrb[0].mxu0 %v1554
      %v1622 = vpop.f32.mrb[0].mxu0
      %v1623 = vadd.f32 %v1479, %v1622
      %v1624 = vpop.f32.mrb[0].mxu0
      %v1625 = vadd.f32 %v1481, %v1624
      %1626 = vdwg.mxu0
      %1627 = vmatprep.subr.mxu0 0.0
      %1628 = vmatpush1.msra.mxu0 %v1403
      %1629 = vmatprep.subr.mxu0 0.0
      %1630 = vmatpush1.msra.mxu0 0.0
      %1631 = vmatprep.subr.mxu0 0.0
      %1632 = vmatpush1.msra.mxu0 0.0
      %1633 = vmatprep.subr.mxu0 0.0
      %1634 = vmatpush1.msra.mxu0 0.0
      %1635 = vmatprep.subr.mxu0 0.0
      %1636 = vmatpush1.msra.mxu0 0.0
      %1637 = vmatprep.subr.mxu0 0.0
      %1638 = vmatpush1.msra.mxu0 0.0
      %1639 = vmatprep.subr.mxu0 0.0
      %1640 = vmatpush1.msra.mxu0 0.0
      %1641 = vmatprep.subr.mxu0 0.0
      %1642 = vmatpush1.msra.mxu0 0.0
      %1643 = vmatprep.subr.mxu0 0.0
      %1644 = vmatpush1.msra.mxu0 0.0
      %1645 = vmatprep.subr.mxu0 0.0
      %1646 = vmatpush1.msra.mxu0 0.0
      %1647 = vmatprep.subr.mxu0 0.0
      %1648 = vmatpush1.msra.mxu0 0.0
      %1649 = vmatprep.subr.mxu0 0.0
      %1650 = vmatpush1.msra.mxu0 0.0
      %1651 = vmatprep.subr.mxu0 0.0
      %1652 = vmatpush1.msra.mxu0 0.0
      %1653 = vmatprep.subr.mxu0 0.0
      %1654 = vmatpush1.msra.mxu0 0.0
      %1655 = vmatprep.subr.mxu0 0.0
      %1656 = vmatpush1.msra.mxu0 0.0
      %1657 = vmatprep.subr.mxu0 0.0
      %1658 = vmatpush1.msra.mxu0 0.0
      %1659 = vmatprep.subr.mxu0 0.0
      %1660 = vmatpush1.msra.mxu0 0.0
      %1661 = vmatprep.subr.mxu0 0.0
      %1662 = vmatpush1.msra.mxu0 0.0
      %1663 = vmatprep.subr.mxu0 0.0
      %1664 = vmatpush1.msra.mxu0 0.0
      %1665 = vmatprep.subr.mxu0 0.0
      %1666 = vmatpush1.msra.mxu0 0.0
      %1667 = vmatprep.subr.mxu0 0.0
      %1668 = vmatpush1.msra.mxu0 0.0
      %1669 = vmatprep.subr.mxu0 0.0
      %1670 = vmatpush1.msra.mxu0 0.0
      %1671 = vmatprep.subr.mxu0 0.0
      %1672 = vmatpush1.msra.mxu0 0.0
      %1673 = vmatprep.subr.mxu0 0.0
      %1674 = vmatpush1.msra.mxu0 0.0
      %1675 = vmatprep.subr.mxu0 0.0
      %1676 = vmatpush1.msra.mxu0 0.0
      %1677 = vmatprep.subr.mxu0 0.0
      %1678 = vmatpush1.msra.mxu0 0.0
      %1679 = vmatprep.subr.mxu0 0.0
      %1680 = vmatpush1.msra.mxu0 0.0
      %1681 = vmatprep.subr.mxu0 0.0
      %1682 = vmatpush1.msra.mxu0 0.0
      %1683 = vmatprep.subr.mxu0 0.0
      %1684 = vmatpush1.msra.mxu0 0.0
      %1685 = vmatprep.subr.mxu0 0.0
      %1686 = vmatpush1.msra.mxu0 0.0
      %1687 = vmatprep.subr.mxu0 0.0
      %1688 = vmatpush1.msra.mxu0 0.0
      %1689 = vmatprep.subr.mxu0 0.0
      %1690 = vmatpush1.msra.mxu0 0.0
      %1691 = vmatprep.mubr.f32.mxu0 0.0
      %1692 = vmatmul.mubr.f32.gmra.mrb[0].mxu0 %v1554
      %v1693 = vpop.f32.mrb[0].mxu0
      %v1694 = vadd.f32 %v1550, %v1693
      %v1695 = vpop.f32.mrb[0].mxu0
      %1696 = vdwg.mxu0
      %s1697 = scalar_lea.vmem %s5, 8
      %v1698 = vld [vmem:[%s1697] sm:$0xff]
      %s1699 = scalar_lea.vmem %s6, 8
      %v1700 = vld [vmem:[%s1699] sm:$0xff]
      %1704 = vrot.lane.b32.xlu0 %v1405, 127
      %v1705 = vpop.permute.xlu0 %1704
      %1706 = vrot.lane.b32.xlu0 %v1406, 127
      %v1707 = vpop.permute.xlu0 %1706
      %1708 = vrot.lane.b32.xlu0 %v1407, 127
      %v1709 = vpop.permute.xlu0 %1708
      %vm1710 = vcmask 1039360
      %v1711 = vsel %vm1710, %v1705, %v1707
      %v1712 = vsel %vm1710, %v1707, %v1709
      %v1717 = vsel %vm1408, %v1700, 0
      %1719 = vmatprep.subr.mxu0 %v1712
      %1720 = vmatpush1.msra.mxu0 %v1711
      %1721 = vmatprep.subr.mxu0 0.0
      %1722 = vmatpush1.msra.mxu0 0.0
      %1723 = vmatprep.subr.mxu0 0.0
      %1724 = vmatpush1.msra.mxu0 0.0
      %1725 = vmatprep.subr.mxu0 0.0
      %1726 = vmatpush1.msra.mxu0 0.0
      %1727 = vmatprep.subr.mxu0 0.0
      %1728 = vmatpush1.msra.mxu0 0.0
      %1729 = vmatprep.subr.mxu0 0.0
      %1730 = vmatpush1.msra.mxu0 0.0
      %1731 = vmatprep.subr.mxu0 0.0
      %1732 = vmatpush1.msra.mxu0 0.0
      %1733 = vmatprep.subr.mxu0 0.0
      %1734 = vmatpush1.msra.mxu0 0.0
      %1735 = vmatprep.subr.mxu0 0.0
      %1736 = vmatpush1.msra.mxu0 0.0
      %1737 = vmatprep.subr.mxu0 0.0
      %1738 = vmatpush1.msra.mxu0 0.0
      %1739 = vmatprep.subr.mxu0 0.0
      %1740 = vmatpush1.msra.mxu0 0.0
      %1741 = vmatprep.subr.mxu0 0.0
      %1742 = vmatpush1.msra.mxu0 0.0
      %1743 = vmatprep.subr.mxu0 0.0
      %1744 = vmatpush1.msra.mxu0 0.0
      %1745 = vmatprep.subr.mxu0 0.0
      %1746 = vmatpush1.msra.mxu0 0.0
      %1747 = vmatprep.subr.mxu0 0.0
      %1748 = vmatpush1.msra.mxu0 0.0
      %1749 = vmatprep.subr.mxu0 0.0
      %1750 = vmatpush1.msra.mxu0 0.0
      %1751 = vmatprep.subr.mxu0 0.0
      %1752 = vmatpush1.msra.mxu0 0.0
      %1753 = vmatprep.subr.mxu0 0.0
      %1754 = vmatpush1.msra.mxu0 0.0
      %1755 = vmatprep.subr.mxu0 0.0
      %1756 = vmatpush1.msra.mxu0 0.0
      %1757 = vmatprep.subr.mxu0 0.0
      %1758 = vmatpush1.msra.mxu0 0.0
      %1759 = vmatprep.subr.mxu0 0.0
      %1760 = vmatpush1.msra.mxu0 0.0
      %1761 = vmatprep.subr.mxu0 0.0
      %1762 = vmatpush1.msra.mxu0 0.0
      %1763 = vmatprep.subr.mxu0 0.0
      %1764 = vmatpush1.msra.mxu0 0.0
      %1765 = vmatprep.subr.mxu0 0.0
      %1766 = vmatpush1.msra.mxu0 0.0
      %1767 = vmatprep.subr.mxu0 0.0
      %1768 = vmatpush1.msra.mxu0 0.0
      %1769 = vmatprep.subr.mxu0 0.0
      %1770 = vmatpush1.msra.mxu0 0.0
      %1771 = vmatprep.subr.mxu0 0.0
      %1772 = vmatpush1.msra.mxu0 0.0
      %1773 = vmatprep.subr.mxu0 0.0
      %1774 = vmatpush1.msra.mxu0 0.0
      %1775 = vmatprep.subr.mxu0 0.0
      %1776 = vmatpush1.msra.mxu0 0.0
      %1777 = vmatprep.subr.mxu0 0.0
      %1778 = vmatpush1.msra.mxu0 0.0
      %1779 = vmatprep.subr.mxu0 0.0
      %1780 = vmatpush1.msra.mxu0 0.0
      %1781 = vmatprep.subr.mxu0 0.0
      %1782 = vmatpush1.msra.mxu0 0.0
      %1783 = vmatprep.mubr.f32.mxu0 0.0
      %1784 = vmatmul.mubr.f32.gmra.mrb[0].mxu0 %v1717
      %v1785 = vpop.f32.mrb[0].mxu0
      %v1786 = vadd.f32 0.0, %v1785
      %v1787 = vpop.f32.mrb[0].mxu0
      %v1788 = vadd.f32 0.0, %v1787
      %1789 = vdwg.mxu0
      %1790 = vmatprep.subr.mxu0 0.0
      %1791 = vmatpush1.msra.mxu0 %v1709
      %1792 = vmatprep.subr.mxu0 0.0
      %1793 = vmatpush1.msra.mxu0 0.0
      %1794 = vmatprep.subr.mxu0 0.0
      %1795 = vmatpush1.msra.mxu0 0.0
      %1796 = vmatprep.subr.mxu0 0.0
      %1797 = vmatpush1.msra.mxu0 0.0
      %1798 = vmatprep.subr.mxu0 0.0
      %1799 = vmatpush1.msra.mxu0 0.0
      %1800 = vmatprep.subr.mxu0 0.0
      %1801 = vmatpush1.msra.mxu0 0.0
      %1802 = vmatprep.subr.mxu0 0.0
      %1803 = vmatpush1.msra.mxu0 0.0
      %1804 = vmatprep.subr.mxu0 0.0
      %1805 = vmatpush1.msra.mxu0 0.0
      %1806 = vmatprep.subr.mxu0 0.0
      %1807 = vmatpush1.msra.mxu0 0.0
      %1808 = vmatprep.subr.mxu0 0.0
      %1809 = vmatpush1.msra.mxu0 0.0
      %1810 = vmatprep.subr.mxu0 0.0
      %1811 = vmatpush1.msra.mxu0 0.0
      %1812 = vmatprep.subr.mxu0 0.0
      %1813 = vmatpush1.msra.mxu0 0.0
      %1814 = vmatprep.subr.mxu0 0.0
      %1815 = vmatpush1.msra.mxu0 0.0
      %1816 = vmatprep.subr.mxu0 0.0
      %1817 = vmatpush1.msra.mxu0 0.0
      %1818 = vmatprep.subr.mxu0 0.0
      %1819 = vmatpush1.msra.mxu0 0.0
      %1820 = vmatprep.subr.mxu0 0.0
      %1821 = vmatpush1.msra.mxu0 0.0
      %1822 = vmatprep.subr.mxu0 0.0
      %1823 = vmatpush1.msra.mxu0 0.0
      %1824 = vmatprep.subr.mxu0 0.0
      %1825 = vmatpush1.msra.mxu0 0.0
      %1826 = vmatprep.subr.mxu0 0.0
      %1827 = vmatpush1.msra.mxu0 0.0
      %1828 = vmatprep.subr.mxu0 0.0
      %1829 = vmatpush1.msra.mxu0 0.0
      %1830 = vmatprep.subr.mxu0 0.0
      %1831 = vmatpush1.msra.mxu0 0.0
      %1832 = vmatprep.subr.mxu0 0.0
      %1833 = vmatpush1.msra.mxu0 0.0
      %1834 = vmatprep.subr.mxu0 0.0
      %1835 = vmatpush1.msra.mxu0 0.0
      %1836 = vmatprep.subr.mxu0 0.0
      %1837 = vmatpush1.msra.mxu0 0.0
      %1838 = vmatprep.subr.mxu0 0.0
      %1839 = vmatpush1.msra.mxu0 0.0
      %1840 = vmatprep.subr.mxu0 0.0
      %1841 = vmatpush1.msra.mxu0 0.0
      %1842 = vmatprep.subr.mxu0 0.0
      %1843 = vmatpush1.msra.mxu0 0.0
      %1844 = vmatprep.subr.mxu0 0.0
      %1845 = vmatpush1.msra.mxu0 0.0
      %1846 = vmatprep.subr.mxu0 0.0
      %1847 = vmatpush1.msra.mxu0 0.0
      %1848 = vmatprep.subr.mxu0 0.0
      %1849 = vmatpush1.msra.mxu0 0.0
      %1850 = vmatprep.subr.mxu0 0.0
      %1851 = vmatpush1.msra.mxu0 0.0
      %1852 = vmatprep.subr.mxu0 0.0
      %1853 = vmatpush1.msra.mxu0 0.0
      %1854 = vmatprep.mubr.f32.mxu0 0.0
      %1855 = vmatmul.mubr.f32.gmra.mrb[0].mxu0 %v1717
      %v1856 = vpop.f32.mrb[0].mxu0
      %v1857 = vadd.f32 0.0, %v1856
      %v1858 = vpop.f32.mrb[0].mxu0
      %1859 = vdwg.mxu0
      %1863 = vrot.lane.b32.xlu0 %v1401, 127
      %v1864 = vpop.permute.xlu0 %1863
      %1865 = vrot.lane.b32.xlu0 %v1402, 127
      %v1866 = vpop.permute.xlu0 %1865
      %1867 = vrot.lane.b32.xlu0 %v1403, 127
      %v1868 = vpop.permute.xlu0 %1867
      %v1869 = vsel %vm1710, %v1864, %v1866
      %v1870 = vsel %vm1710, %v1866, %v1868
      %v1875 = vsel %vm1408, %v1698, 0
      %1877 = vmatprep.subr.mxu0 %v1870
      %1878 = vmatpush1.msra.mxu0 %v1869
      %1879 = vmatprep.subr.mxu0 0.0
      %1880 = vmatpush1.msra.mxu0 0.0
      %1881 = vmatprep.subr.mxu0 0.0
      %1882 = vmatpush1.msra.mxu0 0.0
      %1883 = vmatprep.subr.mxu0 0.0
      %1884 = vmatpush1.msra.mxu0 0.0
      %1885 = vmatprep.subr.mxu0 0.0
      %1886 = vmatpush1.msra.mxu0 0.0
      %1887 = vmatprep.subr.mxu0 0.0
      %1888 = vmatpush1.msra.mxu0 0.0
      %1889 = vmatprep.subr.mxu0 0.0
      %1890 = vmatpush1.msra.mxu0 0.0
      %1891 = vmatprep.subr.mxu0 0.0
      %1892 = vmatpush1.msra.mxu0 0.0
      %1893 = vmatprep.subr.mxu0 0.0
      %1894 = vmatpush1.msra.mxu0 0.0
      %1895 = vmatprep.subr.mxu0 0.0
      %1896 = vmatpush1.msra.mxu0 0.0
      %1897 = vmatprep.subr.mxu0 0.0
      %1898 = vmatpush1.msra.mxu0 0.0
      %1899 = vmatprep.subr.mxu0 0.0
      %1900 = vmatpush1.msra.mxu0 0.0
      %1901 = vmatprep.subr.mxu0 0.0
      %1902 = vmatpush1.msra.mxu0 0.0
      %1903 = vmatprep.subr.mxu0 0.0
      %1904 = vmatpush1.msra.mxu0 0.0
      %1905 = vmatprep.subr.mxu0 0.0
      %1906 = vmatpush1.msra.mxu0 0.0
      %1907 = vmatprep.subr.mxu0 0.0
      %1908 = vmatpush1.msra.mxu0 0.0
      %1909 = vmatprep.subr.mxu0 0.0
      %1910 = vmatpush1.msra.mxu0 0.0
      %1911 = vmatprep.subr.mxu0 0.0
      %1912 = vmatpush1.msra.mxu0 0.0
      %1913 = vmatprep.subr.mxu0 0.0
      %1914 = vmatpush1.msra.mxu0 0.0
      %1915 = vmatprep.subr.mxu0 0.0
      %1916 = vmatpush1.msra.mxu0 0.0
      %1917 = vmatprep.subr.mxu0 0.0
      %1918 = vmatpush1.msra.mxu0 0.0
      %1919 = vmatprep.subr.mxu0 0.0
      %1920 = vmatpush1.msra.mxu0 0.0
      %1921 = vmatprep.subr.mxu0 0.0
      %1922 = vmatpush1.msra.mxu0 0.0
      %1923 = vmatprep.subr.mxu0 0.0
      %1924 = vmatpush1.msra.mxu0 0.0
      %1925 = vmatprep.subr.mxu0 0.0
      %1926 = vmatpush1.msra.mxu0 0.0
      %1927 = vmatprep.subr.mxu0 0.0
      %1928 = vmatpush1.msra.mxu0 0.0
      %1929 = vmatprep.subr.mxu0 0.0
      %1930 = vmatpush1.msra.mxu0 0.0
      %1931 = vmatprep.subr.mxu0 0.0
      %1932 = vmatpush1.msra.mxu0 0.0
      %1933 = vmatprep.subr.mxu0 0.0
      %1934 = vmatpush1.msra.mxu0 0.0
      %1935 = vmatprep.subr.mxu0 0.0
      %1936 = vmatpush1.msra.mxu0 0.0
      %1937 = vmatprep.subr.mxu0 0.0
      %1938 = vmatpush1.msra.mxu0 0.0
      %1939 = vmatprep.subr.mxu0 0.0
      %1940 = vmatpush1.msra.mxu0 0.0
      %1941 = vmatprep.mubr.f32.mxu0 0.0
      %1942 = vmatmul.mubr.f32.gmra.mrb[0].mxu0 %v1875
      %v1943 = vpop.f32.mrb[0].mxu0
      %v1944 = vadd.f32 %v1786, %v1943
      %v1945 = vpop.f32.mrb[0].mxu0
      %v1946 = vadd.f32 %v1788, %v1945
      %1947 = vdwg.mxu0
      %1948 = vmatprep.subr.mxu0 0.0
      %1949 = vmatpush1.msra.mxu0 %v1868
      %1950 = vmatprep.subr.mxu0 0.0
      %1951 = vmatpush1.msra.mxu0 0.0
      %1952 = vmatprep.subr.mxu0 0.0
      %1953 = vmatpush1.msra.mxu0 0.0
      %1954 = vmatprep.subr.mxu0 0.0
      %1955 = vmatpush1.msra.mxu0 0.0
      %1956 = vmatprep.subr.mxu0 0.0
      %1957 = vmatpush1.msra.mxu0 0.0
      %1958 = vmatprep.subr.mxu0 0.0
      %1959 = vmatpush1.msra.mxu0 0.0
      %1960 = vmatprep.subr.mxu0 0.0
      %1961 = vmatpush1.msra.mxu0 0.0
      %1962 = vmatprep.subr.mxu0 0.0
      %1963 = vmatpush1.msra.mxu0 0.0
      %1964 = vmatprep.subr.mxu0 0.0
      %1965 = vmatpush1.msra.mxu0 0.0
      %1966 = vmatprep.subr.mxu0 0.0
      %1967 = vmatpush1.msra.mxu0 0.0
      %1968 = vmatprep.subr.mxu0 0.0
      %1969 = vmatpush1.msra.mxu0 0.0
      %1970 = vmatprep.subr.mxu0 0.0
      %1971 = vmatpush1.msra.mxu0 0.0
      %1972 = vmatprep.subr.mxu0 0.0
      %1973 = vmatpush1.msra.mxu0 0.0
      %1974 = vmatprep.subr.mxu0 0.0
      %1975 = vmatpush1.msra.mxu0 0.0
      %1976 = vmatprep.subr.mxu0 0.0
      %1977 = vmatpush1.msra.mxu0 0.0
      %1978 = vmatprep.subr.mxu0 0.0
      %1979 = vmatpush1.msra.mxu0 0.0
      %1980 = vmatprep.subr.mxu0 0.0
      %1981 = vmatpush1.msra.mxu0 0.0
      %1982 = vmatprep.subr.mxu0 0.0
      %1983 = vmatpush1.msra.mxu0 0.0
      %1984 = vmatprep.subr.mxu0 0.0
      %1985 = vmatpush1.msra.mxu0 0.0
      %1986 = vmatprep.subr.mxu0 0.0
      %1987 = vmatpush1.msra.mxu0 0.0
      %1988 = vmatprep.subr.mxu0 0.0
      %1989 = vmatpush1.msra.mxu0 0.0
      %1990 = vmatprep.subr.mxu0 0.0
      %1991 = vmatpush1.msra.mxu0 0.0
      %1992 = vmatprep.subr.mxu0 0.0
      %1993 = vmatpush1.msra.mxu0 0.0
      %1994 = vmatprep.subr.mxu0 0.0
      %1995 = vmatpush1.msra.mxu0 0.0
      %1996 = vmatprep.subr.mxu0 0.0
      %1997 = vmatpush1.msra.mxu0 0.0
      %1998 = vmatprep.subr.mxu0 0.0
      %1999 = vmatpush1.msra.mxu0 0.0
      %2000 = vmatprep.subr.mxu0 0.0
      %2001 = vmatpush1.msra.mxu0 0.0
      %2002 = vmatprep.subr.mxu0 0.0
      %2003 = vmatpush1.msra.mxu0 0.0
      %2004 = vmatprep.subr.mxu0 0.0
      %2005 = vmatpush1.msra.mxu0 0.0
      %2006 = vmatprep.subr.mxu0 0.0
      %2007 = vmatpush1.msra.mxu0 0.0
      %2008 = vmatprep.subr.mxu0 0.0
      %2009 = vmatpush1.msra.mxu0 0.0
      %2010 = vmatprep.subr.mxu0 0.0
      %2011 = vmatpush1.msra.mxu0 0.0
      %2012 = vmatprep.mubr.f32.mxu0 0.0
      %2013 = vmatmul.mubr.f32.gmra.mrb[0].mxu0 %v1875
      %v2014 = vpop.f32.mrb[0].mxu0
      %v2015 = vadd.f32 %v1857, %v2014
      %v2016 = vpop.f32.mrb[0].mxu0
      %2017 = vdwg.mxu0
      %v2018 = vadd.f32 %v1623, %v1944
      %v2019 = vadd.f32 %v1625, %v1946
      %v2020 = vadd.f32 %v1694, %v2015
      %s2021 = scalar_lea.vmem %s5, 16
      %v2022 = vld [vmem:[%s2021] sm:$0xff]
      %s2023 = scalar_lea.vmem %s6, 16
      %v2024 = vld [vmem:[%s2023] sm:$0xff]
      %2025 = vrot.lane.b32.xlu0 %v1405, 126
      %v2026 = vpop.permute.xlu0 %2025
      %2027 = vrot.lane.b32.xlu0 %v1406, 126
      %v2028 = vpop.permute.xlu0 %2027
      %2029 = vrot.lane.b32.xlu0 %v1407, 126
      %v2030 = vpop.permute.xlu0 %2029
      %vm2031 = vcmask 1031168
      %v2032 = vsel %vm2031, %v2026, %v2028
      %v2033 = vsel %vm2031, %v2028, %v2030
      %v2038 = vsel %vm1408, %v2024, 0
      %2040 = vmatprep.subr.mxu0 %v2033
      %2041 = vmatpush1.msra.mxu0 %v2032
      %2042 = vmatprep.subr.mxu0 0.0
      %2043 = vmatpush1.msra.mxu0 0.0
      %2044 = vmatprep.subr.mxu0 0.0
      %2045 = vmatpush1.msra.mxu0 0.0
      %2046 = vmatprep.subr.mxu0 0.0
      %2047 = vmatpush1.msra.mxu0 0.0
      %2048 = vmatprep.subr.mxu0 0.0
      %2049 = vmatpush1.msra.mxu0 0.0
      %2050 = vmatprep.subr.mxu0 0.0
      %2051 = vmatpush1.msra.mxu0 0.0
      %2052 = vmatprep.subr.mxu0 0.0
      %2053 = vmatpush1.msra.mxu0 0.0
      %2054 = vmatprep.subr.mxu0 0.0
      %2055 = vmatpush1.msra.mxu0 0.0
      %2056 = vmatprep.subr.mxu0 0.0
      %2057 = vmatpush1.msra.mxu0 0.0
      %2058 = vmatprep.subr.mxu0 0.0
      %2059 = vmatpush1.msra.mxu0 0.0
      %2060 = vmatprep.subr.mxu0 0.0
      %2061 = vmatpush1.msra.mxu0 0.0
      %2062 = vmatprep.subr.mxu0 0.0
      %2063 = vmatpush1.msra.mxu0 0.0
      %2064 = vmatprep.subr.mxu0 0.0
      %2065 = vmatpush1.msra.mxu0 0.0
      %2066 = vmatprep.subr.mxu0 0.0
      %2067 = vmatpush1.msra.mxu0 0.0
      %2068 = vmatprep.subr.mxu0 0.0
      %2069 = vmatpush1.msra.mxu0 0.0
      %2070 = vmatprep.subr.mxu0 0.0
      %2071 = vmatpush1.msra.mxu0 0.0
      %2072 = vmatprep.subr.mxu0 0.0
      %2073 = vmatpush1.msra.mxu0 0.0
      %2074 = vmatprep.subr.mxu0 0.0
      %2075 = vmatpush1.msra.mxu0 0.0
      %2076 = vmatprep.subr.mxu0 0.0
      %2077 = vmatpush1.msra.mxu0 0.0
      %2078 = vmatprep.subr.mxu0 0.0
      %2079 = vmatpush1.msra.mxu0 0.0
      %2080 = vmatprep.subr.mxu0 0.0
      %2081 = vmatpush1.msra.mxu0 0.0
      %2082 = vmatprep.subr.mxu0 0.0
      %2083 = vmatpush1.msra.mxu0 0.0
      %2084 = vmatprep.subr.mxu0 0.0
      %2085 = vmatpush1.msra.mxu0 0.0
      %2086 = vmatprep.subr.mxu0 0.0
      %2087 = vmatpush1.msra.mxu0 0.0
      %2088 = vmatprep.subr.mxu0 0.0
      %2089 = vmatpush1.msra.mxu0 0.0
      %2090 = vmatprep.subr.mxu0 0.0
      %2091 = vmatpush1.msra.mxu0 0.0
      %2092 = vmatprep.subr.mxu0 0.0
      %2093 = vmatpush1.msra.mxu0 0.0
      %2094 = vmatprep.subr.mxu0 0.0
      %2095 = vmatpush1.msra.mxu0 0.0
      %2096 = vmatprep.subr.mxu0 0.0
      %2097 = vmatpush1.msra.mxu0 0.0
      %2098 = vmatprep.subr.mxu0 0.0
      %2099 = vmatpush1.msra.mxu0 0.0
      %2100 = vmatprep.subr.mxu0 0.0
      %2101 = vmatpush1.msra.mxu0 0.0
      %2102 = vmatprep.subr.mxu0 0.0
      %2103 = vmatpush1.msra.mxu0 0.0
      %2104 = vmatprep.mubr.f32.mxu0 0.0
      %2105 = vmatmul.mubr.f32.gmra.mrb[0].mxu0 %v2038
      %v2106 = vpop.f32.mrb[0].mxu0
      %v2107 = vadd.f32 0.0, %v2106
      %v2108 = vpop.f32.mrb[0].mxu0
      %v2109 = vadd.f32 0.0, %v2108
      %2110 = vdwg.mxu0
      %2111 = vmatprep.subr.mxu0 0.0
      %2112 = vmatpush1.msra.mxu0 %v2030
      %2113 = vmatprep.subr.mxu0 0.0
      %2114 = vmatpush1.msra.mxu0 0.0
      %2115 = vmatprep.subr.mxu0 0.0
      %2116 = vmatpush1.msra.mxu0 0.0
      %2117 = vmatprep.subr.mxu0 0.0
      %2118 = vmatpush1.msra.mxu0 0.0
      %2119 = vmatprep.subr.mxu0 0.0
      %2120 = vmatpush1.msra.mxu0 0.0
      %2121 = vmatprep.subr.mxu0 0.0
      %2122 = vmatpush1.msra.mxu0 0.0
      %2123 = vmatprep.subr.mxu0 0.0
      %2124 = vmatpush1.msra.mxu0 0.0
      %2125 = vmatprep.subr.mxu0 0.0
      %2126 = vmatpush1.msra.mxu0 0.0
      %2127 = vmatprep.subr.mxu0 0.0
      %2128 = vmatpush1.msra.mxu0 0.0
      %2129 = vmatprep.subr.mxu0 0.0
      %2130 = vmatpush1.msra.mxu0 0.0
      %2131 = vmatprep.subr.mxu0 0.0
      %2132 = vmatpush1.msra.mxu0 0.0
      %2133 = vmatprep.subr.mxu0 0.0
      %2134 = vmatpush1.msra.mxu0 0.0
      %2135 = vmatprep.subr.mxu0 0.0
      %2136 = vmatpush1.msra.mxu0 0.0
      %2137 = vmatprep.subr.mxu0 0.0
      %2138 = vmatpush1.msra.mxu0 0.0
      %2139 = vmatprep.subr.mxu0 0.0
      %2140 = vmatpush1.msra.mxu0 0.0
      %2141 = vmatprep.subr.mxu0 0.0
      %2142 = vmatpush1.msra.mxu0 0.0
      %2143 = vmatprep.subr.mxu0 0.0
      %2144 = vmatpush1.msra.mxu0 0.0
      %2145 = vmatprep.subr.mxu0 0.0
      %2146 = vmatpush1.msra.mxu0 0.0
      %2147 = vmatprep.subr.mxu0 0.0
      %2148 = vmatpush1.msra.mxu0 0.0
      %2149 = vmatprep.subr.mxu0 0.0
      %2150 = vmatpush1.msra.mxu0 0.0
      %2151 = vmatprep.subr.mxu0 0.0
      %2152 = vmatpush1.msra.mxu0 0.0
      %2153 = vmatprep.subr.mxu0 0.0
      %2154 = vmatpush1.msra.mxu0 0.0
      %2155 = vmatprep.subr.mxu0 0.0
      %2156 = vmatpush1.msra.mxu0 0.0
      %2157 = vmatprep.subr.mxu0 0.0
      %2158 = vmatpush1.msra.mxu0 0.0
      %2159 = vmatprep.subr.mxu0 0.0
      %2160 = vmatpush1.msra.mxu0 0.0
      %2161 = vmatprep.subr.mxu0 0.0
      %2162 = vmatpush1.msra.mxu0 0.0
      %2163 = vmatprep.subr.mxu0 0.0
      %2164 = vmatpush1.msra.mxu0 0.0
      %2165 = vmatprep.subr.mxu0 0.0
      %2166 = vmatpush1.msra.mxu0 0.0
      %2167 = vmatprep.subr.mxu0 0.0
      %2168 = vmatpush1.msra.mxu0 0.0
      %2169 = vmatprep.subr.mxu0 0.0
      %2170 = vmatpush1.msra.mxu0 0.0
      %2171 = vmatprep.subr.mxu0 0.0
      %2172 = vmatpush1.msra.mxu0 0.0
      %2173 = vmatprep.subr.mxu0 0.0
      %2174 = vmatpush1.msra.mxu0 0.0
      %2175 = vmatprep.mubr.f32.mxu0 0.0
      %2176 = vmatmul.mubr.f32.gmra.mrb[0].mxu0 %v2038
      %v2177 = vpop.f32.mrb[0].mxu0
      %v2178 = vadd.f32 0.0, %v2177
      %v2179 = vpop.f32.mrb[0].mxu0
      %2180 = vdwg.mxu0
      %2181 = vrot.lane.b32.xlu0 %v1401, 126
      %v2182 = vpop.permute.xlu0 %2181
      %2183 = vrot.lane.b32.xlu0 %v1402, 126
      %v2184 = vpop.permute.xlu0 %2183
      %2185 = vrot.lane.b32.xlu0 %v1403, 126
      %v2186 = vpop.permute.xlu0 %2185
      %v2187 = vsel %vm2031, %v2182, %v2184
      %v2188 = vsel %vm2031, %v2184, %v2186
      %v2193 = vsel %vm1408, %v2022, 0
      %2195 = vmatprep.subr.mxu0 %v2188
      %2196 = vmatpush1.msra.mxu0 %v2187
      %2197 = vmatprep.subr.mxu0 0.0
      %2198 = vmatpush1.msra.mxu0 0.0
      %2199 = vmatprep.subr.mxu0 0.0
      %2200 = vmatpush1.msra.mxu0 0.0
      %2201 = vmatprep.subr.mxu0 0.0
      %2202 = vmatpush1.msra.mxu0 0.0
      %2203 = vmatprep.subr.mxu0 0.0
      %2204 = vmatpush1.msra.mxu0 0.0
      %2205 = vmatprep.subr.mxu0 0.0
      %2206 = vmatpush1.msra.mxu0 0.0
      %2207 = vmatprep.subr.mxu0 0.0
      %2208 = vmatpush1.msra.mxu0 0.0
      %2209 = vmatprep.subr.mxu0 0.0
      %2210 = vmatpush1.msra.mxu0 0.0
      %2211 = vmatprep.subr.mxu0 0.0
      %2212 = vmatpush1.msra.mxu0 0.0
      %2213 = vmatprep.subr.mxu0 0.0
      %2214 = vmatpush1.msra.mxu0 0.0
      %2215 = vmatprep.subr.mxu0 0.0
      %2216 = vmatpush1.msra.mxu0 0.0
      %2217 = vmatprep.subr.mxu0 0.0
      %2218 = vmatpush1.msra.mxu0 0.0
      %2219 = vmatprep.subr.mxu0 0.0
      %2220 = vmatpush1.msra.mxu0 0.0
      %2221 = vmatprep.subr.mxu0 0.0
      %2222 = vmatpush1.msra.mxu0 0.0
      %2223 = vmatprep.subr.mxu0 0.0
      %2224 = vmatpush1.msra.mxu0 0.0
      %2225 = vmatprep.subr.mxu0 0.0
      %2226 = vmatpush1.msra.mxu0 0.0
      %2227 = vmatprep.subr.mxu0 0.0
      %2228 = vmatpush1.msra.mxu0 0.0
      %2229 = vmatprep.subr.mxu0 0.0
      %2230 = vmatpush1.msra.mxu0 0.0
      %2231 = vmatprep.subr.mxu0 0.0
      %2232 = vmatpush1.msra.mxu0 0.0
      %2233 = vmatprep.subr.mxu0 0.0
      %2234 = vmatpush1.msra.mxu0 0.0
      %2235 = vmatprep.subr.mxu0 0.0
      %2236 = vmatpush1.msra.mxu0 0.0
      %2237 = vmatprep.subr.mxu0 0.0
      %2238 = vmatpush1.msra.mxu0 0.0
      %2239 = vmatprep.subr.mxu0 0.0
      %2240 = vmatpush1.msra.mxu0 0.0
      %2241 = vmatprep.subr.mxu0 0.0
      %2242 = vmatpush1.msra.mxu0 0.0
      %2243 = vmatprep.subr.mxu0 0.0
      %2244 = vmatpush1.msra.mxu0 0.0
      %2245 = vmatprep.subr.mxu0 0.0
      %2246 = vmatpush1.msra.mxu0 0.0
      %2247 = vmatprep.subr.mxu0 0.0
      %2248 = vmatpush1.msra.mxu0 0.0
      %2249 = vmatprep.subr.mxu0 0.0
      %2250 = vmatpush1.msra.mxu0 0.0
      %2251 = vmatprep.subr.mxu0 0.0
      %2252 = vmatpush1.msra.mxu0 0.0
      %2253 = vmatprep.subr.mxu0 0.0
      %2254 = vmatpush1.msra.mxu0 0.0
      %2255 = vmatprep.subr.mxu0 0.0
      %2256 = vmatpush1.msra.mxu0 0.0
      %2257 = vmatprep.subr.mxu0 0.0
      %2258 = vmatpush1.msra.mxu0 0.0
      %2259 = vmatprep.mubr.f32.mxu0 0.0
      %2260 = vmatmul.mubr.f32.gmra.mrb[0].mxu0 %v2193
      %v2261 = vpop.f32.mrb[0].mxu0
      %v2262 = vadd.f32 %v2107, %v2261
      %v2263 = vpop.f32.mrb[0].mxu0
      %v2264 = vadd.f32 %v2109, %v2263
      %2265 = vdwg.mxu0
      %2266 = vmatprep.subr.mxu0 0.0
      %2267 = vmatpush1.msra.mxu0 %v2186
      %2268 = vmatprep.subr.mxu0 0.0
      %2269 = vmatpush1.msra.mxu0 0.0
      %2270 = vmatprep.subr.mxu0 0.0
      %2271 = vmatpush1.msra.mxu0 0.0
      %2272 = vmatprep.subr.mxu0 0.0
      %2273 = vmatpush1.msra.mxu0 0.0
      %2274 = vmatprep.subr.mxu0 0.0
      %2275 = vmatpush1.msra.mxu0 0.0
      %2276 = vmatprep.subr.mxu0 0.0
      %2277 = vmatpush1.msra.mxu0 0.0
      %2278 = vmatprep.subr.mxu0 0.0
      %2279 = vmatpush1.msra.mxu0 0.0
      %2280 = vmatprep.subr.mxu0 0.0
      %2281 = vmatpush1.msra.mxu0 0.0
      %2282 = vmatprep.subr.mxu0 0.0
      %2283 = vmatpush1.msra.mxu0 0.0
      %2284 = vmatprep.subr.mxu0 0.0
      %2285 = vmatpush1.msra.mxu0 0.0
      %2286 = vmatprep.subr.mxu0 0.0
      %2287 = vmatpush1.msra.mxu0 0.0
      %2288 = vmatprep.subr.mxu0 0.0
      %2289 = vmatpush1.msra.mxu0 0.0
      %2290 = vmatprep.subr.mxu0 0.0
      %2291 = vmatpush1.msra.mxu0 0.0
      %2292 = vmatprep.subr.mxu0 0.0
      %2293 = vmatpush1.msra.mxu0 0.0
      %2294 = vmatprep.subr.mxu0 0.0
      %2295 = vmatpush1.msra.mxu0 0.0
      %2296 = vmatprep.subr.mxu0 0.0
      %2297 = vmatpush1.msra.mxu0 0.0
      %2298 = vmatprep.subr.mxu0 0.0
      %2299 = vmatpush1.msra.mxu0 0.0
      %2300 = vmatprep.subr.mxu0 0.0
      %2301 = vmatpush1.msra.mxu0 0.0
      %2302 = vmatprep.subr.mxu0 0.0
      %2303 = vmatpush1.msra.mxu0 0.0
      %2304 = vmatprep.subr.mxu0 0.0
      %2305 = vmatpush1.msra.mxu0 0.0
      %2306 = vmatprep.subr.mxu0 0.0
      %2307 = vmatpush1.msra.mxu0 0.0
      %2308 = vmatprep.subr.mxu0 0.0
      %2309 = vmatpush1.msra.mxu0 0.0
      %2310 = vmatprep.subr.mxu0 0.0
      %2311 = vmatpush1.msra.mxu0 0.0
      %2312 = vmatprep.subr.mxu0 0.0
      %2313 = vmatpush1.msra.mxu0 0.0
      %2314 = vmatprep.subr.mxu0 0.0
      %2315 = vmatpush1.msra.mxu0 0.0
      %2316 = vmatprep.subr.mxu0 0.0
      %2317 = vmatpush1.msra.mxu0 0.0
      %2318 = vmatprep.subr.mxu0 0.0
      %2319 = vmatpush1.msra.mxu0 0.0
      %2320 = vmatprep.subr.mxu0 0.0
      %2321 = vmatpush1.msra.mxu0 0.0
      %2322 = vmatprep.subr.mxu0 0.0
      %2323 = vmatpush1.msra.mxu0 0.0
      %2324 = vmatprep.subr.mxu0 0.0
      %2325 = vmatpush1.msra.mxu0 0.0
      %2326 = vmatprep.subr.mxu0 0.0
      %2327 = vmatpush1.msra.mxu0 0.0
      %2328 = vmatprep.subr.mxu0 0.0
      %2329 = vmatpush1.msra.mxu0 0.0
      %2330 = vmatprep.mubr.f32.mxu0 0.0
      %2331 = vmatmul.mubr.f32.gmra.mrb[0].mxu0 %v2193
      %v2332 = vpop.f32.mrb[0].mxu0
      %v2333 = vadd.f32 %v2178, %v2332
      %v2334 = vpop.f32.mrb[0].mxu0
      %2335 = vdwg.mxu0
      %v2336 = vadd.f32 %v2018, %v2262
      %v2337 = vadd.f32 %v2019, %v2264
      %v2338 = vadd.f32 %v2020, %v2333
      %s2339 = scalar_lea.vmem %s5, 24
      %v2340 = vld [vmem:[%s2339] sm:$0xff]
      %s2341 = scalar_lea.vmem %s6, 24
      %v2342 = vld [vmem:[%s2341] sm:$0xff]
      %2343 = vrot.lane.b32.xlu0 %v1405, 110
      %v2344 = vpop.permute.xlu0 %2343
      %2345 = vrot.lane.b32.xlu0 %v1406, 110
      %v2346 = vpop.permute.xlu0 %2345
      %2347 = vrot.lane.b32.xlu0 %v1407, 110
      %v2348 = vpop.permute.xlu0 %2347
      %vm2349 = vcmask 900096
      %v2350 = vsel %vm2349, %v2344, %v2346
      %v2351 = vsel %vm2349, %v2346, %v2348
      %v2356 = vsel %vm1408, %v2342, 0
      %2358 = vmatprep.subr.mxu0 %v2351
      %2359 = vmatpush1.msra.mxu0 %v2350
      %2360 = vmatprep.subr.mxu0 0.0
      %2361 = vmatpush1.msra.mxu0 0.0
      %2362 = vmatprep.subr.mxu0 0.0
      %2363 = vmatpush1.msra.mxu0 0.0
      %2364 = vmatprep.subr.mxu0 0.0
      %2365 = vmatpush1.msra.mxu0 0.0
      %2366 = vmatprep.subr.mxu0 0.0
      %2367 = vmatpush1.msra.mxu0 0.0
      %2368 = vmatprep.subr.mxu0 0.0
      %2369 = vmatpush1.msra.mxu0 0.0
      %2370 = vmatprep.subr.mxu0 0.0
      %2371 = vmatpush1.msra.mxu0 0.0
      %2372 = vmatprep.subr.mxu0 0.0
      %2373 = vmatpush1.msra.mxu0 0.0
      %2374 = vmatprep.subr.mxu0 0.0
      %2375 = vmatpush1.msra.mxu0 0.0
      %2376 = vmatprep.subr.mxu0 0.0
      %2377 = vmatpush1.msra.mxu0 0.0
      %2378 = vmatprep.subr.mxu0 0.0
      %2379 = vmatpush1.msra.mxu0 0.0
      %2380 = vmatprep.subr.mxu0 0.0
      %2381 = vmatpush1.msra.mxu0 0.0
      %2382 = vmatprep.subr.mxu0 0.0
      %2383 = vmatpush1.msra.mxu0 0.0
      %2384 = vmatprep.subr.mxu0 0.0
      %2385 = vmatpush1.msra.mxu0 0.0
      %2386 = vmatprep.subr.mxu0 0.0
      %2387 = vmatpush1.msra.mxu0 0.0
      %2388 = vmatprep.subr.mxu0 0.0
      %2389 = vmatpush1.msra.mxu0 0.0
      %2390 = vmatprep.subr.mxu0 0.0
      %2391 = vmatpush1.msra.mxu0 0.0
      %2392 = vmatprep.subr.mxu0 0.0
      %2393 = vmatpush1.msra.mxu0 0.0
      %2394 = vmatprep.subr.mxu0 0.0
      %2395 = vmatpush1.msra.mxu0 0.0
      %2396 = vmatprep.subr.mxu0 0.0
      %2397 = vmatpush1.msra.mxu0 0.0
      %2398 = vmatprep.subr.mxu0 0.0
      %2399 = vmatpush1.msra.mxu0 0.0
      %2400 = vmatprep.subr.mxu0 0.0
      %2401 = vmatpush1.msra.mxu0 0.0
      %2402 = vmatprep.subr.mxu0 0.0
      %2403 = vmatpush1.msra.mxu0 0.0
      %2404 = vmatprep.subr.mxu0 0.0
      %2405 = vmatpush1.msra.mxu0 0.0
      %2406 = vmatprep.subr.mxu0 0.0
      %2407 = vmatpush1.msra.mxu0 0.0
      %2408 = vmatprep.subr.mxu0 0.0
      %2409 = vmatpush1.msra.mxu0 0.0
      %2410 = vmatprep.subr.mxu0 0.0
      %2411 = vmatpush1.msra.mxu0 0.0
      %2412 = vmatprep.subr.mxu0 0.0
      %2413 = vmatpush1.msra.mxu0 0.0
      %2414 = vmatprep.subr.mxu0 0.0
      %2415 = vmatpush1.msra.mxu0 0.0
      %2416 = vmatprep.subr.mxu0 0.0
      %2417 = vmatpush1.msra.mxu0 0.0
      %2418 = vmatprep.subr.mxu0 0.0
      %2419 = vmatpush1.msra.mxu0 0.0
      %2420 = vmatprep.subr.mxu0 0.0
      %2421 = vmatpush1.msra.mxu0 0.0
      %2422 = vmatprep.mubr.f32.mxu0 0.0
      %2423 = vmatmul.mubr.f32.gmra.mrb[0].mxu0 %v2356
      %v2424 = vpop.f32.mrb[0].mxu0
      %v2425 = vadd.f32 0.0, %v2424
      %v2426 = vpop.f32.mrb[0].mxu0
      %v2427 = vadd.f32 0.0, %v2426
      %2428 = vdwg.mxu0
      %2429 = vmatprep.subr.mxu0 0.0
      %2430 = vmatpush1.msra.mxu0 %v2348
      %2431 = vmatprep.subr.mxu0 0.0
      %2432 = vmatpush1.msra.mxu0 0.0
      %2433 = vmatprep.subr.mxu0 0.0
      %2434 = vmatpush1.msra.mxu0 0.0
      %2435 = vmatprep.subr.mxu0 0.0
      %2436 = vmatpush1.msra.mxu0 0.0
      %2437 = vmatprep.subr.mxu0 0.0
      %2438 = vmatpush1.msra.mxu0 0.0
      %2439 = vmatprep.subr.mxu0 0.0
      %2440 = vmatpush1.msra.mxu0 0.0
      %2441 = vmatprep.subr.mxu0 0.0
      %2442 = vmatpush1.msra.mxu0 0.0
      %2443 = vmatprep.subr.mxu0 0.0
      %2444 = vmatpush1.msra.mxu0 0.0
      %2445 = vmatprep.subr.mxu0 0.0
      %2446 = vmatpush1.msra.mxu0 0.0
      %2447 = vmatprep.subr.mxu0 0.0
      %2448 = vmatpush1.msra.mxu0 0.0
      %2449 = vmatprep.subr.mxu0 0.0
      %2450 = vmatpush1.msra.mxu0 0.0
      %2451 = vmatprep.subr.mxu0 0.0
      %2452 = vmatpush1.msra.mxu0 0.0
      %2453 = vmatprep.subr.mxu0 0.0
      %2454 = vmatpush1.msra.mxu0 0.0
      %2455 = vmatprep.subr.mxu0 0.0
      %2456 = vmatpush1.msra.mxu0 0.0
      %2457 = vmatprep.subr.mxu0 0.0
      %2458 = vmatpush1.msra.mxu0 0.0
      %2459 = vmatprep.subr.mxu0 0.0
      %2460 = vmatpush1.msra.mxu0 0.0
      %2461 = vmatprep.subr.mxu0 0.0
      %2462 = vmatpush1.msra.mxu0 0.0
      %2463 = vmatprep.subr.mxu0 0.0
      %2464 = vmatpush1.msra.mxu0 0.0
      %2465 = vmatprep.subr.mxu0 0.0
      %2466 = vmatpush1.msra.mxu0 0.0
      %2467 = vmatprep.subr.mxu0 0.0
      %2468 = vmatpush1.msra.mxu0 0.0
      %2469 = vmatprep.subr.mxu0 0.0
      %2470 = vmatpush1.msra.mxu0 0.0
      %2471 = vmatprep.subr.mxu0 0.0
      %2472 = vmatpush1.msra.mxu0 0.0
      %2473 = vmatprep.subr.mxu0 0.0
      %2474 = vmatpush1.msra.mxu0 0.0
      %2475 = vmatprep.subr.mxu0 0.0
      %2476 = vmatpush1.msra.mxu0 0.0
      %2477 = vmatprep.subr.mxu0 0.0
      %2478 = vmatpush1.msra.mxu0 0.0
      %2479 = vmatprep.subr.mxu0 0.0
      %2480 = vmatpush1.msra.mxu0 0.0
      %2481 = vmatprep.subr.mxu0 0.0
      %2482 = vmatpush1.msra.mxu0 0.0
      %2483 = vmatprep.subr.mxu0 0.0
      %2484 = vmatpush1.msra.mxu0 0.0
      %2485 = vmatprep.subr.mxu0 0.0
      %2486 = vmatpush1.msra.mxu0 0.0
      %2487 = vmatprep.subr.mxu0 0.0
      %2488 = vmatpush1.msra.mxu0 0.0
      %2489 = vmatprep.subr.mxu0 0.0
      %2490 = vmatpush1.msra.mxu0 0.0
      %2491 = vmatprep.subr.mxu0 0.0
      %2492 = vmatpush1.msra.mxu0 0.0
      %2493 = vmatprep.mubr.f32.mxu0 0.0
      %2494 = vmatmul.mubr.f32.gmra.mrb[0].mxu0 %v2356
      %v2495 = vpop.f32.mrb[0].mxu0
      %v2496 = vadd.f32 0.0, %v2495
      %v2497 = vpop.f32.mrb[0].mxu0
      %2498 = vdwg.mxu0
      %2499 = vrot.lane.b32.xlu0 %v1401, 110
      %v2500 = vpop.permute.xlu0 %2499
      %2501 = vrot.lane.b32.xlu0 %v1402, 110
      %v2502 = vpop.permute.xlu0 %2501
      %2503 = vrot.lane.b32.xlu0 %v1403, 110
      %v2504 = vpop.permute.xlu0 %2503
      %v2505 = vsel %vm2349, %v2500, %v2502
      %v2506 = vsel %vm2349, %v2502, %v2504
      %v2511 = vsel %vm1408, %v2340, 0
      %2513 = vmatprep.subr.mxu0 %v2506
      %2514 = vmatpush1.msra.mxu0 %v2505
      %2515 = vmatprep.subr.mxu0 0.0
      %2516 = vmatpush1.msra.mxu0 0.0
      %2517 = vmatprep.subr.mxu0 0.0
      %2518 = vmatpush1.msra.mxu0 0.0
      %2519 = vmatprep.subr.mxu0 0.0
      %2520 = vmatpush1.msra.mxu0 0.0
      %2521 = vmatprep.subr.mxu0 0.0
      %2522 = vmatpush1.msra.mxu0 0.0
      %2523 = vmatprep.subr.mxu0 0.0
      %2524 = vmatpush1.msra.mxu0 0.0
      %2525 = vmatprep.subr.mxu0 0.0
      %2526 = vmatpush1.msra.mxu0 0.0
      %2527 = vmatprep.subr.mxu0 0.0
      %2528 = vmatpush1.msra.mxu0 0.0
      %2529 = vmatprep.subr.mxu0 0.0
      %2530 = vmatpush1.msra.mxu0 0.0
      %2531 = vmatprep.subr.mxu0 0.0
      %2532 = vmatpush1.msra.mxu0 0.0
      %2533 = vmatprep.subr.mxu0 0.0
      %2534 = vmatpush1.msra.mxu0 0.0
      %2535 = vmatprep.subr.mxu0 0.0
      %2536 = vmatpush1.msra.mxu0 0.0
      %2537 = vmatprep.subr.mxu0 0.0
      %2538 = vmatpush1.msra.mxu0 0.0
      %2539 = vmatprep.subr.mxu0 0.0
      %2540 = vmatpush1.msra.mxu0 0.0
      %2541 = vmatprep.subr.mxu0 0.0
      %2542 = vmatpush1.msra.mxu0 0.0
      %2543 = vmatprep.subr.mxu0 0.0
      %2544 = vmatpush1.msra.mxu0 0.0
      %2545 = vmatprep.subr.mxu0 0.0
      %2546 = vmatpush1.msra.mxu0 0.0
      %2547 = vmatprep.subr.mxu0 0.0
      %2548 = vmatpush1.msra.mxu0 0.0
      %2549 = vmatprep.subr.mxu0 0.0
      %2550 = vmatpush1.msra.mxu0 0.0
      %2551 = vmatprep.subr.mxu0 0.0
      %2552 = vmatpush1.msra.mxu0 0.0
      %2553 = vmatprep.subr.mxu0 0.0
      %2554 = vmatpush1.msra.mxu0 0.0
      %2555 = vmatprep.subr.mxu0 0.0
      %2556 = vmatpush1.msra.mxu0 0.0
      %2557 = vmatprep.subr.mxu0 0.0
      %2558 = vmatpush1.msra.mxu0 0.0
      %2559 = vmatprep.subr.mxu0 0.0
      %2560 = vmatpush1.msra.mxu0 0.0
      %2561 = vmatprep.subr.mxu0 0.0
      %2562 = vmatpush1.msra.mxu0 0.0
      %2563 = vmatprep.subr.mxu0 0.0
      %2564 = vmatpush1.msra.mxu0 0.0
      %2565 = vmatprep.subr.mxu0 0.0
      %2566 = vmatpush1.msra.mxu0 0.0
      %2567 = vmatprep.subr.mxu0 0.0
      %2568 = vmatpush1.msra.mxu0 0.0
      %2569 = vmatprep.subr.mxu0 0.0
      %2570 = vmatpush1.msra.mxu0 0.0
      %2571 = vmatprep.subr.mxu0 0.0
      %2572 = vmatpush1.msra.mxu0 0.0
      %2573 = vmatprep.subr.mxu0 0.0
      %2574 = vmatpush1.msra.mxu0 0.0
      %2575 = vmatprep.subr.mxu0 0.0
      %2576 = vmatpush1.msra.mxu0 0.0
      %2577 = vmatprep.mubr.f32.mxu0 0.0
      %2578 = vmatmul.mubr.f32.gmra.mrb[0].mxu0 %v2511
      %v2579 = vpop.f32.mrb[0].mxu0
      %v2580 = vadd.f32 %v2425, %v2579
      %v2581 = vpop.f32.mrb[0].mxu0
      %v2582 = vadd.f32 %v2427, %v2581
      %2583 = vdwg.mxu0
      %2584 = vmatprep.subr.mxu0 0.0
      %2585 = vmatpush1.msra.mxu0 %v2504
      %2586 = vmatprep.subr.mxu0 0.0
      %2587 = vmatpush1.msra.mxu0 0.0
      %2588 = vmatprep.subr.mxu0 0.0
      %2589 = vmatpush1.msra.mxu0 0.0
      %2590 = vmatprep.subr.mxu0 0.0
      %2591 = vmatpush1.msra.mxu0 0.0
      %2592 = vmatprep.subr.mxu0 0.0
      %2593 = vmatpush1.msra.mxu0 0.0
      %2594 = vmatprep.subr.mxu0 0.0
      %2595 = vmatpush1.msra.mxu0 0.0
      %2596 = vmatprep.subr.mxu0 0.0
      %2597 = vmatpush1.msra.mxu0 0.0
      %2598 = vmatprep.subr.mxu0 0.0
      %2599 = vmatpush1.msra.mxu0 0.0
      %2600 = vmatprep.subr.mxu0 0.0
      %2601 = vmatpush1.msra.mxu0 0.0
      %2602 = vmatprep.subr.mxu0 0.0
      %2603 = vmatpush1.msra.mxu0 0.0
      %2604 = vmatprep.subr.mxu0 0.0
      %2605 = vmatpush1.msra.mxu0 0.0
      %2606 = vmatprep.subr.mxu0 0.0
      %2607 = vmatpush1.msra.mxu0 0.0
      %2608 = vmatprep.subr.mxu0 0.0
      %2609 = vmatpush1.msra.mxu0 0.0
      %2610 = vmatprep.subr.mxu0 0.0
      %2611 = vmatpush1.msra.mxu0 0.0
      %2612 = vmatprep.subr.mxu0 0.0
      %2613 = vmatpush1.msra.mxu0 0.0
      %2614 = vmatprep.subr.mxu0 0.0
      %2615 = vmatpush1.msra.mxu0 0.0
      %2616 = vmatprep.subr.mxu0 0.0
      %2617 = vmatpush1.msra.mxu0 0.0
      %2618 = vmatprep.subr.mxu0 0.0
      %2619 = vmatpush1.msra.mxu0 0.0
      %2620 = vmatprep.subr.mxu0 0.0
      %2621 = vmatpush1.msra.mxu0 0.0
      %2622 = vmatprep.subr.mxu0 0.0
      %2623 = vmatpush1.msra.mxu0 0.0
      %2624 = vmatprep.subr.mxu0 0.0
      %2625 = vmatpush1.msra.mxu0 0.0
      %2626 = vmatprep.subr.mxu0 0.0
      %2627 = vmatpush1.msra.mxu0 0.0
      %2628 = vmatprep.subr.mxu0 0.0
      %2629 = vmatpush1.msra.mxu0 0.0
      %2630 = vmatprep.subr.mxu0 0.0
      %2631 = vmatpush1.msra.mxu0 0.0
      %2632 = vmatprep.subr.mxu0 0.0
      %2633 = vmatpush1.msra.mxu0 0.0
      %2634 = vmatprep.subr.mxu0 0.0
      %2635 = vmatpush1.msra.mxu0 0.0
      %2636 = vmatprep.subr.mxu0 0.0
      %2637 = vmatpush1.msra.mxu0 0.0
      %2638 = vmatprep.subr.mxu0 0.0
      %2639 = vmatpush1.msra.mxu0 0.0
      %2640 = vmatprep.subr.mxu0 0.0
      %2641 = vmatpush1.msra.mxu0 0.0
      %2642 = vmatprep.subr.mxu0 0.0
      %2643 = vmatpush1.msra.mxu0 0.0
      %2644 = vmatprep.subr.mxu0 0.0
      %2645 = vmatpush1.msra.mxu0 0.0
      %2646 = vmatprep.subr.mxu0 0.0
      %2647 = vmatpush1.msra.mxu0 0.0
      %2648 = vmatprep.mubr.f32.mxu0 0.0
      %2649 = vmatmul.mubr.f32.gmra.mrb[0].mxu0 %v2511
      %v2650 = vpop.f32.mrb[0].mxu0
      %v2651 = vadd.f32 %v2496, %v2650
      %v2652 = vpop.f32.mrb[0].mxu0
      %2653 = vdwg.mxu0
      %v2654 = vadd.f32 %v2336, %v2580
      %v2655 = vadd.f32 %v2337, %v2582
      %v2656 = vadd.f32 %v2338, %v2651
      %s2657 = scalar_lea.vmem %s5, 32
      %v2658 = vld [vmem:[%s2657] sm:$0xff]
      %s2659 = scalar_lea.vmem %s6, 32
      %v2660 = vld [vmem:[%s2659] sm:$0xff]
      %2661 = vrot.lane.b32.xlu0 %v1405, 109
      %v2662 = vpop.permute.xlu0 %2661
      %2663 = vrot.lane.b32.xlu0 %v1406, 109
      %v2664 = vpop.permute.xlu0 %2663
      %2665 = vrot.lane.b32.xlu0 %v1407, 109
      %v2666 = vpop.permute.xlu0 %2665
      %vm2667 = vcmask 891904
      %v2668 = vsel %vm2667, %v2662, %v2664
      %v2669 = vsel %vm2667, %v2664, %v2666
      %v2674 = vsel %vm1408, %v2660, 0
      %2676 = vmatprep.subr.mxu0 %v2669
      %2677 = vmatpush1.msra.mxu0 %v2668
      %2678 = vmatprep.subr.mxu0 0.0
      %2679 = vmatpush1.msra.mxu0 0.0
      %2680 = vmatprep.subr.mxu0 0.0
      %2681 = vmatpush1.msra.mxu0 0.0
      %2682 = vmatprep.subr.mxu0 0.0
      %2683 = vmatpush1.msra.mxu0 0.0
      %2684 = vmatprep.subr.mxu0 0.0
      %2685 = vmatpush1.msra.mxu0 0.0
      %2686 = vmatprep.subr.mxu0 0.0
      %2687 = vmatpush1.msra.mxu0 0.0
      %2688 = vmatprep.subr.mxu0 0.0
      %2689 = vmatpush1.msra.mxu0 0.0
      %2690 = vmatprep.subr.mxu0 0.0
      %2691 = vmatpush1.msra.mxu0 0.0
      %2692 = vmatprep.subr.mxu0 0.0
      %2693 = vmatpush1.msra.mxu0 0.0
      %2694 = vmatprep.subr.mxu0 0.0
      %2695 = vmatpush1.msra.mxu0 0.0
      %2696 = vmatprep.subr.mxu0 0.0
      %2697 = vmatpush1.msra.mxu0 0.0
      %2698 = vmatprep.subr.mxu0 0.0
      %2699 = vmatpush1.msra.mxu0 0.0
      %2700 = vmatprep.subr.mxu0 0.0
      %2701 = vmatpush1.msra.mxu0 0.0
      %2702 = vmatprep.subr.mxu0 0.0
      %2703 = vmatpush1.msra.mxu0 0.0
      %2704 = vmatprep.subr.mxu0 0.0
      %2705 = vmatpush1.msra.mxu0 0.0
      %2706 = vmatprep.subr.mxu0 0.0
      %2707 = vmatpush1.msra.mxu0 0.0
      %2708 = vmatprep.subr.mxu0 0.0
      %2709 = vmatpush1.msra.mxu0 0.0
      %2710 = vmatprep.subr.mxu0 0.0
      %2711 = vmatpush1.msra.mxu0 0.0
      %2712 = vmatprep.subr.mxu0 0.0
      %2713 = vmatpush1.msra.mxu0 0.0
      %2714 = vmatprep.subr.mxu0 0.0
      %2715 = vmatpush1.msra.mxu0 0.0
      %2716 = vmatprep.subr.mxu0 0.0
      %2717 = vmatpush1.msra.mxu0 0.0
      %2718 = vmatprep.subr.mxu0 0.0
      %2719 = vmatpush1.msra.mxu0 0.0
      %2720 = vmatprep.subr.mxu0 0.0
      %2721 = vmatpush1.msra.mxu0 0.0
      %2722 = vmatprep.subr.mxu0 0.0
      %2723 = vmatpush1.msra.mxu0 0.0
      %2724 = vmatprep.subr.mxu0 0.0
      %2725 = vmatpush1.msra.mxu0 0.0
      %2726 = vmatprep.subr.mxu0 0.0
      %2727 = vmatpush1.msra.mxu0 0.0
      %2728 = vmatprep.subr.mxu0 0.0
      %2729 = vmatpush1.msra.mxu0 0.0
      %2730 = vmatprep.subr.mxu0 0.0
      %2731 = vmatpush1.msra.mxu0 0.0
      %2732 = vmatprep.subr.mxu0 0.0
      %2733 = vmatpush1.msra.mxu0 0.0
      %2734 = vmatprep.subr.mxu0 0.0
      %2735 = vmatpush1.msra.mxu0 0.0
      %2736 = vmatprep.subr.mxu0 0.0
      %2737 = vmatpush1.msra.mxu0 0.0
      %2738 = vmatprep.subr.mxu0 0.0
      %2739 = vmatpush1.msra.mxu0 0.0
      %2740 = vmatprep.mubr.f32.mxu0 0.0
      %2741 = vmatmul.mubr.f32.gmra.mrb[0].mxu0 %v2674
      %v2742 = vpop.f32.mrb[0].mxu0
      %v2743 = vadd.f32 0.0, %v2742
      %v2744 = vpop.f32.mrb[0].mxu0
      %v2745 = vadd.f32 0.0, %v2744
      %2746 = vdwg.mxu0
      %2747 = vmatprep.subr.mxu0 0.0
      %2748 = vmatpush1.msra.mxu0 %v2666
      %2749 = vmatprep.subr.mxu0 0.0
      %2750 = vmatpush1.msra.mxu0 0.0
      %2751 = vmatprep.subr.mxu0 0.0
      %2752 = vmatpush1.msra.mxu0 0.0
      %2753 = vmatprep.subr.mxu0 0.0
      %2754 = vmatpush1.msra.mxu0 0.0
      %2755 = vmatprep.subr.mxu0 0.0
      %2756 = vmatpush1.msra.mxu0 0.0
      %2757 = vmatprep.subr.mxu0 0.0
      %2758 = vmatpush1.msra.mxu0 0.0
      %2759 = vmatprep.subr.mxu0 0.0
      %2760 = vmatpush1.msra.mxu0 0.0
      %2761 = vmatprep.subr.mxu0 0.0
      %2762 = vmatpush1.msra.mxu0 0.0
      %2763 = vmatprep.subr.mxu0 0.0
      %2764 = vmatpush1.msra.mxu0 0.0
      %2765 = vmatprep.subr.mxu0 0.0
      %2766 = vmatpush1.msra.mxu0 0.0
      %2767 = vmatprep.subr.mxu0 0.0
      %2768 = vmatpush1.msra.mxu0 0.0
      %2769 = vmatprep.subr.mxu0 0.0
      %2770 = vmatpush1.msra.mxu0 0.0
      %2771 = vmatprep.subr.mxu0 0.0
      %2772 = vmatpush1.msra.mxu0 0.0
      %2773 = vmatprep.subr.mxu0 0.0
      %2774 = vmatpush1.msra.mxu0 0.0
      %2775 = vmatprep.subr.mxu0 0.0
      %2776 = vmatpush1.msra.mxu0 0.0
      %2777 = vmatprep.subr.mxu0 0.0
      %2778 = vmatpush1.msra.mxu0 0.0
      %2779 = vmatprep.subr.mxu0 0.0
      %2780 = vmatpush1.msra.mxu0 0.0
      %2781 = vmatprep.subr.mxu0 0.0
      %2782 = vmatpush1.msra.mxu0 0.0
      %2783 = vmatprep.subr.mxu0 0.0
      %2784 = vmatpush1.msra.mxu0 0.0
      %2785 = vmatprep.subr.mxu0 0.0
      %2786 = vmatpush1.msra.mxu0 0.0
      %2787 = vmatprep.subr.mxu0 0.0
      %2788 = vmatpush1.msra.mxu0 0.0
      %2789 = vmatprep.subr.mxu0 0.0
      %2790 = vmatpush1.msra.mxu0 0.0
      %2791 = vmatprep.subr.mxu0 0.0
      %2792 = vmatpush1.msra.mxu0 0.0
      %2793 = vmatprep.subr.mxu0 0.0
      %2794 = vmatpush1.msra.mxu0 0.0
      %2795 = vmatprep.subr.mxu0 0.0
      %2796 = vmatpush1.msra.mxu0 0.0
      %2797 = vmatprep.subr.mxu0 0.0
      %2798 = vmatpush1.msra.mxu0 0.0
      %2799 = vmatprep.subr.mxu0 0.0
      %2800 = vmatpush1.msra.mxu0 0.0
      %2801 = vmatprep.subr.mxu0 0.0
      %2802 = vmatpush1.msra.mxu0 0.0
      %2803 = vmatprep.subr.mxu0 0.0
      %2804 = vmatpush1.msra.mxu0 0.0
      %2805 = vmatprep.subr.mxu0 0.0
      %2806 = vmatpush1.msra.mxu0 0.0
      %2807 = vmatprep.subr.mxu0 0.0
      %2808 = vmatpush1.msra.mxu0 0.0
      %2809 = vmatprep.subr.mxu0 0.0
      %2810 = vmatpush1.msra.mxu0 0.0
      %2811 = vmatprep.mubr.f32.mxu0 0.0
      %2812 = vmatmul.mubr.f32.gmra.mrb[0].mxu0 %v2674
      %v2813 = vpop.f32.mrb[0].mxu0
      %v2814 = vadd.f32 0.0, %v2813
      %v2815 = vpop.f32.mrb[0].mxu0
      %2816 = vdwg.mxu0
      %2817 = vrot.lane.b32.xlu0 %v1401, 109
      %v2818 = vpop.permute.xlu0 %2817
      %2819 = vrot.lane.b32.xlu0 %v1402, 109
      %v2820 = vpop.permute.xlu0 %2819
      %2821 = vrot.lane.b32.xlu0 %v1403, 109
      %v2822 = vpop.permute.xlu0 %2821
      %v2823 = vsel %vm2667, %v2818, %v2820
      %v2824 = vsel %vm2667, %v2820, %v2822
      %v2829 = vsel %vm1408, %v2658, 0
      %2831 = vmatprep.subr.mxu0 %v2824
      %2832 = vmatpush1.msra.mxu0 %v2823
      %2833 = vmatprep.subr.mxu0 0.0
      %2834 = vmatpush1.msra.mxu0 0.0
      %2835 = vmatprep.subr.mxu0 0.0
      %2836 = vmatpush1.msra.mxu0 0.0
      %2837 = vmatprep.subr.mxu0 0.0
      %2838 = vmatpush1.msra.mxu0 0.0
      %2839 = vmatprep.subr.mxu0 0.0
      %2840 = vmatpush1.msra.mxu0 0.0
      %2841 = vmatprep.subr.mxu0 0.0
      %2842 = vmatpush1.msra.mxu0 0.0
      %2843 = vmatprep.subr.mxu0 0.0
      %2844 = vmatpush1.msra.mxu0 0.0
      %2845 = vmatprep.subr.mxu0 0.0
      %2846 = vmatpush1.msra.mxu0 0.0
      %2847 = vmatprep.subr.mxu0 0.0
      %2848 = vmatpush1.msra.mxu0 0.0
      %2849 = vmatprep.subr.mxu0 0.0
      %2850 = vmatpush1.msra.mxu0 0.0
      %2851 = vmatprep.subr.mxu0 0.0
      %2852 = vmatpush1.msra.mxu0 0.0
      %2853 = vmatprep.subr.mxu0 0.0
      %2854 = vmatpush1.msra.mxu0 0.0
      %2855 = vmatprep.subr.mxu0 0.0
      %2856 = vmatpush1.msra.mxu0 0.0
      %2857 = vmatprep.subr.mxu0 0.0
      %2858 = vmatpush1.msra.mxu0 0.0
      %2859 = vmatprep.subr.mxu0 0.0
      %2860 = vmatpush1.msra.mxu0 0.0
      %2861 = vmatprep.subr.mxu0 0.0
      %2862 = vmatpush1.msra.mxu0 0.0
      %2863 = vmatprep.subr.mxu0 0.0
      %2864 = vmatpush1.msra.mxu0 0.0
      %2865 = vmatprep.subr.mxu0 0.0
      %2866 = vmatpush1.msra.mxu0 0.0
      %2867 = vmatprep.subr.mxu0 0.0
      %2868 = vmatpush1.msra.mxu0 0.0
      %2869 = vmatprep.subr.mxu0 0.0
      %2870 = vmatpush1.msra.mxu0 0.0
      %2871 = vmatprep.subr.mxu0 0.0
      %2872 = vmatpush1.msra.mxu0 0.0
      %2873 = vmatprep.subr.mxu0 0.0
      %2874 = vmatpush1.msra.mxu0 0.0
      %2875 = vmatprep.subr.mxu0 0.0
      %2876 = vmatpush1.msra.mxu0 0.0
      %2877 = vmatprep.subr.mxu0 0.0
      %2878 = vmatpush1.msra.mxu0 0.0
      %2879 = vmatprep.subr.mxu0 0.0
      %2880 = vmatpush1.msra.mxu0 0.0
      %2881 = vmatprep.subr.mxu0 0.0
      %2882 = vmatpush1.msra.mxu0 0.0
      %2883 = vmatprep.subr.mxu0 0.0
      %2884 = vmatpush1.msra.mxu0 0.0
      %2885 = vmatprep.subr.mxu0 0.0
      %2886 = vmatpush1.msra.mxu0 0.0
      %2887 = vmatprep.subr.mxu0 0.0
      %2888 = vmatpush1.msra.mxu0 0.0
      %2889 = vmatprep.subr.mxu0 0.0
      %2890 = vmatpush1.msra.mxu0 0.0
      %2891 = vmatprep.subr.mxu0 0.0
      %2892 = vmatpush1.msra.mxu0 0.0
      %2893 = vmatprep.subr.mxu0 0.0
      %2894 = vmatpush1.msra.mxu0 0.0
      %2895 = vmatprep.mubr.f32.mxu0 0.0
      %2896 = vmatmul.mubr.f32.gmra.mrb[0].mxu0 %v2829
      %v2897 = vpop.f32.mrb[0].mxu0
      %v2898 = vadd.f32 %v2743, %v2897
      %v2899 = vpop.f32.mrb[0].mxu0
      %v2900 = vadd.f32 %v2745, %v2899
      %2901 = vdwg.mxu0
      %2902 = vmatprep.subr.mxu0 0.0
      %2903 = vmatpush1.msra.mxu0 %v2822
      %2904 = vmatprep.subr.mxu0 0.0
      %2905 = vmatpush1.msra.mxu0 0.0
      %2906 = vmatprep.subr.mxu0 0.0
      %2907 = vmatpush1.msra.mxu0 0.0
      %2908 = vmatprep.subr.mxu0 0.0
      %2909 = vmatpush1.msra.mxu0 0.0
      %2910 = vmatprep.subr.mxu0 0.0
      %2911 = vmatpush1.msra.mxu0 0.0
      %2912 = vmatprep.subr.mxu0 0.0
      %2913 = vmatpush1.msra.mxu0 0.0
      %2914 = vmatprep.subr.mxu0 0.0
      %2915 = vmatpush1.msra.mxu0 0.0
      %2916 = vmatprep.subr.mxu0 0.0
      %2917 = vmatpush1.msra.mxu0 0.0
      %2918 = vmatprep.subr.mxu0 0.0
      %2919 = vmatpush1.msra.mxu0 0.0
      %2920 = vmatprep.subr.mxu0 0.0
      %2921 = vmatpush1.msra.mxu0 0.0
      %2922 = vmatprep.subr.mxu0 0.0
      %2923 = vmatpush1.msra.mxu0 0.0
      %2924 = vmatprep.subr.mxu0 0.0
      %2925 = vmatpush1.msra.mxu0 0.0
      %2926 = vmatprep.subr.mxu0 0.0
      %2927 = vmatpush1.msra.mxu0 0.0
      %2928 = vmatprep.subr.mxu0 0.0
      %2929 = vmatpush1.msra.mxu0 0.0
      %2930 = vmatprep.subr.mxu0 0.0
      %2931 = vmatpush1.msra.mxu0 0.0
      %2932 = vmatprep.subr.mxu0 0.0
      %2933 = vmatpush1.msra.mxu0 0.0
      %2934 = vmatprep.subr.mxu0 0.0
      %2935 = vmatpush1.msra.mxu0 0.0
      %2936 = vmatprep.subr.mxu0 0.0
      %2937 = vmatpush1.msra.mxu0 0.0
      %2938 = vmatprep.subr.mxu0 0.0
      %2939 = vmatpush1.msra.mxu0 0.0
      %2940 = vmatprep.subr.mxu0 0.0
      %2941 = vmatpush1.msra.mxu0 0.0
      %2942 = vmatprep.subr.mxu0 0.0
      %2943 = vmatpush1.msra.mxu0 0.0
      %2944 = vmatprep.subr.mxu0 0.0
      %2945 = vmatpush1.msra.mxu0 0.0
      %2946 = vmatprep.subr.mxu0 0.0
      %2947 = vmatpush1.msra.mxu0 0.0
      %2948 = vmatprep.subr.mxu0 0.0
      %2949 = vmatpush1.msra.mxu0 0.0
      %2950 = vmatprep.subr.mxu0 0.0
      %2951 = vmatpush1.msra.mxu0 0.0
      %2952 = vmatprep.subr.mxu0 0.0
      %2953 = vmatpush1.msra.mxu0 0.0
      %2954 = vmatprep.subr.mxu0 0.0
      %2955 = vmatpush1.msra.mxu0 0.0
      %2956 = vmatprep.subr.mxu0 0.0
      %2957 = vmatpush1.msra.mxu0 0.0
      %2958 = vmatprep.subr.mxu0 0.0
      %2959 = vmatpush1.msra.mxu0 0.0
      %2960 = vmatprep.subr.mxu0 0.0
      %2961 = vmatpush1.msra.mxu0 0.0
      %2962 = vmatprep.subr.mxu0 0.0
      %2963 = vmatpush1.msra.mxu0 0.0
      %2964 = vmatprep.subr.mxu0 0.0
      %2965 = vmatpush1.msra.mxu0 0.0
      %2966 = vmatprep.mubr.f32.mxu0 0.0
      %2967 = vmatmul.mubr.f32.gmra.mrb[0].mxu0 %v2829
      %v2968 = vpop.f32.mrb[0].mxu0
      %v2969 = vadd.f32 %v2814, %v2968
      %v2970 = vpop.f32.mrb[0].mxu0
      %2971 = vdwg.mxu0
      %v2972 = vadd.f32 %v2654, %v2898
      %v2973 = vadd.f32 %v2655, %v2900
      %v2974 = vadd.f32 %v2656, %v2969
      %s2975 = scalar_lea.vmem %s5, 40
      %v2976 = vld [vmem:[%s2975] sm:$0xff]
      %s2977 = scalar_lea.vmem %s6, 40
      %v2978 = vld [vmem:[%s2977] sm:$0xff]
      %2979 = vrot.lane.b32.xlu0 %v1405, 108
      %v2980 = vpop.permute.xlu0 %2979
      %2981 = vrot.lane.b32.xlu0 %v1406, 108
      %v2982 = vpop.permute.xlu0 %2981
      %2983 = vrot.lane.b32.xlu0 %v1407, 108
      %v2984 = vpop.permute.xlu0 %2983
      %vm2985 = vcmask 883712
      %v2986 = vsel %vm2985, %v2980, %v2982
      %v2987 = vsel %vm2985, %v2982, %v2984
      %v2992 = vsel %vm1408, %v2978, 0
      %2994 = vmatprep.subr.mxu0 %v2987
      %2995 = vmatpush1.msra.mxu0 %v2986
      %2996 = vmatprep.subr.mxu0 0.0
      %2997 = vmatpush1.msra.mxu0 0.0
      %2998 = vmatprep.subr.mxu0 0.0
      %2999 = vmatpush1.msra.mxu0 0.0
      %3000 = vmatprep.subr.mxu0 0.0
      %3001 = vmatpush1.msra.mxu0 0.0
      %3002 = vmatprep.subr.mxu0 0.0
      %3003 = vmatpush1.msra.mxu0 0.0
      %3004 = vmatprep.subr.mxu0 0.0
      %3005 = vmatpush1.msra.mxu0 0.0
      %3006 = vmatprep.subr.mxu0 0.0
      %3007 = vmatpush1.msra.mxu0 0.0
      %3008 = vmatprep.subr.mxu0 0.0
      %3009 = vmatpush1.msra.mxu0 0.0
      %3010 = vmatprep.subr.mxu0 0.0
      %3011 = vmatpush1.msra.mxu0 0.0
      %3012 = vmatprep.subr.mxu0 0.0
      %3013 = vmatpush1.msra.mxu0 0.0
      %3014 = vmatprep.subr.mxu0 0.0
      %3015 = vmatpush1.msra.mxu0 0.0
      %3016 = vmatprep.subr.mxu0 0.0
      %3017 = vmatpush1.msra.mxu0 0.0
      %3018 = vmatprep.subr.mxu0 0.0
      %3019 = vmatpush1.msra.mxu0 0.0
      %3020 = vmatprep.subr.mxu0 0.0
      %3021 = vmatpush1.msra.mxu0 0.0
      %3022 = vmatprep.subr.mxu0 0.0
      %3023 = vmatpush1.msra.mxu0 0.0
      %3024 = vmatprep.subr.mxu0 0.0
      %3025 = vmatpush1.msra.mxu0 0.0
      %3026 = vmatprep.subr.mxu0 0.0
      %3027 = vmatpush1.msra.mxu0 0.0
      %3028 = vmatprep.subr.mxu0 0.0
      %3029 = vmatpush1.msra.mxu0 0.0
      %3030 = vmatprep.subr.mxu0 0.0
      %3031 = vmatpush1.msra.mxu0 0.0
      %3032 = vmatprep.subr.mxu0 0.0
      %3033 = vmatpush1.msra.mxu0 0.0
      %3034 = vmatprep.subr.mxu0 0.0
      %3035 = vmatpush1.msra.mxu0 0.0
      %3036 = vmatprep.subr.mxu0 0.0
      %3037 = vmatpush1.msra.mxu0 0.0
      %3038 = vmatprep.subr.mxu0 0.0
      %3039 = vmatpush1.msra.mxu0 0.0
      %3040 = vmatprep.subr.mxu0 0.0
      %3041 = vmatpush1.msra.mxu0 0.0
      %3042 = vmatprep.subr.mxu0 0.0
      %3043 = vmatpush1.msra.mxu0 0.0
      %3044 = vmatprep.subr.mxu0 0.0
      %3045 = vmatpush1.msra.mxu0 0.0
      %3046 = vmatprep.subr.mxu0 0.0
      %3047 = vmatpush1.msra.mxu0 0.0
      %3048 = vmatprep.subr.mxu0 0.0
      %3049 = vmatpush1.msra.mxu0 0.0
      %3050 = vmatprep.subr.mxu0 0.0
      %3051 = vmatpush1.msra.mxu0 0.0
      %3052 = vmatprep.subr.mxu0 0.0
      %3053 = vmatpush1.msra.mxu0 0.0
      %3054 = vmatprep.subr.mxu0 0.0
      %3055 = vmatpush1.msra.mxu0 0.0
      %3056 = vmatprep.subr.mxu0 0.0
      %3057 = vmatpush1.msra.mxu0 0.0
      %3058 = vmatprep.mubr.f32.mxu0 0.0
      %3059 = vmatmul.mubr.f32.gmra.mrb[0].mxu0 %v2992
      %v3060 = vpop.f32.mrb[0].mxu0
      %v3061 = vadd.f32 0.0, %v3060
      %v3062 = vpop.f32.mrb[0].mxu0
      %v3063 = vadd.f32 0.0, %v3062
      %3064 = vdwg.mxu0
      %3065 = vmatprep.subr.mxu0 0.0
      %3066 = vmatpush1.msra.mxu0 %v2984
      %3067 = vmatprep.subr.mxu0 0.0
      %3068 = vmatpush1.msra.mxu0 0.0
      %3069 = vmatprep.subr.mxu0 0.0
      %3070 = vmatpush1.msra.mxu0 0.0
      %3071 = vmatprep.subr.mxu0 0.0
      %3072 = vmatpush1.msra.mxu0 0.0
      %3073 = vmatprep.subr.mxu0 0.0
      %3074 = vmatpush1.msra.mxu0 0.0
      %3075 = vmatprep.subr.mxu0 0.0
      %3076 = vmatpush1.msra.mxu0 0.0
      %3077 = vmatprep.subr.mxu0 0.0
      %3078 = vmatpush1.msra.mxu0 0.0
      %3079 = vmatprep.subr.mxu0 0.0
      %3080 = vmatpush1.msra.mxu0 0.0
      %3081 = vmatprep.subr.mxu0 0.0
      %3082 = vmatpush1.msra.mxu0 0.0
      %3083 = vmatprep.subr.mxu0 0.0
      %3084 = vmatpush1.msra.mxu0 0.0
      %3085 = vmatprep.subr.mxu0 0.0
      %3086 = vmatpush1.msra.mxu0 0.0
      %3087 = vmatprep.subr.mxu0 0.0
      %3088 = vmatpush1.msra.mxu0 0.0
      %3089 = vmatprep.subr.mxu0 0.0
      %3090 = vmatpush1.msra.mxu0 0.0
      %3091 = vmatprep.subr.mxu0 0.0
      %3092 = vmatpush1.msra.mxu0 0.0
      %3093 = vmatprep.subr.mxu0 0.0
      %3094 = vmatpush1.msra.mxu0 0.0
      %3095 = vmatprep.subr.mxu0 0.0
      %3096 = vmatpush1.msra.mxu0 0.0
      %3097 = vmatprep.subr.mxu0 0.0
      %3098 = vmatpush1.msra.mxu0 0.0
      %3099 = vmatprep.subr.mxu0 0.0
      %3100 = vmatpush1.msra.mxu0 0.0
      %3101 = vmatprep.subr.mxu0 0.0
      %3102 = vmatpush1.msra.mxu0 0.0
      %3103 = vmatprep.subr.mxu0 0.0
      %3104 = vmatpush1.msra.mxu0 0.0
      %3105 = vmatprep.subr.mxu0 0.0
      %3106 = vmatpush1.msra.mxu0 0.0
      %3107 = vmatprep.subr.mxu0 0.0
      %3108 = vmatpush1.msra.mxu0 0.0
      %3109 = vmatprep.subr.mxu0 0.0
      %3110 = vmatpush1.msra.mxu0 0.0
      %3111 = vmatprep.subr.mxu0 0.0
      %3112 = vmatpush1.msra.mxu0 0.0
      %3113 = vmatprep.subr.mxu0 0.0
      %3114 = vmatpush1.msra.mxu0 0.0
      %3115 = vmatprep.subr.mxu0 0.0
      %3116 = vmatpush1.msra.mxu0 0.0
      %3117 = vmatprep.subr.mxu0 0.0
      %3118 = vmatpush1.msra.mxu0 0.0
      %3119 = vmatprep.subr.mxu0 0.0
      %3120 = vmatpush1.msra.mxu0 0.0
      %3121 = vmatprep.subr.mxu0 0.0
      %3122 = vmatpush1.msra.mxu0 0.0
      %3123 = vmatprep.subr.mxu0 0.0
      %3124 = vmatpush1.msra.mxu0 0.0
      %3125 = vmatprep.subr.mxu0 0.0
      %3126 = vmatpush1.msra.mxu0 0.0
      %3127 = vmatprep.subr.mxu0 0.0
      %3128 = vmatpush1.msra.mxu0 0.0
      %3129 = vmatprep.mubr.f32.mxu0 0.0
      %3130 = vmatmul.mubr.f32.gmra.mrb[0].mxu0 %v2992
      %v3131 = vpop.f32.mrb[0].mxu0
      %v3132 = vadd.f32 0.0, %v3131
      %v3133 = vpop.f32.mrb[0].mxu0
      %3134 = vdwg.mxu0
      %3135 = vrot.lane.b32.xlu0 %v1401, 108
      %v3136 = vpop.permute.xlu0 %3135
      %3137 = vrot.lane.b32.xlu0 %v1402, 108
      %v3138 = vpop.permute.xlu0 %3137
      %3139 = vrot.lane.b32.xlu0 %v1403, 108
      %v3140 = vpop.permute.xlu0 %3139
      %v3141 = vsel %vm2985, %v3136, %v3138
      %v3142 = vsel %vm2985, %v3138, %v3140
      %v3147 = vsel %vm1408, %v2976, 0
      %3149 = vmatprep.subr.mxu0 %v3142
      %3150 = vmatpush1.msra.mxu0 %v3141
      %3151 = vmatprep.subr.mxu0 0.0
      %3152 = vmatpush1.msra.mxu0 0.0
      %3153 = vmatprep.subr.mxu0 0.0
      %3154 = vmatpush1.msra.mxu0 0.0
      %3155 = vmatprep.subr.mxu0 0.0
      %3156 = vmatpush1.msra.mxu0 0.0
      %3157 = vmatprep.subr.mxu0 0.0
      %3158 = vmatpush1.msra.mxu0 0.0
      %3159 = vmatprep.subr.mxu0 0.0
      %3160 = vmatpush1.msra.mxu0 0.0
      %3161 = vmatprep.subr.mxu0 0.0
      %3162 = vmatpush1.msra.mxu0 0.0
      %3163 = vmatprep.subr.mxu0 0.0
      %3164 = vmatpush1.msra.mxu0 0.0
      %3165 = vmatprep.subr.mxu0 0.0
      %3166 = vmatpush1.msra.mxu0 0.0
      %3167 = vmatprep.subr.mxu0 0.0
      %3168 = vmatpush1.msra.mxu0 0.0
      %3169 = vmatprep.subr.mxu0 0.0
      %3170 = vmatpush1.msra.mxu0 0.0
      %3171 = vmatprep.subr.mxu0 0.0
      %3172 = vmatpush1.msra.mxu0 0.0
      %3173 = vmatprep.subr.mxu0 0.0
      %3174 = vmatpush1.msra.mxu0 0.0
      %3175 = vmatprep.subr.mxu0 0.0
      %3176 = vmatpush1.msra.mxu0 0.0
      %3177 = vmatprep.subr.mxu0 0.0
      %3178 = vmatpush1.msra.mxu0 0.0
      %3179 = vmatprep.subr.mxu0 0.0
      %3180 = vmatpush1.msra.mxu0 0.0
      %3181 = vmatprep.subr.mxu0 0.0
      %3182 = vmatpush1.msra.mxu0 0.0
      %3183 = vmatprep.subr.mxu0 0.0
      %3184 = vmatpush1.msra.mxu0 0.0
      %3185 = vmatprep.subr.mxu0 0.0
      %3186 = vmatpush1.msra.mxu0 0.0
      %3187 = vmatprep.subr.mxu0 0.0
      %3188 = vmatpush1.msra.mxu0 0.0
      %3189 = vmatprep.subr.mxu0 0.0
      %3190 = vmatpush1.msra.mxu0 0.0
      %3191 = vmatprep.subr.mxu0 0.0
      %3192 = vmatpush1.msra.mxu0 0.0
      %3193 = vmatprep.subr.mxu0 0.0
      %3194 = vmatpush1.msra.mxu0 0.0
      %3195 = vmatprep.subr.mxu0 0.0
      %3196 = vmatpush1.msra.mxu0 0.0
      %3197 = vmatprep.subr.mxu0 0.0
      %3198 = vmatpush1.msra.mxu0 0.0
      %3199 = vmatprep.subr.mxu0 0.0
      %3200 = vmatpush1.msra.mxu0 0.0
      %3201 = vmatprep.subr.mxu0 0.0
      %3202 = vmatpush1.msra.mxu0 0.0
      %3203 = vmatprep.subr.mxu0 0.0
      %3204 = vmatpush1.msra.mxu0 0.0
      %3205 = vmatprep.subr.mxu0 0.0
      %3206 = vmatpush1.msra.mxu0 0.0
      %3207 = vmatprep.subr.mxu0 0.0
      %3208 = vmatpush1.msra.mxu0 0.0
      %3209 = vmatprep.subr.mxu0 0.0
      %3210 = vmatpush1.msra.mxu0 0.0
      %3211 = vmatprep.subr.mxu0 0.0
      %3212 = vmatpush1.msra.mxu0 0.0
      %3213 = vmatprep.mubr.f32.mxu0 0.0
      %3214 = vmatmul.mubr.f32.gmra.mrb[0].mxu0 %v3147
      %v3215 = vpop.f32.mrb[0].mxu0
      %v3216 = vadd.f32 %v3061, %v3215
      %v3217 = vpop.f32.mrb[0].mxu0
      %v3218 = vadd.f32 %v3063, %v3217
      %3219 = vdwg.mxu0
      %3220 = vmatprep.subr.mxu0 0.0
      %3221 = vmatpush1.msra.mxu0 %v3140
      %3222 = vmatprep.subr.mxu0 0.0
      %3223 = vmatpush1.msra.mxu0 0.0
      %3224 = vmatprep.subr.mxu0 0.0
      %3225 = vmatpush1.msra.mxu0 0.0
      %3226 = vmatprep.subr.mxu0 0.0
      %3227 = vmatpush1.msra.mxu0 0.0
      %3228 = vmatprep.subr.mxu0 0.0
      %3229 = vmatpush1.msra.mxu0 0.0
      %3230 = vmatprep.subr.mxu0 0.0
      %3231 = vmatpush1.msra.mxu0 0.0
      %3232 = vmatprep.subr.mxu0 0.0
      %3233 = vmatpush1.msra.mxu0 0.0
      %3234 = vmatprep.subr.mxu0 0.0
      %3235 = vmatpush1.msra.mxu0 0.0
      %3236 = vmatprep.subr.mxu0 0.0
      %3237 = vmatpush1.msra.mxu0 0.0
      %3238 = vmatprep.subr.mxu0 0.0
      %3239 = vmatpush1.msra.mxu0 0.0
      %3240 = vmatprep.subr.mxu0 0.0
      %3241 = vmatpush1.msra.mxu0 0.0
      %3242 = vmatprep.subr.mxu0 0.0
      %3243 = vmatpush1.msra.mxu0 0.0
      %3244 = vmatprep.subr.mxu0 0.0
      %3245 = vmatpush1.msra.mxu0 0.0
      %3246 = vmatprep.subr.mxu0 0.0
      %3247 = vmatpush1.msra.mxu0 0.0
      %3248 = vmatprep.subr.mxu0 0.0
      %3249 = vmatpush1.msra.mxu0 0.0
      %3250 = vmatprep.subr.mxu0 0.0
      %3251 = vmatpush1.msra.mxu0 0.0
      %3252 = vmatprep.subr.mxu0 0.0
      %3253 = vmatpush1.msra.mxu0 0.0
      %3254 = vmatprep.subr.mxu0 0.0
      %3255 = vmatpush1.msra.mxu0 0.0
      %3256 = vmatprep.subr.mxu0 0.0
      %3257 = vmatpush1.msra.mxu0 0.0
      %3258 = vmatprep.subr.mxu0 0.0
      %3259 = vmatpush1.msra.mxu0 0.0
      %3260 = vmatprep.subr.mxu0 0.0
      %3261 = vmatpush1.msra.mxu0 0.0
      %3262 = vmatprep.subr.mxu0 0.0
      %3263 = vmatpush1.msra.mxu0 0.0
      %3264 = vmatprep.subr.mxu0 0.0
      %3265 = vmatpush1.msra.mxu0 0.0
      %3266 = vmatprep.subr.mxu0 0.0
      %3267 = vmatpush1.msra.mxu0 0.0
      %3268 = vmatprep.subr.mxu0 0.0
      %3269 = vmatpush1.msra.mxu0 0.0
      %3270 = vmatprep.subr.mxu0 0.0
      %3271 = vmatpush1.msra.mxu0 0.0
      %3272 = vmatprep.subr.mxu0 0.0
      %3273 = vmatpush1.msra.mxu0 0.0
      %3274 = vmatprep.subr.mxu0 0.0
      %3275 = vmatpush1.msra.mxu0 0.0
      %3276 = vmatprep.subr.mxu0 0.0
      %3277 = vmatpush1.msra.mxu0 0.0
      %3278 = vmatprep.subr.mxu0 0.0
      %3279 = vmatpush1.msra.mxu0 0.0
      %3280 = vmatprep.subr.mxu0 0.0
      %3281 = vmatpush1.msra.mxu0 0.0
      %3282 = vmatprep.subr.mxu0 0.0
      %3283 = vmatpush1.msra.mxu0 0.0
      %3284 = vmatprep.mubr.f32.mxu0 0.0
      %3285 = vmatmul.mubr.f32.gmra.mrb[0].mxu0 %v3147
      %v3286 = vpop.f32.mrb[0].mxu0
      %v3287 = vadd.f32 %v3132, %v3286
      %v3288 = vpop.f32.mrb[0].mxu0
      %3289 = vdwg.mxu0
      %v3290 = vadd.f32 %v2972, %v3216
      %v3291 = vadd.f32 %v2973, %v3218
      %v3292 = vadd.f32 %v2974, %v3287
      %s3293 = scalar_lea.vmem %s5, 48
      %v3294 = vld [vmem:[%s3293] sm:$0xff]
      %s3295 = scalar_lea.vmem %s6, 48
      %v3296 = vld [vmem:[%s3295] sm:$0xff]
      %3297 = vrot.lane.b32.xlu0 %v1405, 92
      %v3298 = vpop.permute.xlu0 %3297
      %3299 = vrot.lane.b32.xlu0 %v1406, 92
      %v3300 = vpop.permute.xlu0 %3299
      %3301 = vrot.lane.b32.xlu0 %v1407, 92
      %v3302 = vpop.permute.xlu0 %3301
      %vm3303 = vcmask 752640
      %v3304 = vsel %vm3303, %v3298, %v3300
      %v3305 = vsel %vm3303, %v3300, %v3302
      %v3310 = vsel %vm1408, %v3296, 0
      %3312 = vmatprep.subr.mxu0 %v3305
      %3313 = vmatpush1.msra.mxu0 %v3304
      %3314 = vmatprep.subr.mxu0 0.0
      %3315 = vmatpush1.msra.mxu0 0.0
      %3316 = vmatprep.subr.mxu0 0.0
      %3317 = vmatpush1.msra.mxu0 0.0
      %3318 = vmatprep.subr.mxu0 0.0
      %3319 = vmatpush1.msra.mxu0 0.0
      %3320 = vmatprep.subr.mxu0 0.0
      %3321 = vmatpush1.msra.mxu0 0.0
      %3322 = vmatprep.subr.mxu0 0.0
      %3323 = vmatpush1.msra.mxu0 0.0
      %3324 = vmatprep.subr.mxu0 0.0
      %3325 = vmatpush1.msra.mxu0 0.0
      %3326 = vmatprep.subr.mxu0 0.0
      %3327 = vmatpush1.msra.mxu0 0.0
      %3328 = vmatprep.subr.mxu0 0.0
      %3329 = vmatpush1.msra.mxu0 0.0
      %3330 = vmatprep.subr.mxu0 0.0
      %3331 = vmatpush1.msra.mxu0 0.0
      %3332 = vmatprep.subr.mxu0 0.0
      %3333 = vmatpush1.msra.mxu0 0.0
      %3334 = vmatprep.subr.mxu0 0.0
      %3335 = vmatpush1.msra.mxu0 0.0
      %3336 = vmatprep.subr.mxu0 0.0
      %3337 = vmatpush1.msra.mxu0 0.0
      %3338 = vmatprep.subr.mxu0 0.0
      %3339 = vmatpush1.msra.mxu0 0.0
      %3340 = vmatprep.subr.mxu0 0.0
      %3341 = vmatpush1.msra.mxu0 0.0
      %3342 = vmatprep.subr.mxu0 0.0
      %3343 = vmatpush1.msra.mxu0 0.0
      %3344 = vmatprep.subr.mxu0 0.0
      %3345 = vmatpush1.msra.mxu0 0.0
      %3346 = vmatprep.subr.mxu0 0.0
      %3347 = vmatpush1.msra.mxu0 0.0
      %3348 = vmatprep.subr.mxu0 0.0
      %3349 = vmatpush1.msra.mxu0 0.0
      %3350 = vmatprep.subr.mxu0 0.0
      %3351 = vmatpush1.msra.mxu0 0.0
      %3352 = vmatprep.subr.mxu0 0.0
      %3353 = vmatpush1.msra.mxu0 0.0
      %3354 = vmatprep.subr.mxu0 0.0
      %3355 = vmatpush1.msra.mxu0 0.0
      %3356 = vmatprep.subr.mxu0 0.0
      %3357 = vmatpush1.msra.mxu0 0.0
      %3358 = vmatprep.subr.mxu0 0.0
      %3359 = vmatpush1.msra.mxu0 0.0
      %3360 = vmatprep.subr.mxu0 0.0
      %3361 = vmatpush1.msra.mxu0 0.0
      %3362 = vmatprep.subr.mxu0 0.0
      %3363 = vmatpush1.msra.mxu0 0.0
      %3364 = vmatprep.subr.mxu0 0.0
      %3365 = vmatpush1.msra.mxu0 0.0
      %3366 = vmatprep.subr.mxu0 0.0
      %3367 = vmatpush1.msra.mxu0 0.0
      %3368 = vmatprep.subr.mxu0 0.0
      %3369 = vmatpush1.msra.mxu0 0.0
      %3370 = vmatprep.subr.mxu0 0.0
      %3371 = vmatpush1.msra.mxu0 0.0
      %3372 = vmatprep.subr.mxu0 0.0
      %3373 = vmatpush1.msra.mxu0 0.0
      %3374 = vmatprep.subr.mxu0 0.0
      %3375 = vmatpush1.msra.mxu0 0.0
      %3376 = vmatprep.mubr.f32.mxu0 0.0
      %3377 = vmatmul.mubr.f32.gmra.mrb[0].mxu0 %v3310
      %v3378 = vpop.f32.mrb[0].mxu0
      %v3379 = vadd.f32 0.0, %v3378
      %v3380 = vpop.f32.mrb[0].mxu0
      %v3381 = vadd.f32 0.0, %v3380
      %3382 = vdwg.mxu0
      %3383 = vmatprep.subr.mxu0 0.0
      %3384 = vmatpush1.msra.mxu0 %v3302
      %3385 = vmatprep.subr.mxu0 0.0
      %3386 = vmatpush1.msra.mxu0 0.0
      %3387 = vmatprep.subr.mxu0 0.0
      %3388 = vmatpush1.msra.mxu0 0.0
      %3389 = vmatprep.subr.mxu0 0.0
      %3390 = vmatpush1.msra.mxu0 0.0
      %3391 = vmatprep.subr.mxu0 0.0
      %3392 = vmatpush1.msra.mxu0 0.0
      %3393 = vmatprep.subr.mxu0 0.0
      %3394 = vmatpush1.msra.mxu0 0.0
      %3395 = vmatprep.subr.mxu0 0.0
      %3396 = vmatpush1.msra.mxu0 0.0
      %3397 = vmatprep.subr.mxu0 0.0
      %3398 = vmatpush1.msra.mxu0 0.0
      %3399 = vmatprep.subr.mxu0 0.0
      %3400 = vmatpush1.msra.mxu0 0.0
      %3401 = vmatprep.subr.mxu0 0.0
      %3402 = vmatpush1.msra.mxu0 0.0
      %3403 = vmatprep.subr.mxu0 0.0
      %3404 = vmatpush1.msra.mxu0 0.0
      %3405 = vmatprep.subr.mxu0 0.0
      %3406 = vmatpush1.msra.mxu0 0.0
      %3407 = vmatprep.subr.mxu0 0.0
      %3408 = vmatpush1.msra.mxu0 0.0
      %3409 = vmatprep.subr.mxu0 0.0
      %3410 = vmatpush1.msra.mxu0 0.0
      %3411 = vmatprep.subr.mxu0 0.0
      %3412 = vmatpush1.msra.mxu0 0.0
      %3413 = vmatprep.subr.mxu0 0.0
      %3414 = vmatpush1.msra.mxu0 0.0
      %3415 = vmatprep.subr.mxu0 0.0
      %3416 = vmatpush1.msra.mxu0 0.0
      %3417 = vmatprep.subr.mxu0 0.0
      %3418 = vmatpush1.msra.mxu0 0.0
      %3419 = vmatprep.subr.mxu0 0.0
      %3420 = vmatpush1.msra.mxu0 0.0
      %3421 = vmatprep.subr.mxu0 0.0
      %3422 = vmatpush1.msra.mxu0 0.0
      %3423 = vmatprep.subr.mxu0 0.0
      %3424 = vmatpush1.msra.mxu0 0.0
      %3425 = vmatprep.subr.mxu0 0.0
      %3426 = vmatpush1.msra.mxu0 0.0
      %3427 = vmatprep.subr.mxu0 0.0
      %3428 = vmatpush1.msra.mxu0 0.0
      %3429 = vmatprep.subr.mxu0 0.0
      %3430 = vmatpush1.msra.mxu0 0.0
      %3431 = vmatprep.subr.mxu0 0.0
      %3432 = vmatpush1.msra.mxu0 0.0
      %3433 = vmatprep.subr.mxu0 0.0
      %3434 = vmatpush1.msra.mxu0 0.0
      %3435 = vmatprep.subr.mxu0 0.0
      %3436 = vmatpush1.msra.mxu0 0.0
      %3437 = vmatprep.subr.mxu0 0.0
      %3438 = vmatpush1.msra.mxu0 0.0
      %3439 = vmatprep.subr.mxu0 0.0
      %3440 = vmatpush1.msra.mxu0 0.0
      %3441 = vmatprep.subr.mxu0 0.0
      %3442 = vmatpush1.msra.mxu0 0.0
      %3443 = vmatprep.subr.mxu0 0.0
      %3444 = vmatpush1.msra.mxu0 0.0
      %3445 = vmatprep.subr.mxu0 0.0
      %3446 = vmatpush1.msra.mxu0 0.0
      %3447 = vmatprep.mubr.f32.mxu0 0.0
      %3448 = vmatmul.mubr.f32.gmra.mrb[0].mxu0 %v3310
      %v3449 = vpop.f32.mrb[0].mxu0
      %v3450 = vadd.f32 0.0, %v3449
      %v3451 = vpop.f32.mrb[0].mxu0
      %3452 = vdwg.mxu0
      %3453 = vrot.lane.b32.xlu0 %v1401, 92
      %v3454 = vpop.permute.xlu0 %3453
      %3455 = vrot.lane.b32.xlu0 %v1402, 92
      %v3456 = vpop.permute.xlu0 %3455
      %3457 = vrot.lane.b32.xlu0 %v1403, 92
      %v3458 = vpop.permute.xlu0 %3457
      %v3459 = vsel %vm3303, %v3454, %v3456
      %v3460 = vsel %vm3303, %v3456, %v3458
      %v3465 = vsel %vm1408, %v3294, 0
      %3467 = vmatprep.subr.mxu0 %v3460
      %3468 = vmatpush1.msra.mxu0 %v3459
      %3469 = vmatprep.subr.mxu0 0.0
      %3470 = vmatpush1.msra.mxu0 0.0
      %3471 = vmatprep.subr.mxu0 0.0
      %3472 = vmatpush1.msra.mxu0 0.0
      %3473 = vmatprep.subr.mxu0 0.0
      %3474 = vmatpush1.msra.mxu0 0.0
      %3475 = vmatprep.subr.mxu0 0.0
      %3476 = vmatpush1.msra.mxu0 0.0
      %3477 = vmatprep.subr.mxu0 0.0
      %3478 = vmatpush1.msra.mxu0 0.0
      %3479 = vmatprep.subr.mxu0 0.0
      %3480 = vmatpush1.msra.mxu0 0.0
      %3481 = vmatprep.subr.mxu0 0.0
      %3482 = vmatpush1.msra.mxu0 0.0
      %3483 = vmatprep.subr.mxu0 0.0
      %3484 = vmatpush1.msra.mxu0 0.0
      %3485 = vmatprep.subr.mxu0 0.0
      %3486 = vmatpush1.msra.mxu0 0.0
      %3487 = vmatprep.subr.mxu0 0.0
      %3488 = vmatpush1.msra.mxu0 0.0
      %3489 = vmatprep.subr.mxu0 0.0
      %3490 = vmatpush1.msra.mxu0 0.0
      %3491 = vmatprep.subr.mxu0 0.0
      %3492 = vmatpush1.msra.mxu0 0.0
      %3493 = vmatprep.subr.mxu0 0.0
      %3494 = vmatpush1.msra.mxu0 0.0
      %3495 = vmatprep.subr.mxu0 0.0
      %3496 = vmatpush1.msra.mxu0 0.0
      %3497 = vmatprep.subr.mxu0 0.0
      %3498 = vmatpush1.msra.mxu0 0.0
      %3499 = vmatprep.subr.mxu0 0.0
      %3500 = vmatpush1.msra.mxu0 0.0
      %3501 = vmatprep.subr.mxu0 0.0
      %3502 = vmatpush1.msra.mxu0 0.0
      %3503 = vmatprep.subr.mxu0 0.0
      %3504 = vmatpush1.msra.mxu0 0.0
      %3505 = vmatprep.subr.mxu0 0.0
      %3506 = vmatpush1.msra.mxu0 0.0
      %3507 = vmatprep.subr.mxu0 0.0
      %3508 = vmatpush1.msra.mxu0 0.0
      %3509 = vmatprep.subr.mxu0 0.0
      %3510 = vmatpush1.msra.mxu0 0.0
      %3511 = vmatprep.subr.mxu0 0.0
      %3512 = vmatpush1.msra.mxu0 0.0
      %3513 = vmatprep.subr.mxu0 0.0
      %3514 = vmatpush1.msra.mxu0 0.0
      %3515 = vmatprep.subr.mxu0 0.0
      %3516 = vmatpush1.msra.mxu0 0.0
      %3517 = vmatprep.subr.mxu0 0.0
      %3518 = vmatpush1.msra.mxu0 0.0
      %3519 = vmatprep.subr.mxu0 0.0
      %3520 = vmatpush1.msra.mxu0 0.0
      %3521 = vmatprep.subr.mxu0 0.0
      %3522 = vmatpush1.msra.mxu0 0.0
      %3523 = vmatprep.subr.mxu0 0.0
      %3524 = vmatpush1.msra.mxu0 0.0
      %3525 = vmatprep.subr.mxu0 0.0
      %3526 = vmatpush1.msra.mxu0 0.0
      %3527 = vmatprep.subr.mxu0 0.0
      %3528 = vmatpush1.msra.mxu0 0.0
      %3529 = vmatprep.subr.mxu0 0.0
      %3530 = vmatpush1.msra.mxu0 0.0
      %3531 = vmatprep.mubr.f32.mxu0 0.0
      %3532 = vmatmul.mubr.f32.gmra.mrb[0].mxu0 %v3465
      %v3533 = vpop.f32.mrb[0].mxu0
      %v3534 = vadd.f32 %v3379, %v3533
      %v3535 = vpop.f32.mrb[0].mxu0
      %v3536 = vadd.f32 %v3381, %v3535
      %3537 = vdwg.mxu0
      %3538 = vmatprep.subr.mxu0 0.0
      %3539 = vmatpush1.msra.mxu0 %v3458
      %3540 = vmatprep.subr.mxu0 0.0
      %3541 = vmatpush1.msra.mxu0 0.0
      %3542 = vmatprep.subr.mxu0 0.0
      %3543 = vmatpush1.msra.mxu0 0.0
      %3544 = vmatprep.subr.mxu0 0.0
      %3545 = vmatpush1.msra.mxu0 0.0
      %3546 = vmatprep.subr.mxu0 0.0
      %3547 = vmatpush1.msra.mxu0 0.0
      %3548 = vmatprep.subr.mxu0 0.0
      %3549 = vmatpush1.msra.mxu0 0.0
      %3550 = vmatprep.subr.mxu0 0.0
      %3551 = vmatpush1.msra.mxu0 0.0
      %3552 = vmatprep.subr.mxu0 0.0
      %3553 = vmatpush1.msra.mxu0 0.0
      %3554 = vmatprep.subr.mxu0 0.0
      %3555 = vmatpush1.msra.mxu0 0.0
      %3556 = vmatprep.subr.mxu0 0.0
      %3557 = vmatpush1.msra.mxu0 0.0
      %3558 = vmatprep.subr.mxu0 0.0
      %3559 = vmatpush1.msra.mxu0 0.0
      %3560 = vmatprep.subr.mxu0 0.0
      %3561 = vmatpush1.msra.mxu0 0.0
      %3562 = vmatprep.subr.mxu0 0.0
      %3563 = vmatpush1.msra.mxu0 0.0
      %3564 = vmatprep.subr.mxu0 0.0
      %3565 = vmatpush1.msra.mxu0 0.0
      %3566 = vmatprep.subr.mxu0 0.0
      %3567 = vmatpush1.msra.mxu0 0.0
      %3568 = vmatprep.subr.mxu0 0.0
      %3569 = vmatpush1.msra.mxu0 0.0
      %3570 = vmatprep.subr.mxu0 0.0
      %3571 = vmatpush1.msra.mxu0 0.0
      %3572 = vmatprep.subr.mxu0 0.0
      %3573 = vmatpush1.msra.mxu0 0.0
      %3574 = vmatprep.subr.mxu0 0.0
      %3575 = vmatpush1.msra.mxu0 0.0
      %3576 = vmatprep.subr.mxu0 0.0
      %3577 = vmatpush1.msra.mxu0 0.0
      %3578 = vmatprep.subr.mxu0 0.0
      %3579 = vmatpush1.msra.mxu0 0.0
      %3580 = vmatprep.subr.mxu0 0.0
      %3581 = vmatpush1.msra.mxu0 0.0
      %3582 = vmatprep.subr.mxu0 0.0
      %3583 = vmatpush1.msra.mxu0 0.0
      %3584 = vmatprep.subr.mxu0 0.0
      %3585 = vmatpush1.msra.mxu0 0.0
      %3586 = vmatprep.subr.mxu0 0.0
      %3587 = vmatpush1.msra.mxu0 0.0
      %3588 = vmatprep.subr.mxu0 0.0
      %3589 = vmatpush1.msra.mxu0 0.0
      %3590 = vmatprep.subr.mxu0 0.0
      %3591 = vmatpush1.msra.mxu0 0.0
      %3592 = vmatprep.subr.mxu0 0.0
      %3593 = vmatpush1.msra.mxu0 0.0
      %3594 = vmatprep.subr.mxu0 0.0
      %3595 = vmatpush1.msra.mxu0 0.0
      %3596 = vmatprep.subr.mxu0 0.0
      %3597 = vmatpush1.msra.mxu0 0.0
      %3598 = vmatprep.subr.mxu0 0.0
      %3599 = vmatpush1.msra.mxu0 0.0
      %3600 = vmatprep.subr.mxu0 0.0
      %3601 = vmatpush1.msra.mxu0 0.0
      %3602 = vmatprep.mubr.f32.mxu0 0.0
      %3603 = vmatmul.mubr.f32.gmra.mrb[0].mxu0 %v3465
      %v3604 = vpop.f32.mrb[0].mxu0
      %v3605 = vadd.f32 %v3450, %v3604
      %v3606 = vpop.f32.mrb[0].mxu0
      %3607 = vdwg.mxu0
      %v3608 = vadd.f32 %v3290, %v3534
      %v3609 = vadd.f32 %v3291, %v3536
      %v3610 = vadd.f32 %v3292, %v3605
      %s3611 = scalar_lea.vmem %s5, 56
      %v3612 = vld [vmem:[%s3611] sm:$0xff]
      %s3613 = scalar_lea.vmem %s6, 56
      %v3614 = vld [vmem:[%s3613] sm:$0xff]
      %3615 = vrot.lane.b32.xlu0 %v1405, 91
      %v3616 = vpop.permute.xlu0 %3615
      %3617 = vrot.lane.b32.xlu0 %v1406, 91
      %v3618 = vpop.permute.xlu0 %3617
      %3619 = vrot.lane.b32.xlu0 %v1407, 91
      %v3620 = vpop.permute.xlu0 %3619
      %vm3621 = vcmask 744448
      %v3622 = vsel %vm3621, %v3616, %v3618
      %v3623 = vsel %vm3621, %v3618, %v3620
      %v3628 = vsel %vm1408, %v3614, 0
      %3630 = vmatprep.subr.mxu0 %v3623
      %3631 = vmatpush1.msra.mxu0 %v3622
      %3632 = vmatprep.subr.mxu0 0.0
      %3633 = vmatpush1.msra.mxu0 0.0
      %3634 = vmatprep.subr.mxu0 0.0
      %3635 = vmatpush1.msra.mxu0 0.0
      %3636 = vmatprep.subr.mxu0 0.0
      %3637 = vmatpush1.msra.mxu0 0.0
      %3638 = vmatprep.subr.mxu0 0.0
      %3639 = vmatpush1.msra.mxu0 0.0
      %3640 = vmatprep.subr.mxu0 0.0
      %3641 = vmatpush1.msra.mxu0 0.0
      %3642 = vmatprep.subr.mxu0 0.0
      %3643 = vmatpush1.msra.mxu0 0.0
      %3644 = vmatprep.subr.mxu0 0.0
      %3645 = vmatpush1.msra.mxu0 0.0
      %3646 = vmatprep.subr.mxu0 0.0
      %3647 = vmatpush1.msra.mxu0 0.0
      %3648 = vmatprep.subr.mxu0 0.0
      %3649 = vmatpush1.msra.mxu0 0.0
      %3650 = vmatprep.subr.mxu0 0.0
      %3651 = vmatpush1.msra.mxu0 0.0
      %3652 = vmatprep.subr.mxu0 0.0
      %3653 = vmatpush1.msra.mxu0 0.0
      %3654 = vmatprep.subr.mxu0 0.0
      %3655 = vmatpush1.msra.mxu0 0.0
      %3656 = vmatprep.subr.mxu0 0.0
      %3657 = vmatpush1.msra.mxu0 0.0
      %3658 = vmatprep.subr.mxu0 0.0
      %3659 = vmatpush1.msra.mxu0 0.0
      %3660 = vmatprep.subr.mxu0 0.0
      %3661 = vmatpush1.msra.mxu0 0.0
      %3662 = vmatprep.subr.mxu0 0.0
      %3663 = vmatpush1.msra.mxu0 0.0
      %3664 = vmatprep.subr.mxu0 0.0
      %3665 = vmatpush1.msra.mxu0 0.0
      %3666 = vmatprep.subr.mxu0 0.0
      %3667 = vmatpush1.msra.mxu0 0.0
      %3668 = vmatprep.subr.mxu0 0.0
      %3669 = vmatpush1.msra.mxu0 0.0
      %3670 = vmatprep.subr.mxu0 0.0
      %3671 = vmatpush1.msra.mxu0 0.0
      %3672 = vmatprep.subr.mxu0 0.0
      %3673 = vmatpush1.msra.mxu0 0.0
      %3674 = vmatprep.subr.mxu0 0.0
      %3675 = vmatpush1.msra.mxu0 0.0
      %3676 = vmatprep.subr.mxu0 0.0
      %3677 = vmatpush1.msra.mxu0 0.0
      %3678 = vmatprep.subr.mxu0 0.0
      %3679 = vmatpush1.msra.mxu0 0.0
      %3680 = vmatprep.subr.mxu0 0.0
      %3681 = vmatpush1.msra.mxu0 0.0
      %3682 = vmatprep.subr.mxu0 0.0
      %3683 = vmatpush1.msra.mxu0 0.0
      %3684 = vmatprep.subr.mxu0 0.0
      %3685 = vmatpush1.msra.mxu0 0.0
      %3686 = vmatprep.subr.mxu0 0.0
      %3687 = vmatpush1.msra.mxu0 0.0
      %3688 = vmatprep.subr.mxu0 0.0
      %3689 = vmatpush1.msra.mxu0 0.0
      %3690 = vmatprep.subr.mxu0 0.0
      %3691 = vmatpush1.msra.mxu0 0.0
      %3692 = vmatprep.subr.mxu0 0.0
      %3693 = vmatpush1.msra.mxu0 0.0
      %3694 = vmatprep.mubr.f32.mxu0 0.0
      %3695 = vmatmul.mubr.f32.gmra.mrb[0].mxu0 %v3628
      %v3696 = vpop.f32.mrb[0].mxu0
      %v3697 = vadd.f32 0.0, %v3696
      %v3698 = vpop.f32.mrb[0].mxu0
      %v3699 = vadd.f32 0.0, %v3698
      %3700 = vdwg.mxu0
      %3701 = vmatprep.subr.mxu0 0.0
      %3702 = vmatpush1.msra.mxu0 %v3620
      %3703 = vmatprep.subr.mxu0 0.0
      %3704 = vmatpush1.msra.mxu0 0.0
      %3705 = vmatprep.subr.mxu0 0.0
      %3706 = vmatpush1.msra.mxu0 0.0
      %3707 = vmatprep.subr.mxu0 0.0
      %3708 = vmatpush1.msra.mxu0 0.0
      %3709 = vmatprep.subr.mxu0 0.0
      %3710 = vmatpush1.msra.mxu0 0.0
      %3711 = vmatprep.subr.mxu0 0.0
      %3712 = vmatpush1.msra.mxu0 0.0
      %3713 = vmatprep.subr.mxu0 0.0
      %3714 = vmatpush1.msra.mxu0 0.0
      %3715 = vmatprep.subr.mxu0 0.0
      %3716 = vmatpush1.msra.mxu0 0.0
      %3717 = vmatprep.subr.mxu0 0.0
      %3718 = vmatpush1.msra.mxu0 0.0
      %3719 = vmatprep.subr.mxu0 0.0
      %3720 = vmatpush1.msra.mxu0 0.0
      %3721 = vmatprep.subr.mxu0 0.0
      %3722 = vmatpush1.msra.mxu0 0.0
      %3723 = vmatprep.subr.mxu0 0.0
      %3724 = vmatpush1.msra.mxu0 0.0
      %3725 = vmatprep.subr.mxu0 0.0
      %3726 = vmatpush1.msra.mxu0 0.0
      %3727 = vmatprep.subr.mxu0 0.0
      %3728 = vmatpush1.msra.mxu0 0.0
      %3729 = vmatprep.subr.mxu0 0.0
      %3730 = vmatpush1.msra.mxu0 0.0
      %3731 = vmatprep.subr.mxu0 0.0
      %3732 = vmatpush1.msra.mxu0 0.0
      %3733 = vmatprep.subr.mxu0 0.0
      %3734 = vmatpush1.msra.mxu0 0.0
      %3735 = vmatprep.subr.mxu0 0.0
      %3736 = vmatpush1.msra.mxu0 0.0
      %3737 = vmatprep.subr.mxu0 0.0
      %3738 = vmatpush1.msra.mxu0 0.0
      %3739 = vmatprep.subr.mxu0 0.0
      %3740 = vmatpush1.msra.mxu0 0.0
      %3741 = vmatprep.subr.mxu0 0.0
      %3742 = vmatpush1.msra.mxu0 0.0
      %3743 = vmatprep.subr.mxu0 0.0
      %3744 = vmatpush1.msra.mxu0 0.0
      %3745 = vmatprep.subr.mxu0 0.0
      %3746 = vmatpush1.msra.mxu0 0.0
      %3747 = vmatprep.subr.mxu0 0.0
      %3748 = vmatpush1.msra.mxu0 0.0
      %3749 = vmatprep.subr.mxu0 0.0
      %3750 = vmatpush1.msra.mxu0 0.0
      %3751 = vmatprep.subr.mxu0 0.0
      %3752 = vmatpush1.msra.mxu0 0.0
      %3753 = vmatprep.subr.mxu0 0.0
      %3754 = vmatpush1.msra.mxu0 0.0
      %3755 = vmatprep.subr.mxu0 0.0
      %3756 = vmatpush1.msra.mxu0 0.0
      %3757 = vmatprep.subr.mxu0 0.0
      %3758 = vmatpush1.msra.mxu0 0.0
      %3759 = vmatprep.subr.mxu0 0.0
      %3760 = vmatpush1.msra.mxu0 0.0
      %3761 = vmatprep.subr.mxu0 0.0
      %3762 = vmatpush1.msra.mxu0 0.0
      %3763 = vmatprep.subr.mxu0 0.0
      %3764 = vmatpush1.msra.mxu0 0.0
      %3765 = vmatprep.mubr.f32.mxu0 0.0
      %3766 = vmatmul.mubr.f32.gmra.mrb[0].mxu0 %v3628
      %v3767 = vpop.f32.mrb[0].mxu0
      %v3768 = vadd.f32 0.0, %v3767
      %v3769 = vpop.f32.mrb[0].mxu0
      %3770 = vdwg.mxu0
      %3771 = vrot.lane.b32.xlu0 %v1401, 91
      %v3772 = vpop.permute.xlu0 %3771
      %3773 = vrot.lane.b32.xlu0 %v1402, 91
      %v3774 = vpop.permute.xlu0 %3773
      %3775 = vrot.lane.b32.xlu0 %v1403, 91
      %v3776 = vpop.permute.xlu0 %3775
      %v3777 = vsel %vm3621, %v3772, %v3774
      %v3778 = vsel %vm3621, %v3774, %v3776
      %v3783 = vsel %vm1408, %v3612, 0
      %3785 = vmatprep.subr.mxu0 %v3778
      %3786 = vmatpush1.msra.mxu0 %v3777
      %3787 = vmatprep.subr.mxu0 0.0
      %3788 = vmatpush1.msra.mxu0 0.0
      %3789 = vmatprep.subr.mxu0 0.0
      %3790 = vmatpush1.msra.mxu0 0.0
      %3791 = vmatprep.subr.mxu0 0.0
      %3792 = vmatpush1.msra.mxu0 0.0
      %3793 = vmatprep.subr.mxu0 0.0
      %3794 = vmatpush1.msra.mxu0 0.0
      %3795 = vmatprep.subr.mxu0 0.0
      %3796 = vmatpush1.msra.mxu0 0.0
      %3797 = vmatprep.subr.mxu0 0.0
      %3798 = vmatpush1.msra.mxu0 0.0
      %3799 = vmatprep.subr.mxu0 0.0
      %3800 = vmatpush1.msra.mxu0 0.0
      %3801 = vmatprep.subr.mxu0 0.0
      %3802 = vmatpush1.msra.mxu0 0.0
      %3803 = vmatprep.subr.mxu0 0.0
      %3804 = vmatpush1.msra.mxu0 0.0
      %3805 = vmatprep.subr.mxu0 0.0
      %3806 = vmatpush1.msra.mxu0 0.0
      %3807 = vmatprep.subr.mxu0 0.0
      %3808 = vmatpush1.msra.mxu0 0.0
      %3809 = vmatprep.subr.mxu0 0.0
      %3810 = vmatpush1.msra.mxu0 0.0
      %3811 = vmatprep.subr.mxu0 0.0
      %3812 = vmatpush1.msra.mxu0 0.0
      %3813 = vmatprep.subr.mxu0 0.0
      %3814 = vmatpush1.msra.mxu0 0.0
      %3815 = vmatprep.subr.mxu0 0.0
      %3816 = vmatpush1.msra.mxu0 0.0
      %3817 = vmatprep.subr.mxu0 0.0
      %3818 = vmatpush1.msra.mxu0 0.0
      %3819 = vmatprep.subr.mxu0 0.0
      %3820 = vmatpush1.msra.mxu0 0.0
      %3821 = vmatprep.subr.mxu0 0.0
      %3822 = vmatpush1.msra.mxu0 0.0
      %3823 = vmatprep.subr.mxu0 0.0
      %3824 = vmatpush1.msra.mxu0 0.0
      %3825 = vmatprep.subr.mxu0 0.0
      %3826 = vmatpush1.msra.mxu0 0.0
      %3827 = vmatprep.subr.mxu0 0.0
      %3828 = vmatpush1.msra.mxu0 0.0
      %3829 = vmatprep.subr.mxu0 0.0
      %3830 = vmatpush1.msra.mxu0 0.0
      %3831 = vmatprep.subr.mxu0 0.0
      %3832 = vmatpush1.msra.mxu0 0.0
      %3833 = vmatprep.subr.mxu0 0.0
      %3834 = vmatpush1.msra.mxu0 0.0
      %3835 = vmatprep.subr.mxu0 0.0
      %3836 = vmatpush1.msra.mxu0 0.0
      %3837 = vmatprep.subr.mxu0 0.0
      %3838 = vmatpush1.msra.mxu0 0.0
      %3839 = vmatprep.subr.mxu0 0.0
      %3840 = vmatpush1.msra.mxu0 0.0
      %3841 = vmatprep.subr.mxu0 0.0
      %3842 = vmatpush1.msra.mxu0 0.0
      %3843 = vmatprep.subr.mxu0 0.0
      %3844 = vmatpush1.msra.mxu0 0.0
      %3845 = vmatprep.subr.mxu0 0.0
      %3846 = vmatpush1.msra.mxu0 0.0
      %3847 = vmatprep.subr.mxu0 0.0
      %3848 = vmatpush1.msra.mxu0 0.0
      %3849 = vmatprep.mubr.f32.mxu0 0.0
      %3850 = vmatmul.mubr.f32.gmra.mrb[0].mxu0 %v3783
      %v3851 = vpop.f32.mrb[0].mxu0
      %v3852 = vadd.f32 %v3697, %v3851
      %v3853 = vpop.f32.mrb[0].mxu0
      %v3854 = vadd.f32 %v3699, %v3853
      %3855 = vdwg.mxu0
      %3856 = vmatprep.subr.mxu0 0.0
      %3857 = vmatpush1.msra.mxu0 %v3776
      %3858 = vmatprep.subr.mxu0 0.0
      %3859 = vmatpush1.msra.mxu0 0.0
      %3860 = vmatprep.subr.mxu0 0.0
      %3861 = vmatpush1.msra.mxu0 0.0
      %3862 = vmatprep.subr.mxu0 0.0
      %3863 = vmatpush1.msra.mxu0 0.0
      %3864 = vmatprep.subr.mxu0 0.0
      %3865 = vmatpush1.msra.mxu0 0.0
      %3866 = vmatprep.subr.mxu0 0.0
      %3867 = vmatpush1.msra.mxu0 0.0
      %3868 = vmatprep.subr.mxu0 0.0
      %3869 = vmatpush1.msra.mxu0 0.0
      %3870 = vmatprep.subr.mxu0 0.0
      %3871 = vmatpush1.msra.mxu0 0.0
      %3872 = vmatprep.subr.mxu0 0.0
      %3873 = vmatpush1.msra.mxu0 0.0
      %3874 = vmatprep.subr.mxu0 0.0
      %3875 = vmatpush1.msra.mxu0 0.0
      %3876 = vmatprep.subr.mxu0 0.0
      %3877 = vmatpush1.msra.mxu0 0.0
      %3878 = vmatprep.subr.mxu0 0.0
      %3879 = vmatpush1.msra.mxu0 0.0
      %3880 = vmatprep.subr.mxu0 0.0
      %3881 = vmatpush1.msra.mxu0 0.0
      %3882 = vmatprep.subr.mxu0 0.0
      %3883 = vmatpush1.msra.mxu0 0.0
      %3884 = vmatprep.subr.mxu0 0.0
      %3885 = vmatpush1.msra.mxu0 0.0
      %3886 = vmatprep.subr.mxu0 0.0
      %3887 = vmatpush1.msra.mxu0 0.0
      %3888 = vmatprep.subr.mxu0 0.0
      %3889 = vmatpush1.msra.mxu0 0.0
      %3890 = vmatprep.subr.mxu0 0.0
      %3891 = vmatpush1.msra.mxu0 0.0
      %3892 = vmatprep.subr.mxu0 0.0
      %3893 = vmatpush1.msra.mxu0 0.0
      %3894 = vmatprep.subr.mxu0 0.0
      %3895 = vmatpush1.msra.mxu0 0.0
      %3896 = vmatprep.subr.mxu0 0.0
      %3897 = vmatpush1.msra.mxu0 0.0
      %3898 = vmatprep.subr.mxu0 0.0
      %3899 = vmatpush1.msra.mxu0 0.0
      %3900 = vmatprep.subr.mxu0 0.0
      %3901 = vmatpush1.msra.mxu0 0.0
      %3902 = vmatprep.subr.mxu0 0.0
      %3903 = vmatpush1.msra.mxu0 0.0
      %3904 = vmatprep.subr.mxu0 0.0
      %3905 = vmatpush1.msra.mxu0 0.0
      %3906 = vmatprep.subr.mxu0 0.0
      %3907 = vmatpush1.msra.mxu0 0.0
      %3908 = vmatprep.subr.mxu0 0.0
      %3909 = vmatpush1.msra.mxu0 0.0
      %3910 = vmatprep.subr.mxu0 0.0
      %3911 = vmatpush1.msra.mxu0 0.0
      %3912 = vmatprep.subr.mxu0 0.0
      %3913 = vmatpush1.msra.mxu0 0.0
      %3914 = vmatprep.subr.mxu0 0.0
      %3915 = vmatpush1.msra.mxu0 0.0
      %3916 = vmatprep.subr.mxu0 0.0
      %3917 = vmatpush1.msra.mxu0 0.0
      %3918 = vmatprep.subr.mxu0 0.0
      %3919 = vmatpush1.msra.mxu0 0.0
      %3920 = vmatprep.mubr.f32.mxu0 0.0
      %3921 = vmatmul.mubr.f32.gmra.mrb[0].mxu0 %v3783
      %v3922 = vpop.f32.mrb[0].mxu0
      %v3923 = vadd.f32 %v3768, %v3922
      %v3924 = vpop.f32.mrb[0].mxu0
      %3925 = vdwg.mxu0
      %v3926 = vadd.f32 %v3608, %v3852
      %v3927 = vadd.f32 %v3609, %v3854
      %v3928 = vadd.f32 %v3610, %v3923
      %s3929 = scalar_lea.vmem %s5, 64
      %v3930 = vld [vmem:[%s3929] sm:$0xff]
      %s3931 = scalar_lea.vmem %s6, 64
      %v3932 = vld [vmem:[%s3931] sm:$0xff]
      %3933 = vrot.lane.b32.xlu0 %v1405, 90
      %v3934 = vpop.permute.xlu0 %3933
      %3935 = vrot.lane.b32.xlu0 %v1406, 90
      %v3936 = vpop.permute.xlu0 %3935
      %3937 = vrot.lane.b32.xlu0 %v1407, 90
      %v3938 = vpop.permute.xlu0 %3937
      %vm3939 = vcmask 736256
      %v3940 = vsel %vm3939, %v3934, %v3936
      %v3941 = vsel %vm3939, %v3936, %v3938
      %v3946 = vsel %vm1408, %v3932, 0
      %3948 = vmatprep.subr.mxu0 %v3941
      %3949 = vmatpush1.msra.mxu0 %v3940
      %3950 = vmatprep.subr.mxu0 0.0
      %3951 = vmatpush1.msra.mxu0 0.0
      %3952 = vmatprep.subr.mxu0 0.0
      %3953 = vmatpush1.msra.mxu0 0.0
      %3954 = vmatprep.subr.mxu0 0.0
      %3955 = vmatpush1.msra.mxu0 0.0
      %3956 = vmatprep.subr.mxu0 0.0
      %3957 = vmatpush1.msra.mxu0 0.0
      %3958 = vmatprep.subr.mxu0 0.0
      %3959 = vmatpush1.msra.mxu0 0.0
      %3960 = vmatprep.subr.mxu0 0.0
      %3961 = vmatpush1.msra.mxu0 0.0
      %3962 = vmatprep.subr.mxu0 0.0
      %3963 = vmatpush1.msra.mxu0 0.0
      %3964 = vmatprep.subr.mxu0 0.0
      %3965 = vmatpush1.msra.mxu0 0.0
      %3966 = vmatprep.subr.mxu0 0.0
      %3967 = vmatpush1.msra.mxu0 0.0
      %3968 = vmatprep.subr.mxu0 0.0
      %3969 = vmatpush1.msra.mxu0 0.0
      %3970 = vmatprep.subr.mxu0 0.0
      %3971 = vmatpush1.msra.mxu0 0.0
      %3972 = vmatprep.subr.mxu0 0.0
      %3973 = vmatpush1.msra.mxu0 0.0
      %3974 = vmatprep.subr.mxu0 0.0
      %3975 = vmatpush1.msra.mxu0 0.0
      %3976 = vmatprep.subr.mxu0 0.0
      %3977 = vmatpush1.msra.mxu0 0.0
      %3978 = vmatprep.subr.mxu0 0.0
      %3979 = vmatpush1.msra.mxu0 0.0
      %3980 = vmatprep.subr.mxu0 0.0
      %3981 = vmatpush1.msra.mxu0 0.0
      %3982 = vmatprep.subr.mxu0 0.0
      %3983 = vmatpush1.msra.mxu0 0.0
      %3984 = vmatprep.subr.mxu0 0.0
      %3985 = vmatpush1.msra.mxu0 0.0
      %3986 = vmatprep.subr.mxu0 0.0
      %3987 = vmatpush1.msra.mxu0 0.0
      %3988 = vmatprep.subr.mxu0 0.0
      %3989 = vmatpush1.msra.mxu0 0.0
      %3990 = vmatprep.subr.mxu0 0.0
      %3991 = vmatpush1.msra.mxu0 0.0
      %3992 = vmatprep.subr.mxu0 0.0
      %3993 = vmatpush1.msra.mxu0 0.0
      %3994 = vmatprep.subr.mxu0 0.0
      %3995 = vmatpush1.msra.mxu0 0.0
      %3996 = vmatprep.subr.mxu0 0.0
      %3997 = vmatpush1.msra.mxu0 0.0
      %3998 = vmatprep.subr.mxu0 0.0
      %3999 = vmatpush1.msra.mxu0 0.0
      %4000 = vmatprep.subr.mxu0 0.0
      %4001 = vmatpush1.msra.mxu0 0.0
      %4002 = vmatprep.subr.mxu0 0.0
      %4003 = vmatpush1.msra.mxu0 0.0
      %4004 = vmatprep.subr.mxu0 0.0
      %4005 = vmatpush1.msra.mxu0 0.0
      %4006 = vmatprep.subr.mxu0 0.0
      %4007 = vmatpush1.msra.mxu0 0.0
      %4008 = vmatprep.subr.mxu0 0.0
      %4009 = vmatpush1.msra.mxu0 0.0
      %4010 = vmatprep.subr.mxu0 0.0
      %4011 = vmatpush1.msra.mxu0 0.0
      %4012 = vmatprep.mubr.f32.mxu0 0.0
      %4013 = vmatmul.mubr.f32.gmra.mrb[0].mxu0 %v3946
      %v4014 = vpop.f32.mrb[0].mxu0
      %v4015 = vadd.f32 0.0, %v4014
      %v4016 = vpop.f32.mrb[0].mxu0
      %v4017 = vadd.f32 0.0, %v4016
      %4018 = vdwg.mxu0
      %4019 = vmatprep.subr.mxu0 0.0
      %4020 = vmatpush1.msra.mxu0 %v3938
      %4021 = vmatprep.subr.mxu0 0.0
      %4022 = vmatpush1.msra.mxu0 0.0
      %4023 = vmatprep.subr.mxu0 0.0
      %4024 = vmatpush1.msra.mxu0 0.0
      %4025 = vmatprep.subr.mxu0 0.0
      %4026 = vmatpush1.msra.mxu0 0.0
      %4027 = vmatprep.subr.mxu0 0.0
      %4028 = vmatpush1.msra.mxu0 0.0
      %4029 = vmatprep.subr.mxu0 0.0
      %4030 = vmatpush1.msra.mxu0 0.0
      %4031 = vmatprep.subr.mxu0 0.0
      %4032 = vmatpush1.msra.mxu0 0.0
      %4033 = vmatprep.subr.mxu0 0.0
      %4034 = vmatpush1.msra.mxu0 0.0
      %4035 = vmatprep.subr.mxu0 0.0
      %4036 = vmatpush1.msra.mxu0 0.0
      %4037 = vmatprep.subr.mxu0 0.0
      %4038 = vmatpush1.msra.mxu0 0.0
      %4039 = vmatprep.subr.mxu0 0.0
      %4040 = vmatpush1.msra.mxu0 0.0
      %4041 = vmatprep.subr.mxu0 0.0
      %4042 = vmatpush1.msra.mxu0 0.0
      %4043 = vmatprep.subr.mxu0 0.0
      %4044 = vmatpush1.msra.mxu0 0.0
      %4045 = vmatprep.subr.mxu0 0.0
      %4046 = vmatpush1.msra.mxu0 0.0
      %4047 = vmatprep.subr.mxu0 0.0
      %4048 = vmatpush1.msra.mxu0 0.0
      %4049 = vmatprep.subr.mxu0 0.0
      %4050 = vmatpush1.msra.mxu0 0.0
      %4051 = vmatprep.subr.mxu0 0.0
      %4052 = vmatpush1.msra.mxu0 0.0
      %4053 = vmatprep.subr.mxu0 0.0
      %4054 = vmatpush1.msra.mxu0 0.0
      %4055 = vmatprep.subr.mxu0 0.0
      %4056 = vmatpush1.msra.mxu0 0.0
      %4057 = vmatprep.subr.mxu0 0.0
      %4058 = vmatpush1.msra.mxu0 0.0
      %4059 = vmatprep.subr.mxu0 0.0
      %4060 = vmatpush1.msra.mxu0 0.0
      %4061 = vmatprep.subr.mxu0 0.0
      %4062 = vmatpush1.msra.mxu0 0.0
      %4063 = vmatprep.subr.mxu0 0.0
      %4064 = vmatpush1.msra.mxu0 0.0
      %4065 = vmatprep.subr.mxu0 0.0
      %4066 = vmatpush1.msra.mxu0 0.0
      %4067 = vmatprep.subr.mxu0 0.0
      %4068 = vmatpush1.msra.mxu0 0.0
      %4069 = vmatprep.subr.mxu0 0.0
      %4070 = vmatpush1.msra.mxu0 0.0
      %4071 = vmatprep.subr.mxu0 0.0
      %4072 = vmatpush1.msra.mxu0 0.0
      %4073 = vmatprep.subr.mxu0 0.0
      %4074 = vmatpush1.msra.mxu0 0.0
      %4075 = vmatprep.subr.mxu0 0.0
      %4076 = vmatpush1.msra.mxu0 0.0
      %4077 = vmatprep.subr.mxu0 0.0
      %4078 = vmatpush1.msra.mxu0 0.0
      %4079 = vmatprep.subr.mxu0 0.0
      %4080 = vmatpush1.msra.mxu0 0.0
      %4081 = vmatprep.subr.mxu0 0.0
      %4082 = vmatpush1.msra.mxu0 0.0
      %4083 = vmatprep.mubr.f32.mxu0 0.0
      %4084 = vmatmul.mubr.f32.gmra.mrb[0].mxu0 %v3946
      %v4085 = vpop.f32.mrb[0].mxu0
      %v4086 = vadd.f32 0.0, %v4085
      %v4087 = vpop.f32.mrb[0].mxu0
      %4088 = vdwg.mxu0
      %4089 = vrot.lane.b32.xlu0 %v1401, 90
      %v4090 = vpop.permute.xlu0 %4089
      %4091 = vrot.lane.b32.xlu0 %v1402, 90
      %v4092 = vpop.permute.xlu0 %4091
      %4093 = vrot.lane.b32.xlu0 %v1403, 90
      %v4094 = vpop.permute.xlu0 %4093
      %v4095 = vsel %vm3939, %v4090, %v4092
      %v4096 = vsel %vm3939, %v4092, %v4094
      %v4101 = vsel %vm1408, %v3930, 0
      %4103 = vmatprep.subr.mxu0 %v4096
      %4104 = vmatpush1.msra.mxu0 %v4095
      %4105 = vmatprep.subr.mxu0 0.0
      %4106 = vmatpush1.msra.mxu0 0.0
      %4107 = vmatprep.subr.mxu0 0.0
      %4108 = vmatpush1.msra.mxu0 0.0
      %4109 = vmatprep.subr.mxu0 0.0
      %4110 = vmatpush1.msra.mxu0 0.0
      %4111 = vmatprep.subr.mxu0 0.0
      %4112 = vmatpush1.msra.mxu0 0.0
      %4113 = vmatprep.subr.mxu0 0.0
      %4114 = vmatpush1.msra.mxu0 0.0
      %4115 = vmatprep.subr.mxu0 0.0
      %4116 = vmatpush1.msra.mxu0 0.0
      %4117 = vmatprep.subr.mxu0 0.0
      %4118 = vmatpush1.msra.mxu0 0.0
      %4119 = vmatprep.subr.mxu0 0.0
      %4120 = vmatpush1.msra.mxu0 0.0
      %4121 = vmatprep.subr.mxu0 0.0
      %4122 = vmatpush1.msra.mxu0 0.0
      %4123 = vmatprep.subr.mxu0 0.0
      %4124 = vmatpush1.msra.mxu0 0.0
      %4125 = vmatprep.subr.mxu0 0.0
      %4126 = vmatpush1.msra.mxu0 0.0
      %4127 = vmatprep.subr.mxu0 0.0
      %4128 = vmatpush1.msra.mxu0 0.0
      %4129 = vmatprep.subr.mxu0 0.0
      %4130 = vmatpush1.msra.mxu0 0.0
      %4131 = vmatprep.subr.mxu0 0.0
      %4132 = vmatpush1.msra.mxu0 0.0
      %4133 = vmatprep.subr.mxu0 0.0
      %4134 = vmatpush1.msra.mxu0 0.0
      %4135 = vmatprep.subr.mxu0 0.0
      %4136 = vmatpush1.msra.mxu0 0.0
      %4137 = vmatprep.subr.mxu0 0.0
      %4138 = vmatpush1.msra.mxu0 0.0
      %4139 = vmatprep.subr.mxu0 0.0
      %4140 = vmatpush1.msra.mxu0 0.0
      %4141 = vmatprep.subr.mxu0 0.0
      %4142 = vmatpush1.msra.mxu0 0.0
      %4143 = vmatprep.subr.mxu0 0.0
      %4144 = vmatpush1.msra.mxu0 0.0
      %4145 = vmatprep.subr.mxu0 0.0
      %4146 = vmatpush1.msra.mxu0 0.0
      %4147 = vmatprep.subr.mxu0 0.0
      %4148 = vmatpush1.msra.mxu0 0.0
      %4149 = vmatprep.subr.mxu0 0.0
      %4150 = vmatpush1.msra.mxu0 0.0
      %4151 = vmatprep.subr.mxu0 0.0
      %4152 = vmatpush1.msra.mxu0 0.0
      %4153 = vmatprep.subr.mxu0 0.0
      %4154 = vmatpush1.msra.mxu0 0.0
      %4155 = vmatprep.subr.mxu0 0.0
      %4156 = vmatpush1.msra.mxu0 0.0
      %4157 = vmatprep.subr.mxu0 0.0
      %4158 = vmatpush1.msra.mxu0 0.0
      %4159 = vmatprep.subr.mxu0 0.0
      %4160 = vmatpush1.msra.mxu0 0.0
      %4161 = vmatprep.subr.mxu0 0.0
      %4162 = vmatpush1.msra.mxu0 0.0
      %4163 = vmatprep.subr.mxu0 0.0
      %4164 = vmatpush1.msra.mxu0 0.0
      %4165 = vmatprep.subr.mxu0 0.0
      %4166 = vmatpush1.msra.mxu0 0.0
      %4167 = vmatprep.mubr.f32.mxu0 0.0
      %4168 = vmatmul.mubr.f32.gmra.mrb[0].mxu0 %v4101
      %v4169 = vpop.f32.mrb[0].mxu0
      %v4170 = vadd.f32 %v4015, %v4169
      %v4171 = vpop.f32.mrb[0].mxu0
      %v4172 = vadd.f32 %v4017, %v4171
      %4173 = vdwg.mxu0
      %4174 = vmatprep.subr.mxu0 0.0
      %4175 = vmatpush1.msra.mxu0 %v4094
      %4176 = vmatprep.subr.mxu0 0.0
      %4177 = vmatpush1.msra.mxu0 0.0
      %4178 = vmatprep.subr.mxu0 0.0
      %4179 = vmatpush1.msra.mxu0 0.0
      %4180 = vmatprep.subr.mxu0 0.0
      %4181 = vmatpush1.msra.mxu0 0.0
      %4182 = vmatprep.subr.mxu0 0.0
      %4183 = vmatpush1.msra.mxu0 0.0
      %4184 = vmatprep.subr.mxu0 0.0
      %4185 = vmatpush1.msra.mxu0 0.0
      %4186 = vmatprep.subr.mxu0 0.0
      %4187 = vmatpush1.msra.mxu0 0.0
      %4188 = vmatprep.subr.mxu0 0.0
      %4189 = vmatpush1.msra.mxu0 0.0
      %4190 = vmatprep.subr.mxu0 0.0
      %4191 = vmatpush1.msra.mxu0 0.0
      %4192 = vmatprep.subr.mxu0 0.0
      %4193 = vmatpush1.msra.mxu0 0.0
      %4194 = vmatprep.subr.mxu0 0.0
      %4195 = vmatpush1.msra.mxu0 0.0
      %4196 = vmatprep.subr.mxu0 0.0
      %4197 = vmatpush1.msra.mxu0 0.0
      %4198 = vmatprep.subr.mxu0 0.0
      %4199 = vmatpush1.msra.mxu0 0.0
      %4200 = vmatprep.subr.mxu0 0.0
      %4201 = vmatpush1.msra.mxu0 0.0
      %4202 = vmatprep.subr.mxu0 0.0
      %4203 = vmatpush1.msra.mxu0 0.0
      %4204 = vmatprep.subr.mxu0 0.0
      %4205 = vmatpush1.msra.mxu0 0.0
      %4206 = vmatprep.subr.mxu0 0.0
      %4207 = vmatpush1.msra.mxu0 0.0
      %4208 = vmatprep.subr.mxu0 0.0
      %4209 = vmatpush1.msra.mxu0 0.0
      %4210 = vmatprep.subr.mxu0 0.0
      %4211 = vmatpush1.msra.mxu0 0.0
      %4212 = vmatprep.subr.mxu0 0.0
      %4213 = vmatpush1.msra.mxu0 0.0
      %4214 = vmatprep.subr.mxu0 0.0
      %4215 = vmatpush1.msra.mxu0 0.0
      %4216 = vmatprep.subr.mxu0 0.0
      %4217 = vmatpush1.msra.mxu0 0.0
      %4218 = vmatprep.subr.mxu0 0.0
      %4219 = vmatpush1.msra.mxu0 0.0
      %4220 = vmatprep.subr.mxu0 0.0
      %4221 = vmatpush1.msra.mxu0 0.0
      %4222 = vmatprep.subr.mxu0 0.0
      %4223 = vmatpush1.msra.mxu0 0.0
      %4224 = vmatprep.subr.mxu0 0.0
      %4225 = vmatpush1.msra.mxu0 0.0
      %4226 = vmatprep.subr.mxu0 0.0
      %4227 = vmatpush1.msra.mxu0 0.0
      %4228 = vmatprep.subr.mxu0 0.0
      %4229 = vmatpush1.msra.mxu0 0.0
      %4230 = vmatprep.subr.mxu0 0.0
      %4231 = vmatpush1.msra.mxu0 0.0
      %4232 = vmatprep.subr.mxu0 0.0
      %4233 = vmatpush1.msra.mxu0 0.0
      %4234 = vmatprep.subr.mxu0 0.0
      %4235 = vmatpush1.msra.mxu0 0.0
      %4236 = vmatprep.subr.mxu0 0.0
      %4237 = vmatpush1.msra.mxu0 0.0
      %4238 = vmatprep.mubr.f32.mxu0 0.0
      %4239 = vmatmul.mubr.f32.gmra.mrb[0].mxu0 %v4101
      %v4240 = vpop.f32.mrb[0].mxu0
      %v4241 = vadd.f32 %v4086, %v4240
      %v4242 = vpop.f32.mrb[0].mxu0
      %4243 = vdwg.mxu0
      %v4244 = vadd.f32 %v3926, %v4170
      %v4245 = vadd.f32 %v3927, %v4172
      %v4246 = vadd.f32 %v3928, %v4241
      %v4247 = vld [vmem:[%s7] sm:$0xff]
      %4249 = vset.pattern.permute.xlu0 0
      %4250 = vperm.xlu0 %4249, %v4247
      %v4251 = vpop.permute.xlu0 %4250
      %v4253 = vadd.f32 %v4244, %v4251
      %v4254 = vadd.f32 %v4245, %v4251
      %v4255 = vadd.f32 %v4246, %v4251
      %v4256 = vmul.f32 %v4253, 0.5
      %v4257 = vmul.f32 %v4254, 0.5
      %v4258 = vmul.f32 %v4255, 0.5
      %v4259 = vmul.f32 %v4253, 0.044715
      %v4260 = vmul.f32 %v4254, 0.044715
      %v4261 = vmul.f32 %v4255, 0.044715
      %v4262 = vmul.f32 %v4259, %v4253
      %v4263 = vmul.f32 %v4260, %v4254
      %v4264 = vmul.f32 %v4261, %v4255
      %v4265 = vmul.f32 %v4262, %v4253
      %v4266 = vmul.f32 %v4263, %v4254
      %v4267 = vmul.f32 %v4264, %v4255
      %v4268 = vadd.f32 %v4253, %v4265
      %v4269 = vadd.f32 %v4254, %v4266
      %v4270 = vadd.f32 %v4255, %v4267
      %v4271 = vmul.f32 %v4268, 0.7978846
      %v4272 = vmul.f32 %v4269, 0.7978846
      %v4273 = vmul.f32 %v4270, 0.7978846
      %v4274 = vtanh.pop %v4271
      %v4275 = vtanh.pop %v4272
      %v4276 = vtanh.pop %v4273
      %v4277 = vadd.f32 %v4274, 1.0
      %v4278 = vadd.f32 %v4275, 1.0
      %v4279 = vadd.f32 %v4276, 1.0
      %v4280 = vmul.f32 %v4256, %v4277
      %v4281 = vmul.f32 %v4257, %v4278
      %v4282 = vmul.f32 %v4258, %v4279
      %vm4283 = vcmask 1048096
      %4284 = vst.msk [vmem:[#allocation3 + $0x10] sm:$0xff] %vm4283, 0.0
      %4285 = vst [vmem:[#allocation3] sm:$0xff] %v4280
      %4286 = vst [vmem:[#allocation3 + $0x8] sm:$0xff] %v4281
      %vm4287 = vcmask 556032
      %4288 = vst.msk [vmem:[#allocation3 + $0x10] sm:$0xff] %vm4287, %v4282
      %v4289 = vld [vmem:[%s8] sm:$0xff]
      %v4290 = vld [vmem:[#allocation3] sm:$0xff]
      %v4291 = vld [vmem:[#allocation3 + $0x8] sm:$0xff]
      %v4292 = vld [vmem:[#allocation3 + $0x10] sm:$0xff]
      %s4293 = scalar_lea.vmem %s8, 8
      %v4294 = vld [vmem:[%s4293] sm:$0xff]
      %4298 = vrot.lane.b32.xlu0 %v4290, 127
      %v4299 = vpop.permute.xlu0 %4298
      %4300 = vrot.lane.b32.xlu0 %v4291, 127
      %v4301 = vpop.permute.xlu0 %4300
      %4302 = vrot.lane.b32.xlu0 %v4292, 127
      %v4303 = vpop.permute.xlu0 %4302
      %v4304 = vsel %vm1710, %v4299, %v4301
      %v4305 = vsel %vm1710, %v4301, %v4303
      %v4310 = vsel %vm1408, %v4294, 0
      %4312 = vmatprep.subr.mxu0 %v4305
      %4313 = vmatpush1.msra.mxu0 %v4304
      %4314 = vmatprep.subr.mxu0 0.0
      %4315 = vmatpush1.msra.mxu0 0.0
      %4316 = vmatprep.subr.mxu0 0.0
      %4317 = vmatpush1.msra.mxu0 0.0
      %4318 = vmatprep.subr.mxu0 0.0
      %4319 = vmatpush1.msra.mxu0 0.0
      %4320 = vmatprep.subr.mxu0 0.0
      %4321 = vmatpush1.msra.mxu0 0.0
      %4322 = vmatprep.subr.mxu0 0.0
      %4323 = vmatpush1.msra.mxu0 0.0
      %4324 = vmatprep.subr.mxu0 0.0
      %4325 = vmatpush1.msra.mxu0 0.0
      %4326 = vmatprep.subr.mxu0 0.0
      %4327 = vmatpush1.msra.mxu0 0.0
      %4328 = vmatprep.subr.mxu0 0.0
      %4329 = vmatpush1.msra.mxu0 0.0
      %4330 = vmatprep.subr.mxu0 0.0
      %4331 = vmatpush1.msra.mxu0 0.0
      %4332 = vmatprep.subr.mxu0 0.0
      %4333 = vmatpush1.msra.mxu0 0.0
      %4334 = vmatprep.subr.mxu0 0.0
      %4335 = vmatpush1.msra.mxu0 0.0
      %4336 = vmatprep.subr.mxu0 0.0
      %4337 = vmatpush1.msra.mxu0 0.0
      %4338 = vmatprep.subr.mxu0 0.0
      %4339 = vmatpush1.msra.mxu0 0.0
      %4340 = vmatprep.subr.mxu0 0.0
      %4341 = vmatpush1.msra.mxu0 0.0
      %4342 = vmatprep.subr.mxu0 0.0
      %4343 = vmatpush1.msra.mxu0 0.0
      %4344 = vmatprep.subr.mxu0 0.0
      %4345 = vmatpush1.msra.mxu0 0.0
      %4346 = vmatprep.subr.mxu0 0.0
      %4347 = vmatpush1.msra.mxu0 0.0
      %4348 = vmatprep.subr.mxu0 0.0
      %4349 = vmatpush1.msra.mxu0 0.0
      %4350 = vmatprep.subr.mxu0 0.0
      %4351 = vmatpush1.msra.mxu0 0.0
      %4352 = vmatprep.subr.mxu0 0.0
      %4353 = vmatpush1.msra.mxu0 0.0
      %4354 = vmatprep.subr.mxu0 0.0
      %4355 = vmatpush1.msra.mxu0 0.0
      %4356 = vmatprep.subr.mxu0 0.0
      %4357 = vmatpush1.msra.mxu0 0.0
      %4358 = vmatprep.subr.mxu0 0.0
      %4359 = vmatpush1.msra.mxu0 0.0
      %4360 = vmatprep.subr.mxu0 0.0
      %4361 = vmatpush1.msra.mxu0 0.0
      %4362 = vmatprep.subr.mxu0 0.0
      %4363 = vmatpush1.msra.mxu0 0.0
      %4364 = vmatprep.subr.mxu0 0.0
      %4365 = vmatpush1.msra.mxu0 0.0
      %4366 = vmatprep.subr.mxu0 0.0
      %4367 = vmatpush1.msra.mxu0 0.0
      %4368 = vmatprep.subr.mxu0 0.0
      %4369 = vmatpush1.msra.mxu0 0.0
      %4370 = vmatprep.subr.mxu0 0.0
      %4371 = vmatpush1.msra.mxu0 0.0
      %4372 = vmatprep.subr.mxu0 0.0
      %4373 = vmatpush1.msra.mxu0 0.0
      %4374 = vmatprep.subr.mxu0 0.0
      %4375 = vmatpush1.msra.mxu0 0.0
      %4376 = vmatprep.mubr.f32.mxu0 0.0
      %4377 = vmatmul.mubr.f32.gmra.mrb[0].mxu0 %v4310
      %v4378 = vpop.f32.mrb[0].mxu0
      %v4379 = vadd.f32 0.0, %v4378
      %v4380 = vpop.f32.mrb[0].mxu0
      %v4381 = vadd.f32 0.0, %v4380
      %4382 = vdwg.mxu0
      %4383 = vmatprep.subr.mxu0 0.0
      %4384 = vmatpush1.msra.mxu0 %v4303
      %4385 = vmatprep.subr.mxu0 0.0
      %4386 = vmatpush1.msra.mxu0 0.0
      %4387 = vmatprep.subr.mxu0 0.0
      %4388 = vmatpush1.msra.mxu0 0.0
      %4389 = vmatprep.subr.mxu0 0.0
      %4390 = vmatpush1.msra.mxu0 0.0
      %4391 = vmatprep.subr.mxu0 0.0
      %4392 = vmatpush1.msra.mxu0 0.0
      %4393 = vmatprep.subr.mxu0 0.0
      %4394 = vmatpush1.msra.mxu0 0.0
      %4395 = vmatprep.subr.mxu0 0.0
      %4396 = vmatpush1.msra.mxu0 0.0
      %4397 = vmatprep.subr.mxu0 0.0
      %4398 = vmatpush1.msra.mxu0 0.0
      %4399 = vmatprep.subr.mxu0 0.0
      %4400 = vmatpush1.msra.mxu0 0.0
      %4401 = vmatprep.subr.mxu0 0.0
      %4402 = vmatpush1.msra.mxu0 0.0
      %4403 = vmatprep.subr.mxu0 0.0
      %4404 = vmatpush1.msra.mxu0 0.0
      %4405 = vmatprep.subr.mxu0 0.0
      %4406 = vmatpush1.msra.mxu0 0.0
      %4407 = vmatprep.subr.mxu0 0.0
      %4408 = vmatpush1.msra.mxu0 0.0
      %4409 = vmatprep.subr.mxu0 0.0
      %4410 = vmatpush1.msra.mxu0 0.0
      %4411 = vmatprep.subr.mxu0 0.0
      %4412 = vmatpush1.msra.mxu0 0.0
      %4413 = vmatprep.subr.mxu0 0.0
      %4414 = vmatpush1.msra.mxu0 0.0
      %4415 = vmatprep.subr.mxu0 0.0
      %4416 = vmatpush1.msra.mxu0 0.0
      %4417 = vmatprep.subr.mxu0 0.0
      %4418 = vmatpush1.msra.mxu0 0.0
      %4419 = vmatprep.subr.mxu0 0.0
      %4420 = vmatpush1.msra.mxu0 0.0
      %4421 = vmatprep.subr.mxu0 0.0
      %4422 = vmatpush1.msra.mxu0 0.0
      %4423 = vmatprep.subr.mxu0 0.0
      %4424 = vmatpush1.msra.mxu0 0.0
      %4425 = vmatprep.subr.mxu0 0.0
      %4426 = vmatpush1.msra.mxu0 0.0
      %4427 = vmatprep.subr.mxu0 0.0
      %4428 = vmatpush1.msra.mxu0 0.0
      %4429 = vmatprep.subr.mxu0 0.0
      %4430 = vmatpush1.msra.mxu0 0.0
      %4431 = vmatprep.subr.mxu0 0.0
      %4432 = vmatpush1.msra.mxu0 0.0
      %4433 = vmatprep.subr.mxu0 0.0
      %4434 = vmatpush1.msra.mxu0 0.0
      %4435 = vmatprep.subr.mxu0 0.0
      %4436 = vmatpush1.msra.mxu0 0.0
      %4437 = vmatprep.subr.mxu0 0.0
      %4438 = vmatpush1.msra.mxu0 0.0
      %4439 = vmatprep.subr.mxu0 0.0
      %4440 = vmatpush1.msra.mxu0 0.0
      %4441 = vmatprep.subr.mxu0 0.0
      %4442 = vmatpush1.msra.mxu0 0.0
      %4443 = vmatprep.subr.mxu0 0.0
      %4444 = vmatpush1.msra.mxu0 0.0
      %4445 = vmatprep.subr.mxu0 0.0
      %4446 = vmatpush1.msra.mxu0 0.0
      %4447 = vmatprep.mubr.f32.mxu0 0.0
      %4448 = vmatmul.mubr.f32.gmra.mrb[0].mxu0 %v4310
      %v4449 = vpop.f32.mrb[0].mxu0
      %v4450 = vadd.f32 0.0, %v4449
      %v4451 = vpop.f32.mrb[0].mxu0
      %4452 = vdwg.mxu0
      %v4454 = vsel %vm1408, %v4289, 0
      %4456 = vmatprep.subr.mxu0 %v4291
      %4457 = vmatpush1.msra.mxu0 %v4290
      %4458 = vmatprep.subr.mxu0 0.0
      %4459 = vmatpush1.msra.mxu0 0.0
      %4460 = vmatprep.subr.mxu0 0.0
      %4461 = vmatpush1.msra.mxu0 0.0
      %4462 = vmatprep.subr.mxu0 0.0
      %4463 = vmatpush1.msra.mxu0 0.0
      %4464 = vmatprep.subr.mxu0 0.0
      %4465 = vmatpush1.msra.mxu0 0.0
      %4466 = vmatprep.subr.mxu0 0.0
      %4467 = vmatpush1.msra.mxu0 0.0
      %4468 = vmatprep.subr.mxu0 0.0
      %4469 = vmatpush1.msra.mxu0 0.0
      %4470 = vmatprep.subr.mxu0 0.0
      %4471 = vmatpush1.msra.mxu0 0.0
      %4472 = vmatprep.subr.mxu0 0.0
      %4473 = vmatpush1.msra.mxu0 0.0
      %4474 = vmatprep.subr.mxu0 0.0
      %4475 = vmatpush1.msra.mxu0 0.0
      %4476 = vmatprep.subr.mxu0 0.0
      %4477 = vmatpush1.msra.mxu0 0.0
      %4478 = vmatprep.subr.mxu0 0.0
      %4479 = vmatpush1.msra.mxu0 0.0
      %4480 = vmatprep.subr.mxu0 0.0
      %4481 = vmatpush1.msra.mxu0 0.0
      %4482 = vmatprep.subr.mxu0 0.0
      %4483 = vmatpush1.msra.mxu0 0.0
      %4484 = vmatprep.subr.mxu0 0.0
      %4485 = vmatpush1.msra.mxu0 0.0
      %4486 = vmatprep.subr.mxu0 0.0
      %4487 = vmatpush1.msra.mxu0 0.0
      %4488 = vmatprep.subr.mxu0 0.0
      %4489 = vmatpush1.msra.mxu0 0.0
      %4490 = vmatprep.subr.mxu0 0.0
      %4491 = vmatpush1.msra.mxu0 0.0
      %4492 = vmatprep.subr.mxu0 0.0
      %4493 = vmatpush1.msra.mxu0 0.0
      %4494 = vmatprep.subr.mxu0 0.0
      %4495 = vmatpush1.msra.mxu0 0.0
      %4496 = vmatprep.subr.mxu0 0.0
      %4497 = vmatpush1.msra.mxu0 0.0
      %4498 = vmatprep.subr.mxu0 0.0
      %4499 = vmatpush1.msra.mxu0 0.0
      %4500 = vmatprep.subr.mxu0 0.0
      %4501 = vmatpush1.msra.mxu0 0.0
      %4502 = vmatprep.subr.mxu0 0.0
      %4503 = vmatpush1.msra.mxu0 0.0
      %4504 = vmatprep.subr.mxu0 0.0
      %4505 = vmatpush1.msra.mxu0 0.0
      %4506 = vmatprep.subr.mxu0 0.0
      %4507 = vmatpush1.msra.mxu0 0.0
      %4508 = vmatprep.subr.mxu0 0.0
      %4509 = vmatpush1.msra.mxu0 0.0
      %4510 = vmatprep.subr.mxu0 0.0
      %4511 = vmatpush1.msra.mxu0 0.0
      %4512 = vmatprep.subr.mxu0 0.0
      %4513 = vmatpush1.msra.mxu0 0.0
      %4514 = vmatprep.subr.mxu0 0.0
      %4515 = vmatpush1.msra.mxu0 0.0
      %4516 = vmatprep.subr.mxu0 0.0
      %4517 = vmatpush1.msra.mxu0 0.0
      %4518 = vmatprep.subr.mxu0 0.0
      %4519 = vmatpush1.msra.mxu0 0.0
      %4520 = vmatprep.mubr.f32.mxu0 0.0
      %4521 = vmatmul.mubr.f32.gmra.mrb[0].mxu0 %v4454
      %v4522 = vpop.f32.mrb[0].mxu0
      %v4523 = vadd.f32 %v4379, %v4522
      %v4524 = vpop.f32.mrb[0].mxu0
      %v4525 = vadd.f32 %v4381, %v4524
      %4526 = vdwg.mxu0
      %4527 = vmatprep.subr.mxu0 0.0
      %4528 = vmatpush1.msra.mxu0 %v4292
      %4529 = vmatprep.subr.mxu0 0.0
      %4530 = vmatpush1.msra.mxu0 0.0
      %4531 = vmatprep.subr.mxu0 0.0
      %4532 = vmatpush1.msra.mxu0 0.0
      %4533 = vmatprep.subr.mxu0 0.0
      %4534 = vmatpush1.msra.mxu0 0.0
      %4535 = vmatprep.subr.mxu0 0.0
      %4536 = vmatpush1.msra.mxu0 0.0
      %4537 = vmatprep.subr.mxu0 0.0
      %4538 = vmatpush1.msra.mxu0 0.0
      %4539 = vmatprep.subr.mxu0 0.0
      %4540 = vmatpush1.msra.mxu0 0.0
      %4541 = vmatprep.subr.mxu0 0.0
      %4542 = vmatpush1.msra.mxu0 0.0
      %4543 = vmatprep.subr.mxu0 0.0
      %4544 = vmatpush1.msra.mxu0 0.0
      %4545 = vmatprep.subr.mxu0 0.0
      %4546 = vmatpush1.msra.mxu0 0.0
      %4547 = vmatprep.subr.mxu0 0.0
      %4548 = vmatpush1.msra.mxu0 0.0
      %4549 = vmatprep.subr.mxu0 0.0
      %4550 = vmatpush1.msra.mxu0 0.0
      %4551 = vmatprep.subr.mxu0 0.0
      %4552 = vmatpush1.msra.mxu0 0.0
      %4553 = vmatprep.subr.mxu0 0.0
      %4554 = vmatpush1.msra.mxu0 0.0
      %4555 = vmatprep.subr.mxu0 0.0
      %4556 = vmatpush1.msra.mxu0 0.0
      %4557 = vmatprep.subr.mxu0 0.0
      %4558 = vmatpush1.msra.mxu0 0.0
      %4559 = vmatprep.subr.mxu0 0.0
      %4560 = vmatpush1.msra.mxu0 0.0
      %4561 = vmatprep.subr.mxu0 0.0
      %4562 = vmatpush1.msra.mxu0 0.0
      %4563 = vmatprep.subr.mxu0 0.0
      %4564 = vmatpush1.msra.mxu0 0.0
      %4565 = vmatprep.subr.mxu0 0.0
      %4566 = vmatpush1.msra.mxu0 0.0
      %4567 = vmatprep.subr.mxu0 0.0
      %4568 = vmatpush1.msra.mxu0 0.0
      %4569 = vmatprep.subr.mxu0 0.0
      %4570 = vmatpush1.msra.mxu0 0.0
      %4571 = vmatprep.subr.mxu0 0.0
      %4572 = vmatpush1.msra.mxu0 0.0
      %4573 = vmatprep.subr.mxu0 0.0
      %4574 = vmatpush1.msra.mxu0 0.0
      %4575 = vmatprep.subr.mxu0 0.0
      %4576 = vmatpush1.msra.mxu0 0.0
      %4577 = vmatprep.subr.mxu0 0.0
      %4578 = vmatpush1.msra.mxu0 0.0
      %4579 = vmatprep.subr.mxu0 0.0
      %4580 = vmatpush1.msra.mxu0 0.0
      %4581 = vmatprep.subr.mxu0 0.0
      %4582 = vmatpush1.msra.mxu0 0.0
      %4583 = vmatprep.subr.mxu0 0.0
      %4584 = vmatpush1.msra.mxu0 0.0
      %4585 = vmatprep.subr.mxu0 0.0
      %4586 = vmatpush1.msra.mxu0 0.0
      %4587 = vmatprep.subr.mxu0 0.0
      %4588 = vmatpush1.msra.mxu0 0.0
      %4589 = vmatprep.subr.mxu0 0.0
      %4590 = vmatpush1.msra.mxu0 0.0
      %4591 = vmatprep.mubr.f32.mxu0 0.0
      %4592 = vmatmul.mubr.f32.gmra.mrb[0].mxu0 %v4454
      %v4593 = vpop.f32.mrb[0].mxu0
      %v4594 = vadd.f32 %v4450, %v4593
      %v4595 = vpop.f32.mrb[0].mxu0
      %4596 = vdwg.mxu0
      %s4597 = scalar_lea.vmem %s8, 16
      %v4598 = vld [vmem:[%s4597] sm:$0xff]
      %4599 = vrot.lane.b32.xlu0 %v4290, 126
      %v4600 = vpop.permute.xlu0 %4599
      %4601 = vrot.lane.b32.xlu0 %v4291, 126
      %v4602 = vpop.permute.xlu0 %4601
      %4603 = vrot.lane.b32.xlu0 %v4292, 126
      %v4604 = vpop.permute.xlu0 %4603
      %v4605 = vsel %vm2031, %v4600, %v4602
      %v4606 = vsel %vm2031, %v4602, %v4604
      %v4611 = vsel %vm1408, %v4598, 0
      %4613 = vmatprep.subr.mxu0 %v4606
      %4614 = vmatpush1.msra.mxu0 %v4605
      %4615 = vmatprep.subr.mxu0 0.0
      %4616 = vmatpush1.msra.mxu0 0.0
      %4617 = vmatprep.subr.mxu0 0.0
      %4618 = vmatpush1.msra.mxu0 0.0
      %4619 = vmatprep.subr.mxu0 0.0
      %4620 = vmatpush1.msra.mxu0 0.0
      %4621 = vmatprep.subr.mxu0 0.0
      %4622 = vmatpush1.msra.mxu0 0.0
      %4623 = vmatprep.subr.mxu0 0.0
      %4624 = vmatpush1.msra.mxu0 0.0
      %4625 = vmatprep.subr.mxu0 0.0
      %4626 = vmatpush1.msra.mxu0 0.0
      %4627 = vmatprep.subr.mxu0 0.0
      %4628 = vmatpush1.msra.mxu0 0.0
      %4629 = vmatprep.subr.mxu0 0.0
      %4630 = vmatpush1.msra.mxu0 0.0
      %4631 = vmatprep.subr.mxu0 0.0
      %4632 = vmatpush1.msra.mxu0 0.0
      %4633 = vmatprep.subr.mxu0 0.0
      %4634 = vmatpush1.msra.mxu0 0.0
      %4635 = vmatprep.subr.mxu0 0.0
      %4636 = vmatpush1.msra.mxu0 0.0
      %4637 = vmatprep.subr.mxu0 0.0
      %4638 = vmatpush1.msra.mxu0 0.0
      %4639 = vmatprep.subr.mxu0 0.0
      %4640 = vmatpush1.msra.mxu0 0.0
      %4641 = vmatprep.subr.mxu0 0.0
      %4642 = vmatpush1.msra.mxu0 0.0
      %4643 = vmatprep.subr.mxu0 0.0
      %4644 = vmatpush1.msra.mxu0 0.0
      %4645 = vmatprep.subr.mxu0 0.0
      %4646 = vmatpush1.msra.mxu0 0.0
      %4647 = vmatprep.subr.mxu0 0.0
      %4648 = vmatpush1.msra.mxu0 0.0
      %4649 = vmatprep.subr.mxu0 0.0
      %4650 = vmatpush1.msra.mxu0 0.0
      %4651 = vmatprep.subr.mxu0 0.0
      %4652 = vmatpush1.msra.mxu0 0.0
      %4653 = vmatprep.subr.mxu0 0.0
      %4654 = vmatpush1.msra.mxu0 0.0
      %4655 = vmatprep.subr.mxu0 0.0
      %4656 = vmatpush1.msra.mxu0 0.0
      %4657 = vmatprep.subr.mxu0 0.0
      %4658 = vmatpush1.msra.mxu0 0.0
      %4659 = vmatprep.subr.mxu0 0.0
      %4660 = vmatpush1.msra.mxu0 0.0
      %4661 = vmatprep.subr.mxu0 0.0
      %4662 = vmatpush1.msra.mxu0 0.0
      %4663 = vmatprep.subr.mxu0 0.0
      %4664 = vmatpush1.msra.mxu0 0.0
      %4665 = vmatprep.subr.mxu0 0.0
      %4666 = vmatpush1.msra.mxu0 0.0
      %4667 = vmatprep.subr.mxu0 0.0
      %4668 = vmatpush1.msra.mxu0 0.0
      %4669 = vmatprep.subr.mxu0 0.0
      %4670 = vmatpush1.msra.mxu0 0.0
      %4671 = vmatprep.subr.mxu0 0.0
      %4672 = vmatpush1.msra.mxu0 0.0
      %4673 = vmatprep.subr.mxu0 0.0
      %4674 = vmatpush1.msra.mxu0 0.0
      %4675 = vmatprep.subr.mxu0 0.0
      %4676 = vmatpush1.msra.mxu0 0.0
      %4677 = vmatprep.mubr.f32.mxu0 0.0
      %4678 = vmatmul.mubr.f32.gmra.mrb[0].mxu0 %v4611
      %v4679 = vpop.f32.mrb[0].mxu0
      %v4680 = vadd.f32 0.0, %v4679
      %v4681 = vpop.f32.mrb[0].mxu0
      %v4682 = vadd.f32 0.0, %v4681
      %4683 = vdwg.mxu0
      %4684 = vmatprep.subr.mxu0 0.0
      %4685 = vmatpush1.msra.mxu0 %v4604
      %4686 = vmatprep.subr.mxu0 0.0
      %4687 = vmatpush1.msra.mxu0 0.0
      %4688 = vmatprep.subr.mxu0 0.0
      %4689 = vmatpush1.msra.mxu0 0.0
      %4690 = vmatprep.subr.mxu0 0.0
      %4691 = vmatpush1.msra.mxu0 0.0
      %4692 = vmatprep.subr.mxu0 0.0
      %4693 = vmatpush1.msra.mxu0 0.0
      %4694 = vmatprep.subr.mxu0 0.0
      %4695 = vmatpush1.msra.mxu0 0.0
      %4696 = vmatprep.subr.mxu0 0.0
      %4697 = vmatpush1.msra.mxu0 0.0
      %4698 = vmatprep.subr.mxu0 0.0
      %4699 = vmatpush1.msra.mxu0 0.0
      %4700 = vmatprep.subr.mxu0 0.0
      %4701 = vmatpush1.msra.mxu0 0.0
      %4702 = vmatprep.subr.mxu0 0.0
      %4703 = vmatpush1.msra.mxu0 0.0
      %4704 = vmatprep.subr.mxu0 0.0
      %4705 = vmatpush1.msra.mxu0 0.0
      %4706 = vmatprep.subr.mxu0 0.0
      %4707 = vmatpush1.msra.mxu0 0.0
      %4708 = vmatprep.subr.mxu0 0.0
      %4709 = vmatpush1.msra.mxu0 0.0
      %4710 = vmatprep.subr.mxu0 0.0
      %4711 = vmatpush1.msra.mxu0 0.0
      %4712 = vmatprep.subr.mxu0 0.0
      %4713 = vmatpush1.msra.mxu0 0.0
      %4714 = vmatprep.subr.mxu0 0.0
      %4715 = vmatpush1.msra.mxu0 0.0
      %4716 = vmatprep.subr.mxu0 0.0
      %4717 = vmatpush1.msra.mxu0 0.0
      %4718 = vmatprep.subr.mxu0 0.0
      %4719 = vmatpush1.msra.mxu0 0.0
      %4720 = vmatprep.subr.mxu0 0.0
      %4721 = vmatpush1.msra.mxu0 0.0
      %4722 = vmatprep.subr.mxu0 0.0
      %4723 = vmatpush1.msra.mxu0 0.0
      %4724 = vmatprep.subr.mxu0 0.0
      %4725 = vmatpush1.msra.mxu0 0.0
      %4726 = vmatprep.subr.mxu0 0.0
      %4727 = vmatpush1.msra.mxu0 0.0
      %4728 = vmatprep.subr.mxu0 0.0
      %4729 = vmatpush1.msra.mxu0 0.0
      %4730 = vmatprep.subr.mxu0 0.0
      %4731 = vmatpush1.msra.mxu0 0.0
      %4732 = vmatprep.subr.mxu0 0.0
      %4733 = vmatpush1.msra.mxu0 0.0
      %4734 = vmatprep.subr.mxu0 0.0
      %4735 = vmatpush1.msra.mxu0 0.0
      %4736 = vmatprep.subr.mxu0 0.0
      %4737 = vmatpush1.msra.mxu0 0.0
      %4738 = vmatprep.subr.mxu0 0.0
      %4739 = vmatpush1.msra.mxu0 0.0
      %4740 = vmatprep.subr.mxu0 0.0
      %4741 = vmatpush1.msra.mxu0 0.0
      %4742 = vmatprep.subr.mxu0 0.0
      %4743 = vmatpush1.msra.mxu0 0.0
      %4744 = vmatprep.subr.mxu0 0.0
      %4745 = vmatpush1.msra.mxu0 0.0
      %4746 = vmatprep.subr.mxu0 0.0
      %4747 = vmatpush1.msra.mxu0 0.0
      %4748 = vmatprep.mubr.f32.mxu0 0.0
      %4749 = vmatmul.mubr.f32.gmra.mrb[0].mxu0 %v4611
      %v4750 = vpop.f32.mrb[0].mxu0
      %v4751 = vadd.f32 0.0, %v4750
      %v4752 = vpop.f32.mrb[0].mxu0
      %4753 = vdwg.mxu0
      %v4754 = vadd.f32 %v4523, %v4680
      %v4755 = vadd.f32 %v4525, %v4682
      %v4756 = vadd.f32 %v4594, %v4751
      %s4757 = scalar_lea.vmem %s8, 24
      %v4758 = vld [vmem:[%s4757] sm:$0xff]
      %4759 = vrot.lane.b32.xlu0 %v4290, 110
      %v4760 = vpop.permute.xlu0 %4759
      %4761 = vrot.lane.b32.xlu0 %v4291, 110
      %v4762 = vpop.permute.xlu0 %4761
      %4763 = vrot.lane.b32.xlu0 %v4292, 110
      %v4764 = vpop.permute.xlu0 %4763
      %v4765 = vsel %vm2349, %v4760, %v4762
      %v4766 = vsel %vm2349, %v4762, %v4764
      %v4771 = vsel %vm1408, %v4758, 0
      %4773 = vmatprep.subr.mxu0 %v4766
      %4774 = vmatpush1.msra.mxu0 %v4765
      %4775 = vmatprep.subr.mxu0 0.0
      %4776 = vmatpush1.msra.mxu0 0.0
      %4777 = vmatprep.subr.mxu0 0.0
      %4778 = vmatpush1.msra.mxu0 0.0
      %4779 = vmatprep.subr.mxu0 0.0
      %4780 = vmatpush1.msra.mxu0 0.0
      %4781 = vmatprep.subr.mxu0 0.0
      %4782 = vmatpush1.msra.mxu0 0.0
      %4783 = vmatprep.subr.mxu0 0.0
      %4784 = vmatpush1.msra.mxu0 0.0
      %4785 = vmatprep.subr.mxu0 0.0
      %4786 = vmatpush1.msra.mxu0 0.0
      %4787 = vmatprep.subr.mxu0 0.0
      %4788 = vmatpush1.msra.mxu0 0.0
      %4789 = vmatprep.subr.mxu0 0.0
      %4790 = vmatpush1.msra.mxu0 0.0
      %4791 = vmatprep.subr.mxu0 0.0
      %4792 = vmatpush1.msra.mxu0 0.0
      %4793 = vmatprep.subr.mxu0 0.0
      %4794 = vmatpush1.msra.mxu0 0.0
      %4795 = vmatprep.subr.mxu0 0.0
      %4796 = vmatpush1.msra.mxu0 0.0
      %4797 = vmatprep.subr.mxu0 0.0
      %4798 = vmatpush1.msra.mxu0 0.0
      %4799 = vmatprep.subr.mxu0 0.0
      %4800 = vmatpush1.msra.mxu0 0.0
      %4801 = vmatprep.subr.mxu0 0.0
      %4802 = vmatpush1.msra.mxu0 0.0
      %4803 = vmatprep.subr.mxu0 0.0
      %4804 = vmatpush1.msra.mxu0 0.0
      %4805 = vmatprep.subr.mxu0 0.0
      %4806 = vmatpush1.msra.mxu0 0.0
      %4807 = vmatprep.subr.mxu0 0.0
      %4808 = vmatpush1.msra.mxu0 0.0
      %4809 = vmatprep.subr.mxu0 0.0
      %4810 = vmatpush1.msra.mxu0 0.0
      %4811 = vmatprep.subr.mxu0 0.0
      %4812 = vmatpush1.msra.mxu0 0.0
      %4813 = vmatprep.subr.mxu0 0.0
      %4814 = vmatpush1.msra.mxu0 0.0
      %4815 = vmatprep.subr.mxu0 0.0
      %4816 = vmatpush1.msra.mxu0 0.0
      %4817 = vmatprep.subr.mxu0 0.0
      %4818 = vmatpush1.msra.mxu0 0.0
      %4819 = vmatprep.subr.mxu0 0.0
      %4820 = vmatpush1.msra.mxu0 0.0
      %4821 = vmatprep.subr.mxu0 0.0
      %4822 = vmatpush1.msra.mxu0 0.0
      %4823 = vmatprep.subr.mxu0 0.0
      %4824 = vmatpush1.msra.mxu0 0.0
      %4825 = vmatprep.subr.mxu0 0.0
      %4826 = vmatpush1.msra.mxu0 0.0
      %4827 = vmatprep.subr.mxu0 0.0
      %4828 = vmatpush1.msra.mxu0 0.0
      %4829 = vmatprep.subr.mxu0 0.0
      %4830 = vmatpush1.msra.mxu0 0.0
      %4831 = vmatprep.subr.mxu0 0.0
      %4832 = vmatpush1.msra.mxu0 0.0
      %4833 = vmatprep.subr.mxu0 0.0
      %4834 = vmatpush1.msra.mxu0 0.0
      %4835 = vmatprep.subr.mxu0 0.0
      %4836 = vmatpush1.msra.mxu0 0.0
      %4837 = vmatprep.mubr.f32.mxu0 0.0
      %4838 = vmatmul.mubr.f32.gmra.mrb[0].mxu0 %v4771
      %v4839 = vpop.f32.mrb[0].mxu0
      %v4840 = vadd.f32 0.0, %v4839
      %v4841 = vpop.f32.mrb[0].mxu0
      %v4842 = vadd.f32 0.0, %v4841
      %4843 = vdwg.mxu0
      %4844 = vmatprep.subr.mxu0 0.0
      %4845 = vmatpush1.msra.mxu0 %v4764
      %4846 = vmatprep.subr.mxu0 0.0
      %4847 = vmatpush1.msra.mxu0 0.0
      %4848 = vmatprep.subr.mxu0 0.0
      %4849 = vmatpush1.msra.mxu0 0.0
      %4850 = vmatprep.subr.mxu0 0.0
      %4851 = vmatpush1.msra.mxu0 0.0
      %4852 = vmatprep.subr.mxu0 0.0
      %4853 = vmatpush1.msra.mxu0 0.0
      %4854 = vmatprep.subr.mxu0 0.0
      %4855 = vmatpush1.msra.mxu0 0.0
      %4856 = vmatprep.subr.mxu0 0.0
      %4857 = vmatpush1.msra.mxu0 0.0
      %4858 = vmatprep.subr.mxu0 0.0
      %4859 = vmatpush1.msra.mxu0 0.0
      %4860 = vmatprep.subr.mxu0 0.0
      %4861 = vmatpush1.msra.mxu0 0.0
      %4862 = vmatprep.subr.mxu0 0.0
      %4863 = vmatpush1.msra.mxu0 0.0
      %4864 = vmatprep.subr.mxu0 0.0
      %4865 = vmatpush1.msra.mxu0 0.0
      %4866 = vmatprep.subr.mxu0 0.0
      %4867 = vmatpush1.msra.mxu0 0.0
      %4868 = vmatprep.subr.mxu0 0.0
      %4869 = vmatpush1.msra.mxu0 0.0
      %4870 = vmatprep.subr.mxu0 0.0
      %4871 = vmatpush1.msra.mxu0 0.0
      %4872 = vmatprep.subr.mxu0 0.0
      %4873 = vmatpush1.msra.mxu0 0.0
      %4874 = vmatprep.subr.mxu0 0.0
      %4875 = vmatpush1.msra.mxu0 0.0
      %4876 = vmatprep.subr.mxu0 0.0
      %4877 = vmatpush1.msra.mxu0 0.0
      %4878 = vmatprep.subr.mxu0 0.0
      %4879 = vmatpush1.msra.mxu0 0.0
      %4880 = vmatprep.subr.mxu0 0.0
      %4881 = vmatpush1.msra.mxu0 0.0
      %4882 = vmatprep.subr.mxu0 0.0
      %4883 = vmatpush1.msra.mxu0 0.0
      %4884 = vmatprep.subr.mxu0 0.0
      %4885 = vmatpush1.msra.mxu0 0.0
      %4886 = vmatprep.subr.mxu0 0.0
      %4887 = vmatpush1.msra.mxu0 0.0
      %4888 = vmatprep.subr.mxu0 0.0
      %4889 = vmatpush1.msra.mxu0 0.0
      %4890 = vmatprep.subr.mxu0 0.0
      %4891 = vmatpush1.msra.mxu0 0.0
      %4892 = vmatprep.subr.mxu0 0.0
      %4893 = vmatpush1.msra.mxu0 0.0
      %4894 = vmatprep.subr.mxu0 0.0
      %4895 = vmatpush1.msra.mxu0 0.0
      %4896 = vmatprep.subr.mxu0 0.0
      %4897 = vmatpush1.msra.mxu0 0.0
      %4898 = vmatprep.subr.mxu0 0.0
      %4899 = vmatpush1.msra.mxu0 0.0
      %4900 = vmatprep.subr.mxu0 0.0
      %4901 = vmatpush1.msra.mxu0 0.0
      %4902 = vmatprep.subr.mxu0 0.0
      %4903 = vmatpush1.msra.mxu0 0.0
      %4904 = vmatprep.subr.mxu0 0.0
      %4905 = vmatpush1.msra.mxu0 0.0
      %4906 = vmatprep.subr.mxu0 0.0
      %4907 = vmatpush1.msra.mxu0 0.0
      %4908 = vmatprep.mubr.f32.mxu0 0.0
      %4909 = vmatmul.mubr.f32.gmra.mrb[0].mxu0 %v4771
      %v4910 = vpop.f32.mrb[0].mxu0
      %v4911 = vadd.f32 0.0, %v4910
      %v4912 = vpop.f32.mrb[0].mxu0
      %4913 = vdwg.mxu0
      %v4914 = vadd.f32 %v4754, %v4840
      %v4915 = vadd.f32 %v4755, %v4842
      %v4916 = vadd.f32 %v4756, %v4911
      %s4917 = scalar_lea.vmem %s8, 32
      %v4918 = vld [vmem:[%s4917] sm:$0xff]
      %4919 = vrot.lane.b32.xlu0 %v4290, 109
      %v4920 = vpop.permute.xlu0 %4919
      %4921 = vrot.lane.b32.xlu0 %v4291, 109
      %v4922 = vpop.permute.xlu0 %4921
      %4923 = vrot.lane.b32.xlu0 %v4292, 109
      %v4924 = vpop.permute.xlu0 %4923
      %v4925 = vsel %vm2667, %v4920, %v4922
      %v4926 = vsel %vm2667, %v4922, %v4924
      %v4931 = vsel %vm1408, %v4918, 0
      %4933 = vmatprep.subr.mxu0 %v4926
      %4934 = vmatpush1.msra.mxu0 %v4925
      %4935 = vmatprep.subr.mxu0 0.0
      %4936 = vmatpush1.msra.mxu0 0.0
      %4937 = vmatprep.subr.mxu0 0.0
      %4938 = vmatpush1.msra.mxu0 0.0
      %4939 = vmatprep.subr.mxu0 0.0
      %4940 = vmatpush1.msra.mxu0 0.0
      %4941 = vmatprep.subr.mxu0 0.0
      %4942 = vmatpush1.msra.mxu0 0.0
      %4943 = vmatprep.subr.mxu0 0.0
      %4944 = vmatpush1.msra.mxu0 0.0
      %4945 = vmatprep.subr.mxu0 0.0
      %4946 = vmatpush1.msra.mxu0 0.0
      %4947 = vmatprep.subr.mxu0 0.0
      %4948 = vmatpush1.msra.mxu0 0.0
      %4949 = vmatprep.subr.mxu0 0.0
      %4950 = vmatpush1.msra.mxu0 0.0
      %4951 = vmatprep.subr.mxu0 0.0
      %4952 = vmatpush1.msra.mxu0 0.0
      %4953 = vmatprep.subr.mxu0 0.0
      %4954 = vmatpush1.msra.mxu0 0.0
      %4955 = vmatprep.subr.mxu0 0.0
      %4956 = vmatpush1.msra.mxu0 0.0
      %4957 = vmatprep.subr.mxu0 0.0
      %4958 = vmatpush1.msra.mxu0 0.0
      %4959 = vmatprep.subr.mxu0 0.0
      %4960 = vmatpush1.msra.mxu0 0.0
      %4961 = vmatprep.subr.mxu0 0.0
      %4962 = vmatpush1.msra.mxu0 0.0
      %4963 = vmatprep.subr.mxu0 0.0
      %4964 = vmatpush1.msra.mxu0 0.0
      %4965 = vmatprep.subr.mxu0 0.0
      %4966 = vmatpush1.msra.mxu0 0.0
      %4967 = vmatprep.subr.mxu0 0.0
      %4968 = vmatpush1.msra.mxu0 0.0
      %4969 = vmatprep.subr.mxu0 0.0
      %4970 = vmatpush1.msra.mxu0 0.0
      %4971 = vmatprep.subr.mxu0 0.0
      %4972 = vmatpush1.msra.mxu0 0.0
      %4973 = vmatprep.subr.mxu0 0.0
      %4974 = vmatpush1.msra.mxu0 0.0
      %4975 = vmatprep.subr.mxu0 0.0
      %4976 = vmatpush1.msra.mxu0 0.0
      %4977 = vmatprep.subr.mxu0 0.0
      %4978 = vmatpush1.msra.mxu0 0.0
      %4979 = vmatprep.subr.mxu0 0.0
      %4980 = vmatpush1.msra.mxu0 0.0
      %4981 = vmatprep.subr.mxu0 0.0
      %4982 = vmatpush1.msra.mxu0 0.0
      %4983 = vmatprep.subr.mxu0 0.0
      %4984 = vmatpush1.msra.mxu0 0.0
      %4985 = vmatprep.subr.mxu0 0.0
      %4986 = vmatpush1.msra.mxu0 0.0
      %4987 = vmatprep.subr.mxu0 0.0
      %4988 = vmatpush1.msra.mxu0 0.0
      %4989 = vmatprep.subr.mxu0 0.0
      %4990 = vmatpush1.msra.mxu0 0.0
      %4991 = vmatprep.subr.mxu0 0.0
      %4992 = vmatpush1.msra.mxu0 0.0
      %4993 = vmatprep.subr.mxu0 0.0
      %4994 = vmatpush1.msra.mxu0 0.0
      %4995 = vmatprep.subr.mxu0 0.0
      %4996 = vmatpush1.msra.mxu0 0.0
      %4997 = vmatprep.mubr.f32.mxu0 0.0
      %4998 = vmatmul.mubr.f32.gmra.mrb[0].mxu0 %v4931
      %v4999 = vpop.f32.mrb[0].mxu0
      %v5000 = vadd.f32 0.0, %v4999
      %v5001 = vpop.f32.mrb[0].mxu0
      %v5002 = vadd.f32 0.0, %v5001
      %5003 = vdwg.mxu0
      %5004 = vmatprep.subr.mxu0 0.0
      %5005 = vmatpush1.msra.mxu0 %v4924
      %5006 = vmatprep.subr.mxu0 0.0
      %5007 = vmatpush1.msra.mxu0 0.0
      %5008 = vmatprep.subr.mxu0 0.0
      %5009 = vmatpush1.msra.mxu0 0.0
      %5010 = vmatprep.subr.mxu0 0.0
      %5011 = vmatpush1.msra.mxu0 0.0
      %5012 = vmatprep.subr.mxu0 0.0
      %5013 = vmatpush1.msra.mxu0 0.0
      %5014 = vmatprep.subr.mxu0 0.0
      %5015 = vmatpush1.msra.mxu0 0.0
      %5016 = vmatprep.subr.mxu0 0.0
      %5017 = vmatpush1.msra.mxu0 0.0
      %5018 = vmatprep.subr.mxu0 0.0
      %5019 = vmatpush1.msra.mxu0 0.0
      %5020 = vmatprep.subr.mxu0 0.0
      %5021 = vmatpush1.msra.mxu0 0.0
      %5022 = vmatprep.subr.mxu0 0.0
      %5023 = vmatpush1.msra.mxu0 0.0
      %5024 = vmatprep.subr.mxu0 0.0
      %5025 = vmatpush1.msra.mxu0 0.0
      %5026 = vmatprep.subr.mxu0 0.0
      %5027 = vmatpush1.msra.mxu0 0.0
      %5028 = vmatprep.subr.mxu0 0.0
      %5029 = vmatpush1.msra.mxu0 0.0
      %5030 = vmatprep.subr.mxu0 0.0
      %5031 = vmatpush1.msra.mxu0 0.0
      %5032 = vmatprep.subr.mxu0 0.0
      %5033 = vmatpush1.msra.mxu0 0.0
      %5034 = vmatprep.subr.mxu0 0.0
      %5035 = vmatpush1.msra.mxu0 0.0
      %5036 = vmatprep.subr.mxu0 0.0
      %5037 = vmatpush1.msra.mxu0 0.0
      %5038 = vmatprep.subr.mxu0 0.0
      %5039 = vmatpush1.msra.mxu0 0.0
      %5040 = vmatprep.subr.mxu0 0.0
      %5041 = vmatpush1.msra.mxu0 0.0
      %5042 = vmatprep.subr.mxu0 0.0
      %5043 = vmatpush1.msra.mxu0 0.0
      %5044 = vmatprep.subr.mxu0 0.0
      %5045 = vmatpush1.msra.mxu0 0.0
      %5046 = vmatprep.subr.mxu0 0.0
      %5047 = vmatpush1.msra.mxu0 0.0
      %5048 = vmatprep.subr.mxu0 0.0
      %5049 = vmatpush1.msra.mxu0 0.0
      %5050 = vmatprep.subr.mxu0 0.0
      %5051 = vmatpush1.msra.mxu0 0.0
      %5052 = vmatprep.subr.mxu0 0.0
      %5053 = vmatpush1.msra.mxu0 0.0
      %5054 = vmatprep.subr.mxu0 0.0
      %5055 = vmatpush1.msra.mxu0 0.0
      %5056 = vmatprep.subr.mxu0 0.0
      %5057 = vmatpush1.msra.mxu0 0.0
      %5058 = vmatprep.subr.mxu0 0.0
      %5059 = vmatpush1.msra.mxu0 0.0
      %5060 = vmatprep.subr.mxu0 0.0
      %5061 = vmatpush1.msra.mxu0 0.0
      %5062 = vmatprep.subr.mxu0 0.0
      %5063 = vmatpush1.msra.mxu0 0.0
      %5064 = vmatprep.subr.mxu0 0.0
      %5065 = vmatpush1.msra.mxu0 0.0
      %5066 = vmatprep.subr.mxu0 0.0
      %5067 = vmatpush1.msra.mxu0 0.0
      %5068 = vmatprep.mubr.f32.mxu0 0.0
      %5069 = vmatmul.mubr.f32.gmra.mrb[0].mxu0 %v4931
      %v5070 = vpop.f32.mrb[0].mxu0
      %v5071 = vadd.f32 0.0, %v5070
      %v5072 = vpop.f32.mrb[0].mxu0
      %5073 = vdwg.mxu0
      %v5074 = vadd.f32 %v4914, %v5000
      %v5075 = vadd.f32 %v4915, %v5002
      %v5076 = vadd.f32 %v4916, %v5071
      %s5077 = scalar_lea.vmem %s8, 40
      %v5078 = vld [vmem:[%s5077] sm:$0xff]
      %5079 = vrot.lane.b32.xlu0 %v4290, 108
      %v5080 = vpop.permute.xlu0 %5079
      %5081 = vrot.lane.b32.xlu0 %v4291, 108
      %v5082 = vpop.permute.xlu0 %5081
      %5083 = vrot.lane.b32.xlu0 %v4292, 108
      %v5084 = vpop.permute.xlu0 %5083
      %v5085 = vsel %vm2985, %v5080, %v5082
      %v5086 = vsel %vm2985, %v5082, %v5084
      %v5091 = vsel %vm1408, %v5078, 0
      %5093 = vmatprep.subr.mxu0 %v5086
      %5094 = vmatpush1.msra.mxu0 %v5085
      %5095 = vmatprep.subr.mxu0 0.0
      %5096 = vmatpush1.msra.mxu0 0.0
      %5097 = vmatprep.subr.mxu0 0.0
      %5098 = vmatpush1.msra.mxu0 0.0
      %5099 = vmatprep.subr.mxu0 0.0
      %5100 = vmatpush1.msra.mxu0 0.0
      %5101 = vmatprep.subr.mxu0 0.0
      %5102 = vmatpush1.msra.mxu0 0.0
      %5103 = vmatprep.subr.mxu0 0.0
      %5104 = vmatpush1.msra.mxu0 0.0
      %5105 = vmatprep.subr.mxu0 0.0
      %5106 = vmatpush1.msra.mxu0 0.0
      %5107 = vmatprep.subr.mxu0 0.0
      %5108 = vmatpush1.msra.mxu0 0.0
      %5109 = vmatprep.subr.mxu0 0.0
      %5110 = vmatpush1.msra.mxu0 0.0
      %5111 = vmatprep.subr.mxu0 0.0
      %5112 = vmatpush1.msra.mxu0 0.0
      %5113 = vmatprep.subr.mxu0 0.0
      %5114 = vmatpush1.msra.mxu0 0.0
      %5115 = vmatprep.subr.mxu0 0.0
      %5116 = vmatpush1.msra.mxu0 0.0
      %5117 = vmatprep.subr.mxu0 0.0
      %5118 = vmatpush1.msra.mxu0 0.0
      %5119 = vmatprep.subr.mxu0 0.0
      %5120 = vmatpush1.msra.mxu0 0.0
      %5121 = vmatprep.subr.mxu0 0.0
      %5122 = vmatpush1.msra.mxu0 0.0
      %5123 = vmatprep.subr.mxu0 0.0
      %5124 = vmatpush1.msra.mxu0 0.0
      %5125 = vmatprep.subr.mxu0 0.0
      %5126 = vmatpush1.msra.mxu0 0.0
      %5127 = vmatprep.subr.mxu0 0.0
      %5128 = vmatpush1.msra.mxu0 0.0
      %5129 = vmatprep.subr.mxu0 0.0
      %5130 = vmatpush1.msra.mxu0 0.0
      %5131 = vmatprep.subr.mxu0 0.0
      %5132 = vmatpush1.msra.mxu0 0.0
      %5133 = vmatprep.subr.mxu0 0.0
      %5134 = vmatpush1.msra.mxu0 0.0
      %5135 = vmatprep.subr.mxu0 0.0
      %5136 = vmatpush1.msra.mxu0 0.0
      %5137 = vmatprep.subr.mxu0 0.0
      %5138 = vmatpush1.msra.mxu0 0.0
      %5139 = vmatprep.subr.mxu0 0.0
      %5140 = vmatpush1.msra.mxu0 0.0
      %5141 = vmatprep.subr.mxu0 0.0
      %5142 = vmatpush1.msra.mxu0 0.0
      %5143 = vmatprep.subr.mxu0 0.0
      %5144 = vmatpush1.msra.mxu0 0.0
      %5145 = vmatprep.subr.mxu0 0.0
      %5146 = vmatpush1.msra.mxu0 0.0
      %5147 = vmatprep.subr.mxu0 0.0
      %5148 = vmatpush1.msra.mxu0 0.0
      %5149 = vmatprep.subr.mxu0 0.0
      %5150 = vmatpush1.msra.mxu0 0.0
      %5151 = vmatprep.subr.mxu0 0.0
      %5152 = vmatpush1.msra.mxu0 0.0
      %5153 = vmatprep.subr.mxu0 0.0
      %5154 = vmatpush1.msra.mxu0 0.0
      %5155 = vmatprep.subr.mxu0 0.0
      %5156 = vmatpush1.msra.mxu0 0.0
      %5157 = vmatprep.mubr.f32.mxu0 0.0
      %5158 = vmatmul.mubr.f32.gmra.mrb[0].mxu0 %v5091
      %v5159 = vpop.f32.mrb[0].mxu0
      %v5160 = vadd.f32 0.0, %v5159
      %v5161 = vpop.f32.mrb[0].mxu0
      %v5162 = vadd.f32 0.0, %v5161
      %5163 = vdwg.mxu0
      %5164 = vmatprep.subr.mxu0 0.0
      %5165 = vmatpush1.msra.mxu0 %v5084
      %5166 = vmatprep.subr.mxu0 0.0
      %5167 = vmatpush1.msra.mxu0 0.0
      %5168 = vmatprep.subr.mxu0 0.0
      %5169 = vmatpush1.msra.mxu0 0.0
      %5170 = vmatprep.subr.mxu0 0.0
      %5171 = vmatpush1.msra.mxu0 0.0
      %5172 = vmatprep.subr.mxu0 0.0
      %5173 = vmatpush1.msra.mxu0 0.0
      %5174 = vmatprep.subr.mxu0 0.0
      %5175 = vmatpush1.msra.mxu0 0.0
      %5176 = vmatprep.subr.mxu0 0.0
      %5177 = vmatpush1.msra.mxu0 0.0
      %5178 = vmatprep.subr.mxu0 0.0
      %5179 = vmatpush1.msra.mxu0 0.0
      %5180 = vmatprep.subr.mxu0 0.0
      %5181 = vmatpush1.msra.mxu0 0.0
      %5182 = vmatprep.subr.mxu0 0.0
      %5183 = vmatpush1.msra.mxu0 0.0
      %5184 = vmatprep.subr.mxu0 0.0
      %5185 = vmatpush1.msra.mxu0 0.0
      %5186 = vmatprep.subr.mxu0 0.0
      %5187 = vmatpush1.msra.mxu0 0.0
      %5188 = vmatprep.subr.mxu0 0.0
      %5189 = vmatpush1.msra.mxu0 0.0
      %5190 = vmatprep.subr.mxu0 0.0
      %5191 = vmatpush1.msra.mxu0 0.0
      %5192 = vmatprep.subr.mxu0 0.0
      %5193 = vmatpush1.msra.mxu0 0.0
      %5194 = vmatprep.subr.mxu0 0.0
      %5195 = vmatpush1.msra.mxu0 0.0
      %5196 = vmatprep.subr.mxu0 0.0
      %5197 = vmatpush1.msra.mxu0 0.0
      %5198 = vmatprep.subr.mxu0 0.0
      %5199 = vmatpush1.msra.mxu0 0.0
      %5200 = vmatprep.subr.mxu0 0.0
      %5201 = vmatpush1.msra.mxu0 0.0
      %5202 = vmatprep.subr.mxu0 0.0
      %5203 = vmatpush1.msra.mxu0 0.0
      %5204 = vmatprep.subr.mxu0 0.0
      %5205 = vmatpush1.msra.mxu0 0.0
      %5206 = vmatprep.subr.mxu0 0.0
      %5207 = vmatpush1.msra.mxu0 0.0
      %5208 = vmatprep.subr.mxu0 0.0
      %5209 = vmatpush1.msra.mxu0 0.0
      %5210 = vmatprep.subr.mxu0 0.0
      %5211 = vmatpush1.msra.mxu0 0.0
      %5212 = vmatprep.subr.mxu0 0.0
      %5213 = vmatpush1.msra.mxu0 0.0
      %5214 = vmatprep.subr.mxu0 0.0
      %5215 = vmatpush1.msra.mxu0 0.0
      %5216 = vmatprep.subr.mxu0 0.0
      %5217 = vmatpush1.msra.mxu0 0.0
      %5218 = vmatprep.subr.mxu0 0.0
      %5219 = vmatpush1.msra.mxu0 0.0
      %5220 = vmatprep.subr.mxu0 0.0
      %5221 = vmatpush1.msra.mxu0 0.0
      %5222 = vmatprep.subr.mxu0 0.0
      %5223 = vmatpush1.msra.mxu0 0.0
      %5224 = vmatprep.subr.mxu0 0.0
      %5225 = vmatpush1.msra.mxu0 0.0
      %5226 = vmatprep.subr.mxu0 0.0
      %5227 = vmatpush1.msra.mxu0 0.0
      %5228 = vmatprep.mubr.f32.mxu0 0.0
      %5229 = vmatmul.mubr.f32.gmra.mrb[0].mxu0 %v5091
      %v5230 = vpop.f32.mrb[0].mxu0
      %v5231 = vadd.f32 0.0, %v5230
      %v5232 = vpop.f32.mrb[0].mxu0
      %5233 = vdwg.mxu0
      %v5234 = vadd.f32 %v5074, %v5160
      %v5235 = vadd.f32 %v5075, %v5162
      %v5236 = vadd.f32 %v5076, %v5231
      %s5237 = scalar_lea.vmem %s8, 48
      %v5238 = vld [vmem:[%s5237] sm:$0xff]
      %5239 = vrot.lane.b32.xlu0 %v4290, 92
      %v5240 = vpop.permute.xlu0 %5239
      %5241 = vrot.lane.b32.xlu0 %v4291, 92
      %v5242 = vpop.permute.xlu0 %5241
      %5243 = vrot.lane.b32.xlu0 %v4292, 92
      %v5244 = vpop.permute.xlu0 %5243
      %v5245 = vsel %vm3303, %v5240, %v5242
      %v5246 = vsel %vm3303, %v5242, %v5244
      %v5251 = vsel %vm1408, %v5238, 0
      %5253 = vmatprep.subr.mxu0 %v5246
      %5254 = vmatpush1.msra.mxu0 %v5245
      %5255 = vmatprep.subr.mxu0 0.0
      %5256 = vmatpush1.msra.mxu0 0.0
      %5257 = vmatprep.subr.mxu0 0.0
      %5258 = vmatpush1.msra.mxu0 0.0
      %5259 = vmatprep.subr.mxu0 0.0
      %5260 = vmatpush1.msra.mxu0 0.0
      %5261 = vmatprep.subr.mxu0 0.0
      %5262 = vmatpush1.msra.mxu0 0.0
      %5263 = vmatprep.subr.mxu0 0.0
      %5264 = vmatpush1.msra.mxu0 0.0
      %5265 = vmatprep.subr.mxu0 0.0
      %5266 = vmatpush1.msra.mxu0 0.0
      %5267 = vmatprep.subr.mxu0 0.0
      %5268 = vmatpush1.msra.mxu0 0.0
      %5269 = vmatprep.subr.mxu0 0.0
      %5270 = vmatpush1.msra.mxu0 0.0
      %5271 = vmatprep.subr.mxu0 0.0
      %5272 = vmatpush1.msra.mxu0 0.0
      %5273 = vmatprep.subr.mxu0 0.0
      %5274 = vmatpush1.msra.mxu0 0.0
      %5275 = vmatprep.subr.mxu0 0.0
      %5276 = vmatpush1.msra.mxu0 0.0
      %5277 = vmatprep.subr.mxu0 0.0
      %5278 = vmatpush1.msra.mxu0 0.0
      %5279 = vmatprep.subr.mxu0 0.0
      %5280 = vmatpush1.msra.mxu0 0.0
      %5281 = vmatprep.subr.mxu0 0.0
      %5282 = vmatpush1.msra.mxu0 0.0
      %5283 = vmatprep.subr.mxu0 0.0
      %5284 = vmatpush1.msra.mxu0 0.0
      %5285 = vmatprep.subr.mxu0 0.0
      %5286 = vmatpush1.msra.mxu0 0.0
      %5287 = vmatprep.subr.mxu0 0.0
      %5288 = vmatpush1.msra.mxu0 0.0
      %5289 = vmatprep.subr.mxu0 0.0
      %5290 = vmatpush1.msra.mxu0 0.0
      %5291 = vmatprep.subr.mxu0 0.0
      %5292 = vmatpush1.msra.mxu0 0.0
      %5293 = vmatprep.subr.mxu0 0.0
      %5294 = vmatpush1.msra.mxu0 0.0
      %5295 = vmatprep.subr.mxu0 0.0
      %5296 = vmatpush1.msra.mxu0 0.0
      %5297 = vmatprep.subr.mxu0 0.0
      %5298 = vmatpush1.msra.mxu0 0.0
      %5299 = vmatprep.subr.mxu0 0.0
      %5300 = vmatpush1.msra.mxu0 0.0
      %5301 = vmatprep.subr.mxu0 0.0
      %5302 = vmatpush1.msra.mxu0 0.0
      %5303 = vmatprep.subr.mxu0 0.0
      %5304 = vmatpush1.msra.mxu0 0.0
      %5305 = vmatprep.subr.mxu0 0.0
      %5306 = vmatpush1.msra.mxu0 0.0
      %5307 = vmatprep.subr.mxu0 0.0
      %5308 = vmatpush1.msra.mxu0 0.0
      %5309 = vmatprep.subr.mxu0 0.0
      %5310 = vmatpush1.msra.mxu0 0.0
      %5311 = vmatprep.subr.mxu0 0.0
      %5312 = vmatpush1.msra.mxu0 0.0
      %5313 = vmatprep.subr.mxu0 0.0
      %5314 = vmatpush1.msra.mxu0 0.0
      %5315 = vmatprep.subr.mxu0 0.0
      %5316 = vmatpush1.msra.mxu0 0.0
      %5317 = vmatprep.mubr.f32.mxu0 0.0
      %5318 = vmatmul.mubr.f32.gmra.mrb[0].mxu0 %v5251
      %v5319 = vpop.f32.mrb[0].mxu0
      %v5320 = vadd.f32 0.0, %v5319
      %v5321 = vpop.f32.mrb[0].mxu0
      %v5322 = vadd.f32 0.0, %v5321
      %5323 = vdwg.mxu0
      %5324 = vmatprep.subr.mxu0 0.0
      %5325 = vmatpush1.msra.mxu0 %v5244
      %5326 = vmatprep.subr.mxu0 0.0
      %5327 = vmatpush1.msra.mxu0 0.0
      %5328 = vmatprep.subr.mxu0 0.0
      %5329 = vmatpush1.msra.mxu0 0.0
      %5330 = vmatprep.subr.mxu0 0.0
      %5331 = vmatpush1.msra.mxu0 0.0
      %5332 = vmatprep.subr.mxu0 0.0
      %5333 = vmatpush1.msra.mxu0 0.0
      %5334 = vmatprep.subr.mxu0 0.0
      %5335 = vmatpush1.msra.mxu0 0.0
      %5336 = vmatprep.subr.mxu0 0.0
      %5337 = vmatpush1.msra.mxu0 0.0
      %5338 = vmatprep.subr.mxu0 0.0
      %5339 = vmatpush1.msra.mxu0 0.0
      %5340 = vmatprep.subr.mxu0 0.0
      %5341 = vmatpush1.msra.mxu0 0.0
      %5342 = vmatprep.subr.mxu0 0.0
      %5343 = vmatpush1.msra.mxu0 0.0
      %5344 = vmatprep.subr.mxu0 0.0
      %5345 = vmatpush1.msra.mxu0 0.0
      %5346 = vmatprep.subr.mxu0 0.0
      %5347 = vmatpush1.msra.mxu0 0.0
      %5348 = vmatprep.subr.mxu0 0.0
      %5349 = vmatpush1.msra.mxu0 0.0
      %5350 = vmatprep.subr.mxu0 0.0
      %5351 = vmatpush1.msra.mxu0 0.0
      %5352 = vmatprep.subr.mxu0 0.0
      %5353 = vmatpush1.msra.mxu0 0.0
      %5354 = vmatprep.subr.mxu0 0.0
      %5355 = vmatpush1.msra.mxu0 0.0
      %5356 = vmatprep.subr.mxu0 0.0
      %5357 = vmatpush1.msra.mxu0 0.0
      %5358 = vmatprep.subr.mxu0 0.0
      %5359 = vmatpush1.msra.mxu0 0.0
      %5360 = vmatprep.subr.mxu0 0.0
      %5361 = vmatpush1.msra.mxu0 0.0
      %5362 = vmatprep.subr.mxu0 0.0
      %5363 = vmatpush1.msra.mxu0 0.0
      %5364 = vmatprep.subr.mxu0 0.0
      %5365 = vmatpush1.msra.mxu0 0.0
      %5366 = vmatprep.subr.mxu0 0.0
      %5367 = vmatpush1.msra.mxu0 0.0
      %5368 = vmatprep.subr.mxu0 0.0
      %5369 = vmatpush1.msra.mxu0 0.0
      %5370 = vmatprep.subr.mxu0 0.0
      %5371 = vmatpush1.msra.mxu0 0.0
      %5372 = vmatprep.subr.mxu0 0.0
      %5373 = vmatpush1.msra.mxu0 0.0
      %5374 = vmatprep.subr.mxu0 0.0
      %5375 = vmatpush1.msra.mxu0 0.0
      %5376 = vmatprep.subr.mxu0 0.0
      %5377 = vmatpush1.msra.mxu0 0.0
      %5378 = vmatprep.subr.mxu0 0.0
      %5379 = vmatpush1.msra.mxu0 0.0
      %5380 = vmatprep.subr.mxu0 0.0
      %5381 = vmatpush1.msra.mxu0 0.0
      %5382 = vmatprep.subr.mxu0 0.0
      %5383 = vmatpush1.msra.mxu0 0.0
      %5384 = vmatprep.subr.mxu0 0.0
      %5385 = vmatpush1.msra.mxu0 0.0
      %5386 = vmatprep.subr.mxu0 0.0
      %5387 = vmatpush1.msra.mxu0 0.0
      %5388 = vmatprep.mubr.f32.mxu0 0.0
      %5389 = vmatmul.mubr.f32.gmra.mrb[0].mxu0 %v5251
      %v5390 = vpop.f32.mrb[0].mxu0
      %v5391 = vadd.f32 0.0, %v5390
      %v5392 = vpop.f32.mrb[0].mxu0
      %5393 = vdwg.mxu0
      %v5394 = vadd.f32 %v5234, %v5320
      %v5395 = vadd.f32 %v5235, %v5322
      %v5396 = vadd.f32 %v5236, %v5391
      %s5397 = scalar_lea.vmem %s8, 56
      %v5398 = vld [vmem:[%s5397] sm:$0xff]
      %5399 = vrot.lane.b32.xlu0 %v4290, 91
      %v5400 = vpop.permute.xlu0 %5399
      %5401 = vrot.lane.b32.xlu0 %v4291, 91
      %v5402 = vpop.permute.xlu0 %5401
      %5403 = vrot.lane.b32.xlu0 %v4292, 91
      %v5404 = vpop.permute.xlu0 %5403
      %v5405 = vsel %vm3621, %v5400, %v5402
      %v5406 = vsel %vm3621, %v5402, %v5404
      %v5411 = vsel %vm1408, %v5398, 0
      %5413 = vmatprep.subr.mxu0 %v5406
      %5414 = vmatpush1.msra.mxu0 %v5405
      %5415 = vmatprep.subr.mxu0 0.0
      %5416 = vmatpush1.msra.mxu0 0.0
      %5417 = vmatprep.subr.mxu0 0.0
      %5418 = vmatpush1.msra.mxu0 0.0
      %5419 = vmatprep.subr.mxu0 0.0
      %5420 = vmatpush1.msra.mxu0 0.0
      %5421 = vmatprep.subr.mxu0 0.0
      %5422 = vmatpush1.msra.mxu0 0.0
      %5423 = vmatprep.subr.mxu0 0.0
      %5424 = vmatpush1.msra.mxu0 0.0
      %5425 = vmatprep.subr.mxu0 0.0
      %5426 = vmatpush1.msra.mxu0 0.0
      %5427 = vmatprep.subr.mxu0 0.0
      %5428 = vmatpush1.msra.mxu0 0.0
      %5429 = vmatprep.subr.mxu0 0.0
      %5430 = vmatpush1.msra.mxu0 0.0
      %5431 = vmatprep.subr.mxu0 0.0
      %5432 = vmatpush1.msra.mxu0 0.0
      %5433 = vmatprep.subr.mxu0 0.0
      %5434 = vmatpush1.msra.mxu0 0.0
      %5435 = vmatprep.subr.mxu0 0.0
      %5436 = vmatpush1.msra.mxu0 0.0
      %5437 = vmatprep.subr.mxu0 0.0
      %5438 = vmatpush1.msra.mxu0 0.0
      %5439 = vmatprep.subr.mxu0 0.0
      %5440 = vmatpush1.msra.mxu0 0.0
      %5441 = vmatprep.subr.mxu0 0.0
      %5442 = vmatpush1.msra.mxu0 0.0
      %5443 = vmatprep.subr.mxu0 0.0
      %5444 = vmatpush1.msra.mxu0 0.0
      %5445 = vmatprep.subr.mxu0 0.0
      %5446 = vmatpush1.msra.mxu0 0.0
      %5447 = vmatprep.subr.mxu0 0.0
      %5448 = vmatpush1.msra.mxu0 0.0
      %5449 = vmatprep.subr.mxu0 0.0
      %5450 = vmatpush1.msra.mxu0 0.0
      %5451 = vmatprep.subr.mxu0 0.0
      %5452 = vmatpush1.msra.mxu0 0.0
      %5453 = vmatprep.subr.mxu0 0.0
      %5454 = vmatpush1.msra.mxu0 0.0
      %5455 = vmatprep.subr.mxu0 0.0
      %5456 = vmatpush1.msra.mxu0 0.0
      %5457 = vmatprep.subr.mxu0 0.0
      %5458 = vmatpush1.msra.mxu0 0.0
      %5459 = vmatprep.subr.mxu0 0.0
      %5460 = vmatpush1.msra.mxu0 0.0
      %5461 = vmatprep.subr.mxu0 0.0
      %5462 = vmatpush1.msra.mxu0 0.0
      %5463 = vmatprep.subr.mxu0 0.0
      %5464 = vmatpush1.msra.mxu0 0.0
      %5465 = vmatprep.subr.mxu0 0.0
      %5466 = vmatpush1.msra.mxu0 0.0
      %5467 = vmatprep.subr.mxu0 0.0
      %5468 = vmatpush1.msra.mxu0 0.0
      %5469 = vmatprep.subr.mxu0 0.0
      %5470 = vmatpush1.msra.mxu0 0.0
      %5471 = vmatprep.subr.mxu0 0.0
      %5472 = vmatpush1.msra.mxu0 0.0
      %5473 = vmatprep.subr.mxu0 0.0
      %5474 = vmatpush1.msra.mxu0 0.0
      %5475 = vmatprep.subr.mxu0 0.0
      %5476 = vmatpush1.msra.mxu0 0.0
      %5477 = vmatprep.mubr.f32.mxu0 0.0
      %5478 = vmatmul.mubr.f32.gmra.mrb[0].mxu0 %v5411
      %v5479 = vpop.f32.mrb[0].mxu0
      %v5480 = vadd.f32 0.0, %v5479
      %v5481 = vpop.f32.mrb[0].mxu0
      %v5482 = vadd.f32 0.0, %v5481
      %5483 = vdwg.mxu0
      %5484 = vmatprep.subr.mxu0 0.0
      %5485 = vmatpush1.msra.mxu0 %v5404
      %5486 = vmatprep.subr.mxu0 0.0
      %5487 = vmatpush1.msra.mxu0 0.0
      %5488 = vmatprep.subr.mxu0 0.0
      %5489 = vmatpush1.msra.mxu0 0.0
      %5490 = vmatprep.subr.mxu0 0.0
      %5491 = vmatpush1.msra.mxu0 0.0
      %5492 = vmatprep.subr.mxu0 0.0
      %5493 = vmatpush1.msra.mxu0 0.0
      %5494 = vmatprep.subr.mxu0 0.0
      %5495 = vmatpush1.msra.mxu0 0.0
      %5496 = vmatprep.subr.mxu0 0.0
      %5497 = vmatpush1.msra.mxu0 0.0
      %5498 = vmatprep.subr.mxu0 0.0
      %5499 = vmatpush1.msra.mxu0 0.0
      %5500 = vmatprep.subr.mxu0 0.0
      %5501 = vmatpush1.msra.mxu0 0.0
      %5502 = vmatprep.subr.mxu0 0.0
      %5503 = vmatpush1.msra.mxu0 0.0
      %5504 = vmatprep.subr.mxu0 0.0
      %5505 = vmatpush1.msra.mxu0 0.0
      %5506 = vmatprep.subr.mxu0 0.0
      %5507 = vmatpush1.msra.mxu0 0.0
      %5508 = vmatprep.subr.mxu0 0.0
      %5509 = vmatpush1.msra.mxu0 0.0
      %5510 = vmatprep.subr.mxu0 0.0
      %5511 = vmatpush1.msra.mxu0 0.0
      %5512 = vmatprep.subr.mxu0 0.0
      %5513 = vmatpush1.msra.mxu0 0.0
      %5514 = vmatprep.subr.mxu0 0.0
      %5515 = vmatpush1.msra.mxu0 0.0
      %5516 = vmatprep.subr.mxu0 0.0
      %5517 = vmatpush1.msra.mxu0 0.0
      %5518 = vmatprep.subr.mxu0 0.0
      %5519 = vmatpush1.msra.mxu0 0.0
      %5520 = vmatprep.subr.mxu0 0.0
      %5521 = vmatpush1.msra.mxu0 0.0
      %5522 = vmatprep.subr.mxu0 0.0
      %5523 = vmatpush1.msra.mxu0 0.0
      %5524 = vmatprep.subr.mxu0 0.0
      %5525 = vmatpush1.msra.mxu0 0.0
      %5526 = vmatprep.subr.mxu0 0.0
      %5527 = vmatpush1.msra.mxu0 0.0
      %5528 = vmatprep.subr.mxu0 0.0
      %5529 = vmatpush1.msra.mxu0 0.0
      %5530 = vmatprep.subr.mxu0 0.0
      %5531 = vmatpush1.msra.mxu0 0.0
      %5532 = vmatprep.subr.mxu0 0.0
      %5533 = vmatpush1.msra.mxu0 0.0
      %5534 = vmatprep.subr.mxu0 0.0
      %5535 = vmatpush1.msra.mxu0 0.0
      %5536 = vmatprep.subr.mxu0 0.0
      %5537 = vmatpush1.msra.mxu0 0.0
      %5538 = vmatprep.subr.mxu0 0.0
      %5539 = vmatpush1.msra.mxu0 0.0
      %5540 = vmatprep.subr.mxu0 0.0
      %5541 = vmatpush1.msra.mxu0 0.0
      %5542 = vmatprep.subr.mxu0 0.0
      %5543 = vmatpush1.msra.mxu0 0.0
      %5544 = vmatprep.subr.mxu0 0.0
      %5545 = vmatpush1.msra.mxu0 0.0
      %5546 = vmatprep.subr.mxu0 0.0
      %5547 = vmatpush1.msra.mxu0 0.0
      %5548 = vmatprep.mubr.f32.mxu0 0.0
      %5549 = vmatmul.mubr.f32.gmra.mrb[0].mxu0 %v5411
      %v5550 = vpop.f32.mrb[0].mxu0
      %v5551 = vadd.f32 0.0, %v5550
      %v5552 = vpop.f32.mrb[0].mxu0
      %5553 = vdwg.mxu0
      %v5554 = vadd.f32 %v5394, %v5480
      %v5555 = vadd.f32 %v5395, %v5482
      %v5556 = vadd.f32 %v5396, %v5551
      %s5557 = scalar_lea.vmem %s8, 64
      %v5558 = vld [vmem:[%s5557] sm:$0xff]
      %5559 = vrot.lane.b32.xlu0 %v4290, 90
      %v5560 = vpop.permute.xlu0 %5559
      %5561 = vrot.lane.b32.xlu0 %v4291, 90
      %v5562 = vpop.permute.xlu0 %5561
      %5563 = vrot.lane.b32.xlu0 %v4292, 90
      %v5564 = vpop.permute.xlu0 %5563
      %v5565 = vsel %vm3939, %v5560, %v5562
      %v5566 = vsel %vm3939, %v5562, %v5564
      %v5571 = vsel %vm1408, %v5558, 0
      %5573 = vmatprep.subr.mxu0 %v5566
      %5574 = vmatpush1.msra.mxu0 %v5565
      %5575 = vmatprep.subr.mxu0 0.0
      %5576 = vmatpush1.msra.mxu0 0.0
      %5577 = vmatprep.subr.mxu0 0.0
      %5578 = vmatpush1.msra.mxu0 0.0
      %5579 = vmatprep.subr.mxu0 0.0
      %5580 = vmatpush1.msra.mxu0 0.0
      %5581 = vmatprep.subr.mxu0 0.0
      %5582 = vmatpush1.msra.mxu0 0.0
      %5583 = vmatprep.subr.mxu0 0.0
      %5584 = vmatpush1.msra.mxu0 0.0
      %5585 = vmatprep.subr.mxu0 0.0
      %5586 = vmatpush1.msra.mxu0 0.0
      %5587 = vmatprep.subr.mxu0 0.0
      %5588 = vmatpush1.msra.mxu0 0.0
      %5589 = vmatprep.subr.mxu0 0.0
      %5590 = vmatpush1.msra.mxu0 0.0
      %5591 = vmatprep.subr.mxu0 0.0
      %5592 = vmatpush1.msra.mxu0 0.0
      %5593 = vmatprep.subr.mxu0 0.0
      %5594 = vmatpush1.msra.mxu0 0.0
      %5595 = vmatprep.subr.mxu0 0.0
      %5596 = vmatpush1.msra.mxu0 0.0
      %5597 = vmatprep.subr.mxu0 0.0
      %5598 = vmatpush1.msra.mxu0 0.0
      %5599 = vmatprep.subr.mxu0 0.0
      %5600 = vmatpush1.msra.mxu0 0.0
      %5601 = vmatprep.subr.mxu0 0.0
      %5602 = vmatpush1.msra.mxu0 0.0
      %5603 = vmatprep.subr.mxu0 0.0
      %5604 = vmatpush1.msra.mxu0 0.0
      %5605 = vmatprep.subr.mxu0 0.0
      %5606 = vmatpush1.msra.mxu0 0.0
      %5607 = vmatprep.subr.mxu0 0.0
      %5608 = vmatpush1.msra.mxu0 0.0
      %5609 = vmatprep.subr.mxu0 0.0
      %5610 = vmatpush1.msra.mxu0 0.0
      %5611 = vmatprep.subr.mxu0 0.0
      %5612 = vmatpush1.msra.mxu0 0.0
      %5613 = vmatprep.subr.mxu0 0.0
      %5614 = vmatpush1.msra.mxu0 0.0
      %5615 = vmatprep.subr.mxu0 0.0
      %5616 = vmatpush1.msra.mxu0 0.0
      %5617 = vmatprep.subr.mxu0 0.0
      %5618 = vmatpush1.msra.mxu0 0.0
      %5619 = vmatprep.subr.mxu0 0.0
      %5620 = vmatpush1.msra.mxu0 0.0
      %5621 = vmatprep.subr.mxu0 0.0
      %5622 = vmatpush1.msra.mxu0 0.0
      %5623 = vmatprep.subr.mxu0 0.0
      %5624 = vmatpush1.msra.mxu0 0.0
      %5625 = vmatprep.subr.mxu0 0.0
      %5626 = vmatpush1.msra.mxu0 0.0
      %5627 = vmatprep.subr.mxu0 0.0
      %5628 = vmatpush1.msra.mxu0 0.0
      %5629 = vmatprep.subr.mxu0 0.0
      %5630 = vmatpush1.msra.mxu0 0.0
      %5631 = vmatprep.subr.mxu0 0.0
      %5632 = vmatpush1.msra.mxu0 0.0
      %5633 = vmatprep.subr.mxu0 0.0
      %5634 = vmatpush1.msra.mxu0 0.0
      %5635 = vmatprep.subr.mxu0 0.0
      %5636 = vmatpush1.msra.mxu0 0.0
      %5637 = vmatprep.mubr.f32.mxu0 0.0
      %5638 = vmatmul.mubr.f32.gmra.mrb[0].mxu0 %v5571
      %v5639 = vpop.f32.mrb[0].mxu0
      %v5640 = vadd.f32 0.0, %v5639
      %v5641 = vpop.f32.mrb[0].mxu0
      %v5642 = vadd.f32 0.0, %v5641
      %5643 = vdwg.mxu0
      %5644 = vmatprep.subr.mxu0 0.0
      %5645 = vmatpush1.msra.mxu0 %v5564
      %5646 = vmatprep.subr.mxu0 0.0
      %5647 = vmatpush1.msra.mxu0 0.0
      %5648 = vmatprep.subr.mxu0 0.0
      %5649 = vmatpush1.msra.mxu0 0.0
      %5650 = vmatprep.subr.mxu0 0.0
      %5651 = vmatpush1.msra.mxu0 0.0
      %5652 = vmatprep.subr.mxu0 0.0
      %5653 = vmatpush1.msra.mxu0 0.0
      %5654 = vmatprep.subr.mxu0 0.0
      %5655 = vmatpush1.msra.mxu0 0.0
      %5656 = vmatprep.subr.mxu0 0.0
      %5657 = vmatpush1.msra.mxu0 0.0
      %5658 = vmatprep.subr.mxu0 0.0
      %5659 = vmatpush1.msra.mxu0 0.0
      %5660 = vmatprep.subr.mxu0 0.0
      %5661 = vmatpush1.msra.mxu0 0.0
      %5662 = vmatprep.subr.mxu0 0.0
      %5663 = vmatpush1.msra.mxu0 0.0
      %5664 = vmatprep.subr.mxu0 0.0
      %5665 = vmatpush1.msra.mxu0 0.0
      %5666 = vmatprep.subr.mxu0 0.0
      %5667 = vmatpush1.msra.mxu0 0.0
      %5668 = vmatprep.subr.mxu0 0.0
      %5669 = vmatpush1.msra.mxu0 0.0
      %5670 = vmatprep.subr.mxu0 0.0
      %5671 = vmatpush1.msra.mxu0 0.0
      %5672 = vmatprep.subr.mxu0 0.0
      %5673 = vmatpush1.msra.mxu0 0.0
      %5674 = vmatprep.subr.mxu0 0.0
      %5675 = vmatpush1.msra.mxu0 0.0
      %5676 = vmatprep.subr.mxu0 0.0
      %5677 = vmatpush1.msra.mxu0 0.0
      %5678 = vmatprep.subr.mxu0 0.0
      %5679 = vmatpush1.msra.mxu0 0.0
      %5680 = vmatprep.subr.mxu0 0.0
      %5681 = vmatpush1.msra.mxu0 0.0
      %5682 = vmatprep.subr.mxu0 0.0
      %5683 = vmatpush1.msra.mxu0 0.0
      %5684 = vmatprep.subr.mxu0 0.0
      %5685 = vmatpush1.msra.mxu0 0.0
      %5686 = vmatprep.subr.mxu0 0.0
      %5687 = vmatpush1.msra.mxu0 0.0
      %5688 = vmatprep.subr.mxu0 0.0
      %5689 = vmatpush1.msra.mxu0 0.0
      %5690 = vmatprep.subr.mxu0 0.0
      %5691 = vmatpush1.msra.mxu0 0.0
      %5692 = vmatprep.subr.mxu0 0.0
      %5693 = vmatpush1.msra.mxu0 0.0
      %5694 = vmatprep.subr.mxu0 0.0
      %5695 = vmatpush1.msra.mxu0 0.0
      %5696 = vmatprep.subr.mxu0 0.0
      %5697 = vmatpush1.msra.mxu0 0.0
      %5698 = vmatprep.subr.mxu0 0.0
      %5699 = vmatpush1.msra.mxu0 0.0
      %5700 = vmatprep.subr.mxu0 0.0
      %5701 = vmatpush1.msra.mxu0 0.0
      %5702 = vmatprep.subr.mxu0 0.0
      %5703 = vmatpush1.msra.mxu0 0.0
      %5704 = vmatprep.subr.mxu0 0.0
      %5705 = vmatpush1.msra.mxu0 0.0
      %5706 = vmatprep.subr.mxu0 0.0
      %5707 = vmatpush1.msra.mxu0 0.0
      %5708 = vmatprep.mubr.f32.mxu0 0.0
      %5709 = vmatmul.mubr.f32.gmra.mrb[0].mxu0 %v5571
      %v5710 = vpop.f32.mrb[0].mxu0
      %v5711 = vadd.f32 0.0, %v5710
      %v5712 = vpop.f32.mrb[0].mxu0
      %5713 = vdwg.mxu0
      %v5714 = vadd.f32 %v5554, %v5640
      %v5715 = vadd.f32 %v5555, %v5642
      %v5716 = vadd.f32 %v5556, %v5711
      %v5717 = vld [vmem:[%s9] sm:$0xff]
      %5719 = vset.pattern.permute.xlu0 0
      %5720 = vperm.xlu0 %5719, %v5717
      %v5721 = vpop.permute.xlu0 %5720
      %v5723 = vadd.f32 %v5714, %v5721
      %v5724 = vadd.f32 %v5715, %v5721
      %v5725 = vadd.f32 %v5716, %v5721
      %v5726 = vmul.f32 %v5723, 0.5
      %v5727 = vmul.f32 %v5724, 0.5
      %v5728 = vmul.f32 %v5725, 0.5
      %v5729 = vmul.f32 %v5723, 0.044715
      %v5730 = vmul.f32 %v5724, 0.044715
      %v5731 = vmul.f32 %v5725, 0.044715
      %v5732 = vmul.f32 %v5729, %v5723
      %v5733 = vmul.f32 %v5730, %v5724
      %v5734 = vmul.f32 %v5731, %v5725
      %v5735 = vmul.f32 %v5732, %v5723
      %v5736 = vmul.f32 %v5733, %v5724
      %v5737 = vmul.f32 %v5734, %v5725
      %v5738 = vadd.f32 %v5723, %v5735
      %v5739 = vadd.f32 %v5724, %v5736
      %v5740 = vadd.f32 %v5725, %v5737
      %v5741 = vmul.f32 %v5738, 0.7978846
      %v5742 = vmul.f32 %v5739, 0.7978846
      %v5743 = vmul.f32 %v5740, 0.7978846
      %v5744 = vtanh.pop %v5741
      %v5745 = vtanh.pop %v5742
      %v5746 = vtanh.pop %v5743
      %v5747 = vadd.f32 %v5744, 1.0
      %v5748 = vadd.f32 %v5745, 1.0
      %v5749 = vadd.f32 %v5746, 1.0
      %v5750 = vmul.f32 %v5726, %v5747
      %v5751 = vmul.f32 %v5727, %v5748
      %v5752 = vmul.f32 %v5728, %v5749
      %v5753 = vld [vmem:[%s10] sm:$0x7]
      %vm5754 = vcmp.gt.f32.partialorder %v5753, 0.5
      %v5755 = vsel %vm5754, 1, 0
      %v5756 = vlaneseq
      %v5757 = vshrl.u32 %v5756, 7
      %v5758 = vsub.s32 0, %v5757
      %v5759 = vrot.slane %v5755, %v5758
      %v5760 = vlaneseq
      %v5761 = vshrl.u32 %v5760, 7
      %v5762 = vsub.s32 1, %v5761
      %v5763 = vrot.slane %v5755, %v5762
      %v5764 = vlaneseq
      %v5765 = vshrl.u32 %v5764, 7
      %v5766 = vsub.s32 2, %v5765
      %v5767 = vrot.slane %v5755, %v5766
      %vm5768 = vcmp.eq.s32.totalorder %v5759, 1
      %vm5769 = vcmp.eq.s32.totalorder %v5763, 1
      %vm5770 = vcmp.eq.s32.totalorder %v5767, 1
      %v5771 = vsel %vm5768, %v5750, 0.0
      %v5772 = vsel %vm5769, %v5751, 0.0
      %v5773 = vsel %vm5770, %v5752, 0.0
      %v5774 = vadd.f32 %v5771, %v5772
      %v5775 = vsel %vm4287, %v5773, 0.0
      %v5776 = vadd.f32 %v5774, %v5775
      %5777 = vadd.xlane.f32.xlu0 %v5776
      %v5778 = vpop.xlane.xlu0 %5777
      %v5779 = vrot.slane %v5778, 4
      %v5780 = vadd.f32 %v5778, %v5779
      %v5781 = vrot.slane %v5780, 2
      %v5782 = vadd.f32 %v5780, %v5781
      %v5783 = vrot.slane %v5782, 1
      %v5784 = vadd.f32 %v5782, %v5783
      %s5785 = vtos %v5784
      %s5786 = smul.f32 %s5785, 0.0006377551
      %v5787 = vstv %s5786
      %v5788 = vsub.f32 %v5750, %v5787
      %v5789 = vsub.f32 %v5751, %v5787
      %v5790 = vsub.f32 %v5752, %v5787
      %v5791 = vsel %vm5768, %v5788, 0.0
      %v5792 = vsel %vm5769, %v5789, 0.0
      %v5793 = vsel %vm5770, %v5790, 0.0
      %v5794 = vmul.f32 %v5791, %v5791
      %v5795 = vmul.f32 %v5792, %v5792
      %v5796 = vmul.f32 %v5793, %v5793
      %v5797 = vadd.f32 %v5794, %v5795
      %v5798 = vsel %vm4287, %v5796, 0.0
      %v5799 = vadd.f32 %v5797, %v5798
      %5800 = vadd.xlane.f32.xlu0 %v5799
      %v5801 = vpop.xlane.xlu0 %5800
      %v5802 = vrot.slane %v5801, 4
      %v5803 = vadd.f32 %v5801, %v5802
      %v5804 = vrot.slane %v5803, 2
      %v5805 = vadd.f32 %v5803, %v5804
      %v5806 = vrot.slane %v5805, 1
      %v5807 = vadd.f32 %v5805, %v5806
      %s5808 = vtos %v5807
      %s5809 = smul.f32 %s5808, 0.0006377551
      %s5810 = sadd.f32 %s5809, 1e-05
      %v5811 = vstv %s5810
      %v5812 = vrsqrt.pop %v5811
      %s5813 = vtos %v5812
      %v5814 = vstv %s5813
      %v5815 = vmul.f32 %v5788, %v5814
      %v5816 = vmul.f32 %v5789, %v5814
      %v5817 = vmul.f32 %v5790, %v5814
      %5818 = vst [vmem:[%s406] sm:$0xff] %v5815
      %5819 = vst [vmem:[%s406 + $0x8] sm:$0xff] %v5816
      %5820 = vst.msk [vmem:[%s406 + $0x10] sm:$0xff] %vm4287, %v5817
      %p5821 = scmp.lt.s32.totalorder %s22, 1
      %s5822 = scalar_select %p5821, %s22, 1
      %s5823 = smul.addr %s5822, 3
      %s5824 = smul.addr %s5823, 8
      %s5825 = scalar_lea.vmem %s11, %s5824
      // Predicated region
      $region65: #{up_forward.1} parent=63 // pred_check
        %p5826 = pneg %p281
      $region66: #{up_forward.1} parent=63 // pred_check_branch
        %5828 = sbr.rel (%p5826) target = $region68
      $region67: #{up_forward.1} parent=63 // pred_region
        _
      $region68: #{up_forward.1} parent=63 // pred_fallthru
        _
    $region64: #{up_forward.1} parent=5 // pred_fallthru
      _
    %p5829 = scmp.le.s32.totalorder 2, %s17
    // Predicated region
    $region69: #{up_forward.1} parent=5 // pred_check
      %p5830 = pneg %p5829
    $region70: #{up_forward.1} parent=5 // pred_check_branch
      %5832 = sbr.rel (%p5830) target = $region72
    $region71: #{up_forward.1} parent=5 // pred_region
      %s5833 = ssub.s32 %s17, 2
      // Predicated region
      $region73: #{up_forward.1} parent=71 // pred_check
        %p5834 = pneg %p287
      $region74: #{up_forward.1} parent=71 // pred_check_branch
        %5836 = sbr.rel (%p5834) target = $region76
      $region75: #{up_forward.1} parent=71 // pred_region
        %p5837 = scmp.lt.s32.totalorder %s23, 1
        %s5838 = scalar_select %p5837, %s23, 1
        %s5839 = smul.addr %s5838, 3
        %s5840 = smul.addr %s5839, 8
        %s5841 = scalar_lea.vmem %s11, %s5840
      $region76: #{up_forward.1} parent=71 // pred_fallthru
        _
    $region72: #{up_forward.1} parent=5 // pred_fallthru
      _
  $region6: #{up_forward.1} parent=0 // loop_footer
    %s21 = sadd.s32 1, %s17
  $region7: #{up_forward.1} parent=0 // loop_footer_branch
    %16 = sbr.rel target = $region3
  $region8: #{up_forward.1} parent=0 // loop_exit
    _

</llo_original>
